<compile_context>
chip_gen: v5e
topology: v5e:2x2
jax: 0.10.0
libtpu: 0.0.40
codegen_flags: <defaults>
</compile_context>

<pallas_src>
import functools

import jax
import jax.numpy as jnp
from jax import lax
from jax.experimental import pallas as pl
from jax.experimental.pallas import tpu as pltpu

LANE = 128    # TPU lane width; channels padded to a multiple of this
PADT = 2      # top/bottom halo rows (dilation-2 3x3 needs 2)
PADL = 16     # left/right halo columns (logical halo is 2; 16 keeps bf16
              # (16,128) tiles aligned for the centre store and halo zeroing)
W_ALIGN = 16  # W padded to a multiple of this (bf16 sublane-tile height)


def _round_up(x, m):
    return (x + m - 1) // m * m


def _refinement_kernel(x_ref, w1_ref, b1_ref, w2_ref, sh2_ref, w3_ref, sh3_ref,
                       out_ref, pad_ref, slab_ref, *, H, W, W_pad, Cin):
    """One batch element per grid step.

    x_ref   : (1, H*W_pad, Cin)          bf16  lane-dense input (unpadded channels)
    w1_ref  : (Cin_p, Cout_p)            bf16  1x1 conv weight (zero-padded rows)
    b1_ref  : (1, Cout_p)                f32   1x1 conv bias
    w2_ref  : (9*Cout_p, Cout_p)         bf16  3x3 dil=1 conv (BN folded, im2col)
    sh2_ref : (1, Cout_p)                f32   folded bias+BN shift
    w3_ref  : (9*Cout_p, Cout_p)         bf16  3x3 dil=2 conv (BN folded, im2col)
    sh3_ref : (1, Cout_p)                f32
    out_ref : (1, H*W_pad, Cout_p)       f32   lane-dense output
    pad_ref : (H+2*PADT, W_pad+2*PADL, Cout_p) bf16  persistent padded scratch
    slab_ref: (H*W_pad, 9*Cout_p)        bf16  im2col slab scratch
    """
    HW = H * W_pad
    Hp, Wp, Cp = pad_ref.shape

    # --- zero the halo border of the padded scratch (bf16, aligned stripes) ---
    # The centre is fully overwritten before every conv, so only the border
    # needs zeroing.  Re-done each grid step because the batch axis is
    # "parallel": on a 2-TensorCore part each core owns its own scratch, so a
    # program_id()==0 gate would leave the second core's border uninitialised.
    pad_ref[0:PADT, :, :] = jnp.zeros((PADT, Wp, Cp), pad_ref.dtype)
    pad_ref[PADT + H:Hp, :, :] = jnp.zeros((Hp - PADT - H, Wp, Cp), pad_ref.dtype)
    pad_ref[:, 0:PADL, :] = jnp.zeros((Hp, PADL, Cp), pad_ref.dtype)
    pad_ref[:, PADL + W_pad:Wp, :] = jnp.zeros((Hp, Wp - PADL - W_pad, Cp),
                                               pad_ref.dtype)

    def store_feat(feat_f32):
        # Tile-aligned store of the (bf16) feature map into the scratch centre.
        pad_ref[PADT:PADT + H, PADL:PADL + W_pad, :] = (
            feat_f32.astype(jnp.bfloat16).reshape(H, W_pad, Cp))
        if W_pad > W:  # static: columns outside the real image must stay zero
            pad_ref[PADT:PADT + H, PADL + W:PADL + W_pad, :] = jnp.zeros(
                (H, W_pad - W, Cp), pad_ref.dtype)

    def conv3x3(w_ref, sh_ref, dil):
        # im2col: store the 9 shifted taps directly into the bf16 slab scratch
        # (lane-aligned blocks, no concatenate / f32 intermediates), then one
        # large-K matmul (K = 9*Cp) on the MXU.
        k = 0
        for ki in range(3):
            for kj in range(3):
                oi = (ki - 1) * dil
                oj = (kj - 1) * dil
                tap = pad_ref[PADT + oi:PADT + oi + H,
                              PADL + oj:PADL + oj + W_pad, :]
                slab_ref[:, k * Cp:(k + 1) * Cp] = tap.reshape(HW, Cp)
                k += 1
        t = jnp.dot(slab_ref[...], w_ref[...], preferred_element_type=jnp.float32)
        return jnp.maximum(t + sh_ref[...], 0.0)            # (HW, Cp) f32

    # ---- initial: 1x1 conv + bias + ReLU (no BN) ----------------------------
    x = x_ref[0]                                             # (HW, Cin) bf16
    Cin_p = w1_ref.shape[0]
    if Cin < Cin_p:
        # zero-extend the real channels to the 128-lane width in VMEM only
        x = jnp.concatenate(
            [x, jnp.zeros((HW, Cin_p - Cin), x.dtype)], axis=1)
    init = jnp.dot(x, w1_ref[...], preferred_element_type=jnp.float32)
    init = jnp.maximum(init + b1_ref[...], 0.0)              # (HW, Cp) f32

    out_ref[0] = init          # stash the residual; re-read after the convs
    store_feat(init)           # conv input goes through the bf16 scratch

    # trunk conv #1: 3x3, pad=1, dil=1  (conv bias + BN folded into w2/sh2)
    t = conv3x3(w2_ref, sh2_ref, 1)
    store_feat(t)
    # trunk conv #2: 3x3, pad=2, dil=2  (conv bias + BN folded into w3/sh3)
    t = conv3x3(w3_ref, sh3_ref, 2)

    # ---- residual add (read initial features back from the output buffer) ---
    out_ref[0] = out_ref[0] + t


def refinement_stage_block(x_nchw, params):
    """x_nchw: (N, Cin, H, W) float32.  Returns (N, Cout, H, W) float32."""
    (w1, b1, w2, b2, s2, sh2, w3, b3, s3, sh3) = params
    N, Cin, H, W = x_nchw.shape
    Cout = w1.shape[1]
    Cin_p = _round_up(Cin, LANE)
    Cout_p = _round_up(Cout, LANE)
    W_pad = _round_up(W, W_ALIGN)

    def pad_to(a, shape):
        return jnp.pad(a, [(0, s - d) for d, s in zip(a.shape, shape)])

    # Fold conv bias + eval-mode BN into the weights / one shift (f32, trace time):
    #   (conv(x, w) + b) * s + sh  ==  conv(x, w * s) + (b * s + sh)
    w2f = w2 * s2[0]
    sh2f = b2 * s2 + sh2
    w3f = w3 * s3[0]
    sh3f = b3 * s3 + sh3

    # Channel-pad weights to the 128-lane width; matmul operands bf16, shifts f32.
    w1p = pad_to(w1, (Cin_p, Cout_p)).astype(jnp.bfloat16)
    b1p = pad_to(b1, (1, Cout_p))
    w2p = pad_to(w2f, (3, 3, Cout_p, Cout_p)).reshape(9 * Cout_p, Cout_p).astype(jnp.bfloat16)
    sh2p = pad_to(sh2f, (1, Cout_p))
    w3p = pad_to(w3f, (3, 3, Cout_p, Cout_p)).reshape(9 * Cout_p, Cout_p).astype(jnp.bfloat16)
    sh3p = pad_to(sh3f, (1, Cout_p))

    # NCHW -> lane-dense (N, H*W_pad, Cin) bf16.  W is zero-padded to W_pad so
    # all in-kernel reshapes / stores stay tile-aligned; channels are NOT
    # padded here (done in VMEM inside the kernel) to save input HBM traffic.
    # (In a chained network the transpose would be hoisted outside the chain.)
    x = jnp.transpose(x_nchw, (0, 2, 3, 1)).astype(jnp.float32)
    x = jnp.pad(x, ((0, 0), (0, 0), (0, W_pad - W), (0, 0)))
    x = x.reshape(N, H * W_pad, Cin).astype(jnp.bfloat16)

    grid_spec = pltpu.PrefetchScalarGridSpec(
        num_scalar_prefetch=0,
        grid=(N,),
        in_specs=[
            pl.BlockSpec((1, H * W_pad, Cin), lambda n: (n, 0, 0)),
            pl.BlockSpec((Cin_p, Cout_p), lambda n: (0, 0)),
            pl.BlockSpec((1, Cout_p), lambda n: (0, 0)),
            pl.BlockSpec((9 * Cout_p, Cout_p), lambda n: (0, 0)),
            pl.BlockSpec((1, Cout_p), lambda n: (0, 0)),
            pl.BlockSpec((9 * Cout_p, Cout_p), lambda n: (0, 0)),
            pl.BlockSpec((1, Cout_p), lambda n: (0, 0)),
        ],
        out_specs=pl.BlockSpec((1, H * W_pad, Cout_p), lambda n: (n, 0, 0)),
        scratch_shapes=[
            pltpu.VMEM((H + 2 * PADT, W_pad + 2 * PADL, Cout_p), jnp.bfloat16),
            pltpu.VMEM((H * W_pad, 9 * Cout_p), jnp.bfloat16),
        ],
    )

    # Advisory cost estimate so XLA schedules neighbouring ops around the kernel.
    flops = 2 * N * H * W_pad * Cout_p * (Cin_p + 2 * 9 * Cout_p)
    bytes_accessed = (
        N * H * W_pad * Cin * 2                 # x (bf16)
        + N * H * W_pad * Cout_p * 4            # out (f32)
        + (w1p.size + w2p.size + w3p.size) * 2  # weights (bf16)
        + (b1p.size + sh2p.size + sh3p.size) * 4)
    cost = pl.CostEstimate(flops=flops, transcendentals=0,
                           bytes_accessed=bytes_accessed)

    out = pl.pallas_call(
        functools.partial(_refinement_kernel, H=H, W=W, W_pad=W_pad, Cin=Cin),
        out_shape=jax.ShapeDtypeStruct((N, H * W_pad, Cout_p), jnp.float32),
        grid_spec=grid_spec,
        compiler_params=pltpu.CompilerParams(
            dimension_semantics=("parallel",),   # batch elements are independent
            vmem_limit_bytes=48 * 1024 * 1024,   # fits v7x (64 MiB) with headroom
        ),
        cost_estimate=cost,
    )(x, w1p, b1p, w2p, sh2p, w3p, sh3p)

    out = out.reshape(N, H, W_pad, Cout_p)[:, :, :W, :Cout]
    return jnp.transpose(out, (0, 3, 1, 2))                  # back to NCHW


# ---------------------------------------------------------------------------- #
# Deterministic parameter construction (synthetic, no checkpoint).
# ---------------------------------------------------------------------------- #
def make_params(key, cin, cout):
    ks = jax.random.split(key, 12)
    eps = 1e-5
    scale = 0.2

    w1 = scale * jax.random.normal(ks[0], (cin, cout), jnp.float32)       # 1x1 conv (IO)
    b1 = scale * jax.random.normal(ks[1], (1, cout), jnp.float32)

    w2 = scale * jax.random.normal(ks[2], (3, 3, cout, cout), jnp.float32)  # HWIO
    b2 = scale * jax.random.normal(ks[3], (1, cout), jnp.float32)
    g2 = 1.0 + 0.1 * jax.random.normal(ks[4], (1, cout), jnp.float32)
    be2 = 0.1 * jax.random.normal(ks[5], (1, cout), jnp.float32)
    m2 = 0.1 * jax.random.normal(ks[6], (1, cout), jnp.float32)
    v2 = 1.0 + 0.1 * jax.nn.sigmoid(jax.random.normal(ks[7], (1, cout), jnp.float32))
    s2 = g2 / jnp.sqrt(v2 + eps)
    sh2 = be2 - m2 * s2

    w3 = scale * jax.random.normal(ks[8], (3, 3, cout, cout), jnp.float32)  # HWIO
    b3 = scale * jax.random.normal(ks[9], (1, cout), jnp.float32)
    g3 = 1.0 + 0.1 * jax.random.normal(ks[10], (1, cout), jnp.float32)
    be3 = 0.1 * jax.random.normal(ks[11], (1, cout), jnp.float32)
    m3 = jnp.zeros((1, cout), jnp.float32)
    v3 = jnp.ones((1, cout), jnp.float32)
    s3 = g3 / jnp.sqrt(v3 + eps)
    sh3 = be3 - m3 * s3

    return (w1, b1, w2, b2, s2, sh2, w3, b3, s3, sh3)


# Pure-JAX reference.  matmul_dtype=bfloat16 mirrors the kernel's bf16-input /
# f32-accumulate matmuls (with bias+BN folded the same way); float32 gives the
# exact PyTorch-eval semantics.
def reference_forward(x_nchw, params, matmul_dtype=jnp.float32):
    (w1, b1, w2, b2, s2, sh2, w3, b3, s3, sh3) = params
    x = jnp.transpose(x_nchw, (0, 2, 3, 1)).astype(jnp.float32)

    w2f = w2 * s2[0]
    sh2f = (b2 * s2 + sh2)[0]
    w3f = w3 * s3[0]
    sh3f = (b3 * s3 + sh3)[0]

    init = jnp.einsum('nhwc,cd->nhwd', x.astype(matmul_dtype), w1.astype(matmul_dtype),
                      preferred_element_type=jnp.float32) + b1[0]
    init = jnp.maximum(init, 0.0)

    def dconv(f, w, d):
        return lax.conv_general_dilated(
            f.astype(matmul_dtype), w.astype(matmul_dtype),
            window_strides=(1, 1), padding=[(d, d), (d, d)], rhs_dilation=(d, d),
            dimension_numbers=('NHWC', 'HWIO', 'NHWC'),
            preferred_element_type=jnp.float32)

    t = jnp.maximum(dconv(init, w2f, 1) + sh2f, 0.0)
    t = jnp.maximum(dconv(t, w3f, 2) + sh3f, 0.0)
    return jnp.transpose(init + t, (0, 3, 1, 2))


if __name__ == "__main__":
    key = jax.random.PRNGKey(0)
    kx, kp = jax.random.split(key)

    N, Cin, Cout, H, W = 2, 4, 8, 16, 16
    x = jax.random.normal(kx, (N, Cin, H, W), jnp.float32)
    params = make_params(kp, Cin, Cout)

    out = jax.block_until_ready(refinement_stage_block(x, params))
    assert out.shape == (N, Cout, H, W)

    # Tight check vs a reference that applies the same bf16 rounding to the
    # matmul inputs (differences are only f32 accumulation-order noise).
    ref_bf16 = reference_forward(x, params, matmul_dtype=jnp.bfloat16)
    assert bool(jnp.allclose(out, ref_bf16, rtol=2e-3, atol=2e-3)), \
        "mismatch vs bf16-matched reference"

    # Loose check vs the pure-f32 (PyTorch-eval) reference: bf16 matmul inputs
    # perturb results at the ~1% level.
    ref_f32 = reference_forward(x, params, matmul_dtype=jnp.float32)
    assert bool(jnp.allclose(out, ref_f32, rtol=5e-2, atol=5e-2)), \
        "mismatch vs f32 reference"

    print("KERNEL_OK")
</pallas_src>

<mosaic_0001>
module attributes {stable_mosaic.version = 11 : i64} {
  func.func @_refinement_kernel(%arg0: i32, %arg1: memref<1x256x4xbf16, #tpu.memory_space<vmem>>, %arg2: memref<128x128xbf16, #tpu.memory_space<vmem>>, %arg3: memref<1x128xf32, #tpu.memory_space<vmem>>, %arg4: memref<1152x128xbf16, #tpu.memory_space<vmem>>, %arg5: memref<1x128xf32, #tpu.memory_space<vmem>>, %arg6: memref<1152x128xbf16, #tpu.memory_space<vmem>>, %arg7: memref<1x128xf32, #tpu.memory_space<vmem>>, %arg8: memref<1x256x128xf32, #tpu.memory_space<vmem>>, %arg9: memref<20x48x128xbf16, #tpu.memory_space<vmem>>, %arg10: memref<256x1152xbf16, #tpu.memory_space<vmem>>) attributes {dimension_semantics = [#tpu.dimension_semantics<parallel>], iteration_bounds = array<i64: 2>, scalar_prefetch = 0 : i64, scratch_operands = 2 : i64, tpu.core_type = #tpu.core_type<tc>, window_params = [{transform_indices = @transform_0, window_bounds = array<i64: 1, 256, 4>}, {pipeline_mode = #tpu.pipeline_mode<synchronous>, transform_indices = @transform_1, window_bounds = array<i64: 128, 128>}, {pipeline_mode = #tpu.pipeline_mode<synchronous>, transform_indices = @transform_2, window_bounds = array<i64: 1, 128>}, {pipeline_mode = #tpu.pipeline_mode<synchronous>, transform_indices = @transform_3, window_bounds = array<i64: 1152, 128>}, {pipeline_mode = #tpu.pipeline_mode<synchronous>, transform_indices = @transform_4, window_bounds = array<i64: 1, 128>}, {pipeline_mode = #tpu.pipeline_mode<synchronous>, transform_indices = @transform_5, window_bounds = array<i64: 1152, 128>}, {pipeline_mode = #tpu.pipeline_mode<synchronous>, transform_indices = @transform_6, window_bounds = array<i64: 1, 128>}, {transform_indices = @transform_7, window_bounds = array<i64: 1, 256, 128>}]} {
    %cst = arith.constant 0.000000e+00 : bf16
    %0 = vector.broadcast %cst : bf16 to vector<2x48x128xbf16>
    %c0 = arith.constant 0 : index
    %c0_0 = arith.constant 0 : index
    %c0_1 = arith.constant 0 : index
    %1 = vector.load %arg9[%c0, %c0_0, %c0_1] : memref<20x48x128xbf16, #tpu.memory_space<vmem>>, vector<2x48x128xbf16>
    tpu.vector_store %arg9[%c0, %c0_0, %c0_1], %0 {strides = array<i32>} : memref<20x48x128xbf16, #tpu.memory_space<vmem>>, vector<2x48x128xbf16>,
    %cst_2 = arith.constant 0.000000e+00 : bf16
    %2 = vector.broadcast %cst_2 : bf16 to vector<2x48x128xbf16>
    %c18 = arith.constant 18 : index
    %c0_3 = arith.constant 0 : index
    %c0_4 = arith.constant 0 : index
    %3 = vector.load %arg9[%c18, %c0_3, %c0_4] : memref<20x48x128xbf16, #tpu.memory_space<vmem>>, vector<2x48x128xbf16>
    tpu.vector_store %arg9[%c18, %c0_3, %c0_4], %2 {strides = array<i32>} : memref<20x48x128xbf16, #tpu.memory_space<vmem>>, vector<2x48x128xbf16>,
    %cst_5 = arith.constant 0.000000e+00 : bf16
    %4 = vector.broadcast %cst_5 : bf16 to vector<20x16x128xbf16>
    %c0_6 = arith.constant 0 : index
    %c0_7 = arith.constant 0 : index
    %c0_8 = arith.constant 0 : index
    %5 = vector.load %arg9[%c0_6, %c0_7, %c0_8] : memref<20x48x128xbf16, #tpu.memory_space<vmem>>, vector<20x16x128xbf16>
    tpu.vector_store %arg9[%c0_6, %c0_7, %c0_8], %4 {strides = array<i32>} : memref<20x48x128xbf16, #tpu.memory_space<vmem>>, vector<20x16x128xbf16>,
    %cst_9 = arith.constant 0.000000e+00 : bf16
    %6 = vector.broadcast %cst_9 : bf16 to vector<20x16x128xbf16>
    %c0_10 = arith.constant 0 : index
    %c32 = arith.constant 32 : index
    %c0_11 = arith.constant 0 : index
    %7 = vector.load %arg9[%c0_10, %c32, %c0_11] : memref<20x48x128xbf16, #tpu.memory_space<vmem>>, vector<20x16x128xbf16>
    tpu.vector_store %arg9[%c0_10, %c32, %c0_11], %6 {strides = array<i32>} : memref<20x48x128xbf16, #tpu.memory_space<vmem>>, vector<20x16x128xbf16>,
    %c0_12 = arith.constant 0 : index
    %c0_13 = arith.constant 0 : index
    %c0_14 = arith.constant 0 : index
    %8 = vector.load %arg1[%c0_12, %c0_13, %c0_14] : memref<1x256x4xbf16, #tpu.memory_space<vmem>>, vector<1x256x4xbf16>
    %9 = vector.shape_cast %8 : vector<1x256x4xbf16> to vector<256x4xbf16>
    %cst_15 = arith.constant 0.000000e+00 : bf16
    %10 = vector.broadcast %cst_15 : bf16 to vector<256x124xbf16>
    %11 = tpu.concatenate %9, %10 in 1 : vector<256x4xbf16>, vector<256x124xbf16> -> vector<256x128xbf16>
    %c0_16 = arith.constant 0 : index
    %c0_17 = arith.constant 0 : index
    %12 = vector.load %arg2[%c0_16, %c0_17] : memref<128x128xbf16, #tpu.memory_space<vmem>>, vector<128x128xbf16>
    %cst_18 = arith.constant dense<0.000000e+00> : vector<256x128xf32>
    %13 = tpu.matmul %11, %12, %cst_18 {dimension_numbers = #tpu.dot_dimension_numbers<[1], [0], [0], [1], [0, 0, 1, 1], [], []>} : vector<256x128xbf16>, vector<128x128xbf16>, vector<256x128xf32> -> vector<256x128xf32>
    %c0_19 = arith.constant 0 : index
    %c0_20 = arith.constant 0 : index
    %14 = vector.load %arg3[%c0_19, %c0_20] : memref<1x128xf32, #tpu.memory_space<vmem>>, vector<1x128xf32>
    %15 = vector.broadcast %14 : vector<1x128xf32> to vector<256x128xf32>
    %16 = arith.addf %13, %15 : vector<256x128xf32>
    %cst_21 = arith.constant 0.000000e+00 : f32
    %17 = vector.broadcast %cst_21 : f32 to vector<256x128xf32>
    %18 = arith.maximumf %16, %17 : vector<256x128xf32>
    %c0_22 = arith.constant 0 : index
    %c0_23 = arith.constant 0 : index
    %c0_24 = arith.constant 0 : index
    %19 = vector.load %arg8[%c0_22, %c0_23, %c0_24] : memref<1x256x128xf32, #tpu.memory_space<vmem>>, vector<1x256x128xf32>
    %20 = vector.shape_cast %19 : vector<1x256x128xf32> to vector<256x128xf32>
    %21 = vector.shape_cast %18 : vector<256x128xf32> to vector<1x256x128xf32>
    tpu.vector_store %arg8[%c0_22, %c0_23, %c0_24], %21 {strides = array<i32>} : memref<1x256x128xf32, #tpu.memory_space<vmem>>, vector<1x256x128xf32>,
    %22 = arith.truncf %18 : vector<256x128xf32> to vector<256x128xbf16>
    %23 = vector.shape_cast %22 : vector<256x128xbf16> to vector<16x16x128xbf16>
    %c2 = arith.constant 2 : index
    %c16 = arith.constant 16 : index
    %c0_25 = arith.constant 0 : index
    %24 = vector.load %arg9[%c2, %c16, %c0_25] : memref<20x48x128xbf16, #tpu.memory_space<vmem>>, vector<16x16x128xbf16>
    tpu.vector_store %arg9[%c2, %c16, %c0_25], %23 {strides = array<i32>} : memref<20x48x128xbf16, #tpu.memory_space<vmem>>, vector<16x16x128xbf16>,
    %c1 = arith.constant 1 : index
    %c15 = arith.constant 15 : index
    %c0_26 = arith.constant 0 : index
    %25 = vector.load %arg9[%c1, %c15, %c0_26] : memref<20x48x128xbf16, #tpu.memory_space<vmem>>, vector<16x16x128xbf16>
    %26 = vector.shape_cast %25 : vector<16x16x128xbf16> to vector<256x128xbf16>
    %c0_27 = arith.constant 0 : index
    %c0_28 = arith.constant 0 : index
    %27 = vector.load %arg10[%c0_27, %c0_28] : memref<256x1152xbf16, #tpu.memory_space<vmem>>, vector<256x128xbf16>
    tpu.vector_store %arg10[%c0_27, %c0_28], %26 {strides = array<i32>} : memref<256x1152xbf16, #tpu.memory_space<vmem>>, vector<256x128xbf16>,
    %c1_29 = arith.constant 1 : index
    %c16_30 = arith.constant 16 : index
    %c0_31 = arith.constant 0 : index
    %28 = vector.load %arg9[%c1_29, %c16_30, %c0_31] : memref<20x48x128xbf16, #tpu.memory_space<vmem>>, vector<16x16x128xbf16>
    %29 = vector.shape_cast %28 : vector<16x16x128xbf16> to vector<256x128xbf16>
    %c0_32 = arith.constant 0 : index
    %c128 = arith.constant 128 : index
    %30 = vector.load %arg10[%c0_32, %c128] : memref<256x1152xbf16, #tpu.memory_space<vmem>>, vector<256x128xbf16>
    tpu.vector_store %arg10[%c0_32, %c128], %29 {strides = array<i32>} : memref<256x1152xbf16, #tpu.memory_space<vmem>>, vector<256x128xbf16>,
    %c1_33 = arith.constant 1 : index
    %c17 = arith.constant 17 : index
    %c0_34 = arith.constant 0 : index
    %31 = vector.load %arg9[%c1_33, %c17, %c0_34] : memref<20x48x128xbf16, #tpu.memory_space<vmem>>, vector<16x16x128xbf16>
    %32 = vector.shape_cast %31 : vector<16x16x128xbf16> to vector<256x128xbf16>
    %c0_35 = arith.constant 0 : index
    %c256 = arith.constant 256 : index
    %33 = vector.load %arg10[%c0_35, %c256] : memref<256x1152xbf16, #tpu.memory_space<vmem>>, vector<256x128xbf16>
    tpu.vector_store %arg10[%c0_35, %c256], %32 {strides = array<i32>} : memref<256x1152xbf16, #tpu.memory_space<vmem>>, vector<256x128xbf16>,
    %c2_36 = arith.constant 2 : index
    %c15_37 = arith.constant 15 : index
    %c0_38 = arith.constant 0 : index
    %34 = vector.load %arg9[%c2_36, %c15_37, %c0_38] : memref<20x48x128xbf16, #tpu.memory_space<vmem>>, vector<16x16x128xbf16>
    %35 = vector.shape_cast %34 : vector<16x16x128xbf16> to vector<256x128xbf16>
    %c0_39 = arith.constant 0 : index
    %c384 = arith.constant 384 : index
    %36 = vector.load %arg10[%c0_39, %c384] : memref<256x1152xbf16, #tpu.memory_space<vmem>>, vector<256x128xbf16>
    tpu.vector_store %arg10[%c0_39, %c384], %35 {strides = array<i32>} : memref<256x1152xbf16, #tpu.memory_space<vmem>>, vector<256x128xbf16>,
    %c2_40 = arith.constant 2 : index
    %c16_41 = arith.constant 16 : index
    %c0_42 = arith.constant 0 : index
    %37 = vector.load %arg9[%c2_40, %c16_41, %c0_42] : memref<20x48x128xbf16, #tpu.memory_space<vmem>>, vector<16x16x128xbf16>
    %38 = vector.shape_cast %37 : vector<16x16x128xbf16> to vector<256x128xbf16>
    %c0_43 = arith.constant 0 : index
    %c512 = arith.constant 512 : index
    %39 = vector.load %arg10[%c0_43, %c512] : memref<256x1152xbf16, #tpu.memory_space<vmem>>, vector<256x128xbf16>
    tpu.vector_store %arg10[%c0_43, %c512], %38 {strides = array<i32>} : memref<256x1152xbf16, #tpu.memory_space<vmem>>, vector<256x128xbf16>,
    %c2_44 = arith.constant 2 : index
    %c17_45 = arith.constant 17 : index
    %c0_46 = arith.constant 0 : index
    %40 = vector.load %arg9[%c2_44, %c17_45, %c0_46] : memref<20x48x128xbf16, #tpu.memory_space<vmem>>, vector<16x16x128xbf16>
    %41 = vector.shape_cast %40 : vector<16x16x128xbf16> to vector<256x128xbf16>
    %c0_47 = arith.constant 0 : index
    %c640 = arith.constant 640 : index
    %42 = vector.load %arg10[%c0_47, %c640] : memref<256x1152xbf16, #tpu.memory_space<vmem>>, vector<256x128xbf16>
    tpu.vector_store %arg10[%c0_47, %c640], %41 {strides = array<i32>} : memref<256x1152xbf16, #tpu.memory_space<vmem>>, vector<256x128xbf16>,
    %c3 = arith.constant 3 : index
    %c15_48 = arith.constant 15 : index
    %c0_49 = arith.constant 0 : index
    %43 = vector.load %arg9[%c3, %c15_48, %c0_49] : memref<20x48x128xbf16, #tpu.memory_space<vmem>>, vector<16x16x128xbf16>
    %44 = vector.shape_cast %43 : vector<16x16x128xbf16> to vector<256x128xbf16>
    %c0_50 = arith.constant 0 : index
    %c768 = arith.constant 768 : index
    %45 = vector.load %arg10[%c0_50, %c768] : memref<256x1152xbf16, #tpu.memory_space<vmem>>, vector<256x128xbf16>
    tpu.vector_store %arg10[%c0_50, %c768], %44 {strides = array<i32>} : memref<256x1152xbf16, #tpu.memory_space<vmem>>, vector<256x128xbf16>,
    %c3_51 = arith.constant 3 : index
    %c16_52 = arith.constant 16 : index
    %c0_53 = arith.constant 0 : index
    %46 = vector.load %arg9[%c3_51, %c16_52, %c0_53] : memref<20x48x128xbf16, #tpu.memory_space<vmem>>, vector<16x16x128xbf16>
    %47 = vector.shape_cast %46 : vector<16x16x128xbf16> to vector<256x128xbf16>
    %c0_54 = arith.constant 0 : index
    %c896 = arith.constant 896 : index
    %48 = vector.load %arg10[%c0_54, %c896] : memref<256x1152xbf16, #tpu.memory_space<vmem>>, vector<256x128xbf16>
    tpu.vector_store %arg10[%c0_54, %c896], %47 {strides = array<i32>} : memref<256x1152xbf16, #tpu.memory_space<vmem>>, vector<256x128xbf16>,
    %c3_55 = arith.constant 3 : index
    %c17_56 = arith.constant 17 : index
    %c0_57 = arith.constant 0 : index
    %49 = vector.load %arg9[%c3_55, %c17_56, %c0_57] : memref<20x48x128xbf16, #tpu.memory_space<vmem>>, vector<16x16x128xbf16>
    %50 = vector.shape_cast %49 : vector<16x16x128xbf16> to vector<256x128xbf16>
    %c0_58 = arith.constant 0 : index
    %c1024 = arith.constant 1024 : index
    %51 = vector.load %arg10[%c0_58, %c1024] : memref<256x1152xbf16, #tpu.memory_space<vmem>>, vector<256x128xbf16>
    tpu.vector_store %arg10[%c0_58, %c1024], %50 {strides = array<i32>} : memref<256x1152xbf16, #tpu.memory_space<vmem>>, vector<256x128xbf16>,
    %c0_59 = arith.constant 0 : index
    %c0_60 = arith.constant 0 : index
    %52 = vector.load %arg10[%c0_59, %c0_60] : memref<256x1152xbf16, #tpu.memory_space<vmem>>, vector<256x1152xbf16>
    %c0_61 = arith.constant 0 : index
    %c0_62 = arith.constant 0 : index
    %53 = vector.load %arg4[%c0_61, %c0_62] : memref<1152x128xbf16, #tpu.memory_space<vmem>>, vector<1152x128xbf16>
    %cst_63 = arith.constant dense<0.000000e+00> : vector<256x128xf32>
    %54 = tpu.matmul %52, %53, %cst_63 {dimension_numbers = #tpu.dot_dimension_numbers<[1], [0], [0], [1], [0, 0, 1, 1], [], []>} : vector<256x1152xbf16>, vector<1152x128xbf16>, vector<256x128xf32> -> vector<256x128xf32>
    %c0_64 = arith.constant 0 : index
    %c0_65 = arith.constant 0 : index
    %55 = vector.load %arg5[%c0_64, %c0_65] : memref<1x128xf32, #tpu.memory_space<vmem>>, vector<1x128xf32>
    %56 = vector.broadcast %55 : vector<1x128xf32> to vector<256x128xf32>
    %57 = arith.addf %54, %56 : vector<256x128xf32>
    %cst_66 = arith.constant 0.000000e+00 : f32
    %58 = vector.broadcast %cst_66 : f32 to vector<256x128xf32>
    %59 = arith.maximumf %57, %58 : vector<256x128xf32>
    %60 = arith.truncf %59 : vector<256x128xf32> to vector<256x128xbf16>
    %61 = vector.shape_cast %60 : vector<256x128xbf16> to vector<16x16x128xbf16>
    %c2_67 = arith.constant 2 : index
    %c16_68 = arith.constant 16 : index
    %c0_69 = arith.constant 0 : index
    %62 = vector.load %arg9[%c2_67, %c16_68, %c0_69] : memref<20x48x128xbf16, #tpu.memory_space<vmem>>, vector<16x16x128xbf16>
    tpu.vector_store %arg9[%c2_67, %c16_68, %c0_69], %61 {strides = array<i32>} : memref<20x48x128xbf16, #tpu.memory_space<vmem>>, vector<16x16x128xbf16>,
    %c0_70 = arith.constant 0 : index
    %c14 = arith.constant 14 : index
    %c0_71 = arith.constant 0 : index
    %63 = vector.load %arg9[%c0_70, %c14, %c0_71] : memref<20x48x128xbf16, #tpu.memory_space<vmem>>, vector<16x16x128xbf16>
    %64 = vector.shape_cast %63 : vector<16x16x128xbf16> to vector<256x128xbf16>
    %c0_72 = arith.constant 0 : index
    %c0_73 = arith.constant 0 : index
    %65 = vector.load %arg10[%c0_72, %c0_73] : memref<256x1152xbf16, #tpu.memory_space<vmem>>, vector<256x128xbf16>
    tpu.vector_store %arg10[%c0_72, %c0_73], %64 {strides = array<i32>} : memref<256x1152xbf16, #tpu.memory_space<vmem>>, vector<256x128xbf16>,
    %c0_74 = arith.constant 0 : index
    %c16_75 = arith.constant 16 : index
    %c0_76 = arith.constant 0 : index
    %66 = vector.load %arg9[%c0_74, %c16_75, %c0_76] : memref<20x48x128xbf16, #tpu.memory_space<vmem>>, vector<16x16x128xbf16>
    %67 = vector.shape_cast %66 : vector<16x16x128xbf16> to vector<256x128xbf16>
    %c0_77 = arith.constant 0 : index
    %c128_78 = arith.constant 128 : index
    %68 = vector.load %arg10[%c0_77, %c128_78] : memref<256x1152xbf16, #tpu.memory_space<vmem>>, vector<256x128xbf16>
    tpu.vector_store %arg10[%c0_77, %c128_78], %67 {strides = array<i32>} : memref<256x1152xbf16, #tpu.memory_space<vmem>>, vector<256x128xbf16>,
    %c0_79 = arith.constant 0 : index
    %c18_80 = arith.constant 18 : index
    %c0_81 = arith.constant 0 : index
    %69 = vector.load %arg9[%c0_79, %c18_80, %c0_81] : memref<20x48x128xbf16, #tpu.memory_space<vmem>>, vector<16x16x128xbf16>
    %70 = vector.shape_cast %69 : vector<16x16x128xbf16> to vector<256x128xbf16>
    %c0_82 = arith.constant 0 : index
    %c256_83 = arith.constant 256 : index
    %71 = vector.load %arg10[%c0_82, %c256_83] : memref<256x1152xbf16, #tpu.memory_space<vmem>>, vector<256x128xbf16>
    tpu.vector_store %arg10[%c0_82, %c256_83], %70 {strides = array<i32>} : memref<256x1152xbf16, #tpu.memory_space<vmem>>, vector<256x128xbf16>,
    %c2_84 = arith.constant 2 : index
    %c14_85 = arith.constant 14 : index
    %c0_86 = arith.constant 0 : index
    %72 = vector.load %arg9[%c2_84, %c14_85, %c0_86] : memref<20x48x128xbf16, #tpu.memory_space<vmem>>, vector<16x16x128xbf16>
    %73 = vector.shape_cast %72 : vector<16x16x128xbf16> to vector<256x128xbf16>
    %c0_87 = arith.constant 0 : index
    %c384_88 = arith.constant 384 : index
    %74 = vector.load %arg10[%c0_87, %c384_88] : memref<256x1152xbf16, #tpu.memory_space<vmem>>, vector<256x128xbf16>
    tpu.vector_store %arg10[%c0_87, %c384_88], %73 {strides = array<i32>} : memref<256x1152xbf16, #tpu.memory_space<vmem>>, vector<256x128xbf16>,
    %c2_89 = arith.constant 2 : index
    %c16_90 = arith.constant 16 : index
    %c0_91 = arith.constant 0 : index
    %75 = vector.load %arg9[%c2_89, %c16_90, %c0_91] : memref<20x48x128xbf16, #tpu.memory_space<vmem>>, vector<16x16x128xbf16>
    %76 = vector.shape_cast %75 : vector<16x16x128xbf16> to vector<256x128xbf16>
    %c0_92 = arith.constant 0 : index
    %c512_93 = arith.constant 512 : index
    %77 = vector.load %arg10[%c0_92, %c512_93] : memref<256x1152xbf16, #tpu.memory_space<vmem>>, vector<256x128xbf16>
    tpu.vector_store %arg10[%c0_92, %c512_93], %76 {strides = array<i32>} : memref<256x1152xbf16, #tpu.memory_space<vmem>>, vector<256x128xbf16>,
    %c2_94 = arith.constant 2 : index
    %c18_95 = arith.constant 18 : index
    %c0_96 = arith.constant 0 : index
    %78 = vector.load %arg9[%c2_94, %c18_95, %c0_96] : memref<20x48x128xbf16, #tpu.memory_space<vmem>>, vector<16x16x128xbf16>
    %79 = vector.shape_cast %78 : vector<16x16x128xbf16> to vector<256x128xbf16>
    %c0_97 = arith.constant 0 : index
    %c640_98 = arith.constant 640 : index
    %80 = vector.load %arg10[%c0_97, %c640_98] : memref<256x1152xbf16, #tpu.memory_space<vmem>>, vector<256x128xbf16>
    tpu.vector_store %arg10[%c0_97, %c640_98], %79 {strides = array<i32>} : memref<256x1152xbf16, #tpu.memory_space<vmem>>, vector<256x128xbf16>,
    %c4 = arith.constant 4 : index
    %c14_99 = arith.constant 14 : index
    %c0_100 = arith.constant 0 : index
    %81 = vector.load %arg9[%c4, %c14_99, %c0_100] : memref<20x48x128xbf16, #tpu.memory_space<vmem>>, vector<16x16x128xbf16>
    %82 = vector.shape_cast %81 : vector<16x16x128xbf16> to vector<256x128xbf16>
    %c0_101 = arith.constant 0 : index
    %c768_102 = arith.constant 768 : index
    %83 = vector.load %arg10[%c0_101, %c768_102] : memref<256x1152xbf16, #tpu.memory_space<vmem>>, vector<256x128xbf16>
    tpu.vector_store %arg10[%c0_101, %c768_102], %82 {strides = array<i32>} : memref<256x1152xbf16, #tpu.memory_space<vmem>>, vector<256x128xbf16>,
    %c4_103 = arith.constant 4 : index
    %c16_104 = arith.constant 16 : index
    %c0_105 = arith.constant 0 : index
    %84 = vector.load %arg9[%c4_103, %c16_104, %c0_105] : memref<20x48x128xbf16, #tpu.memory_space<vmem>>, vector<16x16x128xbf16>
    %85 = vector.shape_cast %84 : vector<16x16x128xbf16> to vector<256x128xbf16>
    %c0_106 = arith.constant 0 : index
    %c896_107 = arith.constant 896 : index
    %86 = vector.load %arg10[%c0_106, %c896_107] : memref<256x1152xbf16, #tpu.memory_space<vmem>>, vector<256x128xbf16>
    tpu.vector_store %arg10[%c0_106, %c896_107], %85 {strides = array<i32>} : memref<256x1152xbf16, #tpu.memory_space<vmem>>, vector<256x128xbf16>,
    %c4_108 = arith.constant 4 : index
    %c18_109 = arith.constant 18 : index
    %c0_110 = arith.constant 0 : index
    %87 = vector.load %arg9[%c4_108, %c18_109, %c0_110] : memref<20x48x128xbf16, #tpu.memory_space<vmem>>, vector<16x16x128xbf16>
    %88 = vector.shape_cast %87 : vector<16x16x128xbf16> to vector<256x128xbf16>
    %c0_111 = arith.constant 0 : index
    %c1024_112 = arith.constant 1024 : index
    %89 = vector.load %arg10[%c0_111, %c1024_112] : memref<256x1152xbf16, #tpu.memory_space<vmem>>, vector<256x128xbf16>
    tpu.vector_store %arg10[%c0_111, %c1024_112], %88 {strides = array<i32>} : memref<256x1152xbf16, #tpu.memory_space<vmem>>, vector<256x128xbf16>,
    %c0_113 = arith.constant 0 : index
    %c0_114 = arith.constant 0 : index
    %90 = vector.load %arg10[%c0_113, %c0_114] : memref<256x1152xbf16, #tpu.memory_space<vmem>>, vector<256x1152xbf16>
    %c0_115 = arith.constant 0 : index
    %c0_116 = arith.constant 0 : index
    %91 = vector.load %arg6[%c0_115, %c0_116] : memref<1152x128xbf16, #tpu.memory_space<vmem>>, vector<1152x128xbf16>
    %cst_117 = arith.constant dense<0.000000e+00> : vector<256x128xf32>
    %92 = tpu.matmul %90, %91, %cst_117 {dimension_numbers = #tpu.dot_dimension_numbers<[1], [0], [0], [1], [0, 0, 1, 1], [], []>} : vector<256x1152xbf16>, vector<1152x128xbf16>, vector<256x128xf32> -> vector<256x128xf32>
    %c0_118 = arith.constant 0 : index
    %c0_119 = arith.constant 0 : index
    %93 = vector.load %arg7[%c0_118, %c0_119] : memref<1x128xf32, #tpu.memory_space<vmem>>, vector<1x128xf32>
    %94 = vector.broadcast %93 : vector<1x128xf32> to vector<256x128xf32>
    %95 = arith.addf %92, %94 : vector<256x128xf32>
    %cst_120 = arith.constant 0.000000e+00 : f32
    %96 = vector.broadcast %cst_120 : f32 to vector<256x128xf32>
    %97 = arith.maximumf %95, %96 : vector<256x128xf32>
    %c0_121 = arith.constant 0 : index
    %c0_122 = arith.constant 0 : index
    %c0_123 = arith.constant 0 : index
    %98 = vector.load %arg8[%c0_121, %c0_122, %c0_123] : memref<1x256x128xf32, #tpu.memory_space<vmem>>, vector<1x256x128xf32>
    %99 = vector.shape_cast %98 : vector<1x256x128xf32> to vector<256x128xf32>
    %100 = arith.addf %99, %97 : vector<256x128xf32>
    %c0_124 = arith.constant 0 : index
    %c0_125 = arith.constant 0 : index
    %c0_126 = arith.constant 0 : index
    %101 = vector.load %arg8[%c0_124, %c0_125, %c0_126] : memref<1x256x128xf32, #tpu.memory_space<vmem>>, vector<1x256x128xf32>
    %102 = vector.shape_cast %101 : vector<1x256x128xf32> to vector<256x128xf32>
    %103 = vector.shape_cast %100 : vector<256x128xf32> to vector<1x256x128xf32>
    tpu.vector_store %arg8[%c0_124, %c0_125, %c0_126], %103 {strides = array<i32>} : memref<1x256x128xf32, #tpu.memory_space<vmem>>, vector<1x256x128xf32>,
    return
  }
  func.func @transform_0(%arg0: i32) -> (i32, i32, i32) {
    %c0_i32 = arith.constant 0 : i32
    %c0_i32_0 = arith.constant 0 : i32
    %c0_i32_1 = arith.constant 0 : i32
    return %arg0, %c0_i32, %c0_i32_0 : i32, i32, i32
  }
  func.func @transform_1(%arg0: i32) -> (i32, i32) {
    %c0_i32 = arith.constant 0 : i32
    %c0_i32_0 = arith.constant 0 : i32
    %c0_i32_1 = arith.constant 0 : i32
    return %c0_i32, %c0_i32_0 : i32, i32
  }
  func.func @transform_2(%arg0: i32) -> (i32, i32) {
    %c0_i32 = arith.constant 0 : i32
    %c0_i32_0 = arith.constant 0 : i32
    %c0_i32_1 = arith.constant 0 : i32
    return %c0_i32, %c0_i32_0 : i32, i32
  }
  func.func @transform_3(%arg0: i32) -> (i32, i32) {
    %c0_i32 = arith.constant 0 : i32
    %c0_i32_0 = arith.constant 0 : i32
    %c0_i32_1 = arith.constant 0 : i32
    return %c0_i32, %c0_i32_0 : i32, i32
  }
  func.func @transform_4(%arg0: i32) -> (i32, i32) {
    %c0_i32 = arith.constant 0 : i32
    %c0_i32_0 = arith.constant 0 : i32
    %c0_i32_1 = arith.constant 0 : i32
    return %c0_i32, %c0_i32_0 : i32, i32
  }
  func.func @transform_5(%arg0: i32) -> (i32, i32) {
    %c0_i32 = arith.constant 0 : i32
    %c0_i32_0 = arith.constant 0 : i32
    %c0_i32_1 = arith.constant 0 : i32
    return %c0_i32, %c0_i32_0 : i32, i32
  }
  func.func @transform_6(%arg0: i32) -> (i32, i32) {
    %c0_i32 = arith.constant 0 : i32
    %c0_i32_0 = arith.constant 0 : i32
    %c0_i32_1 = arith.constant 0 : i32
    return %c0_i32, %c0_i32_0 : i32, i32
  }
  func.func @transform_7(%arg0: i32) -> (i32, i32, i32) {
    %c0_i32 = arith.constant 0 : i32
    %c0_i32_0 = arith.constant 0 : i32
    %c0_i32_1 = arith.constant 0 : i32
    return %arg0, %c0_i32, %c0_i32_0 : i32, i32, i32
  }
}

</mosaic_0001>

<llo_original>
// kernel: tpu_custom_call.1
$region0: #{tpu_custom_call.1}
  #allocation0 [shape = 'u32[]', space=smem, size = 0x4, offset = 0x4, fixed_abs, tag = 'smem constant byte address 0x4 - core index']
  #allocation1 [shape = 'u32[72,128]{1,0:T(1,128)}', space=vmem, size = 0x9000, scoped, tag = 'internal scratch']
  #allocation2 [shape = 'bf16[20,48,128]{2,1,0:T(8,128)(2,1)}', space=vmem, size = 0x3c000, scoped, tag = 'scratch operand']
  #allocation3 [shape = 'bf16[256,1152]{1,0:T(8,128)(2,1)}', space=vmem, size = 0x90000, scoped, tag = 'scratch operand']
  %s0 = inlined_call_operand.vmem [shape: bf16[2,256,4], index: 0, kind: input, shape index: {}]
  %s1 = inlined_call_operand.vmem [shape: bf16[128,128], index: 1, kind: input, shape index: {}]
  %s2 = inlined_call_operand.vmem [shape: f32[1,128], index: 2, kind: input, shape index: {}]
  %s3 = inlined_call_operand.hbm [shape: bf16[1152,128], index: 3, kind: input, shape index: {}]
  %s4 = inlined_call_operand.vmem [shape: f32[1,128], index: 4, kind: input, shape index: {}]
  %s5 = inlined_call_operand.hbm [shape: bf16[1152,128], index: 5, kind: input, shape index: {}]
  %s6 = inlined_call_operand.vmem [shape: f32[1,128], index: 6, kind: input, shape index: {}]
  %s7 = inlined_call_operand.hbm [shape: f32[2,256,128], index: 7, kind: output, shape index: {}]
  %s8 = sld [smem:[#allocation0]]
  $region69: #{tpu_custom_call.1} parent=0
    _
  %s10 = ssub.s32 1, %s8
  %s11 = scalar_select 0, %s10, %s8
  $region1: #{tpu_custom_call.1} parent=0
    #allocation4 [shape = 'u8[294912]{0}', space=vmem, size = 0x48000, scoped, tag = 'input window, operand 3, single buffered']
    #allocation5 [shape = 's32[2]{0}', space=sflag, size = 0x8, scoped, tag = 'scoped memory for tpu_custom_call.1']
    #allocation6 [shape = 's32[2]{0}', space=sflag, size = 0x8, scoped, tag = 'scoped memory for tpu_custom_call.1']
    #allocation7 [shape = 'u8[294912]{0}', space=vmem, size = 0x48000, scoped, tag = 'input window, operand 5, single buffered']
    #allocation8 [shape = 's32[1]{0}', space=sflag, size = 0x4, scoped, tag = 'scoped memory for tpu_custom_call.1']
    #allocation9 [shape = 'u8[262144]{0}', space=vmem, size = 0x40000, scoped, tag = 'output window, operand 0']
    %12 = vsyncpa [#allocation5], 0
    %13 = vsyncpa [#allocation8], 0
    %14 = vsyncpa [#allocation6], 0
    %s15 = scalar_lea.sflag [#allocation6], 1
    %16 = vsyncpa %s15, 0
    loop: start=0, step=1, limit=4
    $region2: #{tpu_custom_call.1} parent=1 // loop_pre_header
      _
    $region3: #{tpu_custom_call.1} parent=1 // loop_header
      %s18 = sphi 0, %s22
      %p19 = scmp.ge.s32.totalorder %s18, 4
      %s28 = sphi 0, %s30
      %s31 = sphi 0, %s28
      %s32 = sphi 0, %s31
      %s48 = sphi 0, %s32
      %s52 = sphi 0, %s52
      %s54 = sphi 0, %s52
      %s55 = sphi 0, %s54
      %s69 = sphi 0, %s55
      %s73 = sphi 0, %s73
      %s75 = sphi 0, %s73
      %s76 = sphi 0, %s75
      %s90 = sphi 0, %s76
      %s94 = sphi 0, %s94
      %s96 = sphi 0, %s94
      %s97 = sphi 0, %s96
      %s111 = sphi 0, %s97
      %s115 = sphi 0, %s115
      %s117 = sphi 0, %s115
      %s118 = sphi 0, %s117
      %s132 = sphi 0, %s118
      %s136 = sphi 0, %s136
      %s138 = sphi 0, %s136
      %s139 = sphi 0, %s138
      %s153 = sphi 0, %s139
      %s157 = sphi 0, %s157
      %s159 = sphi 0, %s157
      %s160 = sphi 0, %s159
      %s174 = sphi 0, %s160
      %s180 = sphi 0, %s182
      %s183 = sphi 0, %s180
      %s184 = sphi 0, %s183
      %s200 = sphi 0, %s184
    $region4: #{tpu_custom_call.1} parent=1 // loop_header_branch
      %21 = sbr.rel (%p19) target = $region8
    $region5: #{tpu_custom_call.1} parent=1 // loop_body
      %s23 = ssub.s32 %s18, 1
      %s24 = ssub.s32 %s18, 2
      %s25 = sadd.s32 %s18, 1
      %s26 = ssub.s32 %s18, %s25
      %p27 = scmp.eq.s32.totalorder %s26, 0
      %s29 = sadd.s32 %s28, 1
      %s30 = scalar_select %p27, %s28, %s29
      %p33 = pneg %p27
      %p34 = scmp.eq.s32.totalorder %s18, 1
      %p35 = por %p33, %p34
      %p36 = scmp.ne.s32.totalorder %s28, %s31
      %p37 = scmp.eq.s32.totalorder %s18, 0
      %p38 = por %p36, %p37
      %p39 = scmp.ne.s32.totalorder %s28, %s31
      %p40 = scmp.eq.s32.totalorder %s23, 1
      %p41 = por %p39, %p40
      %p42 = scmp.ne.s32.totalorder %s31, %s32
      %p43 = scmp.eq.s32.totalorder %s23, 0
      %p44 = por %p42, %p43
      %p45 = scmp.ne.s32.totalorder %s31, %s32
      %p46 = scmp.eq.s32.totalorder %s24, 1
      %p47 = por %p45, %p46
      %p49 = scmp.ne.s32.totalorder %s32, %s48
      %p50 = scmp.eq.s32.totalorder %s24, 0
      %p51 = por %p49, %p50
      %s53 = sadd.s32 %s52, 1
      %p56 = scmp.eq.s32.totalorder %s18, 1
      %p57 = scmp.ne.s32.totalorder %s52, %s54
      %p58 = scmp.eq.s32.totalorder %s18, 0
      %p59 = por %p57, %p58
      %p60 = scmp.ne.s32.totalorder %s52, %s54
      %p61 = scmp.eq.s32.totalorder %s23, 1
      %p62 = por %p60, %p61
      %p63 = scmp.ne.s32.totalorder %s54, %s55
      %p64 = scmp.eq.s32.totalorder %s23, 0
      %p65 = por %p63, %p64
      %p66 = scmp.ne.s32.totalorder %s54, %s55
      %p67 = scmp.eq.s32.totalorder %s24, 1
      %p68 = por %p66, %p67
      %p70 = scmp.ne.s32.totalorder %s55, %s69
      %p71 = scmp.eq.s32.totalorder %s24, 0
      %p72 = por %p70, %p71
      %s74 = sadd.s32 %s73, 1
      %p77 = scmp.eq.s32.totalorder %s18, 1
      %p78 = scmp.ne.s32.totalorder %s73, %s75
      %p79 = scmp.eq.s32.totalorder %s18, 0
      %p80 = por %p78, %p79
      %p81 = scmp.ne.s32.totalorder %s73, %s75
      %p82 = scmp.eq.s32.totalorder %s23, 1
      %p83 = por %p81, %p82
      %p84 = scmp.ne.s32.totalorder %s75, %s76
      %p85 = scmp.eq.s32.totalorder %s23, 0
      %p86 = por %p84, %p85
      %p87 = scmp.ne.s32.totalorder %s75, %s76
      %p88 = scmp.eq.s32.totalorder %s24, 1
      %p89 = por %p87, %p88
      %p91 = scmp.ne.s32.totalorder %s76, %s90
      %p92 = scmp.eq.s32.totalorder %s24, 0
      %p93 = por %p91, %p92
      %s95 = sadd.s32 %s94, 1
      %p98 = scmp.eq.s32.totalorder %s18, 1
      %p99 = scmp.ne.s32.totalorder %s94, %s96
      %p100 = scmp.eq.s32.totalorder %s18, 0
      %p101 = por %p99, %p100
      %p102 = scmp.ne.s32.totalorder %s94, %s96
      %p103 = scmp.eq.s32.totalorder %s23, 1
      %p104 = por %p102, %p103
      %p105 = scmp.ne.s32.totalorder %s96, %s97
      %p106 = scmp.eq.s32.totalorder %s23, 0
      %p107 = por %p105, %p106
      %p108 = scmp.ne.s32.totalorder %s96, %s97
      %p109 = scmp.eq.s32.totalorder %s24, 1
      %p110 = por %p108, %p109
      %p112 = scmp.ne.s32.totalorder %s97, %s111
      %p113 = scmp.eq.s32.totalorder %s24, 0
      %p114 = por %p112, %p113
      %s116 = sadd.s32 %s115, 1
      %p119 = scmp.eq.s32.totalorder %s18, 1
      %p120 = scmp.ne.s32.totalorder %s115, %s117
      %p121 = scmp.eq.s32.totalorder %s18, 0
      %p122 = por %p120, %p121
      %p123 = scmp.ne.s32.totalorder %s115, %s117
      %p124 = scmp.eq.s32.totalorder %s23, 1
      %p125 = por %p123, %p124
      %p126 = scmp.ne.s32.totalorder %s117, %s118
      %p127 = scmp.eq.s32.totalorder %s23, 0
      %p128 = por %p126, %p127
      %p129 = scmp.ne.s32.totalorder %s117, %s118
      %p130 = scmp.eq.s32.totalorder %s24, 1
      %p131 = por %p129, %p130
      %p133 = scmp.ne.s32.totalorder %s118, %s132
      %p134 = scmp.eq.s32.totalorder %s24, 0
      %p135 = por %p133, %p134
      %s137 = sadd.s32 %s136, 1
      %p140 = scmp.eq.s32.totalorder %s18, 1
      %p141 = scmp.ne.s32.totalorder %s136, %s138
      %p142 = scmp.eq.s32.totalorder %s18, 0
      %p143 = por %p141, %p142
      %p144 = scmp.ne.s32.totalorder %s136, %s138
      %p145 = scmp.eq.s32.totalorder %s23, 1
      %p146 = por %p144, %p145
      %p147 = scmp.ne.s32.totalorder %s138, %s139
      %p148 = scmp.eq.s32.totalorder %s23, 0
      %p149 = por %p147, %p148
      %p150 = scmp.ne.s32.totalorder %s138, %s139
      %p151 = scmp.eq.s32.totalorder %s24, 1
      %p152 = por %p150, %p151
      %p154 = scmp.ne.s32.totalorder %s139, %s153
      %p155 = scmp.eq.s32.totalorder %s24, 0
      %p156 = por %p154, %p155
      %s158 = sadd.s32 %s157, 1
      %p161 = scmp.eq.s32.totalorder %s18, 1
      %p162 = scmp.ne.s32.totalorder %s157, %s159
      %p163 = scmp.eq.s32.totalorder %s18, 0
      %p164 = por %p162, %p163
      %p165 = scmp.ne.s32.totalorder %s157, %s159
      %p166 = scmp.eq.s32.totalorder %s23, 1
      %p167 = por %p165, %p166
      %p168 = scmp.ne.s32.totalorder %s159, %s160
      %p169 = scmp.eq.s32.totalorder %s23, 0
      %p170 = por %p168, %p169
      %p171 = scmp.ne.s32.totalorder %s159, %s160
      %p172 = scmp.eq.s32.totalorder %s24, 1
      %p173 = por %p171, %p172
      %p175 = scmp.ne.s32.totalorder %s160, %s174
      %p176 = scmp.eq.s32.totalorder %s24, 0
      %p177 = por %p175, %p176
      %s178 = ssub.s32 %s18, %s25
      %p179 = scmp.eq.s32.totalorder %s178, 0
      %s181 = sadd.s32 %s180, 1
      %s182 = scalar_select %p179, %s180, %s181
      %p185 = pneg %p179
      %p186 = scmp.eq.s32.totalorder %s18, 1
      %p187 = por %p185, %p186
      %p188 = scmp.ne.s32.totalorder %s180, %s183
      %p189 = scmp.eq.s32.totalorder %s18, 0
      %p190 = por %p188, %p189
      %p191 = scmp.ne.s32.totalorder %s180, %s183
      %p192 = scmp.eq.s32.totalorder %s23, 1
      %p193 = por %p191, %p192
      %p194 = scmp.ne.s32.totalorder %s183, %s184
      %p195 = scmp.eq.s32.totalorder %s23, 0
      %p196 = por %p194, %p195
      %p197 = scmp.ne.s32.totalorder %s183, %s184
      %p198 = scmp.eq.s32.totalorder %s24, 1
      %p199 = por %p197, %p198
      %p201 = scmp.ne.s32.totalorder %s184, %s200
      %p202 = scmp.eq.s32.totalorder %s24, 0
      %p203 = por %p201, %p202
      %p204 = scmp.le.s32.totalorder 1, %s18
      %p205 = scmp.lt.s32.totalorder %s18, 3
      %p206 = pnand %p204, %p205
      %p207 = pneg %p206
      // Predicated region
      $region9: #{tpu_custom_call.1} parent=5 // pred_check
        _
      $region10: #{tpu_custom_call.1} parent=5 // pred_check_branch
        %209 = sbr.rel (%p206) target = $region12
      $region11: #{tpu_custom_call.1} parent=5 // pred_region
        %s210 = ssub.s32 %s18, 1
        // Predicated region
        $region13: #{tpu_custom_call.1} parent=11 // pred_check
          %p211 = pneg %p65
        $region14: #{tpu_custom_call.1} parent=11 // pred_check_branch
          %213 = sbr.rel (%p211) target = $region16
        $region15: #{tpu_custom_call.1} parent=11 // pred_region
          _
        $region16: #{tpu_custom_call.1} parent=11 // pred_fallthru
          _
        // Predicated region
        $region17: #{tpu_custom_call.1} parent=11 // pred_check
          %p214 = pneg %p86
        $region18: #{tpu_custom_call.1} parent=11 // pred_check_branch
          %216 = sbr.rel (%p214) target = $region20
        $region19: #{tpu_custom_call.1} parent=11 // pred_region
          _
        $region20: #{tpu_custom_call.1} parent=11 // pred_fallthru
          _
        // Predicated region
        $region21: #{tpu_custom_call.1} parent=11 // pred_check
          %p217 = pneg %p107
        $region22: #{tpu_custom_call.1} parent=11 // pred_check_branch
          %219 = sbr.rel (%p217) target = $region24
        $region23: #{tpu_custom_call.1} parent=11 // pred_region
          %221 = vsyncadd [#allocation5], 0
          %s222 = sshll.u32 %s3, 4
          %s223 = int_to_ptr.hbm [resolvable:$true] %s222
          %s224 = sshll.u32 [#allocation4], 4
          %s225 = int_to_ptr.vmem [resolvable:$true] %s224
          %230 = dma.hbm_to_vmem [thread:$0]  %s223, 9216, %s225, [#allocation5], 64, 64, 4
        $region24: #{tpu_custom_call.1} parent=11 // pred_fallthru
          _
        // Predicated region
        $region25: #{tpu_custom_call.1} parent=11 // pred_check
          %p231 = pneg %p128
        $region26: #{tpu_custom_call.1} parent=11 // pred_check_branch
          %233 = sbr.rel (%p231) target = $region28
        $region27: #{tpu_custom_call.1} parent=11 // pred_region
          _
        $region28: #{tpu_custom_call.1} parent=11 // pred_fallthru
          _
        // Predicated region
        $region29: #{tpu_custom_call.1} parent=11 // pred_check
          %p234 = pneg %p149
        $region30: #{tpu_custom_call.1} parent=11 // pred_check_branch
          %236 = sbr.rel (%p234) target = $region32
        $region31: #{tpu_custom_call.1} parent=11 // pred_region
          %238 = vsyncadd [#allocation8], 0
          %s239 = sshll.u32 %s5, 4
          %s240 = int_to_ptr.hbm [resolvable:$true] %s239
          %s241 = sshll.u32 [#allocation7], 4
          %s242 = int_to_ptr.vmem [resolvable:$true] %s241
          %247 = dma.hbm_to_vmem [thread:$0]  %s240, 9216, %s242, [#allocation8], 64, 64, 4
        $region32: #{tpu_custom_call.1} parent=11 // pred_fallthru
          _
        // Predicated region
        $region33: #{tpu_custom_call.1} parent=11 // pred_check
          %p248 = pneg %p170
        $region34: #{tpu_custom_call.1} parent=11 // pred_check_branch
          %250 = sbr.rel (%p248) target = $region36
        $region35: #{tpu_custom_call.1} parent=11 // pred_region
          _
        $region36: #{tpu_custom_call.1} parent=11 // pred_fallthru
          _
      $region12: #{tpu_custom_call.1} parent=5 // pred_fallthru
        _
      %p251 = scmp.lt.s32.totalorder %s18, 2
      // Predicated region
      $region37: #{tpu_custom_call.1} parent=5 // pred_check
        %p252 = pneg %p251
      $region38: #{tpu_custom_call.1} parent=5 // pred_check_branch
        %254 = sbr.rel (%p252) target = $region40
      $region39: #{tpu_custom_call.1} parent=5 // pred_region
        // Predicated region
        $region41: #{tpu_custom_call.1} parent=39 // pred_check
          %p255 = pneg %p38
        $region42: #{tpu_custom_call.1} parent=39 // pred_check_branch
          %257 = sbr.rel (%p255) target = $region44
        $region43: #{tpu_custom_call.1} parent=39 // pred_region
          %p258 = scmp.lt.s32.totalorder %s18, 1
          %s259 = scalar_select %p258, %s18, 1
          %s260 = smul.addr %s259, 32
          %s261 = smul.addr %s260, 4
          %s262 = scalar_lea.vmem %s0, %s261
        $region44: #{tpu_custom_call.1} parent=39 // pred_fallthru
          _
      $region40: #{tpu_custom_call.1} parent=5 // pred_fallthru
        _
      %p263 = scmp.le.s32.totalorder 1, %s18
      %p264 = scmp.lt.s32.totalorder %s18, 3
      %p265 = pnand %p263, %p264
      %p266 = pneg %p265
      // Predicated region
      $region45: #{tpu_custom_call.1} parent=5 // pred_check
        _
      $region46: #{tpu_custom_call.1} parent=5 // pred_check_branch
        %268 = sbr.rel (%p265) target = $region48
      $region47: #{tpu_custom_call.1} parent=5 // pred_region
        %s269 = ssub.s32 %s18, 1
        // Predicated region
        $region49: #{tpu_custom_call.1} parent=47 // pred_check
          %p270 = pneg %p107
        $region50: #{tpu_custom_call.1} parent=47 // pred_check_branch
          %272 = sbr.rel (%p270) target = $region52
        $region51: #{tpu_custom_call.1} parent=47 // pred_region
          %274 = dma.done [#allocation5], 9216
        $region52: #{tpu_custom_call.1} parent=47 // pred_fallthru
          _
        // Predicated region
        $region53: #{tpu_custom_call.1} parent=47 // pred_check
          %p275 = pneg %p149
        $region54: #{tpu_custom_call.1} parent=47 // pred_check_branch
          %277 = sbr.rel (%p275) target = $region56
        $region55: #{tpu_custom_call.1} parent=47 // pred_region
          %279 = dma.done [#allocation8], 9216
        $region56: #{tpu_custom_call.1} parent=47 // pred_fallthru
          _
        %p280 = scmp.lt.s32.totalorder %s23, 1
        %s281 = scalar_select %p280, %s23, 1
        %s282 = smul.addr %s281, 32
        %s283 = smul.addr %s282, 4
        %s284 = scalar_lea.vmem %s0, %s283
        %p285 = pneg %p44
        %p286 = pneg %p41
        %p287 = pneg %p65
        %p288 = pneg %p62
        %p289 = pneg %p86
        %p290 = pneg %p83
        %p291 = pneg %p107
        %p292 = pneg %p104
        %p293 = pneg %p128
        %p294 = pneg %p125
        %p295 = pneg %p149
        %p296 = pneg %p146
        %p297 = pneg %p170
        %p298 = pneg %p167
        %p299 = pneg %p196
        %p300 = pneg %p193
        %s301 = sand.u32 %s183, 1
        %s302 = scalar_lea.sflag [#allocation6], %s301
        %s303 = sand.u32 %s183, 1
        %s304 = smul.addr %s303, 256
        %s305 = scalar_lea.vmem [#allocation9], %s304
        %p306 = scmp.lt.s32.totalorder %s23, 1
        %s307 = scalar_select %p306, %s23, 1
        %s308 = smul.addr %s307, 32
        %s309 = smul.addr %s308, 4
        %s310 = scalar_lea.vmem %s0, %s309
        %312 = vst [vmem:[#allocation2] sm:$0xf] 0
        %313 = vst [vmem:[#allocation2 + $0x4] sm:$0xf] 0
        %314 = vst [vmem:[#allocation2 + $0x8] sm:$0xf] 0
        %315 = vst [vmem:[#allocation2 + $0xc] sm:$0xf] 0
        %316 = vst [vmem:[#allocation2 + $0x10] sm:$0xf] 0
        %317 = vst [vmem:[#allocation2 + $0x14] sm:$0xf] 0
        %318 = vst [vmem:[#allocation2 + $0x18] sm:$0xf] 0
        %319 = vst [vmem:[#allocation2 + $0x1c] sm:$0xf] 0
        %320 = vst [vmem:[#allocation2 + $0x20] sm:$0xf] 0
        %321 = vst [vmem:[#allocation2 + $0x24] sm:$0xf] 0
        %322 = vst [vmem:[#allocation2 + $0x28] sm:$0xf] 0
        %323 = vst [vmem:[#allocation2 + $0x2c] sm:$0xf] 0
        %s324 = scalar_lea.vmem [#allocation2], 432
        %325 = vst [vmem:[%s324] sm:$0xf] 0
        %326 = vst [vmem:[%s324 + $0x4] sm:$0xf] 0
        %327 = vst [vmem:[%s324 + $0x8] sm:$0xf] 0
        %328 = vst [vmem:[%s324 + $0xc] sm:$0xf] 0
        %329 = vst [vmem:[%s324 + $0x10] sm:$0xf] 0
        %330 = vst [vmem:[%s324 + $0x14] sm:$0xf] 0
        %331 = vst [vmem:[%s324 + $0x18] sm:$0xf] 0
        %332 = vst [vmem:[%s324 + $0x1c] sm:$0xf] 0
        %333 = vst [vmem:[%s324 + $0x20] sm:$0xf] 0
        %334 = vst [vmem:[%s324 + $0x24] sm:$0xf] 0
        %335 = vst [vmem:[%s324 + $0x28] sm:$0xf] 0
        %336 = vst [vmem:[%s324 + $0x2c] sm:$0xf] 0
        %337 = vst [vmem:[#allocation2] sm:$0xf] 0
        %338 = vst [vmem:[#allocation2 + $0x4] sm:$0xf] 0
        %339 = vst [vmem:[#allocation2 + $0x18] sm:$0xf] 0
        %340 = vst [vmem:[#allocation2 + $0x1c] sm:$0xf] 0
        %341 = vst [vmem:[#allocation2 + $0x30] sm:$0xf] 0
        %342 = vst [vmem:[#allocation2 + $0x34] sm:$0xf] 0
        %343 = vst [vmem:[#allocation2 + $0x48] sm:$0xf] 0
        %344 = vst [vmem:[#allocation2 + $0x4c] sm:$0xf] 0
        %345 = vst [vmem:[#allocation2 + $0x60] sm:$0xf] 0
        %346 = vst [vmem:[#allocation2 + $0x64] sm:$0xf] 0
        %347 = vst [vmem:[#allocation2 + $0x78] sm:$0xf] 0
        %348 = vst [vmem:[#allocation2 + $0x7c] sm:$0xf] 0
        %349 = vst [vmem:[#allocation2 + $0x90] sm:$0xf] 0
        %350 = vst [vmem:[#allocation2 + $0x94] sm:$0xf] 0
        %351 = vst [vmem:[#allocation2 + $0xa8] sm:$0xf] 0
        %352 = vst [vmem:[#allocation2 + $0xac] sm:$0xf] 0
        %353 = vst [vmem:[#allocation2 + $0xc0] sm:$0xf] 0
        %354 = vst [vmem:[#allocation2 + $0xc4] sm:$0xf] 0
        %355 = vst [vmem:[#allocation2 + $0xd8] sm:$0xf] 0
        %356 = vst [vmem:[#allocation2 + $0xdc] sm:$0xf] 0
        %357 = vst [vmem:[#allocation2 + $0xf0] sm:$0xf] 0
        %358 = vst [vmem:[#allocation2 + $0xf4] sm:$0xf] 0
        %359 = vst [vmem:[#allocation2 + $0x108] sm:$0xf] 0
        %360 = vst [vmem:[#allocation2 + $0x10c] sm:$0xf] 0
        %361 = vst [vmem:[#allocation2 + $0x120] sm:$0xf] 0
        %362 = vst [vmem:[#allocation2 + $0x124] sm:$0xf] 0
        %363 = vst [vmem:[#allocation2 + $0x138] sm:$0xf] 0
        %364 = vst [vmem:[#allocation2 + $0x13c] sm:$0xf] 0
        %365 = vst [vmem:[#allocation2 + $0x150] sm:$0xf] 0
        %366 = vst [vmem:[#allocation2 + $0x154] sm:$0xf] 0
        %367 = vst [vmem:[#allocation2 + $0x168] sm:$0xf] 0
        %368 = vst [vmem:[#allocation2 + $0x16c] sm:$0xf] 0
        %369 = vst [vmem:[#allocation2 + $0x180] sm:$0xf] 0
        %370 = vst [vmem:[#allocation2 + $0x184] sm:$0xf] 0
        %371 = vst [vmem:[#allocation2 + $0x198] sm:$0xf] 0
        %372 = vst [vmem:[#allocation2 + $0x19c] sm:$0xf] 0
        %373 = vst [vmem:[#allocation2 + $0x1b0] sm:$0xf] 0
        %374 = vst [vmem:[#allocation2 + $0x1b4] sm:$0xf] 0
        %375 = vst [vmem:[#allocation2 + $0x1c8] sm:$0xf] 0
        %376 = vst [vmem:[#allocation2 + $0x1cc] sm:$0xf] 0
        %377 = vst [vmem:[#allocation2 + $0x10] sm:$0xf] 0
        %378 = vst [vmem:[#allocation2 + $0x14] sm:$0xf] 0
        %379 = vst [vmem:[#allocation2 + $0x28] sm:$0xf] 0
        %380 = vst [vmem:[#allocation2 + $0x2c] sm:$0xf] 0
        %381 = vst [vmem:[#allocation2 + $0x40] sm:$0xf] 0
        %382 = vst [vmem:[#allocation2 + $0x44] sm:$0xf] 0
        %383 = vst [vmem:[#allocation2 + $0x58] sm:$0xf] 0
        %384 = vst [vmem:[#allocation2 + $0x5c] sm:$0xf] 0
        %385 = vst [vmem:[#allocation2 + $0x70] sm:$0xf] 0
        %386 = vst [vmem:[#allocation2 + $0x74] sm:$0xf] 0
        %387 = vst [vmem:[#allocation2 + $0x88] sm:$0xf] 0
        %388 = vst [vmem:[#allocation2 + $0x8c] sm:$0xf] 0
        %389 = vst [vmem:[#allocation2 + $0xa0] sm:$0xf] 0
        %390 = vst [vmem:[#allocation2 + $0xa4] sm:$0xf] 0
        %391 = vst [vmem:[#allocation2 + $0xb8] sm:$0xf] 0
        %392 = vst [vmem:[#allocation2 + $0xbc] sm:$0xf] 0
        %393 = vst [vmem:[#allocation2 + $0xd0] sm:$0xf] 0
        %394 = vst [vmem:[#allocation2 + $0xd4] sm:$0xf] 0
        %395 = vst [vmem:[#allocation2 + $0xe8] sm:$0xf] 0
        %396 = vst [vmem:[#allocation2 + $0xec] sm:$0xf] 0
        %397 = vst [vmem:[#allocation2 + $0x100] sm:$0xf] 0
        %398 = vst [vmem:[#allocation2 + $0x104] sm:$0xf] 0
        %399 = vst [vmem:[#allocation2 + $0x118] sm:$0xf] 0
        %400 = vst [vmem:[#allocation2 + $0x11c] sm:$0xf] 0
        %401 = vst [vmem:[#allocation2 + $0x130] sm:$0xf] 0
        %402 = vst [vmem:[#allocation2 + $0x134] sm:$0xf] 0
        %403 = vst [vmem:[#allocation2 + $0x148] sm:$0xf] 0
        %404 = vst [vmem:[#allocation2 + $0x14c] sm:$0xf] 0
        %405 = vst [vmem:[#allocation2 + $0x160] sm:$0xf] 0
        %406 = vst [vmem:[#allocation2 + $0x164] sm:$0xf] 0
        %407 = vst [vmem:[#allocation2 + $0x178] sm:$0xf] 0
        %408 = vst [vmem:[#allocation2 + $0x17c] sm:$0xf] 0
        %409 = vst [vmem:[#allocation2 + $0x190] sm:$0xf] 0
        %410 = vst [vmem:[#allocation2 + $0x194] sm:$0xf] 0
        %411 = vst [vmem:[#allocation2 + $0x1a8] sm:$0xf] 0
        %412 = vst [vmem:[#allocation2 + $0x1ac] sm:$0xf] 0
        %413 = vst [vmem:[#allocation2 + $0x1c0] sm:$0xf] 0
        %414 = vst [vmem:[#allocation2 + $0x1c4] sm:$0xf] 0
        %415 = vst [vmem:[#allocation2 + $0x1d8] sm:$0xf] 0
        %416 = vst [vmem:[#allocation2 + $0x1dc] sm:$0xf] 0
        %v417 = vld [vmem:[%s310] sm:$0xf]
        %v418 = vld [vmem:[%s310 + $0x4] sm:$0xf]
        %v419 = vld [vmem:[%s310 + $0x8] sm:$0xf]
        %v420 = vld [vmem:[%s310 + $0xc] sm:$0xf]
        %v421 = vld [vmem:[%s310 + $0x10] sm:$0xf]
        %v422 = vld [vmem:[%s310 + $0x14] sm:$0xf]
        %v423 = vld [vmem:[%s310 + $0x18] sm:$0xf]
        %v424 = vld [vmem:[%s310 + $0x1c] sm:$0xf]
        %v425 = vld [vmem:[%s310 + $0x20] sm:$0xf]
        %v426 = vld [vmem:[%s310 + $0x24] sm:$0xf]
        %v427 = vld [vmem:[%s310 + $0x28] sm:$0xf]
        %v428 = vld [vmem:[%s310 + $0x2c] sm:$0xf]
        %v429 = vld [vmem:[%s310 + $0x30] sm:$0xf]
        %v430 = vld [vmem:[%s310 + $0x34] sm:$0xf]
        %v431 = vld [vmem:[%s310 + $0x38] sm:$0xf]
        %v432 = vld [vmem:[%s310 + $0x3c] sm:$0xf]
        %v433 = vld [vmem:[%s310 + $0x40] sm:$0xf]
        %v434 = vld [vmem:[%s310 + $0x44] sm:$0xf]
        %v435 = vld [vmem:[%s310 + $0x48] sm:$0xf]
        %v436 = vld [vmem:[%s310 + $0x4c] sm:$0xf]
        %v437 = vld [vmem:[%s310 + $0x50] sm:$0xf]
        %v438 = vld [vmem:[%s310 + $0x54] sm:$0xf]
        %v439 = vld [vmem:[%s310 + $0x58] sm:$0xf]
        %v440 = vld [vmem:[%s310 + $0x5c] sm:$0xf]
        %v441 = vld [vmem:[%s310 + $0x60] sm:$0xf]
        %v442 = vld [vmem:[%s310 + $0x64] sm:$0xf]
        %v443 = vld [vmem:[%s310 + $0x68] sm:$0xf]
        %v444 = vld [vmem:[%s310 + $0x6c] sm:$0xf]
        %v445 = vld [vmem:[%s310 + $0x70] sm:$0xf]
        %v446 = vld [vmem:[%s310 + $0x74] sm:$0xf]
        %v447 = vld [vmem:[%s310 + $0x78] sm:$0xf]
        %v448 = vld [vmem:[%s310 + $0x7c] sm:$0xf]
        %v481 = vunpack.c.l.b16 %v417
        %v482 = vunpack.c.l.b16 %v418
        %v483 = vunpack.c.l.b16 %v419
        %v484 = vunpack.c.l.b16 %v420
        %v485 = vunpack.c.l.b16 %v421
        %v486 = vunpack.c.l.b16 %v422
        %v487 = vunpack.c.l.b16 %v423
        %v488 = vunpack.c.l.b16 %v424
        %v489 = vunpack.c.l.b16 %v425
        %v490 = vunpack.c.l.b16 %v426
        %v491 = vunpack.c.l.b16 %v427
        %v492 = vunpack.c.l.b16 %v428
        %v493 = vunpack.c.l.b16 %v429
        %v494 = vunpack.c.l.b16 %v430
        %v495 = vunpack.c.l.b16 %v431
        %v496 = vunpack.c.l.b16 %v432
        %v497 = vunpack.c.l.b16 %v433
        %v498 = vunpack.c.l.b16 %v434
        %v499 = vunpack.c.l.b16 %v435
        %v500 = vunpack.c.l.b16 %v436
        %v501 = vunpack.c.l.b16 %v437
        %v502 = vunpack.c.l.b16 %v438
        %v503 = vunpack.c.l.b16 %v439
        %v504 = vunpack.c.l.b16 %v440
        %v505 = vunpack.c.l.b16 %v441
        %v506 = vunpack.c.l.b16 %v442
        %v507 = vunpack.c.l.b16 %v443
        %v508 = vunpack.c.l.b16 %v444
        %v509 = vunpack.c.l.b16 %v445
        %v510 = vunpack.c.l.b16 %v446
        %v511 = vunpack.c.l.b16 %v447
        %v512 = vunpack.c.l.b16 %v448
        %v513 = vpack.c.b16 %v482, %v481
        %v514 = vpack.c.b16 %v484, %v483
        %v515 = vpack.c.b16 %v486, %v485
        %v516 = vpack.c.b16 %v488, %v487
        %v517 = vpack.c.b16 %v490, %v489
        %v518 = vpack.c.b16 %v492, %v491
        %v519 = vpack.c.b16 %v494, %v493
        %v520 = vpack.c.b16 %v496, %v495
        %v521 = vpack.c.b16 %v498, %v497
        %v522 = vpack.c.b16 %v500, %v499
        %v523 = vpack.c.b16 %v502, %v501
        %v524 = vpack.c.b16 %v504, %v503
        %v525 = vpack.c.b16 %v506, %v505
        %v526 = vpack.c.b16 %v508, %v507
        %v527 = vpack.c.b16 %v510, %v509
        %v528 = vpack.c.b16 %v512, %v511
        %vm529 = vcmask 31744
        %v532 = vsel %vm529, %v513, 0
        %v535 = vsel %vm529, %v514, 0
        %v538 = vsel %vm529, %v515, 0
        %v541 = vsel %vm529, %v516, 0
        %v544 = vsel %vm529, %v517, 0
        %v547 = vsel %vm529, %v518, 0
        %v550 = vsel %vm529, %v519, 0
        %v553 = vsel %vm529, %v520, 0
        %v556 = vsel %vm529, %v521, 0
        %v559 = vsel %vm529, %v522, 0
        %v562 = vsel %vm529, %v523, 0
        %v565 = vsel %vm529, %v524, 0
        %v568 = vsel %vm529, %v525, 0
        %v571 = vsel %vm529, %v526, 0
        %v574 = vsel %vm529, %v527, 0
        %v577 = vsel %vm529, %v528, 0
        %v579 = vld [vmem:[%s1] sm:$0xf]
        %v580 = vld [vmem:[%s1 + $0x4] sm:$0xf]
        %v581 = vld [vmem:[%s1 + $0x8] sm:$0xf]
        %v582 = vld [vmem:[%s1 + $0xc] sm:$0xf]
        %v583 = vld [vmem:[%s1 + $0x10] sm:$0xf]
        %v584 = vld [vmem:[%s1 + $0x14] sm:$0xf]
        %v585 = vld [vmem:[%s1 + $0x18] sm:$0xf]
        %v586 = vld [vmem:[%s1 + $0x1c] sm:$0xf]
        %v587 = vld [vmem:[%s1 + $0x20] sm:$0xf]
        %v588 = vld [vmem:[%s1 + $0x24] sm:$0xf]
        %v589 = vld [vmem:[%s1 + $0x28] sm:$0xf]
        %v590 = vld [vmem:[%s1 + $0x2c] sm:$0xf]
        %v591 = vld [vmem:[%s1 + $0x30] sm:$0xf]
        %v592 = vld [vmem:[%s1 + $0x34] sm:$0xf]
        %v593 = vld [vmem:[%s1 + $0x38] sm:$0xf]
        %v594 = vld [vmem:[%s1 + $0x3c] sm:$0xf]
        %v595 = vld [vmem:[%s2] sm:$0x1]
        %v597 = vperm.slane %v595, 0
        %v615 = vunpack.c.l.b16 %v579
        %v616 = vunpack.c.l.b16 %v580
        %v617 = vunpack.c.l.b16 %v581
        %v618 = vunpack.c.l.b16 %v582
        %v619 = vunpack.c.l.b16 %v583
        %v620 = vunpack.c.l.b16 %v584
        %v621 = vunpack.c.l.b16 %v585
        %v622 = vunpack.c.l.b16 %v586
        %v623 = vunpack.c.l.b16 %v587
        %v624 = vunpack.c.l.b16 %v588
        %v625 = vunpack.c.l.b16 %v589
        %v626 = vunpack.c.l.b16 %v590
        %v627 = vunpack.c.l.b16 %v591
        %v628 = vunpack.c.l.b16 %v592
        %v629 = vunpack.c.l.b16 %v593
        %v630 = vunpack.c.l.b16 %v594
        %v631 = vpack.c.b16 %v616, %v615
        %v632 = vpack.c.b16 %v618, %v617
        %v633 = vpack.c.b16 %v620, %v619
        %v634 = vpack.c.b16 %v622, %v621
        %v635 = vpack.c.b16 %v624, %v623
        %v636 = vpack.c.b16 %v626, %v625
        %v637 = vpack.c.b16 %v628, %v627
        %v638 = vpack.c.b16 %v630, %v629
        %647 = vmatpush.bf16.msra.mxu0 %v638
        %648 = vmatpush.bf16.msra.mxu0 %v637
        %649 = vmatpush.bf16.msra.mxu0 %v636
        %650 = vmatpush.bf16.msra.mxu0 %v635
        %651 = vmatpush.bf16.msra.mxu0 %v634
        %652 = vmatpush.bf16.msra.mxu0 %v633
        %653 = vmatpush.bf16.msra.mxu0 %v632
        %654 = vmatpush.bf16.msra.mxu0 %v631
        %655 = vmatmul.bf16.gmra.mxu0 %v532
        %v656 = vpop.f32.mrf.mxu0
        %v657 = vadd.f32 %v597, %v656
        %v658 = vpop.f32.mrf.mxu0
        %v659 = vadd.f32 %v597, %v658
        %660 = vmatmul.bf16.gmra.mxu0 %v535
        %v661 = vpop.f32.mrf.mxu0
        %v662 = vadd.f32 %v597, %v661
        %v663 = vpop.f32.mrf.mxu0
        %v664 = vadd.f32 %v597, %v663
        %665 = vmatmul.bf16.gmra.mxu0 %v538
        %v666 = vpop.f32.mrf.mxu0
        %v667 = vadd.f32 %v597, %v666
        %v668 = vpop.f32.mrf.mxu0
        %v669 = vadd.f32 %v597, %v668
        %670 = vmatmul.bf16.gmra.mxu0 %v541
        %v671 = vpop.f32.mrf.mxu0
        %v672 = vadd.f32 %v597, %v671
        %v673 = vpop.f32.mrf.mxu0
        %v674 = vadd.f32 %v597, %v673
        %675 = vmatmul.bf16.gmra.mxu0 %v544
        %v676 = vpop.f32.mrf.mxu0
        %v677 = vadd.f32 %v597, %v676
        %v678 = vpop.f32.mrf.mxu0
        %v679 = vadd.f32 %v597, %v678
        %680 = vmatmul.bf16.gmra.mxu0 %v547
        %v681 = vpop.f32.mrf.mxu0
        %v682 = vadd.f32 %v597, %v681
        %v683 = vpop.f32.mrf.mxu0
        %v684 = vadd.f32 %v597, %v683
        %685 = vmatmul.bf16.gmra.mxu0 %v550
        %v686 = vpop.f32.mrf.mxu0
        %v687 = vadd.f32 %v597, %v686
        %v688 = vpop.f32.mrf.mxu0
        %v689 = vadd.f32 %v597, %v688
        %690 = vmatmul.bf16.gmra.mxu0 %v553
        %v691 = vpop.f32.mrf.mxu0
        %v692 = vadd.f32 %v597, %v691
        %v693 = vpop.f32.mrf.mxu0
        %v694 = vadd.f32 %v597, %v693
        %695 = vmatmul.bf16.gmra.mxu0 %v556
        %v696 = vpop.f32.mrf.mxu0
        %v697 = vadd.f32 %v597, %v696
        %v698 = vpop.f32.mrf.mxu0
        %v699 = vadd.f32 %v597, %v698
        %700 = vmatmul.bf16.gmra.mxu0 %v559
        %v701 = vpop.f32.mrf.mxu0
        %v702 = vadd.f32 %v597, %v701
        %v703 = vpop.f32.mrf.mxu0
        %v704 = vadd.f32 %v597, %v703
        %705 = vmatmul.bf16.gmra.mxu0 %v562
        %v706 = vpop.f32.mrf.mxu0
        %v707 = vadd.f32 %v597, %v706
        %v708 = vpop.f32.mrf.mxu0
        %v709 = vadd.f32 %v597, %v708
        %710 = vmatmul.bf16.gmra.mxu0 %v565
        %v711 = vpop.f32.mrf.mxu0
        %v712 = vadd.f32 %v597, %v711
        %v713 = vpop.f32.mrf.mxu0
        %v714 = vadd.f32 %v597, %v713
        %715 = vmatmul.bf16.gmra.mxu0 %v568
        %v716 = vpop.f32.mrf.mxu0
        %v717 = vadd.f32 %v597, %v716
        %v718 = vpop.f32.mrf.mxu0
        %v719 = vadd.f32 %v597, %v718
        %720 = vmatmul.bf16.gmra.mxu0 %v571
        %v721 = vpop.f32.mrf.mxu0
        %v722 = vadd.f32 %v597, %v721
        %v723 = vpop.f32.mrf.mxu0
        %v724 = vadd.f32 %v597, %v723
        %725 = vmatmul.bf16.gmra.mxu0 %v574
        %v726 = vpop.f32.mrf.mxu0
        %v727 = vadd.f32 %v597, %v726
        %v728 = vpop.f32.mrf.mxu0
        %v729 = vadd.f32 %v597, %v728
        %730 = vmatmul.bf16.gmra.mxu0 %v577
        %v731 = vpop.f32.mrf.mxu0
        %v732 = vadd.f32 %v597, %v731
        %v733 = vpop.f32.mrf.mxu0
        %v734 = vadd.f32 %v597, %v733
        %735 = vdwg.mxu0
        %v736 = vmax.f32 %v657, 0.0
        %v737 = vmax.f32 %v659, 0.0
        %v738 = vmax.f32 %v662, 0.0
        %v739 = vmax.f32 %v664, 0.0
        %v740 = vmax.f32 %v667, 0.0
        %v741 = vmax.f32 %v669, 0.0
        %v742 = vmax.f32 %v672, 0.0
        %v743 = vmax.f32 %v674, 0.0
        %v744 = vmax.f32 %v677, 0.0
        %v745 = vmax.f32 %v679, 0.0
        %v746 = vmax.f32 %v682, 0.0
        %v747 = vmax.f32 %v684, 0.0
        %v748 = vmax.f32 %v687, 0.0
        %v749 = vmax.f32 %v689, 0.0
        %v750 = vmax.f32 %v692, 0.0
        %v751 = vmax.f32 %v694, 0.0
        %v752 = vmax.f32 %v697, 0.0
        %v753 = vmax.f32 %v699, 0.0
        %v754 = vmax.f32 %v702, 0.0
        %v755 = vmax.f32 %v704, 0.0
        %v756 = vmax.f32 %v707, 0.0
        %v757 = vmax.f32 %v709, 0.0
        %v758 = vmax.f32 %v712, 0.0
        %v759 = vmax.f32 %v714, 0.0
        %v760 = vmax.f32 %v717, 0.0
        %v761 = vmax.f32 %v719, 0.0
        %v762 = vmax.f32 %v722, 0.0
        %v763 = vmax.f32 %v724, 0.0
        %v764 = vmax.f32 %v727, 0.0
        %v765 = vmax.f32 %v729, 0.0
        %v766 = vmax.f32 %v732, 0.0
        %v767 = vmax.f32 %v734, 0.0
        %768 = vst [vmem:[%s305] sm:$0xff] %v736
        %769 = vst [vmem:[%s305 + $0x8] sm:$0xff] %v737
        %770 = vst [vmem:[%s305 + $0x10] sm:$0xff] %v738
        %771 = vst [vmem:[%s305 + $0x18] sm:$0xff] %v739
        %772 = vst [vmem:[%s305 + $0x20] sm:$0xff] %v740
        %773 = vst [vmem:[%s305 + $0x28] sm:$0xff] %v741
        %774 = vst [vmem:[%s305 + $0x30] sm:$0xff] %v742
        %775 = vst [vmem:[%s305 + $0x38] sm:$0xff] %v743
        %776 = vst [vmem:[%s305 + $0x40] sm:$0xff] %v744
        %777 = vst [vmem:[%s305 + $0x48] sm:$0xff] %v745
        %778 = vst [vmem:[%s305 + $0x50] sm:$0xff] %v746
        %779 = vst [vmem:[%s305 + $0x58] sm:$0xff] %v747
        %780 = vst [vmem:[%s305 + $0x60] sm:$0xff] %v748
        %781 = vst [vmem:[%s305 + $0x68] sm:$0xff] %v749
        %782 = vst [vmem:[%s305 + $0x70] sm:$0xff] %v750
        %783 = vst [vmem:[%s305 + $0x78] sm:$0xff] %v751
        %784 = vst [vmem:[%s305 + $0x80] sm:$0xff] %v752
        %785 = vst [vmem:[%s305 + $0x88] sm:$0xff] %v753
        %786 = vst [vmem:[%s305 + $0x90] sm:$0xff] %v754
        %787 = vst [vmem:[%s305 + $0x98] sm:$0xff] %v755
        %788 = vst [vmem:[%s305 + $0xa0] sm:$0xff] %v756
        %789 = vst [vmem:[%s305 + $0xa8] sm:$0xff] %v757
        %790 = vst [vmem:[%s305 + $0xb0] sm:$0xff] %v758
        %791 = vst [vmem:[%s305 + $0xb8] sm:$0xff] %v759
        %792 = vst [vmem:[%s305 + $0xc0] sm:$0xff] %v760
        %793 = vst [vmem:[%s305 + $0xc8] sm:$0xff] %v761
        %794 = vst [vmem:[%s305 + $0xd0] sm:$0xff] %v762
        %795 = vst [vmem:[%s305 + $0xd8] sm:$0xff] %v763
        %796 = vst [vmem:[%s305 + $0xe0] sm:$0xff] %v764
        %797 = vst [vmem:[%s305 + $0xe8] sm:$0xff] %v765
        %798 = vst [vmem:[%s305 + $0xf0] sm:$0xff] %v766
        %799 = vst [vmem:[%s305 + $0xf8] sm:$0xff] %v767
        %v800 = vpack.c.bf16 %v736, %v736
        %v801 = vpack.c.bf16 %v737, %v737
        %v802 = vpack.c.bf16 %v738, %v738
        %v803 = vpack.c.bf16 %v739, %v739
        %v804 = vpack.c.bf16 %v740, %v740
        %v805 = vpack.c.bf16 %v741, %v741
        %v806 = vpack.c.bf16 %v742, %v742
        %v807 = vpack.c.bf16 %v743, %v743
        %v808 = vpack.c.bf16 %v744, %v744
        %v809 = vpack.c.bf16 %v745, %v745
        %v810 = vpack.c.bf16 %v746, %v746
        %v811 = vpack.c.bf16 %v747, %v747
        %v812 = vpack.c.bf16 %v748, %v748
        %v813 = vpack.c.bf16 %v749, %v749
        %v814 = vpack.c.bf16 %v750, %v750
        %v815 = vpack.c.bf16 %v751, %v751
        %v816 = vpack.c.bf16 %v752, %v752
        %v817 = vpack.c.bf16 %v753, %v753
        %v818 = vpack.c.bf16 %v754, %v754
        %v819 = vpack.c.bf16 %v755, %v755
        %v820 = vpack.c.bf16 %v756, %v756
        %v821 = vpack.c.bf16 %v757, %v757
        %v822 = vpack.c.bf16 %v758, %v758
        %v823 = vpack.c.bf16 %v759, %v759
        %v824 = vpack.c.bf16 %v760, %v760
        %v825 = vpack.c.bf16 %v761, %v761
        %v826 = vpack.c.bf16 %v762, %v762
        %v827 = vpack.c.bf16 %v763, %v763
        %v828 = vpack.c.bf16 %v764, %v764
        %v829 = vpack.c.bf16 %v765, %v765
        %v830 = vpack.c.bf16 %v766, %v766
        %v831 = vpack.c.bf16 %v767, %v767
        %s832 = scalar_lea.vmem [#allocation2], 48
        %833 = vst [vmem:[%s832 + $0x8] sm:$0xf] %v800
        %834 = vst [vmem:[%s832 + $0xc] sm:$0xf] %v801
        %835 = vst [vmem:[%s832 + $0x20] sm:$0xf] %v802
        %836 = vst [vmem:[%s832 + $0x24] sm:$0xf] %v803
        %837 = vst [vmem:[%s832 + $0x38] sm:$0xf] %v804
        %838 = vst [vmem:[%s832 + $0x3c] sm:$0xf] %v805
        %839 = vst [vmem:[%s832 + $0x50] sm:$0xf] %v806
        %840 = vst [vmem:[%s832 + $0x54] sm:$0xf] %v807
        %841 = vst [vmem:[%s832 + $0x68] sm:$0xf] %v808
        %842 = vst [vmem:[%s832 + $0x6c] sm:$0xf] %v809
        %843 = vst [vmem:[%s832 + $0x80] sm:$0xf] %v810
        %844 = vst [vmem:[%s832 + $0x84] sm:$0xf] %v811
        %845 = vst [vmem:[%s832 + $0x98] sm:$0xf] %v812
        %846 = vst [vmem:[%s832 + $0x9c] sm:$0xf] %v813
        %847 = vst [vmem:[%s832 + $0xb0] sm:$0xf] %v814
        %848 = vst [vmem:[%s832 + $0xb4] sm:$0xf] %v815
        %849 = vst [vmem:[%s832 + $0xc8] sm:$0xf] %v816
        %850 = vst [vmem:[%s832 + $0xcc] sm:$0xf] %v817
        %851 = vst [vmem:[%s832 + $0xe0] sm:$0xf] %v818
        %852 = vst [vmem:[%s832 + $0xe4] sm:$0xf] %v819
        %853 = vst [vmem:[%s832 + $0xf8] sm:$0xf] %v820
        %854 = vst [vmem:[%s832 + $0xfc] sm:$0xf] %v821
        %855 = vst [vmem:[%s832 + $0x110] sm:$0xf] %v822
        %856 = vst [vmem:[%s832 + $0x114] sm:$0xf] %v823
        %857 = vst [vmem:[%s832 + $0x128] sm:$0xf] %v824
        %858 = vst [vmem:[%s832 + $0x12c] sm:$0xf] %v825
        %859 = vst [vmem:[%s832 + $0x140] sm:$0xf] %v826
        %860 = vst [vmem:[%s832 + $0x144] sm:$0xf] %v827
        %861 = vst [vmem:[%s832 + $0x158] sm:$0xf] %v828
        %862 = vst [vmem:[%s832 + $0x15c] sm:$0xf] %v829
        %863 = vst [vmem:[%s832 + $0x170] sm:$0xf] %v830
        %864 = vst [vmem:[%s832 + $0x174] sm:$0xf] %v831
        %s865 = scalar_lea.vmem [#allocation2], 24
        %v866 = vld [vmem:[%s865 + $0x4] sm:$0x8]
        %v867 = vld [vmem:[%s865 + $0x8] sm:$0xf]
        %v868 = vld [vmem:[%s865 + $0xc] sm:$0xf]
        %v869 = vld [vmem:[%s865 + $0x1c] sm:$0x8]
        %v870 = vld [vmem:[%s865 + $0x20] sm:$0xf]
        %v871 = vld [vmem:[%s865 + $0x24] sm:$0xf]
        %v872 = vld [vmem:[%s865 + $0x34] sm:$0x8]
        %v873 = vld [vmem:[%s865 + $0x38] sm:$0xf]
        %v874 = vld [vmem:[%s865 + $0x3c] sm:$0xf]
        %v875 = vld [vmem:[%s865 + $0x4c] sm:$0x8]
        %v876 = vld [vmem:[%s865 + $0x50] sm:$0xf]
        %v877 = vld [vmem:[%s865 + $0x54] sm:$0xf]
        %v878 = vld [vmem:[%s865 + $0x64] sm:$0x8]
        %v879 = vld [vmem:[%s865 + $0x68] sm:$0xf]
        %v880 = vld [vmem:[%s865 + $0x6c] sm:$0xf]
        %v881 = vld [vmem:[%s865 + $0x7c] sm:$0x8]
        %v882 = vld [vmem:[%s865 + $0x80] sm:$0xf]
        %v883 = vld [vmem:[%s865 + $0x84] sm:$0xf]
        %v884 = vld [vmem:[%s865 + $0x94] sm:$0x8]
        %v885 = vld [vmem:[%s865 + $0x98] sm:$0xf]
        %v886 = vld [vmem:[%s865 + $0x9c] sm:$0xf]
        %v887 = vld [vmem:[%s865 + $0xac] sm:$0x8]
        %v888 = vld [vmem:[%s865 + $0xb0] sm:$0xf]
        %v889 = vld [vmem:[%s865 + $0xb4] sm:$0xf]
        %v890 = vld [vmem:[%s865 + $0xc4] sm:$0x8]
        %v891 = vld [vmem:[%s865 + $0xc8] sm:$0xf]
        %v892 = vld [vmem:[%s865 + $0xcc] sm:$0xf]
        %v893 = vld [vmem:[%s865 + $0xdc] sm:$0x8]
        %v894 = vld [vmem:[%s865 + $0xe0] sm:$0xf]
        %v895 = vld [vmem:[%s865 + $0xe4] sm:$0xf]
        %v896 = vld [vmem:[%s865 + $0xf4] sm:$0x8]
        %v897 = vld [vmem:[%s865 + $0xf8] sm:$0xf]
        %v898 = vld [vmem:[%s865 + $0xfc] sm:$0xf]
        %v899 = vld [vmem:[%s865 + $0x10c] sm:$0x8]
        %v900 = vld [vmem:[%s865 + $0x110] sm:$0xf]
        %v901 = vld [vmem:[%s865 + $0x114] sm:$0xf]
        %v902 = vld [vmem:[%s865 + $0x124] sm:$0x8]
        %v903 = vld [vmem:[%s865 + $0x128] sm:$0xf]
        %v904 = vld [vmem:[%s865 + $0x12c] sm:$0xf]
        %v905 = vld [vmem:[%s865 + $0x13c] sm:$0x8]
        %v906 = vld [vmem:[%s865 + $0x140] sm:$0xf]
        %v907 = vld [vmem:[%s865 + $0x144] sm:$0xf]
        %v908 = vld [vmem:[%s865 + $0x154] sm:$0x8]
        %v909 = vld [vmem:[%s865 + $0x158] sm:$0xf]
        %v910 = vld [vmem:[%s865 + $0x15c] sm:$0xf]
        %v911 = vld [vmem:[%s865 + $0x16c] sm:$0x8]
        %v912 = vld [vmem:[%s865 + $0x170] sm:$0xf]
        %v913 = vld [vmem:[%s865 + $0x174] sm:$0xf]
        %vm914 = vsmask.f32 256
        %vm915 = vsmask.f32 4368
        %vm916 = vmor %vm914, %vm915
        %v918 = vshrl.u32 %v866, 16
        %v920 = vrot.slane %v918, 7
        %v921 = vrot.slane %v920, 4
        %v923 = vshrl.u32 %v867, 16
        %v925 = vrot.slane %v923, 7
        %v926 = vshll.u32 %v867, 16
        %v928 = vor.u32 %v925, %v926
        %v929 = vsel %vm916, %v921, %v928
        %v930 = vrot.slane %v925, 4
        %v932 = vshrl.u32 %v868, 16
        %v934 = vrot.slane %v932, 7
        %v935 = vshll.u32 %v868, 16
        %v937 = vor.u32 %v934, %v935
        %v938 = vsel %vm916, %v930, %v937
        %v940 = vshrl.u32 %v869, 16
        %v942 = vrot.slane %v940, 7
        %v943 = vrot.slane %v942, 4
        %v945 = vshrl.u32 %v870, 16
        %v947 = vrot.slane %v945, 7
        %v948 = vshll.u32 %v870, 16
        %v950 = vor.u32 %v947, %v948
        %v951 = vsel %vm916, %v943, %v950
        %v952 = vrot.slane %v947, 4
        %v954 = vshrl.u32 %v871, 16
        %v956 = vrot.slane %v954, 7
        %v957 = vshll.u32 %v871, 16
        %v959 = vor.u32 %v956, %v957
        %v960 = vsel %vm916, %v952, %v959
        %v962 = vshrl.u32 %v872, 16
        %v964 = vrot.slane %v962, 7
        %v965 = vrot.slane %v964, 4
        %v967 = vshrl.u32 %v873, 16
        %v969 = vrot.slane %v967, 7
        %v970 = vshll.u32 %v873, 16
        %v972 = vor.u32 %v969, %v970
        %v973 = vsel %vm916, %v965, %v972
        %v974 = vrot.slane %v969, 4
        %v976 = vshrl.u32 %v874, 16
        %v978 = vrot.slane %v976, 7
        %v979 = vshll.u32 %v874, 16
        %v981 = vor.u32 %v978, %v979
        %v982 = vsel %vm916, %v974, %v981
        %v984 = vshrl.u32 %v875, 16
        %v986 = vrot.slane %v984, 7
        %v987 = vrot.slane %v986, 4
        %v989 = vshrl.u32 %v876, 16
        %v991 = vrot.slane %v989, 7
        %v992 = vshll.u32 %v876, 16
        %v994 = vor.u32 %v991, %v992
        %v995 = vsel %vm916, %v987, %v994
        %v996 = vrot.slane %v991, 4
        %v998 = vshrl.u32 %v877, 16
        %v1000 = vrot.slane %v998, 7
        %v1001 = vshll.u32 %v877, 16
        %v1003 = vor.u32 %v1000, %v1001
        %v1004 = vsel %vm916, %v996, %v1003
        %v1006 = vshrl.u32 %v878, 16
        %v1008 = vrot.slane %v1006, 7
        %v1009 = vrot.slane %v1008, 4
        %v1011 = vshrl.u32 %v879, 16
        %v1013 = vrot.slane %v1011, 7
        %v1014 = vshll.u32 %v879, 16
        %v1016 = vor.u32 %v1013, %v1014
        %v1017 = vsel %vm916, %v1009, %v1016
        %v1018 = vrot.slane %v1013, 4
        %v1020 = vshrl.u32 %v880, 16
        %v1022 = vrot.slane %v1020, 7
        %v1023 = vshll.u32 %v880, 16
        %v1025 = vor.u32 %v1022, %v1023
        %v1026 = vsel %vm916, %v1018, %v1025
        %v1028 = vshrl.u32 %v881, 16
        %v1030 = vrot.slane %v1028, 7
        %v1031 = vrot.slane %v1030, 4
        %v1033 = vshrl.u32 %v882, 16
        %v1035 = vrot.slane %v1033, 7
        %v1036 = vshll.u32 %v882, 16
        %v1038 = vor.u32 %v1035, %v1036
        %v1039 = vsel %vm916, %v1031, %v1038
        %v1040 = vrot.slane %v1035, 4
        %v1042 = vshrl.u32 %v883, 16
        %v1044 = vrot.slane %v1042, 7
        %v1045 = vshll.u32 %v883, 16
        %v1047 = vor.u32 %v1044, %v1045
        %v1048 = vsel %vm916, %v1040, %v1047
        %v1050 = vshrl.u32 %v884, 16
        %v1052 = vrot.slane %v1050, 7
        %v1053 = vrot.slane %v1052, 4
        %v1055 = vshrl.u32 %v885, 16
        %v1057 = vrot.slane %v1055, 7
        %v1058 = vshll.u32 %v885, 16
        %v1060 = vor.u32 %v1057, %v1058
        %v1061 = vsel %vm916, %v1053, %v1060
        %v1062 = vrot.slane %v1057, 4
        %v1064 = vshrl.u32 %v886, 16
        %v1066 = vrot.slane %v1064, 7
        %v1067 = vshll.u32 %v886, 16
        %v1069 = vor.u32 %v1066, %v1067
        %v1070 = vsel %vm916, %v1062, %v1069
        %v1072 = vshrl.u32 %v887, 16
        %v1074 = vrot.slane %v1072, 7
        %v1075 = vrot.slane %v1074, 4
        %v1077 = vshrl.u32 %v888, 16
        %v1079 = vrot.slane %v1077, 7
        %v1080 = vshll.u32 %v888, 16
        %v1082 = vor.u32 %v1079, %v1080
        %v1083 = vsel %vm916, %v1075, %v1082
        %v1084 = vrot.slane %v1079, 4
        %v1086 = vshrl.u32 %v889, 16
        %v1088 = vrot.slane %v1086, 7
        %v1089 = vshll.u32 %v889, 16
        %v1091 = vor.u32 %v1088, %v1089
        %v1092 = vsel %vm916, %v1084, %v1091
        %v1094 = vshrl.u32 %v890, 16
        %v1096 = vrot.slane %v1094, 7
        %v1097 = vrot.slane %v1096, 4
        %v1099 = vshrl.u32 %v891, 16
        %v1101 = vrot.slane %v1099, 7
        %v1102 = vshll.u32 %v891, 16
        %v1104 = vor.u32 %v1101, %v1102
        %v1105 = vsel %vm916, %v1097, %v1104
        %v1106 = vrot.slane %v1101, 4
        %v1108 = vshrl.u32 %v892, 16
        %v1110 = vrot.slane %v1108, 7
        %v1111 = vshll.u32 %v892, 16
        %v1113 = vor.u32 %v1110, %v1111
        %v1114 = vsel %vm916, %v1106, %v1113
        %v1116 = vshrl.u32 %v893, 16
        %v1118 = vrot.slane %v1116, 7
        %v1119 = vrot.slane %v1118, 4
        %v1121 = vshrl.u32 %v894, 16
        %v1123 = vrot.slane %v1121, 7
        %v1124 = vshll.u32 %v894, 16
        %v1126 = vor.u32 %v1123, %v1124
        %v1127 = vsel %vm916, %v1119, %v1126
        %v1128 = vrot.slane %v1123, 4
        %v1130 = vshrl.u32 %v895, 16
        %v1132 = vrot.slane %v1130, 7
        %v1133 = vshll.u32 %v895, 16
        %v1135 = vor.u32 %v1132, %v1133
        %v1136 = vsel %vm916, %v1128, %v1135
        %v1138 = vshrl.u32 %v896, 16
        %v1140 = vrot.slane %v1138, 7
        %v1141 = vrot.slane %v1140, 4
        %v1143 = vshrl.u32 %v897, 16
        %v1145 = vrot.slane %v1143, 7
        %v1146 = vshll.u32 %v897, 16
        %v1148 = vor.u32 %v1145, %v1146
        %v1149 = vsel %vm916, %v1141, %v1148
        %v1150 = vrot.slane %v1145, 4
        %v1152 = vshrl.u32 %v898, 16
        %v1154 = vrot.slane %v1152, 7
        %v1155 = vshll.u32 %v898, 16
        %v1157 = vor.u32 %v1154, %v1155
        %v1158 = vsel %vm916, %v1150, %v1157
        %v1160 = vshrl.u32 %v899, 16
        %v1162 = vrot.slane %v1160, 7
        %v1163 = vrot.slane %v1162, 4
        %v1165 = vshrl.u32 %v900, 16
        %v1167 = vrot.slane %v1165, 7
        %v1168 = vshll.u32 %v900, 16
        %v1170 = vor.u32 %v1167, %v1168
        %v1171 = vsel %vm916, %v1163, %v1170
        %v1172 = vrot.slane %v1167, 4
        %v1174 = vshrl.u32 %v901, 16
        %v1176 = vrot.slane %v1174, 7
        %v1177 = vshll.u32 %v901, 16
        %v1179 = vor.u32 %v1176, %v1177
        %v1180 = vsel %vm916, %v1172, %v1179
        %v1182 = vshrl.u32 %v902, 16
        %v1184 = vrot.slane %v1182, 7
        %v1185 = vrot.slane %v1184, 4
        %v1187 = vshrl.u32 %v903, 16
        %v1189 = vrot.slane %v1187, 7
        %v1190 = vshll.u32 %v903, 16
        %v1192 = vor.u32 %v1189, %v1190
        %v1193 = vsel %vm916, %v1185, %v1192
        %v1194 = vrot.slane %v1189, 4
        %v1196 = vshrl.u32 %v904, 16
        %v1198 = vrot.slane %v1196, 7
        %v1199 = vshll.u32 %v904, 16
        %v1201 = vor.u32 %v1198, %v1199
        %v1202 = vsel %vm916, %v1194, %v1201
        %v1204 = vshrl.u32 %v905, 16
        %v1206 = vrot.slane %v1204, 7
        %v1207 = vrot.slane %v1206, 4
        %v1209 = vshrl.u32 %v906, 16
        %v1211 = vrot.slane %v1209, 7
        %v1212 = vshll.u32 %v906, 16
        %v1214 = vor.u32 %v1211, %v1212
        %v1215 = vsel %vm916, %v1207, %v1214
        %v1216 = vrot.slane %v1211, 4
        %v1218 = vshrl.u32 %v907, 16
        %v1220 = vrot.slane %v1218, 7
        %v1221 = vshll.u32 %v907, 16
        %v1223 = vor.u32 %v1220, %v1221
        %v1224 = vsel %vm916, %v1216, %v1223
        %v1226 = vshrl.u32 %v908, 16
        %v1228 = vrot.slane %v1226, 7
        %v1229 = vrot.slane %v1228, 4
        %v1231 = vshrl.u32 %v909, 16
        %v1233 = vrot.slane %v1231, 7
        %v1234 = vshll.u32 %v909, 16
        %v1236 = vor.u32 %v1233, %v1234
        %v1237 = vsel %vm916, %v1229, %v1236
        %v1238 = vrot.slane %v1233, 4
        %v1240 = vshrl.u32 %v910, 16
        %v1242 = vrot.slane %v1240, 7
        %v1243 = vshll.u32 %v910, 16
        %v1245 = vor.u32 %v1242, %v1243
        %v1246 = vsel %vm916, %v1238, %v1245
        %v1248 = vshrl.u32 %v911, 16
        %v1250 = vrot.slane %v1248, 7
        %v1251 = vrot.slane %v1250, 4
        %v1253 = vshrl.u32 %v912, 16
        %v1255 = vrot.slane %v1253, 7
        %v1256 = vshll.u32 %v912, 16
        %v1258 = vor.u32 %v1255, %v1256
        %v1259 = vsel %vm916, %v1251, %v1258
        %v1260 = vrot.slane %v1255, 4
        %v1262 = vshrl.u32 %v913, 16
        %v1264 = vrot.slane %v1262, 7
        %v1265 = vshll.u32 %v913, 16
        %v1267 = vor.u32 %v1264, %v1265
        %v1268 = vsel %vm916, %v1260, %v1267
        %1301 = vst [vmem:[#allocation3] sm:$0xf] %v929
        %1302 = vst [vmem:[#allocation3 + $0x24] sm:$0xf] %v938
        %1303 = vst [vmem:[#allocation3 + $0x48] sm:$0xf] %v951
        %1304 = vst [vmem:[#allocation3 + $0x6c] sm:$0xf] %v960
        %1305 = vst [vmem:[#allocation3 + $0x90] sm:$0xf] %v973
        %1306 = vst [vmem:[#allocation3 + $0xb4] sm:$0xf] %v982
        %1307 = vst [vmem:[#allocation3 + $0xd8] sm:$0xf] %v995
        %1308 = vst [vmem:[#allocation3 + $0xfc] sm:$0xf] %v1004
        %1309 = vst [vmem:[#allocation3 + $0x120] sm:$0xf] %v1017
        %1310 = vst [vmem:[#allocation3 + $0x144] sm:$0xf] %v1026
        %1311 = vst [vmem:[#allocation3 + $0x168] sm:$0xf] %v1039
        %1312 = vst [vmem:[#allocation3 + $0x18c] sm:$0xf] %v1048
        %1313 = vst [vmem:[#allocation3 + $0x1b0] sm:$0xf] %v1061
        %1314 = vst [vmem:[#allocation3 + $0x1d4] sm:$0xf] %v1070
        %1315 = vst [vmem:[#allocation3 + $0x1f8] sm:$0xf] %v1083
        %1316 = vst [vmem:[#allocation3 + $0x21c] sm:$0xf] %v1092
        %1317 = vst [vmem:[#allocation3 + $0x240] sm:$0xf] %v1105
        %1318 = vst [vmem:[#allocation3 + $0x264] sm:$0xf] %v1114
        %1319 = vst [vmem:[#allocation3 + $0x288] sm:$0xf] %v1127
        %1320 = vst [vmem:[#allocation3 + $0x2ac] sm:$0xf] %v1136
        %1321 = vst [vmem:[#allocation3 + $0x2d0] sm:$0xf] %v1149
        %1322 = vst [vmem:[#allocation3 + $0x2f4] sm:$0xf] %v1158
        %1323 = vst [vmem:[#allocation3 + $0x318] sm:$0xf] %v1171
        %1324 = vst [vmem:[#allocation3 + $0x33c] sm:$0xf] %v1180
        %1325 = vst [vmem:[#allocation3 + $0x360] sm:$0xf] %v1193
        %1326 = vst [vmem:[#allocation3 + $0x384] sm:$0xf] %v1202
        %1327 = vst [vmem:[#allocation3 + $0x3a8] sm:$0xf] %v1215
        %1328 = vst [vmem:[#allocation3 + $0x3cc] sm:$0xf] %v1224
        %1329 = vst [vmem:[#allocation3 + $0x3f0] sm:$0xf] %v1237
        %1330 = vst [vmem:[#allocation3 + $0x414] sm:$0xf] %v1246
        %1331 = vst [vmem:[#allocation3 + $0x438] sm:$0xf] %v1259
        %1332 = vst [vmem:[#allocation3 + $0x45c] sm:$0xf] %v1268
        %v1333 = vld [vmem:[%s865 + $0x8] sm:$0xf]
        %v1334 = vld [vmem:[%s865 + $0xc] sm:$0xf]
        %v1335 = vld [vmem:[%s865 + $0x20] sm:$0xf]
        %v1336 = vld [vmem:[%s865 + $0x24] sm:$0xf]
        %v1337 = vld [vmem:[%s865 + $0x38] sm:$0xf]
        %v1338 = vld [vmem:[%s865 + $0x3c] sm:$0xf]
        %v1339 = vld [vmem:[%s865 + $0x50] sm:$0xf]
        %v1340 = vld [vmem:[%s865 + $0x54] sm:$0xf]
        %v1341 = vld [vmem:[%s865 + $0x68] sm:$0xf]
        %v1342 = vld [vmem:[%s865 + $0x6c] sm:$0xf]
        %v1343 = vld [vmem:[%s865 + $0x80] sm:$0xf]
        %v1344 = vld [vmem:[%s865 + $0x84] sm:$0xf]
        %v1345 = vld [vmem:[%s865 + $0x98] sm:$0xf]
        %v1346 = vld [vmem:[%s865 + $0x9c] sm:$0xf]
        %v1347 = vld [vmem:[%s865 + $0xb0] sm:$0xf]
        %v1348 = vld [vmem:[%s865 + $0xb4] sm:$0xf]
        %v1349 = vld [vmem:[%s865 + $0xc8] sm:$0xf]
        %v1350 = vld [vmem:[%s865 + $0xcc] sm:$0xf]
        %v1351 = vld [vmem:[%s865 + $0xe0] sm:$0xf]
        %v1352 = vld [vmem:[%s865 + $0xe4] sm:$0xf]
        %v1353 = vld [vmem:[%s865 + $0xf8] sm:$0xf]
        %v1354 = vld [vmem:[%s865 + $0xfc] sm:$0xf]
        %v1355 = vld [vmem:[%s865 + $0x110] sm:$0xf]
        %v1356 = vld [vmem:[%s865 + $0x114] sm:$0xf]
        %v1357 = vld [vmem:[%s865 + $0x128] sm:$0xf]
        %v1358 = vld [vmem:[%s865 + $0x12c] sm:$0xf]
        %v1359 = vld [vmem:[%s865 + $0x140] sm:$0xf]
        %v1360 = vld [vmem:[%s865 + $0x144] sm:$0xf]
        %v1361 = vld [vmem:[%s865 + $0x158] sm:$0xf]
        %v1362 = vld [vmem:[%s865 + $0x15c] sm:$0xf]
        %v1363 = vld [vmem:[%s865 + $0x170] sm:$0xf]
        %v1364 = vld [vmem:[%s865 + $0x174] sm:$0xf]
        %1365 = vst [vmem:[#allocation3 + $0x4] sm:$0xf] %v1333
        %1366 = vst [vmem:[#allocation3 + $0x28] sm:$0xf] %v1334
        %1367 = vst [vmem:[#allocation3 + $0x4c] sm:$0xf] %v1335
        %1368 = vst [vmem:[#allocation3 + $0x70] sm:$0xf] %v1336
        %1369 = vst [vmem:[#allocation3 + $0x94] sm:$0xf] %v1337
        %1370 = vst [vmem:[#allocation3 + $0xb8] sm:$0xf] %v1338
        %1371 = vst [vmem:[#allocation3 + $0xdc] sm:$0xf] %v1339
        %1372 = vst [vmem:[#allocation3 + $0x100] sm:$0xf] %v1340
        %1373 = vst [vmem:[#allocation3 + $0x124] sm:$0xf] %v1341
        %1374 = vst [vmem:[#allocation3 + $0x148] sm:$0xf] %v1342
        %1375 = vst [vmem:[#allocation3 + $0x16c] sm:$0xf] %v1343
        %1376 = vst [vmem:[#allocation3 + $0x190] sm:$0xf] %v1344
        %1377 = vst [vmem:[#allocation3 + $0x1b4] sm:$0xf] %v1345
        %1378 = vst [vmem:[#allocation3 + $0x1d8] sm:$0xf] %v1346
        %1379 = vst [vmem:[#allocation3 + $0x1fc] sm:$0xf] %v1347
        %1380 = vst [vmem:[#allocation3 + $0x220] sm:$0xf] %v1348
        %1381 = vst [vmem:[#allocation3 + $0x244] sm:$0xf] %v1349
        %1382 = vst [vmem:[#allocation3 + $0x268] sm:$0xf] %v1350
        %1383 = vst [vmem:[#allocation3 + $0x28c] sm:$0xf] %v1351
        %1384 = vst [vmem:[#allocation3 + $0x2b0] sm:$0xf] %v1352
        %1385 = vst [vmem:[#allocation3 + $0x2d4] sm:$0xf] %v1353
        %1386 = vst [vmem:[#allocation3 + $0x2f8] sm:$0xf] %v1354
        %1387 = vst [vmem:[#allocation3 + $0x31c] sm:$0xf] %v1355
        %1388 = vst [vmem:[#allocation3 + $0x340] sm:$0xf] %v1356
        %1389 = vst [vmem:[#allocation3 + $0x364] sm:$0xf] %v1357
        %1390 = vst [vmem:[#allocation3 + $0x388] sm:$0xf] %v1358
        %1391 = vst [vmem:[#allocation3 + $0x3ac] sm:$0xf] %v1359
        %1392 = vst [vmem:[#allocation3 + $0x3d0] sm:$0xf] %v1360
        %1393 = vst [vmem:[#allocation3 + $0x3f4] sm:$0xf] %v1361
        %1394 = vst [vmem:[#allocation3 + $0x418] sm:$0xf] %v1362
        %1395 = vst [vmem:[#allocation3 + $0x43c] sm:$0xf] %v1363
        %1396 = vst [vmem:[#allocation3 + $0x460] sm:$0xf] %v1364
        %v1397 = vld [vmem:[%s865 + $0x8] sm:$0xf]
        %v1398 = vld [vmem:[%s865 + $0xc] sm:$0xf]
        %v1399 = vld [vmem:[%s865 + $0x10] sm:$0x1]
        %v1400 = vld [vmem:[%s865 + $0x20] sm:$0xf]
        %v1401 = vld [vmem:[%s865 + $0x24] sm:$0xf]
        %v1402 = vld [vmem:[%s865 + $0x28] sm:$0x1]
        %v1403 = vld [vmem:[%s865 + $0x38] sm:$0xf]
        %v1404 = vld [vmem:[%s865 + $0x3c] sm:$0xf]
        %v1405 = vld [vmem:[%s865 + $0x40] sm:$0x1]
        %v1406 = vld [vmem:[%s865 + $0x50] sm:$0xf]
        %v1407 = vld [vmem:[%s865 + $0x54] sm:$0xf]
        %v1408 = vld [vmem:[%s865 + $0x58] sm:$0x1]
        %v1409 = vld [vmem:[%s865 + $0x68] sm:$0xf]
        %v1410 = vld [vmem:[%s865 + $0x6c] sm:$0xf]
        %v1411 = vld [vmem:[%s865 + $0x70] sm:$0x1]
        %v1412 = vld [vmem:[%s865 + $0x80] sm:$0xf]
        %v1413 = vld [vmem:[%s865 + $0x84] sm:$0xf]
        %v1414 = vld [vmem:[%s865 + $0x88] sm:$0x1]
        %v1415 = vld [vmem:[%s865 + $0x98] sm:$0xf]
        %v1416 = vld [vmem:[%s865 + $0x9c] sm:$0xf]
        %v1417 = vld [vmem:[%s865 + $0xa0] sm:$0x1]
        %v1418 = vld [vmem:[%s865 + $0xb0] sm:$0xf]
        %v1419 = vld [vmem:[%s865 + $0xb4] sm:$0xf]
        %v1420 = vld [vmem:[%s865 + $0xb8] sm:$0x1]
        %v1421 = vld [vmem:[%s865 + $0xc8] sm:$0xf]
        %v1422 = vld [vmem:[%s865 + $0xcc] sm:$0xf]
        %v1423 = vld [vmem:[%s865 + $0xd0] sm:$0x1]
        %v1424 = vld [vmem:[%s865 + $0xe0] sm:$0xf]
        %v1425 = vld [vmem:[%s865 + $0xe4] sm:$0xf]
        %v1426 = vld [vmem:[%s865 + $0xe8] sm:$0x1]
        %v1427 = vld [vmem:[%s865 + $0xf8] sm:$0xf]
        %v1428 = vld [vmem:[%s865 + $0xfc] sm:$0xf]
        %v1429 = vld [vmem:[%s865 + $0x100] sm:$0x1]
        %v1430 = vld [vmem:[%s865 + $0x110] sm:$0xf]
        %v1431 = vld [vmem:[%s865 + $0x114] sm:$0xf]
        %v1432 = vld [vmem:[%s865 + $0x118] sm:$0x1]
        %v1433 = vld [vmem:[%s865 + $0x128] sm:$0xf]
        %v1434 = vld [vmem:[%s865 + $0x12c] sm:$0xf]
        %v1435 = vld [vmem:[%s865 + $0x130] sm:$0x1]
        %v1436 = vld [vmem:[%s865 + $0x140] sm:$0xf]
        %v1437 = vld [vmem:[%s865 + $0x144] sm:$0xf]
        %v1438 = vld [vmem:[%s865 + $0x148] sm:$0x1]
        %v1439 = vld [vmem:[%s865 + $0x158] sm:$0xf]
        %v1440 = vld [vmem:[%s865 + $0x15c] sm:$0xf]
        %v1441 = vld [vmem:[%s865 + $0x160] sm:$0x1]
        %v1442 = vld [vmem:[%s865 + $0x170] sm:$0xf]
        %v1443 = vld [vmem:[%s865 + $0x174] sm:$0xf]
        %v1444 = vld [vmem:[%s865 + $0x178] sm:$0x1]
        %vm1445 = vsmask.f32 3328
        %vm1446 = vsmask.f32 7440
        %vm1447 = vmor %vm1445, %vm1446
        %v1449 = vshrl.u32 %v1397, 16
        %v1451 = vrot.slane %v1449, 4
        %v1452 = vshll.u32 %v1397, 16
        %v1454 = vrot.slane %v1452, 5
        %v1455 = vor.u32 %v1451, %v1454
        %v1456 = vrot.slane %v1455, 4
        %v1458 = vshll.u32 %v1398, 16
        %v1460 = vrot.slane %v1458, 5
        %v1461 = vsel %vm1447, %v1456, %v1460
        %v1462 = vshrl.u32 %v1398, 16
        %v1464 = vrot.slane %v1462, 4
        %v1465 = vor.u32 %v1464, %v1460
        %v1466 = vrot.slane %v1465, 4
        %v1468 = vshll.u32 %v1399, 16
        %v1470 = vrot.slane %v1468, 5
        %v1471 = vsel %vm1447, %v1466, %v1470
        %v1473 = vshrl.u32 %v1400, 16
        %v1475 = vrot.slane %v1473, 4
        %v1476 = vshll.u32 %v1400, 16
        %v1478 = vrot.slane %v1476, 5
        %v1479 = vor.u32 %v1475, %v1478
        %v1480 = vrot.slane %v1479, 4
        %v1482 = vshll.u32 %v1401, 16
        %v1484 = vrot.slane %v1482, 5
        %v1485 = vsel %vm1447, %v1480, %v1484
        %v1486 = vshrl.u32 %v1401, 16
        %v1488 = vrot.slane %v1486, 4
        %v1489 = vor.u32 %v1488, %v1484
        %v1490 = vrot.slane %v1489, 4
        %v1492 = vshll.u32 %v1402, 16
        %v1494 = vrot.slane %v1492, 5
        %v1495 = vsel %vm1447, %v1490, %v1494
        %v1497 = vshrl.u32 %v1403, 16
        %v1499 = vrot.slane %v1497, 4
        %v1500 = vshll.u32 %v1403, 16
        %v1502 = vrot.slane %v1500, 5
        %v1503 = vor.u32 %v1499, %v1502
        %v1504 = vrot.slane %v1503, 4
        %v1506 = vshll.u32 %v1404, 16
        %v1508 = vrot.slane %v1506, 5
        %v1509 = vsel %vm1447, %v1504, %v1508
        %v1510 = vshrl.u32 %v1404, 16
        %v1512 = vrot.slane %v1510, 4
        %v1513 = vor.u32 %v1512, %v1508
        %v1514 = vrot.slane %v1513, 4
        %v1516 = vshll.u32 %v1405, 16
        %v1518 = vrot.slane %v1516, 5
        %v1519 = vsel %vm1447, %v1514, %v1518
        %v1521 = vshrl.u32 %v1406, 16
        %v1523 = vrot.slane %v1521, 4
        %v1524 = vshll.u32 %v1406, 16
        %v1526 = vrot.slane %v1524, 5
        %v1527 = vor.u32 %v1523, %v1526
        %v1528 = vrot.slane %v1527, 4
        %v1530 = vshll.u32 %v1407, 16
        %v1532 = vrot.slane %v1530, 5
        %v1533 = vsel %vm1447, %v1528, %v1532
        %v1534 = vshrl.u32 %v1407, 16
        %v1536 = vrot.slane %v1534, 4
        %v1537 = vor.u32 %v1536, %v1532
        %v1538 = vrot.slane %v1537, 4
        %v1540 = vshll.u32 %v1408, 16
        %v1542 = vrot.slane %v1540, 5
        %v1543 = vsel %vm1447, %v1538, %v1542
        %v1545 = vshrl.u32 %v1409, 16
        %v1547 = vrot.slane %v1545, 4
        %v1548 = vshll.u32 %v1409, 16
        %v1550 = vrot.slane %v1548, 5
        %v1551 = vor.u32 %v1547, %v1550
        %v1552 = vrot.slane %v1551, 4
        %v1554 = vshll.u32 %v1410, 16
        %v1556 = vrot.slane %v1554, 5
        %v1557 = vsel %vm1447, %v1552, %v1556
        %v1558 = vshrl.u32 %v1410, 16
        %v1560 = vrot.slane %v1558, 4
        %v1561 = vor.u32 %v1560, %v1556
        %v1562 = vrot.slane %v1561, 4
        %v1564 = vshll.u32 %v1411, 16
        %v1566 = vrot.slane %v1564, 5
        %v1567 = vsel %vm1447, %v1562, %v1566
        %v1569 = vshrl.u32 %v1412, 16
        %v1571 = vrot.slane %v1569, 4
        %v1572 = vshll.u32 %v1412, 16
        %v1574 = vrot.slane %v1572, 5
        %v1575 = vor.u32 %v1571, %v1574
        %v1576 = vrot.slane %v1575, 4
        %v1578 = vshll.u32 %v1413, 16
        %v1580 = vrot.slane %v1578, 5
        %v1581 = vsel %vm1447, %v1576, %v1580
        %v1582 = vshrl.u32 %v1413, 16
        %v1584 = vrot.slane %v1582, 4
        %v1585 = vor.u32 %v1584, %v1580
        %v1586 = vrot.slane %v1585, 4
        %v1588 = vshll.u32 %v1414, 16
        %v1590 = vrot.slane %v1588, 5
        %v1591 = vsel %vm1447, %v1586, %v1590
        %v1593 = vshrl.u32 %v1415, 16
        %v1595 = vrot.slane %v1593, 4
        %v1596 = vshll.u32 %v1415, 16
        %v1598 = vrot.slane %v1596, 5
        %v1599 = vor.u32 %v1595, %v1598
        %v1600 = vrot.slane %v1599, 4
        %v1602 = vshll.u32 %v1416, 16
        %v1604 = vrot.slane %v1602, 5
        %v1605 = vsel %vm1447, %v1600, %v1604
        %v1606 = vshrl.u32 %v1416, 16
        %v1608 = vrot.slane %v1606, 4
        %v1609 = vor.u32 %v1608, %v1604
        %v1610 = vrot.slane %v1609, 4
        %v1612 = vshll.u32 %v1417, 16
        %v1614 = vrot.slane %v1612, 5
        %v1615 = vsel %vm1447, %v1610, %v1614
        %v1617 = vshrl.u32 %v1418, 16
        %v1619 = vrot.slane %v1617, 4
        %v1620 = vshll.u32 %v1418, 16
        %v1622 = vrot.slane %v1620, 5
        %v1623 = vor.u32 %v1619, %v1622
        %v1624 = vrot.slane %v1623, 4
        %v1626 = vshll.u32 %v1419, 16
        %v1628 = vrot.slane %v1626, 5
        %v1629 = vsel %vm1447, %v1624, %v1628
        %v1630 = vshrl.u32 %v1419, 16
        %v1632 = vrot.slane %v1630, 4
        %v1633 = vor.u32 %v1632, %v1628
        %v1634 = vrot.slane %v1633, 4
        %v1636 = vshll.u32 %v1420, 16
        %v1638 = vrot.slane %v1636, 5
        %v1639 = vsel %vm1447, %v1634, %v1638
        %v1641 = vshrl.u32 %v1421, 16
        %v1643 = vrot.slane %v1641, 4
        %v1644 = vshll.u32 %v1421, 16
        %v1646 = vrot.slane %v1644, 5
        %v1647 = vor.u32 %v1643, %v1646
        %v1648 = vrot.slane %v1647, 4
        %v1650 = vshll.u32 %v1422, 16
        %v1652 = vrot.slane %v1650, 5
        %v1653 = vsel %vm1447, %v1648, %v1652
        %v1654 = vshrl.u32 %v1422, 16
        %v1656 = vrot.slane %v1654, 4
        %v1657 = vor.u32 %v1656, %v1652
        %v1658 = vrot.slane %v1657, 4
        %v1660 = vshll.u32 %v1423, 16
        %v1662 = vrot.slane %v1660, 5
        %v1663 = vsel %vm1447, %v1658, %v1662
        %v1665 = vshrl.u32 %v1424, 16
        %v1667 = vrot.slane %v1665, 4
        %v1668 = vshll.u32 %v1424, 16
        %v1670 = vrot.slane %v1668, 5
        %v1671 = vor.u32 %v1667, %v1670
        %v1672 = vrot.slane %v1671, 4
        %v1674 = vshll.u32 %v1425, 16
        %v1676 = vrot.slane %v1674, 5
        %v1677 = vsel %vm1447, %v1672, %v1676
        %v1678 = vshrl.u32 %v1425, 16
        %v1680 = vrot.slane %v1678, 4
        %v1681 = vor.u32 %v1680, %v1676
        %v1682 = vrot.slane %v1681, 4
        %v1684 = vshll.u32 %v1426, 16
        %v1686 = vrot.slane %v1684, 5
        %v1687 = vsel %vm1447, %v1682, %v1686
        %v1689 = vshrl.u32 %v1427, 16
        %v1691 = vrot.slane %v1689, 4
        %v1692 = vshll.u32 %v1427, 16
        %v1694 = vrot.slane %v1692, 5
        %v1695 = vor.u32 %v1691, %v1694
        %v1696 = vrot.slane %v1695, 4
        %v1698 = vshll.u32 %v1428, 16
        %v1700 = vrot.slane %v1698, 5
        %v1701 = vsel %vm1447, %v1696, %v1700
        %v1702 = vshrl.u32 %v1428, 16
        %v1704 = vrot.slane %v1702, 4
        %v1705 = vor.u32 %v1704, %v1700
        %v1706 = vrot.slane %v1705, 4
        %v1708 = vshll.u32 %v1429, 16
        %v1710 = vrot.slane %v1708, 5
        %v1711 = vsel %vm1447, %v1706, %v1710
        %v1713 = vshrl.u32 %v1430, 16
        %v1715 = vrot.slane %v1713, 4
        %v1716 = vshll.u32 %v1430, 16
        %v1718 = vrot.slane %v1716, 5
        %v1719 = vor.u32 %v1715, %v1718
        %v1720 = vrot.slane %v1719, 4
        %v1722 = vshll.u32 %v1431, 16
        %v1724 = vrot.slane %v1722, 5
        %v1725 = vsel %vm1447, %v1720, %v1724
        %v1726 = vshrl.u32 %v1431, 16
        %v1728 = vrot.slane %v1726, 4
        %v1729 = vor.u32 %v1728, %v1724
        %v1730 = vrot.slane %v1729, 4
        %v1732 = vshll.u32 %v1432, 16
        %v1734 = vrot.slane %v1732, 5
        %v1735 = vsel %vm1447, %v1730, %v1734
        %v1737 = vshrl.u32 %v1433, 16
        %v1739 = vrot.slane %v1737, 4
        %v1740 = vshll.u32 %v1433, 16
        %v1742 = vrot.slane %v1740, 5
        %v1743 = vor.u32 %v1739, %v1742
        %v1744 = vrot.slane %v1743, 4
        %v1746 = vshll.u32 %v1434, 16
        %v1748 = vrot.slane %v1746, 5
        %v1749 = vsel %vm1447, %v1744, %v1748
        %v1750 = vshrl.u32 %v1434, 16
        %v1752 = vrot.slane %v1750, 4
        %v1753 = vor.u32 %v1752, %v1748
        %v1754 = vrot.slane %v1753, 4
        %v1756 = vshll.u32 %v1435, 16
        %v1758 = vrot.slane %v1756, 5
        %v1759 = vsel %vm1447, %v1754, %v1758
        %v1761 = vshrl.u32 %v1436, 16
        %v1763 = vrot.slane %v1761, 4
        %v1764 = vshll.u32 %v1436, 16
        %v1766 = vrot.slane %v1764, 5
        %v1767 = vor.u32 %v1763, %v1766
        %v1768 = vrot.slane %v1767, 4
        %v1770 = vshll.u32 %v1437, 16
        %v1772 = vrot.slane %v1770, 5
        %v1773 = vsel %vm1447, %v1768, %v1772
        %v1774 = vshrl.u32 %v1437, 16
        %v1776 = vrot.slane %v1774, 4
        %v1777 = vor.u32 %v1776, %v1772
        %v1778 = vrot.slane %v1777, 4
        %v1780 = vshll.u32 %v1438, 16
        %v1782 = vrot.slane %v1780, 5
        %v1783 = vsel %vm1447, %v1778, %v1782
        %v1785 = vshrl.u32 %v1439, 16
        %v1787 = vrot.slane %v1785, 4
        %v1788 = vshll.u32 %v1439, 16
        %v1790 = vrot.slane %v1788, 5
        %v1791 = vor.u32 %v1787, %v1790
        %v1792 = vrot.slane %v1791, 4
        %v1794 = vshll.u32 %v1440, 16
        %v1796 = vrot.slane %v1794, 5
        %v1797 = vsel %vm1447, %v1792, %v1796
        %v1798 = vshrl.u32 %v1440, 16
        %v1800 = vrot.slane %v1798, 4
        %v1801 = vor.u32 %v1800, %v1796
        %v1802 = vrot.slane %v1801, 4
        %v1804 = vshll.u32 %v1441, 16
        %v1806 = vrot.slane %v1804, 5
        %v1807 = vsel %vm1447, %v1802, %v1806
        %v1809 = vshrl.u32 %v1442, 16
        %v1811 = vrot.slane %v1809, 4
        %v1812 = vshll.u32 %v1442, 16
        %v1814 = vrot.slane %v1812, 5
        %v1815 = vor.u32 %v1811, %v1814
        %v1816 = vrot.slane %v1815, 4
        %v1818 = vshll.u32 %v1443, 16
        %v1820 = vrot.slane %v1818, 5
        %v1821 = vsel %vm1447, %v1816, %v1820
        %v1822 = vshrl.u32 %v1443, 16
        %v1824 = vrot.slane %v1822, 4
        %v1825 = vor.u32 %v1824, %v1820
        %v1826 = vrot.slane %v1825, 4
        %v1828 = vshll.u32 %v1444, 16
        %v1830 = vrot.slane %v1828, 5
        %v1831 = vsel %vm1447, %v1826, %v1830
        %1864 = vst [vmem:[#allocation3 + $0x8] sm:$0xf] %v1461
        %1865 = vst [vmem:[#allocation3 + $0x2c] sm:$0xf] %v1471
        %1866 = vst [vmem:[#allocation3 + $0x50] sm:$0xf] %v1485
        %1867 = vst [vmem:[#allocation3 + $0x74] sm:$0xf] %v1495
        %1868 = vst [vmem:[#allocation3 + $0x98] sm:$0xf] %v1509
        %1869 = vst [vmem:[#allocation3 + $0xbc] sm:$0xf] %v1519
        %1870 = vst [vmem:[#allocation3 + $0xe0] sm:$0xf] %v1533
        %1871 = vst [vmem:[#allocation3 + $0x104] sm:$0xf] %v1543
        %1872 = vst [vmem:[#allocation3 + $0x128] sm:$0xf] %v1557
        %1873 = vst [vmem:[#allocation3 + $0x14c] sm:$0xf] %v1567
        %1874 = vst [vmem:[#allocation3 + $0x170] sm:$0xf] %v1581
        %1875 = vst [vmem:[#allocation3 + $0x194] sm:$0xf] %v1591
        %1876 = vst [vmem:[#allocation3 + $0x1b8] sm:$0xf] %v1605
        %1877 = vst [vmem:[#allocation3 + $0x1dc] sm:$0xf] %v1615
        %1878 = vst [vmem:[#allocation3 + $0x200] sm:$0xf] %v1629
        %1879 = vst [vmem:[#allocation3 + $0x224] sm:$0xf] %v1639
        %1880 = vst [vmem:[#allocation3 + $0x248] sm:$0xf] %v1653
        %1881 = vst [vmem:[#allocation3 + $0x26c] sm:$0xf] %v1663
        %1882 = vst [vmem:[#allocation3 + $0x290] sm:$0xf] %v1677
        %1883 = vst [vmem:[#allocation3 + $0x2b4] sm:$0xf] %v1687
        %1884 = vst [vmem:[#allocation3 + $0x2d8] sm:$0xf] %v1701
        %1885 = vst [vmem:[#allocation3 + $0x2fc] sm:$0xf] %v1711
        %1886 = vst [vmem:[#allocation3 + $0x320] sm:$0xf] %v1725
        %1887 = vst [vmem:[#allocation3 + $0x344] sm:$0xf] %v1735
        %1888 = vst [vmem:[#allocation3 + $0x368] sm:$0xf] %v1749
        %1889 = vst [vmem:[#allocation3 + $0x38c] sm:$0xf] %v1759
        %1890 = vst [vmem:[#allocation3 + $0x3b0] sm:$0xf] %v1773
        %1891 = vst [vmem:[#allocation3 + $0x3d4] sm:$0xf] %v1783
        %1892 = vst [vmem:[#allocation3 + $0x3f8] sm:$0xf] %v1797
        %1893 = vst [vmem:[#allocation3 + $0x41c] sm:$0xf] %v1807
        %1894 = vst [vmem:[#allocation3 + $0x440] sm:$0xf] %v1821
        %1895 = vst [vmem:[#allocation3 + $0x464] sm:$0xf] %v1831
        %v1896 = vld [vmem:[%s832 + $0x4] sm:$0x8]
        %v1897 = vld [vmem:[%s832 + $0x8] sm:$0xf]
        %v1898 = vld [vmem:[%s832 + $0xc] sm:$0xf]
        %v1899 = vld [vmem:[%s832 + $0x1c] sm:$0x8]
        %v1900 = vld [vmem:[%s832 + $0x20] sm:$0xf]
        %v1901 = vld [vmem:[%s832 + $0x24] sm:$0xf]
        %v1902 = vld [vmem:[%s832 + $0x34] sm:$0x8]
        %v1903 = vld [vmem:[%s832 + $0x38] sm:$0xf]
        %v1904 = vld [vmem:[%s832 + $0x3c] sm:$0xf]
        %v1905 = vld [vmem:[%s832 + $0x4c] sm:$0x8]
        %v1906 = vld [vmem:[%s832 + $0x50] sm:$0xf]
        %v1907 = vld [vmem:[%s832 + $0x54] sm:$0xf]
        %v1908 = vld [vmem:[%s832 + $0x64] sm:$0x8]
        %v1909 = vld [vmem:[%s832 + $0x68] sm:$0xf]
        %v1910 = vld [vmem:[%s832 + $0x6c] sm:$0xf]
        %v1911 = vld [vmem:[%s832 + $0x7c] sm:$0x8]
        %v1912 = vld [vmem:[%s832 + $0x80] sm:$0xf]
        %v1913 = vld [vmem:[%s832 + $0x84] sm:$0xf]
        %v1914 = vld [vmem:[%s832 + $0x94] sm:$0x8]
        %v1915 = vld [vmem:[%s832 + $0x98] sm:$0xf]
        %v1916 = vld [vmem:[%s832 + $0x9c] sm:$0xf]
        %v1917 = vld [vmem:[%s832 + $0xac] sm:$0x8]
        %v1918 = vld [vmem:[%s832 + $0xb0] sm:$0xf]
        %v1919 = vld [vmem:[%s832 + $0xb4] sm:$0xf]
        %v1920 = vld [vmem:[%s832 + $0xc4] sm:$0x8]
        %v1921 = vld [vmem:[%s832 + $0xc8] sm:$0xf]
        %v1922 = vld [vmem:[%s832 + $0xcc] sm:$0xf]
        %v1923 = vld [vmem:[%s832 + $0xdc] sm:$0x8]
        %v1924 = vld [vmem:[%s832 + $0xe0] sm:$0xf]
        %v1925 = vld [vmem:[%s832 + $0xe4] sm:$0xf]
        %v1926 = vld [vmem:[%s832 + $0xf4] sm:$0x8]
        %v1927 = vld [vmem:[%s832 + $0xf8] sm:$0xf]
        %v1928 = vld [vmem:[%s832 + $0xfc] sm:$0xf]
        %v1929 = vld [vmem:[%s832 + $0x10c] sm:$0x8]
        %v1930 = vld [vmem:[%s832 + $0x110] sm:$0xf]
        %v1931 = vld [vmem:[%s832 + $0x114] sm:$0xf]
        %v1932 = vld [vmem:[%s832 + $0x124] sm:$0x8]
        %v1933 = vld [vmem:[%s832 + $0x128] sm:$0xf]
        %v1934 = vld [vmem:[%s832 + $0x12c] sm:$0xf]
        %v1935 = vld [vmem:[%s832 + $0x13c] sm:$0x8]
        %v1936 = vld [vmem:[%s832 + $0x140] sm:$0xf]
        %v1937 = vld [vmem:[%s832 + $0x144] sm:$0xf]
        %v1938 = vld [vmem:[%s832 + $0x154] sm:$0x8]
        %v1939 = vld [vmem:[%s832 + $0x158] sm:$0xf]
        %v1940 = vld [vmem:[%s832 + $0x15c] sm:$0xf]
        %v1941 = vld [vmem:[%s832 + $0x16c] sm:$0x8]
        %v1942 = vld [vmem:[%s832 + $0x170] sm:$0xf]
        %v1943 = vld [vmem:[%s832 + $0x174] sm:$0xf]
        %v1945 = vshrl.u32 %v1896, 16
        %v1947 = vrot.slane %v1945, 7
        %v1948 = vrot.slane %v1947, 4
        %v1950 = vshrl.u32 %v1897, 16
        %v1952 = vrot.slane %v1950, 7
        %v1953 = vshll.u32 %v1897, 16
        %v1955 = vor.u32 %v1952, %v1953
        %v1956 = vsel %vm916, %v1948, %v1955
        %v1957 = vrot.slane %v1952, 4
        %v1959 = vshrl.u32 %v1898, 16
        %v1961 = vrot.slane %v1959, 7
        %v1962 = vshll.u32 %v1898, 16
        %v1964 = vor.u32 %v1961, %v1962
        %v1965 = vsel %vm916, %v1957, %v1964
        %v1967 = vshrl.u32 %v1899, 16
        %v1969 = vrot.slane %v1967, 7
        %v1970 = vrot.slane %v1969, 4
        %v1972 = vshrl.u32 %v1900, 16
        %v1974 = vrot.slane %v1972, 7
        %v1975 = vshll.u32 %v1900, 16
        %v1977 = vor.u32 %v1974, %v1975
        %v1978 = vsel %vm916, %v1970, %v1977
        %v1979 = vrot.slane %v1974, 4
        %v1981 = vshrl.u32 %v1901, 16
        %v1983 = vrot.slane %v1981, 7
        %v1984 = vshll.u32 %v1901, 16
        %v1986 = vor.u32 %v1983, %v1984
        %v1987 = vsel %vm916, %v1979, %v1986
        %v1989 = vshrl.u32 %v1902, 16
        %v1991 = vrot.slane %v1989, 7
        %v1992 = vrot.slane %v1991, 4
        %v1994 = vshrl.u32 %v1903, 16
        %v1996 = vrot.slane %v1994, 7
        %v1997 = vshll.u32 %v1903, 16
        %v1999 = vor.u32 %v1996, %v1997
        %v2000 = vsel %vm916, %v1992, %v1999
        %v2001 = vrot.slane %v1996, 4
        %v2003 = vshrl.u32 %v1904, 16
        %v2005 = vrot.slane %v2003, 7
        %v2006 = vshll.u32 %v1904, 16
        %v2008 = vor.u32 %v2005, %v2006
        %v2009 = vsel %vm916, %v2001, %v2008
        %v2011 = vshrl.u32 %v1905, 16
        %v2013 = vrot.slane %v2011, 7
        %v2014 = vrot.slane %v2013, 4
        %v2016 = vshrl.u32 %v1906, 16
        %v2018 = vrot.slane %v2016, 7
        %v2019 = vshll.u32 %v1906, 16
        %v2021 = vor.u32 %v2018, %v2019
        %v2022 = vsel %vm916, %v2014, %v2021
        %v2023 = vrot.slane %v2018, 4
        %v2025 = vshrl.u32 %v1907, 16
        %v2027 = vrot.slane %v2025, 7
        %v2028 = vshll.u32 %v1907, 16
        %v2030 = vor.u32 %v2027, %v2028
        %v2031 = vsel %vm916, %v2023, %v2030
        %v2033 = vshrl.u32 %v1908, 16
        %v2035 = vrot.slane %v2033, 7
        %v2036 = vrot.slane %v2035, 4
        %v2038 = vshrl.u32 %v1909, 16
        %v2040 = vrot.slane %v2038, 7
        %v2041 = vshll.u32 %v1909, 16
        %v2043 = vor.u32 %v2040, %v2041
        %v2044 = vsel %vm916, %v2036, %v2043
        %v2045 = vrot.slane %v2040, 4
        %v2047 = vshrl.u32 %v1910, 16
        %v2049 = vrot.slane %v2047, 7
        %v2050 = vshll.u32 %v1910, 16
        %v2052 = vor.u32 %v2049, %v2050
        %v2053 = vsel %vm916, %v2045, %v2052
        %v2055 = vshrl.u32 %v1911, 16
        %v2057 = vrot.slane %v2055, 7
        %v2058 = vrot.slane %v2057, 4
        %v2060 = vshrl.u32 %v1912, 16
        %v2062 = vrot.slane %v2060, 7
        %v2063 = vshll.u32 %v1912, 16
        %v2065 = vor.u32 %v2062, %v2063
        %v2066 = vsel %vm916, %v2058, %v2065
        %v2067 = vrot.slane %v2062, 4
        %v2069 = vshrl.u32 %v1913, 16
        %v2071 = vrot.slane %v2069, 7
        %v2072 = vshll.u32 %v1913, 16
        %v2074 = vor.u32 %v2071, %v2072
        %v2075 = vsel %vm916, %v2067, %v2074
        %v2077 = vshrl.u32 %v1914, 16
        %v2079 = vrot.slane %v2077, 7
        %v2080 = vrot.slane %v2079, 4
        %v2082 = vshrl.u32 %v1915, 16
        %v2084 = vrot.slane %v2082, 7
        %v2085 = vshll.u32 %v1915, 16
        %v2087 = vor.u32 %v2084, %v2085
        %v2088 = vsel %vm916, %v2080, %v2087
        %v2089 = vrot.slane %v2084, 4
        %v2091 = vshrl.u32 %v1916, 16
        %v2093 = vrot.slane %v2091, 7
        %v2094 = vshll.u32 %v1916, 16
        %v2096 = vor.u32 %v2093, %v2094
        %v2097 = vsel %vm916, %v2089, %v2096
        %v2099 = vshrl.u32 %v1917, 16
        %v2101 = vrot.slane %v2099, 7
        %v2102 = vrot.slane %v2101, 4
        %v2104 = vshrl.u32 %v1918, 16
        %v2106 = vrot.slane %v2104, 7
        %v2107 = vshll.u32 %v1918, 16
        %v2109 = vor.u32 %v2106, %v2107
        %v2110 = vsel %vm916, %v2102, %v2109
        %v2111 = vrot.slane %v2106, 4
        %v2113 = vshrl.u32 %v1919, 16
        %v2115 = vrot.slane %v2113, 7
        %v2116 = vshll.u32 %v1919, 16
        %v2118 = vor.u32 %v2115, %v2116
        %v2119 = vsel %vm916, %v2111, %v2118
        %v2121 = vshrl.u32 %v1920, 16
        %v2123 = vrot.slane %v2121, 7
        %v2124 = vrot.slane %v2123, 4
        %v2126 = vshrl.u32 %v1921, 16
        %v2128 = vrot.slane %v2126, 7
        %v2129 = vshll.u32 %v1921, 16
        %v2131 = vor.u32 %v2128, %v2129
        %v2132 = vsel %vm916, %v2124, %v2131
        %v2133 = vrot.slane %v2128, 4
        %v2135 = vshrl.u32 %v1922, 16
        %v2137 = vrot.slane %v2135, 7
        %v2138 = vshll.u32 %v1922, 16
        %v2140 = vor.u32 %v2137, %v2138
        %v2141 = vsel %vm916, %v2133, %v2140
        %v2143 = vshrl.u32 %v1923, 16
        %v2145 = vrot.slane %v2143, 7
        %v2146 = vrot.slane %v2145, 4
        %v2148 = vshrl.u32 %v1924, 16
        %v2150 = vrot.slane %v2148, 7
        %v2151 = vshll.u32 %v1924, 16
        %v2153 = vor.u32 %v2150, %v2151
        %v2154 = vsel %vm916, %v2146, %v2153
        %v2155 = vrot.slane %v2150, 4
        %v2157 = vshrl.u32 %v1925, 16
        %v2159 = vrot.slane %v2157, 7
        %v2160 = vshll.u32 %v1925, 16
        %v2162 = vor.u32 %v2159, %v2160
        %v2163 = vsel %vm916, %v2155, %v2162
        %v2165 = vshrl.u32 %v1926, 16
        %v2167 = vrot.slane %v2165, 7
        %v2168 = vrot.slane %v2167, 4
        %v2170 = vshrl.u32 %v1927, 16
        %v2172 = vrot.slane %v2170, 7
        %v2173 = vshll.u32 %v1927, 16
        %v2175 = vor.u32 %v2172, %v2173
        %v2176 = vsel %vm916, %v2168, %v2175
        %v2177 = vrot.slane %v2172, 4
        %v2179 = vshrl.u32 %v1928, 16
        %v2181 = vrot.slane %v2179, 7
        %v2182 = vshll.u32 %v1928, 16
        %v2184 = vor.u32 %v2181, %v2182
        %v2185 = vsel %vm916, %v2177, %v2184
        %v2187 = vshrl.u32 %v1929, 16
        %v2189 = vrot.slane %v2187, 7
        %v2190 = vrot.slane %v2189, 4
        %v2192 = vshrl.u32 %v1930, 16
        %v2194 = vrot.slane %v2192, 7
        %v2195 = vshll.u32 %v1930, 16
        %v2197 = vor.u32 %v2194, %v2195
        %v2198 = vsel %vm916, %v2190, %v2197
        %v2199 = vrot.slane %v2194, 4
        %v2201 = vshrl.u32 %v1931, 16
        %v2203 = vrot.slane %v2201, 7
        %v2204 = vshll.u32 %v1931, 16
        %v2206 = vor.u32 %v2203, %v2204
        %v2207 = vsel %vm916, %v2199, %v2206
        %v2209 = vshrl.u32 %v1932, 16
        %v2211 = vrot.slane %v2209, 7
        %v2212 = vrot.slane %v2211, 4
        %v2214 = vshrl.u32 %v1933, 16
        %v2216 = vrot.slane %v2214, 7
        %v2217 = vshll.u32 %v1933, 16
        %v2219 = vor.u32 %v2216, %v2217
        %v2220 = vsel %vm916, %v2212, %v2219
        %v2221 = vrot.slane %v2216, 4
        %v2223 = vshrl.u32 %v1934, 16
        %v2225 = vrot.slane %v2223, 7
        %v2226 = vshll.u32 %v1934, 16
        %v2228 = vor.u32 %v2225, %v2226
        %v2229 = vsel %vm916, %v2221, %v2228
        %v2231 = vshrl.u32 %v1935, 16
        %v2233 = vrot.slane %v2231, 7
        %v2234 = vrot.slane %v2233, 4
        %v2236 = vshrl.u32 %v1936, 16
        %v2238 = vrot.slane %v2236, 7
        %v2239 = vshll.u32 %v1936, 16
        %v2241 = vor.u32 %v2238, %v2239
        %v2242 = vsel %vm916, %v2234, %v2241
        %v2243 = vrot.slane %v2238, 4
        %v2245 = vshrl.u32 %v1937, 16
        %v2247 = vrot.slane %v2245, 7
        %v2248 = vshll.u32 %v1937, 16
        %v2250 = vor.u32 %v2247, %v2248
        %v2251 = vsel %vm916, %v2243, %v2250
        %v2253 = vshrl.u32 %v1938, 16
        %v2255 = vrot.slane %v2253, 7
        %v2256 = vrot.slane %v2255, 4
        %v2258 = vshrl.u32 %v1939, 16
        %v2260 = vrot.slane %v2258, 7
        %v2261 = vshll.u32 %v1939, 16
        %v2263 = vor.u32 %v2260, %v2261
        %v2264 = vsel %vm916, %v2256, %v2263
        %v2265 = vrot.slane %v2260, 4
        %v2267 = vshrl.u32 %v1940, 16
        %v2269 = vrot.slane %v2267, 7
        %v2270 = vshll.u32 %v1940, 16
        %v2272 = vor.u32 %v2269, %v2270
        %v2273 = vsel %vm916, %v2265, %v2272
        %v2275 = vshrl.u32 %v1941, 16
        %v2277 = vrot.slane %v2275, 7
        %v2278 = vrot.slane %v2277, 4
        %v2280 = vshrl.u32 %v1942, 16
        %v2282 = vrot.slane %v2280, 7
        %v2283 = vshll.u32 %v1942, 16
        %v2285 = vor.u32 %v2282, %v2283
        %v2286 = vsel %vm916, %v2278, %v2285
        %v2287 = vrot.slane %v2282, 4
        %v2289 = vshrl.u32 %v1943, 16
        %v2291 = vrot.slane %v2289, 7
        %v2292 = vshll.u32 %v1943, 16
        %v2294 = vor.u32 %v2291, %v2292
        %v2295 = vsel %vm916, %v2287, %v2294
        %2328 = vst [vmem:[#allocation3 + $0xc] sm:$0xf] %v1956
        %2329 = vst [vmem:[#allocation3 + $0x30] sm:$0xf] %v1965
        %2330 = vst [vmem:[#allocation3 + $0x54] sm:$0xf] %v1978
        %2331 = vst [vmem:[#allocation3 + $0x78] sm:$0xf] %v1987
        %2332 = vst [vmem:[#allocation3 + $0x9c] sm:$0xf] %v2000
        %2333 = vst [vmem:[#allocation3 + $0xc0] sm:$0xf] %v2009
        %2334 = vst [vmem:[#allocation3 + $0xe4] sm:$0xf] %v2022
        %2335 = vst [vmem:[#allocation3 + $0x108] sm:$0xf] %v2031
        %2336 = vst [vmem:[#allocation3 + $0x12c] sm:$0xf] %v2044
        %2337 = vst [vmem:[#allocation3 + $0x150] sm:$0xf] %v2053
        %2338 = vst [vmem:[#allocation3 + $0x174] sm:$0xf] %v2066
        %2339 = vst [vmem:[#allocation3 + $0x198] sm:$0xf] %v2075
        %2340 = vst [vmem:[#allocation3 + $0x1bc] sm:$0xf] %v2088
        %2341 = vst [vmem:[#allocation3 + $0x1e0] sm:$0xf] %v2097
        %2342 = vst [vmem:[#allocation3 + $0x204] sm:$0xf] %v2110
        %2343 = vst [vmem:[#allocation3 + $0x228] sm:$0xf] %v2119
        %2344 = vst [vmem:[#allocation3 + $0x24c] sm:$0xf] %v2132
        %2345 = vst [vmem:[#allocation3 + $0x270] sm:$0xf] %v2141
        %2346 = vst [vmem:[#allocation3 + $0x294] sm:$0xf] %v2154
        %2347 = vst [vmem:[#allocation3 + $0x2b8] sm:$0xf] %v2163
        %2348 = vst [vmem:[#allocation3 + $0x2dc] sm:$0xf] %v2176
        %2349 = vst [vmem:[#allocation3 + $0x300] sm:$0xf] %v2185
        %2350 = vst [vmem:[#allocation3 + $0x324] sm:$0xf] %v2198
        %2351 = vst [vmem:[#allocation3 + $0x348] sm:$0xf] %v2207
        %2352 = vst [vmem:[#allocation3 + $0x36c] sm:$0xf] %v2220
        %2353 = vst [vmem:[#allocation3 + $0x390] sm:$0xf] %v2229
        %2354 = vst [vmem:[#allocation3 + $0x3b4] sm:$0xf] %v2242
        %2355 = vst [vmem:[#allocation3 + $0x3d8] sm:$0xf] %v2251
        %2356 = vst [vmem:[#allocation3 + $0x3fc] sm:$0xf] %v2264
        %2357 = vst [vmem:[#allocation3 + $0x420] sm:$0xf] %v2273
        %2358 = vst [vmem:[#allocation3 + $0x444] sm:$0xf] %v2286
        %2359 = vst [vmem:[#allocation3 + $0x468] sm:$0xf] %v2295
        %v2360 = vld [vmem:[%s832 + $0x8] sm:$0xf]
        %v2361 = vld [vmem:[%s832 + $0xc] sm:$0xf]
        %v2362 = vld [vmem:[%s832 + $0x20] sm:$0xf]
        %v2363 = vld [vmem:[%s832 + $0x24] sm:$0xf]
        %v2364 = vld [vmem:[%s832 + $0x38] sm:$0xf]
        %v2365 = vld [vmem:[%s832 + $0x3c] sm:$0xf]
        %v2366 = vld [vmem:[%s832 + $0x50] sm:$0xf]
        %v2367 = vld [vmem:[%s832 + $0x54] sm:$0xf]
        %v2368 = vld [vmem:[%s832 + $0x68] sm:$0xf]
        %v2369 = vld [vmem:[%s832 + $0x6c] sm:$0xf]
        %v2370 = vld [vmem:[%s832 + $0x80] sm:$0xf]
        %v2371 = vld [vmem:[%s832 + $0x84] sm:$0xf]
        %v2372 = vld [vmem:[%s832 + $0x98] sm:$0xf]
        %v2373 = vld [vmem:[%s832 + $0x9c] sm:$0xf]
        %v2374 = vld [vmem:[%s832 + $0xb0] sm:$0xf]
        %v2375 = vld [vmem:[%s832 + $0xb4] sm:$0xf]
        %v2376 = vld [vmem:[%s832 + $0xc8] sm:$0xf]
        %v2377 = vld [vmem:[%s832 + $0xcc] sm:$0xf]
        %v2378 = vld [vmem:[%s832 + $0xe0] sm:$0xf]
        %v2379 = vld [vmem:[%s832 + $0xe4] sm:$0xf]
        %v2380 = vld [vmem:[%s832 + $0xf8] sm:$0xf]
        %v2381 = vld [vmem:[%s832 + $0xfc] sm:$0xf]
        %v2382 = vld [vmem:[%s832 + $0x110] sm:$0xf]
        %v2383 = vld [vmem:[%s832 + $0x114] sm:$0xf]
        %v2384 = vld [vmem:[%s832 + $0x128] sm:$0xf]
        %v2385 = vld [vmem:[%s832 + $0x12c] sm:$0xf]
        %v2386 = vld [vmem:[%s832 + $0x140] sm:$0xf]
        %v2387 = vld [vmem:[%s832 + $0x144] sm:$0xf]
        %v2388 = vld [vmem:[%s832 + $0x158] sm:$0xf]
        %v2389 = vld [vmem:[%s832 + $0x15c] sm:$0xf]
        %v2390 = vld [vmem:[%s832 + $0x170] sm:$0xf]
        %v2391 = vld [vmem:[%s832 + $0x174] sm:$0xf]
        %2392 = vst [vmem:[#allocation3 + $0x10] sm:$0xf] %v2360
        %2393 = vst [vmem:[#allocation3 + $0x34] sm:$0xf] %v2361
        %2394 = vst [vmem:[#allocation3 + $0x58] sm:$0xf] %v2362
        %2395 = vst [vmem:[#allocation3 + $0x7c] sm:$0xf] %v2363
        %2396 = vst [vmem:[#allocation3 + $0xa0] sm:$0xf] %v2364
        %2397 = vst [vmem:[#allocation3 + $0xc4] sm:$0xf] %v2365
        %2398 = vst [vmem:[#allocation3 + $0xe8] sm:$0xf] %v2366
        %2399 = vst [vmem:[#allocation3 + $0x10c] sm:$0xf] %v2367
        %2400 = vst [vmem:[#allocation3 + $0x130] sm:$0xf] %v2368
        %2401 = vst [vmem:[#allocation3 + $0x154] sm:$0xf] %v2369
        %2402 = vst [vmem:[#allocation3 + $0x178] sm:$0xf] %v2370
        %2403 = vst [vmem:[#allocation3 + $0x19c] sm:$0xf] %v2371
        %2404 = vst [vmem:[#allocation3 + $0x1c0] sm:$0xf] %v2372
        %2405 = vst [vmem:[#allocation3 + $0x1e4] sm:$0xf] %v2373
        %2406 = vst [vmem:[#allocation3 + $0x208] sm:$0xf] %v2374
        %2407 = vst [vmem:[#allocation3 + $0x22c] sm:$0xf] %v2375
        %2408 = vst [vmem:[#allocation3 + $0x250] sm:$0xf] %v2376
        %2409 = vst [vmem:[#allocation3 + $0x274] sm:$0xf] %v2377
        %2410 = vst [vmem:[#allocation3 + $0x298] sm:$0xf] %v2378
        %2411 = vst [vmem:[#allocation3 + $0x2bc] sm:$0xf] %v2379
        %2412 = vst [vmem:[#allocation3 + $0x2e0] sm:$0xf] %v2380
        %2413 = vst [vmem:[#allocation3 + $0x304] sm:$0xf] %v2381
        %2414 = vst [vmem:[#allocation3 + $0x328] sm:$0xf] %v2382
        %2415 = vst [vmem:[#allocation3 + $0x34c] sm:$0xf] %v2383
        %2416 = vst [vmem:[#allocation3 + $0x370] sm:$0xf] %v2384
        %2417 = vst [vmem:[#allocation3 + $0x394] sm:$0xf] %v2385
        %2418 = vst [vmem:[#allocation3 + $0x3b8] sm:$0xf] %v2386
        %2419 = vst [vmem:[#allocation3 + $0x3dc] sm:$0xf] %v2387
        %2420 = vst [vmem:[#allocation3 + $0x400] sm:$0xf] %v2388
        %2421 = vst [vmem:[#allocation3 + $0x424] sm:$0xf] %v2389
        %2422 = vst [vmem:[#allocation3 + $0x448] sm:$0xf] %v2390
        %2423 = vst [vmem:[#allocation3 + $0x46c] sm:$0xf] %v2391
        %v2424 = vld [vmem:[%s832 + $0x8] sm:$0xf]
        %v2425 = vld [vmem:[%s832 + $0xc] sm:$0xf]
        %v2426 = vld [vmem:[%s832 + $0x10] sm:$0x1]
        %v2427 = vld [vmem:[%s832 + $0x20] sm:$0xf]
        %v2428 = vld [vmem:[%s832 + $0x24] sm:$0xf]
        %v2429 = vld [vmem:[%s832 + $0x28] sm:$0x1]
        %v2430 = vld [vmem:[%s832 + $0x38] sm:$0xf]
        %v2431 = vld [vmem:[%s832 + $0x3c] sm:$0xf]
        %v2432 = vld [vmem:[%s832 + $0x40] sm:$0x1]
        %v2433 = vld [vmem:[%s832 + $0x50] sm:$0xf]
        %v2434 = vld [vmem:[%s832 + $0x54] sm:$0xf]
        %v2435 = vld [vmem:[%s832 + $0x58] sm:$0x1]
        %v2436 = vld [vmem:[%s832 + $0x68] sm:$0xf]
        %v2437 = vld [vmem:[%s832 + $0x6c] sm:$0xf]
        %v2438 = vld [vmem:[%s832 + $0x70] sm:$0x1]
        %v2439 = vld [vmem:[%s832 + $0x80] sm:$0xf]
        %v2440 = vld [vmem:[%s832 + $0x84] sm:$0xf]
        %v2441 = vld [vmem:[%s832 + $0x88] sm:$0x1]
        %v2442 = vld [vmem:[%s832 + $0x98] sm:$0xf]
        %v2443 = vld [vmem:[%s832 + $0x9c] sm:$0xf]
        %v2444 = vld [vmem:[%s832 + $0xa0] sm:$0x1]
        %v2445 = vld [vmem:[%s832 + $0xb0] sm:$0xf]
        %v2446 = vld [vmem:[%s832 + $0xb4] sm:$0xf]
        %v2447 = vld [vmem:[%s832 + $0xb8] sm:$0x1]
        %v2448 = vld [vmem:[%s832 + $0xc8] sm:$0xf]
        %v2449 = vld [vmem:[%s832 + $0xcc] sm:$0xf]
        %v2450 = vld [vmem:[%s832 + $0xd0] sm:$0x1]
        %v2451 = vld [vmem:[%s832 + $0xe0] sm:$0xf]
        %v2452 = vld [vmem:[%s832 + $0xe4] sm:$0xf]
        %v2453 = vld [vmem:[%s832 + $0xe8] sm:$0x1]
        %v2454 = vld [vmem:[%s832 + $0xf8] sm:$0xf]
        %v2455 = vld [vmem:[%s832 + $0xfc] sm:$0xf]
        %v2456 = vld [vmem:[%s832 + $0x100] sm:$0x1]
        %v2457 = vld [vmem:[%s832 + $0x110] sm:$0xf]
        %v2458 = vld [vmem:[%s832 + $0x114] sm:$0xf]
        %v2459 = vld [vmem:[%s832 + $0x118] sm:$0x1]
        %v2460 = vld [vmem:[%s832 + $0x128] sm:$0xf]
        %v2461 = vld [vmem:[%s832 + $0x12c] sm:$0xf]
        %v2462 = vld [vmem:[%s832 + $0x130] sm:$0x1]
        %v2463 = vld [vmem:[%s832 + $0x140] sm:$0xf]
        %v2464 = vld [vmem:[%s832 + $0x144] sm:$0xf]
        %v2465 = vld [vmem:[%s832 + $0x148] sm:$0x1]
        %v2466 = vld [vmem:[%s832 + $0x158] sm:$0xf]
        %v2467 = vld [vmem:[%s832 + $0x15c] sm:$0xf]
        %v2468 = vld [vmem:[%s832 + $0x160] sm:$0x1]
        %v2469 = vld [vmem:[%s832 + $0x170] sm:$0xf]
        %v2470 = vld [vmem:[%s832 + $0x174] sm:$0xf]
        %v2471 = vld [vmem:[%s832 + $0x178] sm:$0x1]
        %v2473 = vshrl.u32 %v2424, 16
        %v2475 = vrot.slane %v2473, 4
        %v2476 = vshll.u32 %v2424, 16
        %v2478 = vrot.slane %v2476, 5
        %v2479 = vor.u32 %v2475, %v2478
        %v2480 = vrot.slane %v2479, 4
        %v2482 = vshll.u32 %v2425, 16
        %v2484 = vrot.slane %v2482, 5
        %v2485 = vsel %vm1447, %v2480, %v2484
        %v2486 = vshrl.u32 %v2425, 16
        %v2488 = vrot.slane %v2486, 4
        %v2489 = vor.u32 %v2488, %v2484
        %v2490 = vrot.slane %v2489, 4
        %v2492 = vshll.u32 %v2426, 16
        %v2494 = vrot.slane %v2492, 5
        %v2495 = vsel %vm1447, %v2490, %v2494
        %v2497 = vshrl.u32 %v2427, 16
        %v2499 = vrot.slane %v2497, 4
        %v2500 = vshll.u32 %v2427, 16
        %v2502 = vrot.slane %v2500, 5
        %v2503 = vor.u32 %v2499, %v2502
        %v2504 = vrot.slane %v2503, 4
        %v2506 = vshll.u32 %v2428, 16
        %v2508 = vrot.slane %v2506, 5
        %v2509 = vsel %vm1447, %v2504, %v2508
        %v2510 = vshrl.u32 %v2428, 16
        %v2512 = vrot.slane %v2510, 4
        %v2513 = vor.u32 %v2512, %v2508
        %v2514 = vrot.slane %v2513, 4
        %v2516 = vshll.u32 %v2429, 16
        %v2518 = vrot.slane %v2516, 5
        %v2519 = vsel %vm1447, %v2514, %v2518
        %v2521 = vshrl.u32 %v2430, 16
        %v2523 = vrot.slane %v2521, 4
        %v2524 = vshll.u32 %v2430, 16
        %v2526 = vrot.slane %v2524, 5
        %v2527 = vor.u32 %v2523, %v2526
        %v2528 = vrot.slane %v2527, 4
        %v2530 = vshll.u32 %v2431, 16
        %v2532 = vrot.slane %v2530, 5
        %v2533 = vsel %vm1447, %v2528, %v2532
        %v2534 = vshrl.u32 %v2431, 16
        %v2536 = vrot.slane %v2534, 4
        %v2537 = vor.u32 %v2536, %v2532
        %v2538 = vrot.slane %v2537, 4
        %v2540 = vshll.u32 %v2432, 16
        %v2542 = vrot.slane %v2540, 5
        %v2543 = vsel %vm1447, %v2538, %v2542
        %v2545 = vshrl.u32 %v2433, 16
        %v2547 = vrot.slane %v2545, 4
        %v2548 = vshll.u32 %v2433, 16
        %v2550 = vrot.slane %v2548, 5
        %v2551 = vor.u32 %v2547, %v2550
        %v2552 = vrot.slane %v2551, 4
        %v2554 = vshll.u32 %v2434, 16
        %v2556 = vrot.slane %v2554, 5
        %v2557 = vsel %vm1447, %v2552, %v2556
        %v2558 = vshrl.u32 %v2434, 16
        %v2560 = vrot.slane %v2558, 4
        %v2561 = vor.u32 %v2560, %v2556
        %v2562 = vrot.slane %v2561, 4
        %v2564 = vshll.u32 %v2435, 16
        %v2566 = vrot.slane %v2564, 5
        %v2567 = vsel %vm1447, %v2562, %v2566
        %v2569 = vshrl.u32 %v2436, 16
        %v2571 = vrot.slane %v2569, 4
        %v2572 = vshll.u32 %v2436, 16
        %v2574 = vrot.slane %v2572, 5
        %v2575 = vor.u32 %v2571, %v2574
        %v2576 = vrot.slane %v2575, 4
        %v2578 = vshll.u32 %v2437, 16
        %v2580 = vrot.slane %v2578, 5
        %v2581 = vsel %vm1447, %v2576, %v2580
        %v2582 = vshrl.u32 %v2437, 16
        %v2584 = vrot.slane %v2582, 4
        %v2585 = vor.u32 %v2584, %v2580
        %v2586 = vrot.slane %v2585, 4
        %v2588 = vshll.u32 %v2438, 16
        %v2590 = vrot.slane %v2588, 5
        %v2591 = vsel %vm1447, %v2586, %v2590
        %v2593 = vshrl.u32 %v2439, 16
        %v2595 = vrot.slane %v2593, 4
        %v2596 = vshll.u32 %v2439, 16
        %v2598 = vrot.slane %v2596, 5
        %v2599 = vor.u32 %v2595, %v2598
        %v2600 = vrot.slane %v2599, 4
        %v2602 = vshll.u32 %v2440, 16
        %v2604 = vrot.slane %v2602, 5
        %v2605 = vsel %vm1447, %v2600, %v2604
        %v2606 = vshrl.u32 %v2440, 16
        %v2608 = vrot.slane %v2606, 4
        %v2609 = vor.u32 %v2608, %v2604
        %v2610 = vrot.slane %v2609, 4
        %v2612 = vshll.u32 %v2441, 16
        %v2614 = vrot.slane %v2612, 5
        %v2615 = vsel %vm1447, %v2610, %v2614
        %v2617 = vshrl.u32 %v2442, 16
        %v2619 = vrot.slane %v2617, 4
        %v2620 = vshll.u32 %v2442, 16
        %v2622 = vrot.slane %v2620, 5
        %v2623 = vor.u32 %v2619, %v2622
        %v2624 = vrot.slane %v2623, 4
        %v2626 = vshll.u32 %v2443, 16
        %v2628 = vrot.slane %v2626, 5
        %v2629 = vsel %vm1447, %v2624, %v2628
        %v2630 = vshrl.u32 %v2443, 16
        %v2632 = vrot.slane %v2630, 4
        %v2633 = vor.u32 %v2632, %v2628
        %v2634 = vrot.slane %v2633, 4
        %v2636 = vshll.u32 %v2444, 16
        %v2638 = vrot.slane %v2636, 5
        %v2639 = vsel %vm1447, %v2634, %v2638
        %v2641 = vshrl.u32 %v2445, 16
        %v2643 = vrot.slane %v2641, 4
        %v2644 = vshll.u32 %v2445, 16
        %v2646 = vrot.slane %v2644, 5
        %v2647 = vor.u32 %v2643, %v2646
        %v2648 = vrot.slane %v2647, 4
        %v2650 = vshll.u32 %v2446, 16
        %v2652 = vrot.slane %v2650, 5
        %v2653 = vsel %vm1447, %v2648, %v2652
        %v2654 = vshrl.u32 %v2446, 16
        %v2656 = vrot.slane %v2654, 4
        %v2657 = vor.u32 %v2656, %v2652
        %v2658 = vrot.slane %v2657, 4
        %v2660 = vshll.u32 %v2447, 16
        %v2662 = vrot.slane %v2660, 5
        %v2663 = vsel %vm1447, %v2658, %v2662
        %v2665 = vshrl.u32 %v2448, 16
        %v2667 = vrot.slane %v2665, 4
        %v2668 = vshll.u32 %v2448, 16
        %v2670 = vrot.slane %v2668, 5
        %v2671 = vor.u32 %v2667, %v2670
        %v2672 = vrot.slane %v2671, 4
        %v2674 = vshll.u32 %v2449, 16
        %v2676 = vrot.slane %v2674, 5
        %v2677 = vsel %vm1447, %v2672, %v2676
        %v2678 = vshrl.u32 %v2449, 16
        %v2680 = vrot.slane %v2678, 4
        %v2681 = vor.u32 %v2680, %v2676
        %v2682 = vrot.slane %v2681, 4
        %v2684 = vshll.u32 %v2450, 16
        %v2686 = vrot.slane %v2684, 5
        %v2687 = vsel %vm1447, %v2682, %v2686
        %v2689 = vshrl.u32 %v2451, 16
        %v2691 = vrot.slane %v2689, 4
        %v2692 = vshll.u32 %v2451, 16
        %v2694 = vrot.slane %v2692, 5
        %v2695 = vor.u32 %v2691, %v2694
        %v2696 = vrot.slane %v2695, 4
        %v2698 = vshll.u32 %v2452, 16
        %v2700 = vrot.slane %v2698, 5
        %v2701 = vsel %vm1447, %v2696, %v2700
        %v2702 = vshrl.u32 %v2452, 16
        %v2704 = vrot.slane %v2702, 4
        %v2705 = vor.u32 %v2704, %v2700
        %v2706 = vrot.slane %v2705, 4
        %v2708 = vshll.u32 %v2453, 16
        %v2710 = vrot.slane %v2708, 5
        %v2711 = vsel %vm1447, %v2706, %v2710
        %v2713 = vshrl.u32 %v2454, 16
        %v2715 = vrot.slane %v2713, 4
        %v2716 = vshll.u32 %v2454, 16
        %v2718 = vrot.slane %v2716, 5
        %v2719 = vor.u32 %v2715, %v2718
        %v2720 = vrot.slane %v2719, 4
        %v2722 = vshll.u32 %v2455, 16
        %v2724 = vrot.slane %v2722, 5
        %v2725 = vsel %vm1447, %v2720, %v2724
        %v2726 = vshrl.u32 %v2455, 16
        %v2728 = vrot.slane %v2726, 4
        %v2729 = vor.u32 %v2728, %v2724
        %v2730 = vrot.slane %v2729, 4
        %v2732 = vshll.u32 %v2456, 16
        %v2734 = vrot.slane %v2732, 5
        %v2735 = vsel %vm1447, %v2730, %v2734
        %v2737 = vshrl.u32 %v2457, 16
        %v2739 = vrot.slane %v2737, 4
        %v2740 = vshll.u32 %v2457, 16
        %v2742 = vrot.slane %v2740, 5
        %v2743 = vor.u32 %v2739, %v2742
        %v2744 = vrot.slane %v2743, 4
        %v2746 = vshll.u32 %v2458, 16
        %v2748 = vrot.slane %v2746, 5
        %v2749 = vsel %vm1447, %v2744, %v2748
        %v2750 = vshrl.u32 %v2458, 16
        %v2752 = vrot.slane %v2750, 4
        %v2753 = vor.u32 %v2752, %v2748
        %v2754 = vrot.slane %v2753, 4
        %v2756 = vshll.u32 %v2459, 16
        %v2758 = vrot.slane %v2756, 5
        %v2759 = vsel %vm1447, %v2754, %v2758
        %v2761 = vshrl.u32 %v2460, 16
        %v2763 = vrot.slane %v2761, 4
        %v2764 = vshll.u32 %v2460, 16
        %v2766 = vrot.slane %v2764, 5
        %v2767 = vor.u32 %v2763, %v2766
        %v2768 = vrot.slane %v2767, 4
        %v2770 = vshll.u32 %v2461, 16
        %v2772 = vrot.slane %v2770, 5
        %v2773 = vsel %vm1447, %v2768, %v2772
        %v2774 = vshrl.u32 %v2461, 16
        %v2776 = vrot.slane %v2774, 4
        %v2777 = vor.u32 %v2776, %v2772
        %v2778 = vrot.slane %v2777, 4
        %v2780 = vshll.u32 %v2462, 16
        %v2782 = vrot.slane %v2780, 5
        %v2783 = vsel %vm1447, %v2778, %v2782
        %v2785 = vshrl.u32 %v2463, 16
        %v2787 = vrot.slane %v2785, 4
        %v2788 = vshll.u32 %v2463, 16
        %v2790 = vrot.slane %v2788, 5
        %v2791 = vor.u32 %v2787, %v2790
        %v2792 = vrot.slane %v2791, 4
        %v2794 = vshll.u32 %v2464, 16
        %v2796 = vrot.slane %v2794, 5
        %v2797 = vsel %vm1447, %v2792, %v2796
        %v2798 = vshrl.u32 %v2464, 16
        %v2800 = vrot.slane %v2798, 4
        %v2801 = vor.u32 %v2800, %v2796
        %v2802 = vrot.slane %v2801, 4
        %v2804 = vshll.u32 %v2465, 16
        %v2806 = vrot.slane %v2804, 5
        %v2807 = vsel %vm1447, %v2802, %v2806
        %v2809 = vshrl.u32 %v2466, 16
        %v2811 = vrot.slane %v2809, 4
        %v2812 = vshll.u32 %v2466, 16
        %v2814 = vrot.slane %v2812, 5
        %v2815 = vor.u32 %v2811, %v2814
        %v2816 = vrot.slane %v2815, 4
        %v2818 = vshll.u32 %v2467, 16
        %v2820 = vrot.slane %v2818, 5
        %v2821 = vsel %vm1447, %v2816, %v2820
        %v2822 = vshrl.u32 %v2467, 16
        %v2824 = vrot.slane %v2822, 4
        %v2825 = vor.u32 %v2824, %v2820
        %v2826 = vrot.slane %v2825, 4
        %v2828 = vshll.u32 %v2468, 16
        %v2830 = vrot.slane %v2828, 5
        %v2831 = vsel %vm1447, %v2826, %v2830
        %v2833 = vshrl.u32 %v2469, 16
        %v2835 = vrot.slane %v2833, 4
        %v2836 = vshll.u32 %v2469, 16
        %v2838 = vrot.slane %v2836, 5
        %v2839 = vor.u32 %v2835, %v2838
        %v2840 = vrot.slane %v2839, 4
        %v2842 = vshll.u32 %v2470, 16
        %v2844 = vrot.slane %v2842, 5
        %v2845 = vsel %vm1447, %v2840, %v2844
        %v2846 = vshrl.u32 %v2470, 16
        %v2848 = vrot.slane %v2846, 4
        %v2849 = vor.u32 %v2848, %v2844
        %v2850 = vrot.slane %v2849, 4
        %v2852 = vshll.u32 %v2471, 16
        %v2854 = vrot.slane %v2852, 5
        %v2855 = vsel %vm1447, %v2850, %v2854
        %2888 = vst [vmem:[#allocation3 + $0x14] sm:$0xf] %v2485
        %2889 = vst [vmem:[#allocation3 + $0x38] sm:$0xf] %v2495
        %2890 = vst [vmem:[#allocation3 + $0x5c] sm:$0xf] %v2509
        %2891 = vst [vmem:[#allocation3 + $0x80] sm:$0xf] %v2519
        %2892 = vst [vmem:[#allocation3 + $0xa4] sm:$0xf] %v2533
        %2893 = vst [vmem:[#allocation3 + $0xc8] sm:$0xf] %v2543
        %2894 = vst [vmem:[#allocation3 + $0xec] sm:$0xf] %v2557
        %2895 = vst [vmem:[#allocation3 + $0x110] sm:$0xf] %v2567
        %2896 = vst [vmem:[#allocation3 + $0x134] sm:$0xf] %v2581
        %2897 = vst [vmem:[#allocation3 + $0x158] sm:$0xf] %v2591
        %2898 = vst [vmem:[#allocation3 + $0x17c] sm:$0xf] %v2605
        %2899 = vst [vmem:[#allocation3 + $0x1a0] sm:$0xf] %v2615
        %2900 = vst [vmem:[#allocation3 + $0x1c4] sm:$0xf] %v2629
        %2901 = vst [vmem:[#allocation3 + $0x1e8] sm:$0xf] %v2639
        %2902 = vst [vmem:[#allocation3 + $0x20c] sm:$0xf] %v2653
        %2903 = vst [vmem:[#allocation3 + $0x230] sm:$0xf] %v2663
        %2904 = vst [vmem:[#allocation3 + $0x254] sm:$0xf] %v2677
        %2905 = vst [vmem:[#allocation3 + $0x278] sm:$0xf] %v2687
        %2906 = vst [vmem:[#allocation3 + $0x29c] sm:$0xf] %v2701
        %2907 = vst [vmem:[#allocation3 + $0x2c0] sm:$0xf] %v2711
        %2908 = vst [vmem:[#allocation3 + $0x2e4] sm:$0xf] %v2725
        %2909 = vst [vmem:[#allocation3 + $0x308] sm:$0xf] %v2735
        %2910 = vst [vmem:[#allocation3 + $0x32c] sm:$0xf] %v2749
        %2911 = vst [vmem:[#allocation3 + $0x350] sm:$0xf] %v2759
        %2912 = vst [vmem:[#allocation3 + $0x374] sm:$0xf] %v2773
        %2913 = vst [vmem:[#allocation3 + $0x398] sm:$0xf] %v2783
        %2914 = vst [vmem:[#allocation3 + $0x3bc] sm:$0xf] %v2797
        %2915 = vst [vmem:[#allocation3 + $0x3e0] sm:$0xf] %v2807
        %2916 = vst [vmem:[#allocation3 + $0x404] sm:$0xf] %v2821
        %2917 = vst [vmem:[#allocation3 + $0x428] sm:$0xf] %v2831
        %2918 = vst [vmem:[#allocation3 + $0x44c] sm:$0xf] %v2845
        %2919 = vst [vmem:[#allocation3 + $0x470] sm:$0xf] %v2855
        %s2920 = scalar_lea.vmem [#allocation2], 72
        %v2921 = vld [vmem:[%s2920 + $0x4] sm:$0x8]
        %v2922 = vld [vmem:[%s2920 + $0x8] sm:$0xf]
        %v2923 = vld [vmem:[%s2920 + $0xc] sm:$0xf]
        %v2924 = vld [vmem:[%s2920 + $0x1c] sm:$0x8]
        %v2925 = vld [vmem:[%s2920 + $0x20] sm:$0xf]
        %v2926 = vld [vmem:[%s2920 + $0x24] sm:$0xf]
        %v2927 = vld [vmem:[%s2920 + $0x34] sm:$0x8]
        %v2928 = vld [vmem:[%s2920 + $0x38] sm:$0xf]
        %v2929 = vld [vmem:[%s2920 + $0x3c] sm:$0xf]
        %v2930 = vld [vmem:[%s2920 + $0x4c] sm:$0x8]
        %v2931 = vld [vmem:[%s2920 + $0x50] sm:$0xf]
        %v2932 = vld [vmem:[%s2920 + $0x54] sm:$0xf]
        %v2933 = vld [vmem:[%s2920 + $0x64] sm:$0x8]
        %v2934 = vld [vmem:[%s2920 + $0x68] sm:$0xf]
        %v2935 = vld [vmem:[%s2920 + $0x6c] sm:$0xf]
        %v2936 = vld [vmem:[%s2920 + $0x7c] sm:$0x8]
        %v2937 = vld [vmem:[%s2920 + $0x80] sm:$0xf]
        %v2938 = vld [vmem:[%s2920 + $0x84] sm:$0xf]
        %v2939 = vld [vmem:[%s2920 + $0x94] sm:$0x8]
        %v2940 = vld [vmem:[%s2920 + $0x98] sm:$0xf]
        %v2941 = vld [vmem:[%s2920 + $0x9c] sm:$0xf]
        %v2942 = vld [vmem:[%s2920 + $0xac] sm:$0x8]
        %v2943 = vld [vmem:[%s2920 + $0xb0] sm:$0xf]
        %v2944 = vld [vmem:[%s2920 + $0xb4] sm:$0xf]
        %v2945 = vld [vmem:[%s2920 + $0xc4] sm:$0x8]
        %v2946 = vld [vmem:[%s2920 + $0xc8] sm:$0xf]
        %v2947 = vld [vmem:[%s2920 + $0xcc] sm:$0xf]
        %v2948 = vld [vmem:[%s2920 + $0xdc] sm:$0x8]
        %v2949 = vld [vmem:[%s2920 + $0xe0] sm:$0xf]
        %v2950 = vld [vmem:[%s2920 + $0xe4] sm:$0xf]
        %v2951 = vld [vmem:[%s2920 + $0xf4] sm:$0x8]
        %v2952 = vld [vmem:[%s2920 + $0xf8] sm:$0xf]
        %v2953 = vld [vmem:[%s2920 + $0xfc] sm:$0xf]
        %v2954 = vld [vmem:[%s2920 + $0x10c] sm:$0x8]
        %v2955 = vld [vmem:[%s2920 + $0x110] sm:$0xf]
        %v2956 = vld [vmem:[%s2920 + $0x114] sm:$0xf]
        %v2957 = vld [vmem:[%s2920 + $0x124] sm:$0x8]
        %v2958 = vld [vmem:[%s2920 + $0x128] sm:$0xf]
        %v2959 = vld [vmem:[%s2920 + $0x12c] sm:$0xf]
        %v2960 = vld [vmem:[%s2920 + $0x13c] sm:$0x8]
        %v2961 = vld [vmem:[%s2920 + $0x140] sm:$0xf]
        %v2962 = vld [vmem:[%s2920 + $0x144] sm:$0xf]
        %v2963 = vld [vmem:[%s2920 + $0x154] sm:$0x8]
        %v2964 = vld [vmem:[%s2920 + $0x158] sm:$0xf]
        %v2965 = vld [vmem:[%s2920 + $0x15c] sm:$0xf]
        %v2966 = vld [vmem:[%s2920 + $0x16c] sm:$0x8]
        %v2967 = vld [vmem:[%s2920 + $0x170] sm:$0xf]
        %v2968 = vld [vmem:[%s2920 + $0x174] sm:$0xf]
        %v2970 = vshrl.u32 %v2921, 16
        %v2972 = vrot.slane %v2970, 7
        %v2973 = vrot.slane %v2972, 4
        %v2975 = vshrl.u32 %v2922, 16
        %v2977 = vrot.slane %v2975, 7
        %v2978 = vshll.u32 %v2922, 16
        %v2980 = vor.u32 %v2977, %v2978
        %v2981 = vsel %vm916, %v2973, %v2980
        %v2982 = vrot.slane %v2977, 4
        %v2984 = vshrl.u32 %v2923, 16
        %v2986 = vrot.slane %v2984, 7
        %v2987 = vshll.u32 %v2923, 16
        %v2989 = vor.u32 %v2986, %v2987
        %v2990 = vsel %vm916, %v2982, %v2989
        %v2992 = vshrl.u32 %v2924, 16
        %v2994 = vrot.slane %v2992, 7
        %v2995 = vrot.slane %v2994, 4
        %v2997 = vshrl.u32 %v2925, 16
        %v2999 = vrot.slane %v2997, 7
        %v3000 = vshll.u32 %v2925, 16
        %v3002 = vor.u32 %v2999, %v3000
        %v3003 = vsel %vm916, %v2995, %v3002
        %v3004 = vrot.slane %v2999, 4
        %v3006 = vshrl.u32 %v2926, 16
        %v3008 = vrot.slane %v3006, 7
        %v3009 = vshll.u32 %v2926, 16
        %v3011 = vor.u32 %v3008, %v3009
        %v3012 = vsel %vm916, %v3004, %v3011
        %v3014 = vshrl.u32 %v2927, 16
        %v3016 = vrot.slane %v3014, 7
        %v3017 = vrot.slane %v3016, 4
        %v3019 = vshrl.u32 %v2928, 16
        %v3021 = vrot.slane %v3019, 7
        %v3022 = vshll.u32 %v2928, 16
        %v3024 = vor.u32 %v3021, %v3022
        %v3025 = vsel %vm916, %v3017, %v3024
        %v3026 = vrot.slane %v3021, 4
        %v3028 = vshrl.u32 %v2929, 16
        %v3030 = vrot.slane %v3028, 7
        %v3031 = vshll.u32 %v2929, 16
        %v3033 = vor.u32 %v3030, %v3031
        %v3034 = vsel %vm916, %v3026, %v3033
        %v3036 = vshrl.u32 %v2930, 16
        %v3038 = vrot.slane %v3036, 7
        %v3039 = vrot.slane %v3038, 4
        %v3041 = vshrl.u32 %v2931, 16
        %v3043 = vrot.slane %v3041, 7
        %v3044 = vshll.u32 %v2931, 16
        %v3046 = vor.u32 %v3043, %v3044
        %v3047 = vsel %vm916, %v3039, %v3046
        %v3048 = vrot.slane %v3043, 4
        %v3050 = vshrl.u32 %v2932, 16
        %v3052 = vrot.slane %v3050, 7
        %v3053 = vshll.u32 %v2932, 16
        %v3055 = vor.u32 %v3052, %v3053
        %v3056 = vsel %vm916, %v3048, %v3055
        %v3058 = vshrl.u32 %v2933, 16
        %v3060 = vrot.slane %v3058, 7
        %v3061 = vrot.slane %v3060, 4
        %v3063 = vshrl.u32 %v2934, 16
        %v3065 = vrot.slane %v3063, 7
        %v3066 = vshll.u32 %v2934, 16
        %v3068 = vor.u32 %v3065, %v3066
        %v3069 = vsel %vm916, %v3061, %v3068
        %v3070 = vrot.slane %v3065, 4
        %v3072 = vshrl.u32 %v2935, 16
        %v3074 = vrot.slane %v3072, 7
        %v3075 = vshll.u32 %v2935, 16
        %v3077 = vor.u32 %v3074, %v3075
        %v3078 = vsel %vm916, %v3070, %v3077
        %v3080 = vshrl.u32 %v2936, 16
        %v3082 = vrot.slane %v3080, 7
        %v3083 = vrot.slane %v3082, 4
        %v3085 = vshrl.u32 %v2937, 16
        %v3087 = vrot.slane %v3085, 7
        %v3088 = vshll.u32 %v2937, 16
        %v3090 = vor.u32 %v3087, %v3088
        %v3091 = vsel %vm916, %v3083, %v3090
        %v3092 = vrot.slane %v3087, 4
        %v3094 = vshrl.u32 %v2938, 16
        %v3096 = vrot.slane %v3094, 7
        %v3097 = vshll.u32 %v2938, 16
        %v3099 = vor.u32 %v3096, %v3097
        %v3100 = vsel %vm916, %v3092, %v3099
        %v3102 = vshrl.u32 %v2939, 16
        %v3104 = vrot.slane %v3102, 7
        %v3105 = vrot.slane %v3104, 4
        %v3107 = vshrl.u32 %v2940, 16
        %v3109 = vrot.slane %v3107, 7
        %v3110 = vshll.u32 %v2940, 16
        %v3112 = vor.u32 %v3109, %v3110
        %v3113 = vsel %vm916, %v3105, %v3112
        %v3114 = vrot.slane %v3109, 4
        %v3116 = vshrl.u32 %v2941, 16
        %v3118 = vrot.slane %v3116, 7
        %v3119 = vshll.u32 %v2941, 16
        %v3121 = vor.u32 %v3118, %v3119
        %v3122 = vsel %vm916, %v3114, %v3121
        %v3124 = vshrl.u32 %v2942, 16
        %v3126 = vrot.slane %v3124, 7
        %v3127 = vrot.slane %v3126, 4
        %v3129 = vshrl.u32 %v2943, 16
        %v3131 = vrot.slane %v3129, 7
        %v3132 = vshll.u32 %v2943, 16
        %v3134 = vor.u32 %v3131, %v3132
        %v3135 = vsel %vm916, %v3127, %v3134
        %v3136 = vrot.slane %v3131, 4
        %v3138 = vshrl.u32 %v2944, 16
        %v3140 = vrot.slane %v3138, 7
        %v3141 = vshll.u32 %v2944, 16
        %v3143 = vor.u32 %v3140, %v3141
        %v3144 = vsel %vm916, %v3136, %v3143
        %v3146 = vshrl.u32 %v2945, 16
        %v3148 = vrot.slane %v3146, 7
        %v3149 = vrot.slane %v3148, 4
        %v3151 = vshrl.u32 %v2946, 16
        %v3153 = vrot.slane %v3151, 7
        %v3154 = vshll.u32 %v2946, 16
        %v3156 = vor.u32 %v3153, %v3154
        %v3157 = vsel %vm916, %v3149, %v3156
        %v3158 = vrot.slane %v3153, 4
        %v3160 = vshrl.u32 %v2947, 16
        %v3162 = vrot.slane %v3160, 7
        %v3163 = vshll.u32 %v2947, 16
        %v3165 = vor.u32 %v3162, %v3163
        %v3166 = vsel %vm916, %v3158, %v3165
        %v3168 = vshrl.u32 %v2948, 16
        %v3170 = vrot.slane %v3168, 7
        %v3171 = vrot.slane %v3170, 4
        %v3173 = vshrl.u32 %v2949, 16
        %v3175 = vrot.slane %v3173, 7
        %v3176 = vshll.u32 %v2949, 16
        %v3178 = vor.u32 %v3175, %v3176
        %v3179 = vsel %vm916, %v3171, %v3178
        %v3180 = vrot.slane %v3175, 4
        %v3182 = vshrl.u32 %v2950, 16
        %v3184 = vrot.slane %v3182, 7
        %v3185 = vshll.u32 %v2950, 16
        %v3187 = vor.u32 %v3184, %v3185
        %v3188 = vsel %vm916, %v3180, %v3187
        %v3190 = vshrl.u32 %v2951, 16
        %v3192 = vrot.slane %v3190, 7
        %v3193 = vrot.slane %v3192, 4
        %v3195 = vshrl.u32 %v2952, 16
        %v3197 = vrot.slane %v3195, 7
        %v3198 = vshll.u32 %v2952, 16
        %v3200 = vor.u32 %v3197, %v3198
        %v3201 = vsel %vm916, %v3193, %v3200
        %v3202 = vrot.slane %v3197, 4
        %v3204 = vshrl.u32 %v2953, 16
        %v3206 = vrot.slane %v3204, 7
        %v3207 = vshll.u32 %v2953, 16
        %v3209 = vor.u32 %v3206, %v3207
        %v3210 = vsel %vm916, %v3202, %v3209
        %v3212 = vshrl.u32 %v2954, 16
        %v3214 = vrot.slane %v3212, 7
        %v3215 = vrot.slane %v3214, 4
        %v3217 = vshrl.u32 %v2955, 16
        %v3219 = vrot.slane %v3217, 7
        %v3220 = vshll.u32 %v2955, 16
        %v3222 = vor.u32 %v3219, %v3220
        %v3223 = vsel %vm916, %v3215, %v3222
        %v3224 = vrot.slane %v3219, 4
        %v3226 = vshrl.u32 %v2956, 16
        %v3228 = vrot.slane %v3226, 7
        %v3229 = vshll.u32 %v2956, 16
        %v3231 = vor.u32 %v3228, %v3229
        %v3232 = vsel %vm916, %v3224, %v3231
        %v3234 = vshrl.u32 %v2957, 16
        %v3236 = vrot.slane %v3234, 7
        %v3237 = vrot.slane %v3236, 4
        %v3239 = vshrl.u32 %v2958, 16
        %v3241 = vrot.slane %v3239, 7
        %v3242 = vshll.u32 %v2958, 16
        %v3244 = vor.u32 %v3241, %v3242
        %v3245 = vsel %vm916, %v3237, %v3244
        %v3246 = vrot.slane %v3241, 4
        %v3248 = vshrl.u32 %v2959, 16
        %v3250 = vrot.slane %v3248, 7
        %v3251 = vshll.u32 %v2959, 16
        %v3253 = vor.u32 %v3250, %v3251
        %v3254 = vsel %vm916, %v3246, %v3253
        %v3256 = vshrl.u32 %v2960, 16
        %v3258 = vrot.slane %v3256, 7
        %v3259 = vrot.slane %v3258, 4
        %v3261 = vshrl.u32 %v2961, 16
        %v3263 = vrot.slane %v3261, 7
        %v3264 = vshll.u32 %v2961, 16
        %v3266 = vor.u32 %v3263, %v3264
        %v3267 = vsel %vm916, %v3259, %v3266
        %v3268 = vrot.slane %v3263, 4
        %v3270 = vshrl.u32 %v2962, 16
        %v3272 = vrot.slane %v3270, 7
        %v3273 = vshll.u32 %v2962, 16
        %v3275 = vor.u32 %v3272, %v3273
        %v3276 = vsel %vm916, %v3268, %v3275
        %v3278 = vshrl.u32 %v2963, 16
        %v3280 = vrot.slane %v3278, 7
        %v3281 = vrot.slane %v3280, 4
        %v3283 = vshrl.u32 %v2964, 16
        %v3285 = vrot.slane %v3283, 7
        %v3286 = vshll.u32 %v2964, 16
        %v3288 = vor.u32 %v3285, %v3286
        %v3289 = vsel %vm916, %v3281, %v3288
        %v3290 = vrot.slane %v3285, 4
        %v3292 = vshrl.u32 %v2965, 16
        %v3294 = vrot.slane %v3292, 7
        %v3295 = vshll.u32 %v2965, 16
        %v3297 = vor.u32 %v3294, %v3295
        %v3298 = vsel %vm916, %v3290, %v3297
        %v3300 = vshrl.u32 %v2966, 16
        %v3302 = vrot.slane %v3300, 7
        %v3303 = vrot.slane %v3302, 4
        %v3305 = vshrl.u32 %v2967, 16
        %v3307 = vrot.slane %v3305, 7
        %v3308 = vshll.u32 %v2967, 16
        %v3310 = vor.u32 %v3307, %v3308
        %v3311 = vsel %vm916, %v3303, %v3310
        %v3312 = vrot.slane %v3307, 4
        %v3314 = vshrl.u32 %v2968, 16
        %v3316 = vrot.slane %v3314, 7
        %v3317 = vshll.u32 %v2968, 16
        %v3319 = vor.u32 %v3316, %v3317
        %v3320 = vsel %vm916, %v3312, %v3319
        %3353 = vst [vmem:[#allocation3 + $0x18] sm:$0xf] %v2981
        %3354 = vst [vmem:[#allocation3 + $0x3c] sm:$0xf] %v2990
        %3355 = vst [vmem:[#allocation3 + $0x60] sm:$0xf] %v3003
        %3356 = vst [vmem:[#allocation3 + $0x84] sm:$0xf] %v3012
        %3357 = vst [vmem:[#allocation3 + $0xa8] sm:$0xf] %v3025
        %3358 = vst [vmem:[#allocation3 + $0xcc] sm:$0xf] %v3034
        %3359 = vst [vmem:[#allocation3 + $0xf0] sm:$0xf] %v3047
        %3360 = vst [vmem:[#allocation3 + $0x114] sm:$0xf] %v3056
        %3361 = vst [vmem:[#allocation3 + $0x138] sm:$0xf] %v3069
        %3362 = vst [vmem:[#allocation3 + $0x15c] sm:$0xf] %v3078
        %3363 = vst [vmem:[#allocation3 + $0x180] sm:$0xf] %v3091
        %3364 = vst [vmem:[#allocation3 + $0x1a4] sm:$0xf] %v3100
        %3365 = vst [vmem:[#allocation3 + $0x1c8] sm:$0xf] %v3113
        %3366 = vst [vmem:[#allocation3 + $0x1ec] sm:$0xf] %v3122
        %3367 = vst [vmem:[#allocation3 + $0x210] sm:$0xf] %v3135
        %3368 = vst [vmem:[#allocation3 + $0x234] sm:$0xf] %v3144
        %3369 = vst [vmem:[#allocation3 + $0x258] sm:$0xf] %v3157
        %3370 = vst [vmem:[#allocation3 + $0x27c] sm:$0xf] %v3166
        %3371 = vst [vmem:[#allocation3 + $0x2a0] sm:$0xf] %v3179
        %3372 = vst [vmem:[#allocation3 + $0x2c4] sm:$0xf] %v3188
        %3373 = vst [vmem:[#allocation3 + $0x2e8] sm:$0xf] %v3201
        %3374 = vst [vmem:[#allocation3 + $0x30c] sm:$0xf] %v3210
        %3375 = vst [vmem:[#allocation3 + $0x330] sm:$0xf] %v3223
        %3376 = vst [vmem:[#allocation3 + $0x354] sm:$0xf] %v3232
        %3377 = vst [vmem:[#allocation3 + $0x378] sm:$0xf] %v3245
        %3378 = vst [vmem:[#allocation3 + $0x39c] sm:$0xf] %v3254
        %3379 = vst [vmem:[#allocation3 + $0x3c0] sm:$0xf] %v3267
        %3380 = vst [vmem:[#allocation3 + $0x3e4] sm:$0xf] %v3276
        %3381 = vst [vmem:[#allocation3 + $0x408] sm:$0xf] %v3289
        %3382 = vst [vmem:[#allocation3 + $0x42c] sm:$0xf] %v3298
        %3383 = vst [vmem:[#allocation3 + $0x450] sm:$0xf] %v3311
        %3384 = vst [vmem:[#allocation3 + $0x474] sm:$0xf] %v3320
        %v3385 = vld [vmem:[%s2920 + $0x8] sm:$0xf]
        %v3386 = vld [vmem:[%s2920 + $0xc] sm:$0xf]
        %v3387 = vld [vmem:[%s2920 + $0x20] sm:$0xf]
        %v3388 = vld [vmem:[%s2920 + $0x24] sm:$0xf]
        %v3389 = vld [vmem:[%s2920 + $0x38] sm:$0xf]
        %v3390 = vld [vmem:[%s2920 + $0x3c] sm:$0xf]
        %v3391 = vld [vmem:[%s2920 + $0x50] sm:$0xf]
        %v3392 = vld [vmem:[%s2920 + $0x54] sm:$0xf]
        %v3393 = vld [vmem:[%s2920 + $0x68] sm:$0xf]
        %v3394 = vld [vmem:[%s2920 + $0x6c] sm:$0xf]
        %v3395 = vld [vmem:[%s2920 + $0x80] sm:$0xf]
        %v3396 = vld [vmem:[%s2920 + $0x84] sm:$0xf]
        %v3397 = vld [vmem:[%s2920 + $0x98] sm:$0xf]
        %v3398 = vld [vmem:[%s2920 + $0x9c] sm:$0xf]
        %v3399 = vld [vmem:[%s2920 + $0xb0] sm:$0xf]
        %v3400 = vld [vmem:[%s2920 + $0xb4] sm:$0xf]
        %v3401 = vld [vmem:[%s2920 + $0xc8] sm:$0xf]
        %v3402 = vld [vmem:[%s2920 + $0xcc] sm:$0xf]
        %v3403 = vld [vmem:[%s2920 + $0xe0] sm:$0xf]
        %v3404 = vld [vmem:[%s2920 + $0xe4] sm:$0xf]
        %v3405 = vld [vmem:[%s2920 + $0xf8] sm:$0xf]
        %v3406 = vld [vmem:[%s2920 + $0xfc] sm:$0xf]
        %v3407 = vld [vmem:[%s2920 + $0x110] sm:$0xf]
        %v3408 = vld [vmem:[%s2920 + $0x114] sm:$0xf]
        %v3409 = vld [vmem:[%s2920 + $0x128] sm:$0xf]
        %v3410 = vld [vmem:[%s2920 + $0x12c] sm:$0xf]
        %v3411 = vld [vmem:[%s2920 + $0x140] sm:$0xf]
        %v3412 = vld [vmem:[%s2920 + $0x144] sm:$0xf]
        %v3413 = vld [vmem:[%s2920 + $0x158] sm:$0xf]
        %v3414 = vld [vmem:[%s2920 + $0x15c] sm:$0xf]
        %v3415 = vld [vmem:[%s2920 + $0x170] sm:$0xf]
        %v3416 = vld [vmem:[%s2920 + $0x174] sm:$0xf]
        %3417 = vst [vmem:[#allocation3 + $0x1c] sm:$0xf] %v3385
        %3418 = vst [vmem:[#allocation3 + $0x40] sm:$0xf] %v3386
        %3419 = vst [vmem:[#allocation3 + $0x64] sm:$0xf] %v3387
        %3420 = vst [vmem:[#allocation3 + $0x88] sm:$0xf] %v3388
        %3421 = vst [vmem:[#allocation3 + $0xac] sm:$0xf] %v3389
        %3422 = vst [vmem:[#allocation3 + $0xd0] sm:$0xf] %v3390
        %3423 = vst [vmem:[#allocation3 + $0xf4] sm:$0xf] %v3391
        %3424 = vst [vmem:[#allocation3 + $0x118] sm:$0xf] %v3392
        %3425 = vst [vmem:[#allocation3 + $0x13c] sm:$0xf] %v3393
        %3426 = vst [vmem:[#allocation3 + $0x160] sm:$0xf] %v3394
        %3427 = vst [vmem:[#allocation3 + $0x184] sm:$0xf] %v3395
        %3428 = vst [vmem:[#allocation3 + $0x1a8] sm:$0xf] %v3396
        %3429 = vst [vmem:[#allocation3 + $0x1cc] sm:$0xf] %v3397
        %3430 = vst [vmem:[#allocation3 + $0x1f0] sm:$0xf] %v3398
        %3431 = vst [vmem:[#allocation3 + $0x214] sm:$0xf] %v3399
        %3432 = vst [vmem:[#allocation3 + $0x238] sm:$0xf] %v3400
        %3433 = vst [vmem:[#allocation3 + $0x25c] sm:$0xf] %v3401
        %3434 = vst [vmem:[#allocation3 + $0x280] sm:$0xf] %v3402
        %3435 = vst [vmem:[#allocation3 + $0x2a4] sm:$0xf] %v3403
        %3436 = vst [vmem:[#allocation3 + $0x2c8] sm:$0xf] %v3404
        %3437 = vst [vmem:[#allocation3 + $0x2ec] sm:$0xf] %v3405
        %3438 = vst [vmem:[#allocation3 + $0x310] sm:$0xf] %v3406
        %3439 = vst [vmem:[#allocation3 + $0x334] sm:$0xf] %v3407
        %3440 = vst [vmem:[#allocation3 + $0x358] sm:$0xf] %v3408
        %3441 = vst [vmem:[#allocation3 + $0x37c] sm:$0xf] %v3409
        %3442 = vst [vmem:[#allocation3 + $0x3a0] sm:$0xf] %v3410
        %3443 = vst [vmem:[#allocation3 + $0x3c4] sm:$0xf] %v3411
        %3444 = vst [vmem:[#allocation3 + $0x3e8] sm:$0xf] %v3412
        %3445 = vst [vmem:[#allocation3 + $0x40c] sm:$0xf] %v3413
        %3446 = vst [vmem:[#allocation3 + $0x430] sm:$0xf] %v3414
        %3447 = vst [vmem:[#allocation3 + $0x454] sm:$0xf] %v3415
        %3448 = vst [vmem:[#allocation3 + $0x478] sm:$0xf] %v3416
        %v3449 = vld [vmem:[%s2920 + $0x8] sm:$0xf]
        %v3450 = vld [vmem:[%s2920 + $0xc] sm:$0xf]
        %v3451 = vld [vmem:[%s2920 + $0x10] sm:$0x1]
        %v3452 = vld [vmem:[%s2920 + $0x20] sm:$0xf]
        %v3453 = vld [vmem:[%s2920 + $0x24] sm:$0xf]
        %v3454 = vld [vmem:[%s2920 + $0x28] sm:$0x1]
        %v3455 = vld [vmem:[%s2920 + $0x38] sm:$0xf]
        %v3456 = vld [vmem:[%s2920 + $0x3c] sm:$0xf]
        %v3457 = vld [vmem:[%s2920 + $0x40] sm:$0x1]
        %v3458 = vld [vmem:[%s2920 + $0x50] sm:$0xf]
        %v3459 = vld [vmem:[%s2920 + $0x54] sm:$0xf]
        %v3460 = vld [vmem:[%s2920 + $0x58] sm:$0x1]
        %v3461 = vld [vmem:[%s2920 + $0x68] sm:$0xf]
        %v3462 = vld [vmem:[%s2920 + $0x6c] sm:$0xf]
        %v3463 = vld [vmem:[%s2920 + $0x70] sm:$0x1]
        %v3464 = vld [vmem:[%s2920 + $0x80] sm:$0xf]
        %v3465 = vld [vmem:[%s2920 + $0x84] sm:$0xf]
        %v3466 = vld [vmem:[%s2920 + $0x88] sm:$0x1]
        %v3467 = vld [vmem:[%s2920 + $0x98] sm:$0xf]
        %v3468 = vld [vmem:[%s2920 + $0x9c] sm:$0xf]
        %v3469 = vld [vmem:[%s2920 + $0xa0] sm:$0x1]
        %v3470 = vld [vmem:[%s2920 + $0xb0] sm:$0xf]
        %v3471 = vld [vmem:[%s2920 + $0xb4] sm:$0xf]
        %v3472 = vld [vmem:[%s2920 + $0xb8] sm:$0x1]
        %v3473 = vld [vmem:[%s2920 + $0xc8] sm:$0xf]
        %v3474 = vld [vmem:[%s2920 + $0xcc] sm:$0xf]
        %v3475 = vld [vmem:[%s2920 + $0xd0] sm:$0x1]
        %v3476 = vld [vmem:[%s2920 + $0xe0] sm:$0xf]
        %v3477 = vld [vmem:[%s2920 + $0xe4] sm:$0xf]
        %v3478 = vld [vmem:[%s2920 + $0xe8] sm:$0x1]
        %v3479 = vld [vmem:[%s2920 + $0xf8] sm:$0xf]
        %v3480 = vld [vmem:[%s2920 + $0xfc] sm:$0xf]
        %v3481 = vld [vmem:[%s2920 + $0x100] sm:$0x1]
        %v3482 = vld [vmem:[%s2920 + $0x110] sm:$0xf]
        %v3483 = vld [vmem:[%s2920 + $0x114] sm:$0xf]
        %v3484 = vld [vmem:[%s2920 + $0x118] sm:$0x1]
        %v3485 = vld [vmem:[%s2920 + $0x128] sm:$0xf]
        %v3486 = vld [vmem:[%s2920 + $0x12c] sm:$0xf]
        %v3487 = vld [vmem:[%s2920 + $0x130] sm:$0x1]
        %v3488 = vld [vmem:[%s2920 + $0x140] sm:$0xf]
        %v3489 = vld [vmem:[%s2920 + $0x144] sm:$0xf]
        %v3490 = vld [vmem:[%s2920 + $0x148] sm:$0x1]
        %v3491 = vld [vmem:[%s2920 + $0x158] sm:$0xf]
        %v3492 = vld [vmem:[%s2920 + $0x15c] sm:$0xf]
        %v3493 = vld [vmem:[%s2920 + $0x160] sm:$0x1]
        %v3494 = vld [vmem:[%s2920 + $0x170] sm:$0xf]
        %v3495 = vld [vmem:[%s2920 + $0x174] sm:$0xf]
        %v3496 = vld [vmem:[%s2920 + $0x178] sm:$0x1]
        %v3498 = vshrl.u32 %v3449, 16
        %v3500 = vrot.slane %v3498, 4
        %v3501 = vshll.u32 %v3449, 16
        %v3503 = vrot.slane %v3501, 5
        %v3504 = vor.u32 %v3500, %v3503
        %v3505 = vrot.slane %v3504, 4
        %v3507 = vshll.u32 %v3450, 16
        %v3509 = vrot.slane %v3507, 5
        %v3510 = vsel %vm1447, %v3505, %v3509
        %v3511 = vshrl.u32 %v3450, 16
        %v3513 = vrot.slane %v3511, 4
        %v3514 = vor.u32 %v3513, %v3509
        %v3515 = vrot.slane %v3514, 4
        %v3517 = vshll.u32 %v3451, 16
        %v3519 = vrot.slane %v3517, 5
        %v3520 = vsel %vm1447, %v3515, %v3519
        %v3522 = vshrl.u32 %v3452, 16
        %v3524 = vrot.slane %v3522, 4
        %v3525 = vshll.u32 %v3452, 16
        %v3527 = vrot.slane %v3525, 5
        %v3528 = vor.u32 %v3524, %v3527
        %v3529 = vrot.slane %v3528, 4
        %v3531 = vshll.u32 %v3453, 16
        %v3533 = vrot.slane %v3531, 5
        %v3534 = vsel %vm1447, %v3529, %v3533
        %v3535 = vshrl.u32 %v3453, 16
        %v3537 = vrot.slane %v3535, 4
        %v3538 = vor.u32 %v3537, %v3533
        %v3539 = vrot.slane %v3538, 4
        %v3541 = vshll.u32 %v3454, 16
        %v3543 = vrot.slane %v3541, 5
        %v3544 = vsel %vm1447, %v3539, %v3543
        %v3546 = vshrl.u32 %v3455, 16
        %v3548 = vrot.slane %v3546, 4
        %v3549 = vshll.u32 %v3455, 16
        %v3551 = vrot.slane %v3549, 5
        %v3552 = vor.u32 %v3548, %v3551
        %v3553 = vrot.slane %v3552, 4
        %v3555 = vshll.u32 %v3456, 16
        %v3557 = vrot.slane %v3555, 5
        %v3558 = vsel %vm1447, %v3553, %v3557
        %v3559 = vshrl.u32 %v3456, 16
        %v3561 = vrot.slane %v3559, 4
        %v3562 = vor.u32 %v3561, %v3557
        %v3563 = vrot.slane %v3562, 4
        %v3565 = vshll.u32 %v3457, 16
        %v3567 = vrot.slane %v3565, 5
        %v3568 = vsel %vm1447, %v3563, %v3567
        %v3570 = vshrl.u32 %v3458, 16
        %v3572 = vrot.slane %v3570, 4
        %v3573 = vshll.u32 %v3458, 16
        %v3575 = vrot.slane %v3573, 5
        %v3576 = vor.u32 %v3572, %v3575
        %v3577 = vrot.slane %v3576, 4
        %v3579 = vshll.u32 %v3459, 16
        %v3581 = vrot.slane %v3579, 5
        %v3582 = vsel %vm1447, %v3577, %v3581
        %v3583 = vshrl.u32 %v3459, 16
        %v3585 = vrot.slane %v3583, 4
        %v3586 = vor.u32 %v3585, %v3581
        %v3587 = vrot.slane %v3586, 4
        %v3589 = vshll.u32 %v3460, 16
        %v3591 = vrot.slane %v3589, 5
        %v3592 = vsel %vm1447, %v3587, %v3591
        %v3594 = vshrl.u32 %v3461, 16
        %v3596 = vrot.slane %v3594, 4
        %v3597 = vshll.u32 %v3461, 16
        %v3599 = vrot.slane %v3597, 5
        %v3600 = vor.u32 %v3596, %v3599
        %v3601 = vrot.slane %v3600, 4
        %v3603 = vshll.u32 %v3462, 16
        %v3605 = vrot.slane %v3603, 5
        %v3606 = vsel %vm1447, %v3601, %v3605
        %v3607 = vshrl.u32 %v3462, 16
        %v3609 = vrot.slane %v3607, 4
        %v3610 = vor.u32 %v3609, %v3605
        %v3611 = vrot.slane %v3610, 4
        %v3613 = vshll.u32 %v3463, 16
        %v3615 = vrot.slane %v3613, 5
        %v3616 = vsel %vm1447, %v3611, %v3615
        %v3618 = vshrl.u32 %v3464, 16
        %v3620 = vrot.slane %v3618, 4
        %v3621 = vshll.u32 %v3464, 16
        %v3623 = vrot.slane %v3621, 5
        %v3624 = vor.u32 %v3620, %v3623
        %v3625 = vrot.slane %v3624, 4
        %v3627 = vshll.u32 %v3465, 16
        %v3629 = vrot.slane %v3627, 5
        %v3630 = vsel %vm1447, %v3625, %v3629
        %v3631 = vshrl.u32 %v3465, 16
        %v3633 = vrot.slane %v3631, 4
        %v3634 = vor.u32 %v3633, %v3629
        %v3635 = vrot.slane %v3634, 4
        %v3637 = vshll.u32 %v3466, 16
        %v3639 = vrot.slane %v3637, 5
        %v3640 = vsel %vm1447, %v3635, %v3639
        %v3642 = vshrl.u32 %v3467, 16
        %v3644 = vrot.slane %v3642, 4
        %v3645 = vshll.u32 %v3467, 16
        %v3647 = vrot.slane %v3645, 5
        %v3648 = vor.u32 %v3644, %v3647
        %v3649 = vrot.slane %v3648, 4
        %v3651 = vshll.u32 %v3468, 16
        %v3653 = vrot.slane %v3651, 5
        %v3654 = vsel %vm1447, %v3649, %v3653
        %v3655 = vshrl.u32 %v3468, 16
        %v3657 = vrot.slane %v3655, 4
        %v3658 = vor.u32 %v3657, %v3653
        %v3659 = vrot.slane %v3658, 4
        %v3661 = vshll.u32 %v3469, 16
        %v3663 = vrot.slane %v3661, 5
        %v3664 = vsel %vm1447, %v3659, %v3663
        %v3666 = vshrl.u32 %v3470, 16
        %v3668 = vrot.slane %v3666, 4
        %v3669 = vshll.u32 %v3470, 16
        %v3671 = vrot.slane %v3669, 5
        %v3672 = vor.u32 %v3668, %v3671
        %v3673 = vrot.slane %v3672, 4
        %v3675 = vshll.u32 %v3471, 16
        %v3677 = vrot.slane %v3675, 5
        %v3678 = vsel %vm1447, %v3673, %v3677
        %v3679 = vshrl.u32 %v3471, 16
        %v3681 = vrot.slane %v3679, 4
        %v3682 = vor.u32 %v3681, %v3677
        %v3683 = vrot.slane %v3682, 4
        %v3685 = vshll.u32 %v3472, 16
        %v3687 = vrot.slane %v3685, 5
        %v3688 = vsel %vm1447, %v3683, %v3687
        %v3690 = vshrl.u32 %v3473, 16
        %v3692 = vrot.slane %v3690, 4
        %v3693 = vshll.u32 %v3473, 16
        %v3695 = vrot.slane %v3693, 5
        %v3696 = vor.u32 %v3692, %v3695
        %v3697 = vrot.slane %v3696, 4
        %v3699 = vshll.u32 %v3474, 16
        %v3701 = vrot.slane %v3699, 5
        %v3702 = vsel %vm1447, %v3697, %v3701
        %v3703 = vshrl.u32 %v3474, 16
        %v3705 = vrot.slane %v3703, 4
        %v3706 = vor.u32 %v3705, %v3701
        %v3707 = vrot.slane %v3706, 4
        %v3709 = vshll.u32 %v3475, 16
        %v3711 = vrot.slane %v3709, 5
        %v3712 = vsel %vm1447, %v3707, %v3711
        %v3714 = vshrl.u32 %v3476, 16
        %v3716 = vrot.slane %v3714, 4
        %v3717 = vshll.u32 %v3476, 16
        %v3719 = vrot.slane %v3717, 5
        %v3720 = vor.u32 %v3716, %v3719
        %v3721 = vrot.slane %v3720, 4
        %v3723 = vshll.u32 %v3477, 16
        %v3725 = vrot.slane %v3723, 5
        %v3726 = vsel %vm1447, %v3721, %v3725
        %v3727 = vshrl.u32 %v3477, 16
        %v3729 = vrot.slane %v3727, 4
        %v3730 = vor.u32 %v3729, %v3725
        %v3731 = vrot.slane %v3730, 4
        %v3733 = vshll.u32 %v3478, 16
        %v3735 = vrot.slane %v3733, 5
        %v3736 = vsel %vm1447, %v3731, %v3735
        %v3738 = vshrl.u32 %v3479, 16
        %v3740 = vrot.slane %v3738, 4
        %v3741 = vshll.u32 %v3479, 16
        %v3743 = vrot.slane %v3741, 5
        %v3744 = vor.u32 %v3740, %v3743
        %v3745 = vrot.slane %v3744, 4
        %v3747 = vshll.u32 %v3480, 16
        %v3749 = vrot.slane %v3747, 5
        %v3750 = vsel %vm1447, %v3745, %v3749
        %v3751 = vshrl.u32 %v3480, 16
        %v3753 = vrot.slane %v3751, 4
        %v3754 = vor.u32 %v3753, %v3749
        %v3755 = vrot.slane %v3754, 4
        %v3757 = vshll.u32 %v3481, 16
        %v3759 = vrot.slane %v3757, 5
        %v3760 = vsel %vm1447, %v3755, %v3759
        %v3762 = vshrl.u32 %v3482, 16
        %v3764 = vrot.slane %v3762, 4
        %v3765 = vshll.u32 %v3482, 16
        %v3767 = vrot.slane %v3765, 5
        %v3768 = vor.u32 %v3764, %v3767
        %v3769 = vrot.slane %v3768, 4
        %v3771 = vshll.u32 %v3483, 16
        %v3773 = vrot.slane %v3771, 5
        %v3774 = vsel %vm1447, %v3769, %v3773
        %v3775 = vshrl.u32 %v3483, 16
        %v3777 = vrot.slane %v3775, 4
        %v3778 = vor.u32 %v3777, %v3773
        %v3779 = vrot.slane %v3778, 4
        %v3781 = vshll.u32 %v3484, 16
        %v3783 = vrot.slane %v3781, 5
        %v3784 = vsel %vm1447, %v3779, %v3783
        %v3786 = vshrl.u32 %v3485, 16
        %v3788 = vrot.slane %v3786, 4
        %v3789 = vshll.u32 %v3485, 16
        %v3791 = vrot.slane %v3789, 5
        %v3792 = vor.u32 %v3788, %v3791
        %v3793 = vrot.slane %v3792, 4
        %v3795 = vshll.u32 %v3486, 16
        %v3797 = vrot.slane %v3795, 5
        %v3798 = vsel %vm1447, %v3793, %v3797
        %v3799 = vshrl.u32 %v3486, 16
        %v3801 = vrot.slane %v3799, 4
        %v3802 = vor.u32 %v3801, %v3797
        %v3803 = vrot.slane %v3802, 4
        %v3805 = vshll.u32 %v3487, 16
        %v3807 = vrot.slane %v3805, 5
        %v3808 = vsel %vm1447, %v3803, %v3807
        %v3810 = vshrl.u32 %v3488, 16
        %v3812 = vrot.slane %v3810, 4
        %v3813 = vshll.u32 %v3488, 16
        %v3815 = vrot.slane %v3813, 5
        %v3816 = vor.u32 %v3812, %v3815
        %v3817 = vrot.slane %v3816, 4
        %v3819 = vshll.u32 %v3489, 16
        %v3821 = vrot.slane %v3819, 5
        %v3822 = vsel %vm1447, %v3817, %v3821
        %v3823 = vshrl.u32 %v3489, 16
        %v3825 = vrot.slane %v3823, 4
        %v3826 = vor.u32 %v3825, %v3821
        %v3827 = vrot.slane %v3826, 4
        %v3829 = vshll.u32 %v3490, 16
        %v3831 = vrot.slane %v3829, 5
        %v3832 = vsel %vm1447, %v3827, %v3831
        %v3834 = vshrl.u32 %v3491, 16
        %v3836 = vrot.slane %v3834, 4
        %v3837 = vshll.u32 %v3491, 16
        %v3839 = vrot.slane %v3837, 5
        %v3840 = vor.u32 %v3836, %v3839
        %v3841 = vrot.slane %v3840, 4
        %v3843 = vshll.u32 %v3492, 16
        %v3845 = vrot.slane %v3843, 5
        %v3846 = vsel %vm1447, %v3841, %v3845
        %v3847 = vshrl.u32 %v3492, 16
        %v3849 = vrot.slane %v3847, 4
        %v3850 = vor.u32 %v3849, %v3845
        %v3851 = vrot.slane %v3850, 4
        %v3853 = vshll.u32 %v3493, 16
        %v3855 = vrot.slane %v3853, 5
        %v3856 = vsel %vm1447, %v3851, %v3855
        %v3858 = vshrl.u32 %v3494, 16
        %v3860 = vrot.slane %v3858, 4
        %v3861 = vshll.u32 %v3494, 16
        %v3863 = vrot.slane %v3861, 5
        %v3864 = vor.u32 %v3860, %v3863
        %v3865 = vrot.slane %v3864, 4
        %v3867 = vshll.u32 %v3495, 16
        %v3869 = vrot.slane %v3867, 5
        %v3870 = vsel %vm1447, %v3865, %v3869
        %v3871 = vshrl.u32 %v3495, 16
        %v3873 = vrot.slane %v3871, 4
        %v3874 = vor.u32 %v3873, %v3869
        %v3875 = vrot.slane %v3874, 4
        %v3877 = vshll.u32 %v3496, 16
        %v3879 = vrot.slane %v3877, 5
        %v3880 = vsel %vm1447, %v3875, %v3879
        %3913 = vst [vmem:[#allocation3 + $0x20] sm:$0xf] %v3510
        %3914 = vst [vmem:[#allocation3 + $0x44] sm:$0xf] %v3520
        %3915 = vst [vmem:[#allocation3 + $0x68] sm:$0xf] %v3534
        %3916 = vst [vmem:[#allocation3 + $0x8c] sm:$0xf] %v3544
        %3917 = vst [vmem:[#allocation3 + $0xb0] sm:$0xf] %v3558
        %3918 = vst [vmem:[#allocation3 + $0xd4] sm:$0xf] %v3568
        %3919 = vst [vmem:[#allocation3 + $0xf8] sm:$0xf] %v3582
        %3920 = vst [vmem:[#allocation3 + $0x11c] sm:$0xf] %v3592
        %3921 = vst [vmem:[#allocation3 + $0x140] sm:$0xf] %v3606
        %3922 = vst [vmem:[#allocation3 + $0x164] sm:$0xf] %v3616
        %3923 = vst [vmem:[#allocation3 + $0x188] sm:$0xf] %v3630
        %3924 = vst [vmem:[#allocation3 + $0x1ac] sm:$0xf] %v3640
        %3925 = vst [vmem:[#allocation3 + $0x1d0] sm:$0xf] %v3654
        %3926 = vst [vmem:[#allocation3 + $0x1f4] sm:$0xf] %v3664
        %3927 = vst [vmem:[#allocation3 + $0x218] sm:$0xf] %v3678
        %3928 = vst [vmem:[#allocation3 + $0x23c] sm:$0xf] %v3688
        %3929 = vst [vmem:[#allocation3 + $0x260] sm:$0xf] %v3702
        %3930 = vst [vmem:[#allocation3 + $0x284] sm:$0xf] %v3712
        %3931 = vst [vmem:[#allocation3 + $0x2a8] sm:$0xf] %v3726
        %3932 = vst [vmem:[#allocation3 + $0x2cc] sm:$0xf] %v3736
        %3933 = vst [vmem:[#allocation3 + $0x2f0] sm:$0xf] %v3750
        %3934 = vst [vmem:[#allocation3 + $0x314] sm:$0xf] %v3760
        %3935 = vst [vmem:[#allocation3 + $0x338] sm:$0xf] %v3774
        %3936 = vst [vmem:[#allocation3 + $0x35c] sm:$0xf] %v3784
        %3937 = vst [vmem:[#allocation3 + $0x380] sm:$0xf] %v3798
        %3938 = vst [vmem:[#allocation3 + $0x3a4] sm:$0xf] %v3808
        %3939 = vst [vmem:[#allocation3 + $0x3c8] sm:$0xf] %v3822
        %3940 = vst [vmem:[#allocation3 + $0x3ec] sm:$0xf] %v3832
        %3941 = vst [vmem:[#allocation3 + $0x410] sm:$0xf] %v3846
        %3942 = vst [vmem:[#allocation3 + $0x434] sm:$0xf] %v3856
        %3943 = vst [vmem:[#allocation3 + $0x458] sm:$0xf] %v3870
        %3944 = vst [vmem:[#allocation3 + $0x47c] sm:$0xf] %v3880
        %v3945 = vld [vmem:[#allocation3] sm:$0xff]
        %v3946 = vld [vmem:[#allocation3 + $0x8] sm:$0xff]
        %v3947 = vld [vmem:[#allocation3 + $0x10] sm:$0xff]
        %v3948 = vld [vmem:[#allocation3 + $0x18] sm:$0xff]
        %v3949 = vld [vmem:[#allocation3 + $0x20] sm:$0xf]
        %v3950 = vld [vmem:[#allocation3 + $0x24] sm:$0xff]
        %v3951 = vld [vmem:[#allocation3 + $0x2c] sm:$0xff]
        %v3952 = vld [vmem:[#allocation3 + $0x34] sm:$0xff]
        %v3953 = vld [vmem:[#allocation3 + $0x3c] sm:$0xff]
        %v3954 = vld [vmem:[#allocation3 + $0x44] sm:$0xf]
        %v3955 = vld [vmem:[#allocation3 + $0x48] sm:$0xff]
        %v3956 = vld [vmem:[#allocation3 + $0x50] sm:$0xff]
        %v3957 = vld [vmem:[#allocation3 + $0x58] sm:$0xff]
        %v3958 = vld [vmem:[#allocation3 + $0x60] sm:$0xff]
        %v3959 = vld [vmem:[#allocation3 + $0x68] sm:$0xf]
        %v3960 = vld [vmem:[#allocation3 + $0x6c] sm:$0xff]
        %v3961 = vld [vmem:[#allocation3 + $0x74] sm:$0xff]
        %v3962 = vld [vmem:[#allocation3 + $0x7c] sm:$0xff]
        %v3963 = vld [vmem:[#allocation3 + $0x84] sm:$0xff]
        %v3964 = vld [vmem:[#allocation3 + $0x8c] sm:$0xf]
        %v3965 = vld [vmem:[#allocation3 + $0x90] sm:$0xff]
        %v3966 = vld [vmem:[#allocation3 + $0x98] sm:$0xff]
        %v3967 = vld [vmem:[#allocation3 + $0xa0] sm:$0xff]
        %v3968 = vld [vmem:[#allocation3 + $0xa8] sm:$0xff]
        %v3969 = vld [vmem:[#allocation3 + $0xb0] sm:$0xf]
        %v3970 = vld [vmem:[#allocation3 + $0xb4] sm:$0xff]
        %v3971 = vld [vmem:[#allocation3 + $0xbc] sm:$0xff]
        %v3972 = vld [vmem:[#allocation3 + $0xc4] sm:$0xff]
        %v3973 = vld [vmem:[#allocation3 + $0xcc] sm:$0xff]
        %v3974 = vld [vmem:[#allocation3 + $0xd4] sm:$0xf]
        %v3975 = vld [vmem:[#allocation3 + $0xd8] sm:$0xff]
        %v3976 = vld [vmem:[#allocation3 + $0xe0] sm:$0xff]
        %v3977 = vld [vmem:[#allocation3 + $0xe8] sm:$0xff]
        %v3978 = vld [vmem:[#allocation3 + $0xf0] sm:$0xff]
        %v3979 = vld [vmem:[#allocation3 + $0xf8] sm:$0xf]
        %v3980 = vld [vmem:[#allocation3 + $0xfc] sm:$0xff]
        %v3981 = vld [vmem:[#allocation3 + $0x104] sm:$0xff]
        %v3982 = vld [vmem:[#allocation3 + $0x10c] sm:$0xff]
        %v3983 = vld [vmem:[#allocation3 + $0x114] sm:$0xff]
        %v3984 = vld [vmem:[#allocation3 + $0x11c] sm:$0xf]
        %v3985 = vld [vmem:[#allocation3 + $0x120] sm:$0xff]
        %v3986 = vld [vmem:[#allocation3 + $0x128] sm:$0xff]
        %v3987 = vld [vmem:[#allocation3 + $0x130] sm:$0xff]
        %v3988 = vld [vmem:[#allocation3 + $0x138] sm:$0xff]
        %v3989 = vld [vmem:[#allocation3 + $0x140] sm:$0xf]
        %v3990 = vld [vmem:[#allocation3 + $0x144] sm:$0xff]
        %v3991 = vld [vmem:[#allocation3 + $0x14c] sm:$0xff]
        %v3992 = vld [vmem:[#allocation3 + $0x154] sm:$0xff]
        %v3993 = vld [vmem:[#allocation3 + $0x15c] sm:$0xff]
        %v3994 = vld [vmem:[#allocation3 + $0x164] sm:$0xf]
        %v3995 = vld [vmem:[#allocation3 + $0x168] sm:$0xff]
        %v3996 = vld [vmem:[#allocation3 + $0x170] sm:$0xff]
        %v3997 = vld [vmem:[#allocation3 + $0x178] sm:$0xff]
        %v3998 = vld [vmem:[#allocation3 + $0x180] sm:$0xff]
        %v3999 = vld [vmem:[#allocation3 + $0x188] sm:$0xf]
        %v4000 = vld [vmem:[#allocation3 + $0x18c] sm:$0xff]
        %v4001 = vld [vmem:[#allocation3 + $0x194] sm:$0xff]
        %v4002 = vld [vmem:[#allocation3 + $0x19c] sm:$0xff]
        %v4003 = vld [vmem:[#allocation3 + $0x1a4] sm:$0xff]
        %v4004 = vld [vmem:[#allocation3 + $0x1ac] sm:$0xf]
        %v4005 = vld [vmem:[#allocation3 + $0x1b0] sm:$0xff]
        %v4006 = vld [vmem:[#allocation3 + $0x1b8] sm:$0xff]
        %v4007 = vld [vmem:[#allocation3 + $0x1c0] sm:$0xff]
        %v4008 = vld [vmem:[#allocation3 + $0x1c8] sm:$0xff]
        %v4009 = vld [vmem:[#allocation3 + $0x1d0] sm:$0xf]
        %v4010 = vld [vmem:[#allocation3 + $0x1d4] sm:$0xff]
        %v4011 = vld [vmem:[#allocation3 + $0x1dc] sm:$0xff]
        %v4012 = vld [vmem:[#allocation3 + $0x1e4] sm:$0xff]
        %v4013 = vld [vmem:[#allocation3 + $0x1ec] sm:$0xff]
        %v4014 = vld [vmem:[#allocation3 + $0x1f4] sm:$0xf]
        %v4015 = vld [vmem:[#allocation3 + $0x1f8] sm:$0xff]
        %v4016 = vld [vmem:[#allocation3 + $0x200] sm:$0xff]
        %v4017 = vld [vmem:[#allocation3 + $0x208] sm:$0xff]
        %v4018 = vld [vmem:[#allocation3 + $0x210] sm:$0xff]
        %v4019 = vld [vmem:[#allocation3 + $0x218] sm:$0xf]
        %v4020 = vld [vmem:[#allocation3 + $0x21c] sm:$0xff]
        %v4021 = vld [vmem:[#allocation3 + $0x224] sm:$0xff]
        %v4022 = vld [vmem:[#allocation3 + $0x22c] sm:$0xff]
        %v4023 = vld [vmem:[#allocation3 + $0x234] sm:$0xff]
        %v4024 = vld [vmem:[#allocation3 + $0x23c] sm:$0xf]
        %v4025 = vld [vmem:[#allocation3 + $0x240] sm:$0xff]
        %v4026 = vld [vmem:[#allocation3 + $0x248] sm:$0xff]
        %v4027 = vld [vmem:[#allocation3 + $0x250] sm:$0xff]
        %v4028 = vld [vmem:[#allocation3 + $0x258] sm:$0xff]
        %v4029 = vld [vmem:[#allocation3 + $0x260] sm:$0xf]
        %v4030 = vld [vmem:[#allocation3 + $0x264] sm:$0xff]
        %v4031 = vld [vmem:[#allocation3 + $0x26c] sm:$0xff]
        %v4032 = vld [vmem:[#allocation3 + $0x274] sm:$0xff]
        %v4033 = vld [vmem:[#allocation3 + $0x27c] sm:$0xff]
        %v4034 = vld [vmem:[#allocation3 + $0x284] sm:$0xf]
        %v4035 = vld [vmem:[#allocation3 + $0x288] sm:$0xff]
        %v4036 = vld [vmem:[#allocation3 + $0x290] sm:$0xff]
        %v4037 = vld [vmem:[#allocation3 + $0x298] sm:$0xff]
        %v4038 = vld [vmem:[#allocation3 + $0x2a0] sm:$0xff]
        %v4039 = vld [vmem:[#allocation3 + $0x2a8] sm:$0xf]
        %v4040 = vld [vmem:[#allocation3 + $0x2ac] sm:$0xff]
        %v4041 = vld [vmem:[#allocation3 + $0x2b4] sm:$0xff]
        %v4042 = vld [vmem:[#allocation3 + $0x2bc] sm:$0xff]
        %v4043 = vld [vmem:[#allocation3 + $0x2c4] sm:$0xff]
        %v4044 = vld [vmem:[#allocation3 + $0x2cc] sm:$0xf]
        %v4045 = vld [vmem:[#allocation3 + $0x2d0] sm:$0xff]
        %v4046 = vld [vmem:[#allocation3 + $0x2d8] sm:$0xff]
        %v4047 = vld [vmem:[#allocation3 + $0x2e0] sm:$0xff]
        %v4048 = vld [vmem:[#allocation3 + $0x2e8] sm:$0xff]
        %v4049 = vld [vmem:[#allocation3 + $0x2f0] sm:$0xf]
        %v4050 = vld [vmem:[#allocation3 + $0x2f4] sm:$0xff]
        %v4051 = vld [vmem:[#allocation3 + $0x2fc] sm:$0xff]
        %v4052 = vld [vmem:[#allocation3 + $0x304] sm:$0xff]
        %v4053 = vld [vmem:[#allocation3 + $0x30c] sm:$0xff]
        %v4054 = vld [vmem:[#allocation3 + $0x314] sm:$0xf]
        %v4055 = vld [vmem:[#allocation3 + $0x318] sm:$0xff]
        %v4056 = vld [vmem:[#allocation3 + $0x320] sm:$0xff]
        %v4057 = vld [vmem:[#allocation3 + $0x328] sm:$0xff]
        %v4058 = vld [vmem:[#allocation3 + $0x330] sm:$0xff]
        %v4059 = vld [vmem:[#allocation3 + $0x338] sm:$0xf]
        %v4060 = vld [vmem:[#allocation3 + $0x33c] sm:$0xff]
        %v4061 = vld [vmem:[#allocation3 + $0x344] sm:$0xff]
        %v4062 = vld [vmem:[#allocation3 + $0x34c] sm:$0xff]
        %v4063 = vld [vmem:[#allocation3 + $0x354] sm:$0xff]
        %v4064 = vld [vmem:[#allocation3 + $0x35c] sm:$0xf]
        %v4065 = vld [vmem:[#allocation3 + $0x360] sm:$0xff]
        %v4066 = vld [vmem:[#allocation3 + $0x368] sm:$0xff]
        %v4067 = vld [vmem:[#allocation3 + $0x370] sm:$0xff]
        %v4068 = vld [vmem:[#allocation3 + $0x378] sm:$0xff]
        %v4069 = vld [vmem:[#allocation3 + $0x380] sm:$0xf]
        %v4070 = vld [vmem:[#allocation3 + $0x384] sm:$0xff]
        %v4071 = vld [vmem:[#allocation3 + $0x38c] sm:$0xff]
        %v4072 = vld [vmem:[#allocation3 + $0x394] sm:$0xff]
        %v4073 = vld [vmem:[#allocation3 + $0x39c] sm:$0xff]
        %v4074 = vld [vmem:[#allocation3 + $0x3a4] sm:$0xf]
        %v4075 = vld [vmem:[#allocation3 + $0x3a8] sm:$0xff]
        %v4076 = vld [vmem:[#allocation3 + $0x3b0] sm:$0xff]
        %v4077 = vld [vmem:[#allocation3 + $0x3b8] sm:$0xff]
        %v4078 = vld [vmem:[#allocation3 + $0x3c0] sm:$0xff]
        %v4079 = vld [vmem:[#allocation3 + $0x3c8] sm:$0xf]
        %v4080 = vld [vmem:[#allocation3 + $0x3cc] sm:$0xff]
        %v4081 = vld [vmem:[#allocation3 + $0x3d4] sm:$0xff]
        %v4082 = vld [vmem:[#allocation3 + $0x3dc] sm:$0xff]
        %v4083 = vld [vmem:[#allocation3 + $0x3e4] sm:$0xff]
        %v4084 = vld [vmem:[#allocation3 + $0x3ec] sm:$0xf]
        %v4085 = vld [vmem:[#allocation3 + $0x3f0] sm:$0xff]
        %v4086 = vld [vmem:[#allocation3 + $0x3f8] sm:$0xff]
        %v4087 = vld [vmem:[#allocation3 + $0x400] sm:$0xff]
        %v4088 = vld [vmem:[#allocation3 + $0x408] sm:$0xff]
        %v4089 = vld [vmem:[#allocation3 + $0x410] sm:$0xf]
        %v4090 = vld [vmem:[#allocation3 + $0x414] sm:$0xff]
        %v4091 = vld [vmem:[#allocation3 + $0x41c] sm:$0xff]
        %v4092 = vld [vmem:[#allocation3 + $0x424] sm:$0xff]
        %v4093 = vld [vmem:[#allocation3 + $0x42c] sm:$0xff]
        %v4094 = vld [vmem:[#allocation3 + $0x434] sm:$0xf]
        %v4095 = vld [vmem:[#allocation3 + $0x438] sm:$0xff]
        %v4096 = vld [vmem:[#allocation3 + $0x440] sm:$0xff]
        %v4097 = vld [vmem:[#allocation3 + $0x448] sm:$0xff]
        %v4098 = vld [vmem:[#allocation3 + $0x450] sm:$0xff]
        %v4099 = vld [vmem:[#allocation3 + $0x458] sm:$0xf]
        %v4100 = vld [vmem:[#allocation3 + $0x45c] sm:$0xff]
        %v4101 = vld [vmem:[#allocation3 + $0x464] sm:$0xff]
        %v4102 = vld [vmem:[#allocation3 + $0x46c] sm:$0xff]
        %v4103 = vld [vmem:[#allocation3 + $0x474] sm:$0xff]
        %v4104 = vld [vmem:[#allocation3 + $0x47c] sm:$0xf]
        %v4105 = vld [vmem:[#allocation4] sm:$0xf]
        %v4106 = vld [vmem:[#allocation4 + $0x4] sm:$0xf]
        %v4107 = vld [vmem:[#allocation4 + $0x8] sm:$0xf]
        %v4108 = vld [vmem:[#allocation4 + $0xc] sm:$0xf]
        %v4109 = vld [vmem:[#allocation4 + $0x10] sm:$0xf]
        %v4110 = vld [vmem:[#allocation4 + $0x14] sm:$0xf]
        %v4111 = vld [vmem:[#allocation4 + $0x18] sm:$0xf]
        %v4112 = vld [vmem:[#allocation4 + $0x1c] sm:$0xf]
        %v4113 = vld [vmem:[#allocation4 + $0x20] sm:$0xf]
        %v4114 = vld [vmem:[#allocation4 + $0x24] sm:$0xf]
        %v4115 = vld [vmem:[#allocation4 + $0x28] sm:$0xf]
        %v4116 = vld [vmem:[#allocation4 + $0x2c] sm:$0xf]
        %v4117 = vld [vmem:[#allocation4 + $0x30] sm:$0xf]
        %v4118 = vld [vmem:[#allocation4 + $0x34] sm:$0xf]
        %v4119 = vld [vmem:[#allocation4 + $0x38] sm:$0xf]
        %v4120 = vld [vmem:[#allocation4 + $0x3c] sm:$0xf]
        %v4121 = vld [vmem:[#allocation4 + $0x40] sm:$0xf]
        %v4122 = vld [vmem:[#allocation4 + $0x44] sm:$0xf]
        %v4123 = vld [vmem:[#allocation4 + $0x48] sm:$0xf]
        %v4124 = vld [vmem:[#allocation4 + $0x4c] sm:$0xf]
        %v4125 = vld [vmem:[#allocation4 + $0x50] sm:$0xf]
        %v4126 = vld [vmem:[#allocation4 + $0x54] sm:$0xf]
        %v4127 = vld [vmem:[#allocation4 + $0x58] sm:$0xf]
        %v4128 = vld [vmem:[#allocation4 + $0x5c] sm:$0xf]
        %v4129 = vld [vmem:[#allocation4 + $0x60] sm:$0xf]
        %v4130 = vld [vmem:[#allocation4 + $0x64] sm:$0xf]
        %v4131 = vld [vmem:[#allocation4 + $0x68] sm:$0xf]
        %v4132 = vld [vmem:[#allocation4 + $0x6c] sm:$0xf]
        %v4133 = vld [vmem:[#allocation4 + $0x70] sm:$0xf]
        %v4134 = vld [vmem:[#allocation4 + $0x74] sm:$0xf]
        %v4135 = vld [vmem:[#allocation4 + $0x78] sm:$0xf]
        %v4136 = vld [vmem:[#allocation4 + $0x7c] sm:$0xf]
        %v4137 = vld [vmem:[#allocation4 + $0x80] sm:$0xf]
        %v4138 = vld [vmem:[#allocation4 + $0x84] sm:$0xf]
        %v4139 = vld [vmem:[#allocation4 + $0x88] sm:$0xf]
        %v4140 = vld [vmem:[#allocation4 + $0x8c] sm:$0xf]
        %v4141 = vld [vmem:[#allocation4 + $0x90] sm:$0xf]
        %v4142 = vld [vmem:[#allocation4 + $0x94] sm:$0xf]
        %v4143 = vld [vmem:[#allocation4 + $0x98] sm:$0xf]
        %v4144 = vld [vmem:[#allocation4 + $0x9c] sm:$0xf]
        %v4145 = vld [vmem:[#allocation4 + $0xa0] sm:$0xf]
        %v4146 = vld [vmem:[#allocation4 + $0xa4] sm:$0xf]
        %v4147 = vld [vmem:[#allocation4 + $0xa8] sm:$0xf]
        %v4148 = vld [vmem:[#allocation4 + $0xac] sm:$0xf]
        %v4149 = vld [vmem:[#allocation4 + $0xb0] sm:$0xf]
        %v4150 = vld [vmem:[#allocation4 + $0xb4] sm:$0xf]
        %v4151 = vld [vmem:[#allocation4 + $0xb8] sm:$0xf]
        %v4152 = vld [vmem:[#allocation4 + $0xbc] sm:$0xf]
        %v4153 = vld [vmem:[#allocation4 + $0xc0] sm:$0xf]
        %v4154 = vld [vmem:[#allocation4 + $0xc4] sm:$0xf]
        %v4155 = vld [vmem:[#allocation4 + $0xc8] sm:$0xf]
        %v4156 = vld [vmem:[#allocation4 + $0xcc] sm:$0xf]
        %v4157 = vld [vmem:[#allocation4 + $0xd0] sm:$0xf]
        %v4158 = vld [vmem:[#allocation4 + $0xd4] sm:$0xf]
        %v4159 = vld [vmem:[#allocation4 + $0xd8] sm:$0xf]
        %v4160 = vld [vmem:[#allocation4 + $0xdc] sm:$0xf]
        %v4161 = vld [vmem:[#allocation4 + $0xe0] sm:$0xf]
        %v4162 = vld [vmem:[#allocation4 + $0xe4] sm:$0xf]
        %v4163 = vld [vmem:[#allocation4 + $0xe8] sm:$0xf]
        %v4164 = vld [vmem:[#allocation4 + $0xec] sm:$0xf]
        %v4165 = vld [vmem:[#allocation4 + $0xf0] sm:$0xf]
        %v4166 = vld [vmem:[#allocation4 + $0xf4] sm:$0xf]
        %v4167 = vld [vmem:[#allocation4 + $0xf8] sm:$0xf]
        %v4168 = vld [vmem:[#allocation4 + $0xfc] sm:$0xf]
        %v4169 = vld [vmem:[#allocation4 + $0x100] sm:$0xf]
        %v4170 = vld [vmem:[#allocation4 + $0x104] sm:$0xf]
        %v4171 = vld [vmem:[#allocation4 + $0x108] sm:$0xf]
        %v4172 = vld [vmem:[#allocation4 + $0x10c] sm:$0xf]
        %v4173 = vld [vmem:[#allocation4 + $0x110] sm:$0xf]
        %v4174 = vld [vmem:[#allocation4 + $0x114] sm:$0xf]
        %v4175 = vld [vmem:[#allocation4 + $0x118] sm:$0xf]
        %v4176 = vld [vmem:[#allocation4 + $0x11c] sm:$0xf]
        %v4177 = vld [vmem:[#allocation4 + $0x120] sm:$0xf]
        %v4178 = vld [vmem:[#allocation4 + $0x124] sm:$0xf]
        %v4179 = vld [vmem:[#allocation4 + $0x128] sm:$0xf]
        %v4180 = vld [vmem:[#allocation4 + $0x12c] sm:$0xf]
        %v4181 = vld [vmem:[#allocation4 + $0x130] sm:$0xf]
        %v4182 = vld [vmem:[#allocation4 + $0x134] sm:$0xf]
        %v4183 = vld [vmem:[#allocation4 + $0x138] sm:$0xf]
        %v4184 = vld [vmem:[#allocation4 + $0x13c] sm:$0xf]
        %v4185 = vld [vmem:[#allocation4 + $0x140] sm:$0xf]
        %v4186 = vld [vmem:[#allocation4 + $0x144] sm:$0xf]
        %v4187 = vld [vmem:[#allocation4 + $0x148] sm:$0xf]
        %v4188 = vld [vmem:[#allocation4 + $0x14c] sm:$0xf]
        %v4189 = vld [vmem:[#allocation4 + $0x150] sm:$0xf]
        %v4190 = vld [vmem:[#allocation4 + $0x154] sm:$0xf]
        %v4191 = vld [vmem:[#allocation4 + $0x158] sm:$0xf]
        %v4192 = vld [vmem:[#allocation4 + $0x15c] sm:$0xf]
        %v4193 = vld [vmem:[#allocation4 + $0x160] sm:$0xf]
        %v4194 = vld [vmem:[#allocation4 + $0x164] sm:$0xf]
        %v4195 = vld [vmem:[#allocation4 + $0x168] sm:$0xf]
        %v4196 = vld [vmem:[#allocation4 + $0x16c] sm:$0xf]
        %v4197 = vld [vmem:[#allocation4 + $0x170] sm:$0xf]
        %v4198 = vld [vmem:[#allocation4 + $0x174] sm:$0xf]
        %v4199 = vld [vmem:[#allocation4 + $0x178] sm:$0xf]
        %v4200 = vld [vmem:[#allocation4 + $0x17c] sm:$0xf]
        %v4201 = vld [vmem:[#allocation4 + $0x180] sm:$0xf]
        %v4202 = vld [vmem:[#allocation4 + $0x184] sm:$0xf]
        %v4203 = vld [vmem:[#allocation4 + $0x188] sm:$0xf]
        %v4204 = vld [vmem:[#allocation4 + $0x18c] sm:$0xf]
        %v4205 = vld [vmem:[#allocation4 + $0x190] sm:$0xf]
        %v4206 = vld [vmem:[#allocation4 + $0x194] sm:$0xf]
        %v4207 = vld [vmem:[#allocation4 + $0x198] sm:$0xf]
        %v4208 = vld [vmem:[#allocation4 + $0x19c] sm:$0xf]
        %v4209 = vld [vmem:[#allocation4 + $0x1a0] sm:$0xf]
        %v4210 = vld [vmem:[#allocation4 + $0x1a4] sm:$0xf]
        %v4211 = vld [vmem:[#allocation4 + $0x1a8] sm:$0xf]
        %v4212 = vld [vmem:[#allocation4 + $0x1ac] sm:$0xf]
        %v4213 = vld [vmem:[#allocation4 + $0x1b0] sm:$0xf]
        %v4214 = vld [vmem:[#allocation4 + $0x1b4] sm:$0xf]
        %v4215 = vld [vmem:[#allocation4 + $0x1b8] sm:$0xf]
        %v4216 = vld [vmem:[#allocation4 + $0x1bc] sm:$0xf]
        %v4217 = vld [vmem:[#allocation4 + $0x1c0] sm:$0xf]
        %v4218 = vld [vmem:[#allocation4 + $0x1c4] sm:$0xf]
        %v4219 = vld [vmem:[#allocation4 + $0x1c8] sm:$0xf]
        %v4220 = vld [vmem:[#allocation4 + $0x1cc] sm:$0xf]
        %v4221 = vld [vmem:[#allocation4 + $0x1d0] sm:$0xf]
        %v4222 = vld [vmem:[#allocation4 + $0x1d4] sm:$0xf]
        %v4223 = vld [vmem:[#allocation4 + $0x1d8] sm:$0xf]
        %v4224 = vld [vmem:[#allocation4 + $0x1dc] sm:$0xf]
        %v4225 = vld [vmem:[#allocation4 + $0x1e0] sm:$0xf]
        %v4226 = vld [vmem:[#allocation4 + $0x1e4] sm:$0xf]
        %v4227 = vld [vmem:[#allocation4 + $0x1e8] sm:$0xf]
        %v4228 = vld [vmem:[#allocation4 + $0x1ec] sm:$0xf]
        %v4229 = vld [vmem:[#allocation4 + $0x1f0] sm:$0xf]
        %v4230 = vld [vmem:[#allocation4 + $0x1f4] sm:$0xf]
        %v4231 = vld [vmem:[#allocation4 + $0x1f8] sm:$0xf]
        %v4232 = vld [vmem:[#allocation4 + $0x1fc] sm:$0xf]
        %v4233 = vld [vmem:[#allocation4 + $0x200] sm:$0xf]
        %v4234 = vld [vmem:[#allocation4 + $0x204] sm:$0xf]
        %v4235 = vld [vmem:[#allocation4 + $0x208] sm:$0xf]
        %v4236 = vld [vmem:[#allocation4 + $0x20c] sm:$0xf]
        %v4237 = vld [vmem:[#allocation4 + $0x210] sm:$0xf]
        %v4238 = vld [vmem:[#allocation4 + $0x214] sm:$0xf]
        %v4239 = vld [vmem:[#allocation4 + $0x218] sm:$0xf]
        %v4240 = vld [vmem:[#allocation4 + $0x21c] sm:$0xf]
        %v4241 = vld [vmem:[#allocation4 + $0x220] sm:$0xf]
        %v4242 = vld [vmem:[#allocation4 + $0x224] sm:$0xf]
        %v4243 = vld [vmem:[#allocation4 + $0x228] sm:$0xf]
        %v4244 = vld [vmem:[#allocation4 + $0x22c] sm:$0xf]
        %v4245 = vld [vmem:[#allocation4 + $0x230] sm:$0xf]
        %v4246 = vld [vmem:[#allocation4 + $0x234] sm:$0xf]
        %v4247 = vld [vmem:[#allocation4 + $0x238] sm:$0xf]
        %v4248 = vld [vmem:[#allocation4 + $0x23c] sm:$0xf]
        %v4249 = vld [vmem:[%s4] sm:$0x1]
        %v4251 = vperm.slane %v4249, 0
        %v4413 = vunpack.c.l.b16 %v3945
        %v4414 = vunpack.c.h.b16 %v3945
        %v4415 = vunpack.c.l.b16 %v3946
        %v4416 = vunpack.c.h.b16 %v3946
        %v4417 = vunpack.c.l.b16 %v3947
        %v4418 = vunpack.c.h.b16 %v3947
        %v4419 = vunpack.c.l.b16 %v3948
        %v4420 = vunpack.c.h.b16 %v3948
        %v4421 = vunpack.c.l.b16 %v3949
        %v4422 = vunpack.c.l.b16 %v3950
        %v4423 = vunpack.c.h.b16 %v3950
        %v4424 = vunpack.c.l.b16 %v3951
        %v4425 = vunpack.c.h.b16 %v3951
        %v4426 = vunpack.c.l.b16 %v3952
        %v4427 = vunpack.c.h.b16 %v3952
        %v4428 = vunpack.c.l.b16 %v3953
        %v4429 = vunpack.c.h.b16 %v3953
        %v4430 = vunpack.c.l.b16 %v3954
        %v4431 = vunpack.c.l.b16 %v3955
        %v4432 = vunpack.c.h.b16 %v3955
        %v4433 = vunpack.c.l.b16 %v3956
        %v4434 = vunpack.c.h.b16 %v3956
        %v4435 = vunpack.c.l.b16 %v3957
        %v4436 = vunpack.c.h.b16 %v3957
        %v4437 = vunpack.c.l.b16 %v3958
        %v4438 = vunpack.c.h.b16 %v3958
        %v4439 = vunpack.c.l.b16 %v3959
        %v4440 = vunpack.c.l.b16 %v3960
        %v4441 = vunpack.c.h.b16 %v3960
        %v4442 = vunpack.c.l.b16 %v3961
        %v4443 = vunpack.c.h.b16 %v3961
        %v4444 = vunpack.c.l.b16 %v3962
        %v4445 = vunpack.c.h.b16 %v3962
        %v4446 = vunpack.c.l.b16 %v3963
        %v4447 = vunpack.c.h.b16 %v3963
        %v4448 = vunpack.c.l.b16 %v3964
        %v4449 = vunpack.c.l.b16 %v3965
        %v4450 = vunpack.c.h.b16 %v3965
        %v4451 = vunpack.c.l.b16 %v3966
        %v4452 = vunpack.c.h.b16 %v3966
        %v4453 = vunpack.c.l.b16 %v3967
        %v4454 = vunpack.c.h.b16 %v3967
        %v4455 = vunpack.c.l.b16 %v3968
        %v4456 = vunpack.c.h.b16 %v3968
        %v4457 = vunpack.c.l.b16 %v3969
        %v4458 = vunpack.c.l.b16 %v3970
        %v4459 = vunpack.c.h.b16 %v3970
        %v4460 = vunpack.c.l.b16 %v3971
        %v4461 = vunpack.c.h.b16 %v3971
        %v4462 = vunpack.c.l.b16 %v3972
        %v4463 = vunpack.c.h.b16 %v3972
        %v4464 = vunpack.c.l.b16 %v3973
        %v4465 = vunpack.c.h.b16 %v3973
        %v4466 = vunpack.c.l.b16 %v3974
        %v4467 = vunpack.c.l.b16 %v3975
        %v4468 = vunpack.c.h.b16 %v3975
        %v4469 = vunpack.c.l.b16 %v3976
        %v4470 = vunpack.c.h.b16 %v3976
        %v4471 = vunpack.c.l.b16 %v3977
        %v4472 = vunpack.c.h.b16 %v3977
        %v4473 = vunpack.c.l.b16 %v3978
        %v4474 = vunpack.c.h.b16 %v3978
        %v4475 = vunpack.c.l.b16 %v3979
        %v4476 = vunpack.c.l.b16 %v3980
        %v4477 = vunpack.c.h.b16 %v3980
        %v4478 = vunpack.c.l.b16 %v3981
        %v4479 = vunpack.c.h.b16 %v3981
        %v4480 = vunpack.c.l.b16 %v3982
        %v4481 = vunpack.c.h.b16 %v3982
        %v4482 = vunpack.c.l.b16 %v3983
        %v4483 = vunpack.c.h.b16 %v3983
        %v4484 = vunpack.c.l.b16 %v3984
        %v4485 = vunpack.c.l.b16 %v3985
        %v4486 = vunpack.c.h.b16 %v3985
        %v4487 = vunpack.c.l.b16 %v3986
        %v4488 = vunpack.c.h.b16 %v3986
        %v4489 = vunpack.c.l.b16 %v3987
        %v4490 = vunpack.c.h.b16 %v3987
        %v4491 = vunpack.c.l.b16 %v3988
        %v4492 = vunpack.c.h.b16 %v3988
        %v4493 = vunpack.c.l.b16 %v3989
        %v4494 = vunpack.c.l.b16 %v3990
        %v4495 = vunpack.c.h.b16 %v3990
        %v4496 = vunpack.c.l.b16 %v3991
        %v4497 = vunpack.c.h.b16 %v3991
        %v4498 = vunpack.c.l.b16 %v3992
        %v4499 = vunpack.c.h.b16 %v3992
        %v4500 = vunpack.c.l.b16 %v3993
        %v4501 = vunpack.c.h.b16 %v3993
        %v4502 = vunpack.c.l.b16 %v3994
        %v4503 = vunpack.c.l.b16 %v3995
        %v4504 = vunpack.c.h.b16 %v3995
        %v4505 = vunpack.c.l.b16 %v3996
        %v4506 = vunpack.c.h.b16 %v3996
        %v4507 = vunpack.c.l.b16 %v3997
        %v4508 = vunpack.c.h.b16 %v3997
        %v4509 = vunpack.c.l.b16 %v3998
        %v4510 = vunpack.c.h.b16 %v3998
        %v4511 = vunpack.c.l.b16 %v3999
        %v4512 = vunpack.c.l.b16 %v4000
        %v4513 = vunpack.c.h.b16 %v4000
        %v4514 = vunpack.c.l.b16 %v4001
        %v4515 = vunpack.c.h.b16 %v4001
        %v4516 = vunpack.c.l.b16 %v4002
        %v4517 = vunpack.c.h.b16 %v4002
        %v4518 = vunpack.c.l.b16 %v4003
        %v4519 = vunpack.c.h.b16 %v4003
        %v4520 = vunpack.c.l.b16 %v4004
        %v4521 = vunpack.c.l.b16 %v4005
        %v4522 = vunpack.c.h.b16 %v4005
        %v4523 = vunpack.c.l.b16 %v4006
        %v4524 = vunpack.c.h.b16 %v4006
        %v4525 = vunpack.c.l.b16 %v4007
        %v4526 = vunpack.c.h.b16 %v4007
        %v4527 = vunpack.c.l.b16 %v4008
        %v4528 = vunpack.c.h.b16 %v4008
        %v4529 = vunpack.c.l.b16 %v4009
        %v4530 = vunpack.c.l.b16 %v4010
        %v4531 = vunpack.c.h.b16 %v4010
        %v4532 = vunpack.c.l.b16 %v4011
        %v4533 = vunpack.c.h.b16 %v4011
        %v4534 = vunpack.c.l.b16 %v4012
        %v4535 = vunpack.c.h.b16 %v4012
        %v4536 = vunpack.c.l.b16 %v4013
        %v4537 = vunpack.c.h.b16 %v4013
        %v4538 = vunpack.c.l.b16 %v4014
        %v4539 = vunpack.c.l.b16 %v4015
        %v4540 = vunpack.c.h.b16 %v4015
        %v4541 = vunpack.c.l.b16 %v4016
        %v4542 = vunpack.c.h.b16 %v4016
        %v4543 = vunpack.c.l.b16 %v4017
        %v4544 = vunpack.c.h.b16 %v4017
        %v4545 = vunpack.c.l.b16 %v4018
        %v4546 = vunpack.c.h.b16 %v4018
        %v4547 = vunpack.c.l.b16 %v4019
        %v4548 = vunpack.c.l.b16 %v4020
        %v4549 = vunpack.c.h.b16 %v4020
        %v4550 = vunpack.c.l.b16 %v4021
        %v4551 = vunpack.c.h.b16 %v4021
        %v4552 = vunpack.c.l.b16 %v4022
        %v4553 = vunpack.c.h.b16 %v4022
        %v4554 = vunpack.c.l.b16 %v4023
        %v4555 = vunpack.c.h.b16 %v4023
        %v4556 = vunpack.c.l.b16 %v4024
        %v4557 = vunpack.c.l.b16 %v4025
        %v4558 = vunpack.c.h.b16 %v4025
        %v4559 = vunpack.c.l.b16 %v4026
        %v4560 = vunpack.c.h.b16 %v4026
        %v4561 = vunpack.c.l.b16 %v4027
        %v4562 = vunpack.c.h.b16 %v4027
        %v4563 = vunpack.c.l.b16 %v4028
        %v4564 = vunpack.c.h.b16 %v4028
        %v4565 = vunpack.c.l.b16 %v4029
        %v4566 = vunpack.c.l.b16 %v4030
        %v4567 = vunpack.c.h.b16 %v4030
        %v4568 = vunpack.c.l.b16 %v4031
        %v4569 = vunpack.c.h.b16 %v4031
        %v4570 = vunpack.c.l.b16 %v4032
        %v4571 = vunpack.c.h.b16 %v4032
        %v4572 = vunpack.c.l.b16 %v4033
        %v4573 = vunpack.c.h.b16 %v4033
        %v4574 = vunpack.c.l.b16 %v4034
        %v4575 = vunpack.c.l.b16 %v4035
        %v4576 = vunpack.c.h.b16 %v4035
        %v4577 = vunpack.c.l.b16 %v4036
        %v4578 = vunpack.c.h.b16 %v4036
        %v4579 = vunpack.c.l.b16 %v4037
        %v4580 = vunpack.c.h.b16 %v4037
        %v4581 = vunpack.c.l.b16 %v4038
        %v4582 = vunpack.c.h.b16 %v4038
        %v4583 = vunpack.c.l.b16 %v4039
        %v4584 = vunpack.c.l.b16 %v4040
        %v4585 = vunpack.c.h.b16 %v4040
        %v4586 = vunpack.c.l.b16 %v4041
        %v4587 = vunpack.c.h.b16 %v4041
        %v4588 = vunpack.c.l.b16 %v4042
        %v4589 = vunpack.c.h.b16 %v4042
        %v4590 = vunpack.c.l.b16 %v4043
        %v4591 = vunpack.c.h.b16 %v4043
        %v4592 = vunpack.c.l.b16 %v4044
        %v4593 = vunpack.c.l.b16 %v4045
        %v4594 = vunpack.c.h.b16 %v4045
        %v4595 = vunpack.c.l.b16 %v4046
        %v4596 = vunpack.c.h.b16 %v4046
        %v4597 = vunpack.c.l.b16 %v4047
        %v4598 = vunpack.c.h.b16 %v4047
        %v4599 = vunpack.c.l.b16 %v4048
        %v4600 = vunpack.c.h.b16 %v4048
        %v4601 = vunpack.c.l.b16 %v4049
        %v4602 = vunpack.c.l.b16 %v4050
        %v4603 = vunpack.c.h.b16 %v4050
        %v4604 = vunpack.c.l.b16 %v4051
        %v4605 = vunpack.c.h.b16 %v4051
        %v4606 = vunpack.c.l.b16 %v4052
        %v4607 = vunpack.c.h.b16 %v4052
        %v4608 = vunpack.c.l.b16 %v4053
        %v4609 = vunpack.c.h.b16 %v4053
        %v4610 = vunpack.c.l.b16 %v4054
        %v4611 = vunpack.c.l.b16 %v4055
        %v4612 = vunpack.c.h.b16 %v4055
        %v4613 = vunpack.c.l.b16 %v4056
        %v4614 = vunpack.c.h.b16 %v4056
        %v4615 = vunpack.c.l.b16 %v4057
        %v4616 = vunpack.c.h.b16 %v4057
        %v4617 = vunpack.c.l.b16 %v4058
        %v4618 = vunpack.c.h.b16 %v4058
        %v4619 = vunpack.c.l.b16 %v4059
        %v4620 = vunpack.c.l.b16 %v4060
        %v4621 = vunpack.c.h.b16 %v4060
        %v4622 = vunpack.c.l.b16 %v4061
        %v4623 = vunpack.c.h.b16 %v4061
        %v4624 = vunpack.c.l.b16 %v4062
        %v4625 = vunpack.c.h.b16 %v4062
        %v4626 = vunpack.c.l.b16 %v4063
        %v4627 = vunpack.c.h.b16 %v4063
        %v4628 = vunpack.c.l.b16 %v4064
        %v4629 = vunpack.c.l.b16 %v4065
        %v4630 = vunpack.c.h.b16 %v4065
        %v4631 = vunpack.c.l.b16 %v4066
        %v4632 = vunpack.c.h.b16 %v4066
        %v4633 = vunpack.c.l.b16 %v4067
        %v4634 = vunpack.c.h.b16 %v4067
        %v4635 = vunpack.c.l.b16 %v4068
        %v4636 = vunpack.c.h.b16 %v4068
        %v4637 = vunpack.c.l.b16 %v4069
        %v4638 = vunpack.c.l.b16 %v4070
        %v4639 = vunpack.c.h.b16 %v4070
        %v4640 = vunpack.c.l.b16 %v4071
        %v4641 = vunpack.c.h.b16 %v4071
        %v4642 = vunpack.c.l.b16 %v4072
        %v4643 = vunpack.c.h.b16 %v4072
        %v4644 = vunpack.c.l.b16 %v4073
        %v4645 = vunpack.c.h.b16 %v4073
        %v4646 = vunpack.c.l.b16 %v4074
        %v4647 = vunpack.c.l.b16 %v4075
        %v4648 = vunpack.c.h.b16 %v4075
        %v4649 = vunpack.c.l.b16 %v4076
        %v4650 = vunpack.c.h.b16 %v4076
        %v4651 = vunpack.c.l.b16 %v4077
        %v4652 = vunpack.c.h.b16 %v4077
        %v4653 = vunpack.c.l.b16 %v4078
        %v4654 = vunpack.c.h.b16 %v4078
        %v4655 = vunpack.c.l.b16 %v4079
        %v4656 = vunpack.c.l.b16 %v4080
        %v4657 = vunpack.c.h.b16 %v4080
        %v4658 = vunpack.c.l.b16 %v4081
        %v4659 = vunpack.c.h.b16 %v4081
        %v4660 = vunpack.c.l.b16 %v4082
        %v4661 = vunpack.c.h.b16 %v4082
        %v4662 = vunpack.c.l.b16 %v4083
        %v4663 = vunpack.c.h.b16 %v4083
        %v4664 = vunpack.c.l.b16 %v4084
        %v4665 = vunpack.c.l.b16 %v4085
        %v4666 = vunpack.c.h.b16 %v4085
        %v4667 = vunpack.c.l.b16 %v4086
        %v4668 = vunpack.c.h.b16 %v4086
        %v4669 = vunpack.c.l.b16 %v4087
        %v4670 = vunpack.c.h.b16 %v4087
        %v4671 = vunpack.c.l.b16 %v4088
        %v4672 = vunpack.c.h.b16 %v4088
        %v4673 = vunpack.c.l.b16 %v4089
        %v4674 = vunpack.c.l.b16 %v4090
        %v4675 = vunpack.c.h.b16 %v4090
        %v4676 = vunpack.c.l.b16 %v4091
        %v4677 = vunpack.c.h.b16 %v4091
        %v4678 = vunpack.c.l.b16 %v4092
        %v4679 = vunpack.c.h.b16 %v4092
        %v4680 = vunpack.c.l.b16 %v4093
        %v4681 = vunpack.c.h.b16 %v4093
        %v4682 = vunpack.c.l.b16 %v4094
        %v4683 = vunpack.c.l.b16 %v4095
        %v4684 = vunpack.c.h.b16 %v4095
        %v4685 = vunpack.c.l.b16 %v4096
        %v4686 = vunpack.c.h.b16 %v4096
        %v4687 = vunpack.c.l.b16 %v4097
        %v4688 = vunpack.c.h.b16 %v4097
        %v4689 = vunpack.c.l.b16 %v4098
        %v4690 = vunpack.c.h.b16 %v4098
        %v4691 = vunpack.c.l.b16 %v4099
        %v4692 = vunpack.c.l.b16 %v4100
        %v4693 = vunpack.c.h.b16 %v4100
        %v4694 = vunpack.c.l.b16 %v4101
        %v4695 = vunpack.c.h.b16 %v4101
        %v4696 = vunpack.c.l.b16 %v4102
        %v4697 = vunpack.c.h.b16 %v4102
        %v4698 = vunpack.c.l.b16 %v4103
        %v4699 = vunpack.c.h.b16 %v4103
        %v4700 = vunpack.c.l.b16 %v4104
        %v4701 = vpack.c.b16 %v4422, %v4413
        %v4702 = vpack.c.b16 %v4423, %v4414
        %v4703 = vpack.c.b16 %v4424, %v4415
        %v4704 = vpack.c.b16 %v4425, %v4416
        %v4705 = vpack.c.b16 %v4426, %v4417
        %v4706 = vpack.c.b16 %v4427, %v4418
        %v4707 = vpack.c.b16 %v4428, %v4419
        %v4708 = vpack.c.b16 %v4429, %v4420
        %v4709 = vpack.c.b16 %v4430, %v4421
        %v4710 = vpack.c.b16 %v4440, %v4431
        %v4711 = vpack.c.b16 %v4441, %v4432
        %v4712 = vpack.c.b16 %v4442, %v4433
        %v4713 = vpack.c.b16 %v4443, %v4434
        %v4714 = vpack.c.b16 %v4444, %v4435
        %v4715 = vpack.c.b16 %v4445, %v4436
        %v4716 = vpack.c.b16 %v4446, %v4437
        %v4717 = vpack.c.b16 %v4447, %v4438
        %v4718 = vpack.c.b16 %v4448, %v4439
        %v4719 = vpack.c.b16 %v4458, %v4449
        %v4720 = vpack.c.b16 %v4459, %v4450
        %v4721 = vpack.c.b16 %v4460, %v4451
        %v4722 = vpack.c.b16 %v4461, %v4452
        %v4723 = vpack.c.b16 %v4462, %v4453
        %v4724 = vpack.c.b16 %v4463, %v4454
        %v4725 = vpack.c.b16 %v4464, %v4455
        %v4726 = vpack.c.b16 %v4465, %v4456
        %v4727 = vpack.c.b16 %v4466, %v4457
        %v4728 = vpack.c.b16 %v4476, %v4467
        %v4729 = vpack.c.b16 %v4477, %v4468
        %v4730 = vpack.c.b16 %v4478, %v4469
        %v4731 = vpack.c.b16 %v4479, %v4470
        %v4732 = vpack.c.b16 %v4480, %v4471
        %v4733 = vpack.c.b16 %v4481, %v4472
        %v4734 = vpack.c.b16 %v4482, %v4473
        %v4735 = vpack.c.b16 %v4483, %v4474
        %v4736 = vpack.c.b16 %v4484, %v4475
        %v4737 = vpack.c.b16 %v4494, %v4485
        %v4738 = vpack.c.b16 %v4495, %v4486
        %v4739 = vpack.c.b16 %v4496, %v4487
        %v4740 = vpack.c.b16 %v4497, %v4488
        %v4741 = vpack.c.b16 %v4498, %v4489
        %v4742 = vpack.c.b16 %v4499, %v4490
        %v4743 = vpack.c.b16 %v4500, %v4491
        %v4744 = vpack.c.b16 %v4501, %v4492
        %v4745 = vpack.c.b16 %v4502, %v4493
        %v4746 = vpack.c.b16 %v4512, %v4503
        %v4747 = vpack.c.b16 %v4513, %v4504
        %v4748 = vpack.c.b16 %v4514, %v4505
        %v4749 = vpack.c.b16 %v4515, %v4506
        %v4750 = vpack.c.b16 %v4516, %v4507
        %v4751 = vpack.c.b16 %v4517, %v4508
        %v4752 = vpack.c.b16 %v4518, %v4509
        %v4753 = vpack.c.b16 %v4519, %v4510
        %v4754 = vpack.c.b16 %v4520, %v4511
        %v4755 = vpack.c.b16 %v4530, %v4521
        %v4756 = vpack.c.b16 %v4531, %v4522
        %v4757 = vpack.c.b16 %v4532, %v4523
        %v4758 = vpack.c.b16 %v4533, %v4524
        %v4759 = vpack.c.b16 %v4534, %v4525
        %v4760 = vpack.c.b16 %v4535, %v4526
        %v4761 = vpack.c.b16 %v4536, %v4527
        %v4762 = vpack.c.b16 %v4537, %v4528
        %v4763 = vpack.c.b16 %v4538, %v4529
        %v4764 = vpack.c.b16 %v4548, %v4539
        %v4765 = vpack.c.b16 %v4549, %v4540
        %v4766 = vpack.c.b16 %v4550, %v4541
        %v4767 = vpack.c.b16 %v4551, %v4542
        %v4768 = vpack.c.b16 %v4552, %v4543
        %v4769 = vpack.c.b16 %v4553, %v4544
        %v4770 = vpack.c.b16 %v4554, %v4545
        %v4771 = vpack.c.b16 %v4555, %v4546
        %v4772 = vpack.c.b16 %v4556, %v4547
        %v4773 = vpack.c.b16 %v4566, %v4557
        %v4774 = vpack.c.b16 %v4567, %v4558
        %v4775 = vpack.c.b16 %v4568, %v4559
        %v4776 = vpack.c.b16 %v4569, %v4560
        %v4777 = vpack.c.b16 %v4570, %v4561
        %v4778 = vpack.c.b16 %v4571, %v4562
        %v4779 = vpack.c.b16 %v4572, %v4563
        %v4780 = vpack.c.b16 %v4573, %v4564
        %v4781 = vpack.c.b16 %v4574, %v4565
        %v4782 = vpack.c.b16 %v4584, %v4575
        %v4783 = vpack.c.b16 %v4585, %v4576
        %v4784 = vpack.c.b16 %v4586, %v4577
        %v4785 = vpack.c.b16 %v4587, %v4578
        %v4786 = vpack.c.b16 %v4588, %v4579
        %v4787 = vpack.c.b16 %v4589, %v4580
        %v4788 = vpack.c.b16 %v4590, %v4581
        %v4789 = vpack.c.b16 %v4591, %v4582
        %v4790 = vpack.c.b16 %v4592, %v4583
        %v4791 = vpack.c.b16 %v4602, %v4593
        %v4792 = vpack.c.b16 %v4603, %v4594
        %v4793 = vpack.c.b16 %v4604, %v4595
        %v4794 = vpack.c.b16 %v4605, %v4596
        %v4795 = vpack.c.b16 %v4606, %v4597
        %v4796 = vpack.c.b16 %v4607, %v4598
        %v4797 = vpack.c.b16 %v4608, %v4599
        %v4798 = vpack.c.b16 %v4609, %v4600
        %v4799 = vpack.c.b16 %v4610, %v4601
        %v4800 = vpack.c.b16 %v4620, %v4611
        %v4801 = vpack.c.b16 %v4621, %v4612
        %v4802 = vpack.c.b16 %v4622, %v4613
        %v4803 = vpack.c.b16 %v4623, %v4614
        %v4804 = vpack.c.b16 %v4624, %v4615
        %v4805 = vpack.c.b16 %v4625, %v4616
        %v4806 = vpack.c.b16 %v4626, %v4617
        %v4807 = vpack.c.b16 %v4627, %v4618
        %v4808 = vpack.c.b16 %v4628, %v4619
        %v4809 = vpack.c.b16 %v4638, %v4629
        %v4810 = vpack.c.b16 %v4639, %v4630
        %v4811 = vpack.c.b16 %v4640, %v4631
        %v4812 = vpack.c.b16 %v4641, %v4632
        %v4813 = vpack.c.b16 %v4642, %v4633
        %v4814 = vpack.c.b16 %v4643, %v4634
        %v4815 = vpack.c.b16 %v4644, %v4635
        %v4816 = vpack.c.b16 %v4645, %v4636
        %v4817 = vpack.c.b16 %v4646, %v4637
        %v4818 = vpack.c.b16 %v4656, %v4647
        %v4819 = vpack.c.b16 %v4657, %v4648
        %v4820 = vpack.c.b16 %v4658, %v4649
        %v4821 = vpack.c.b16 %v4659, %v4650
        %v4822 = vpack.c.b16 %v4660, %v4651
        %v4823 = vpack.c.b16 %v4661, %v4652
        %v4824 = vpack.c.b16 %v4662, %v4653
        %v4825 = vpack.c.b16 %v4663, %v4654
        %v4826 = vpack.c.b16 %v4664, %v4655
        %v4827 = vpack.c.b16 %v4674, %v4665
        %v4828 = vpack.c.b16 %v4675, %v4666
        %v4829 = vpack.c.b16 %v4676, %v4667
        %v4830 = vpack.c.b16 %v4677, %v4668
        %v4831 = vpack.c.b16 %v4678, %v4669
        %v4832 = vpack.c.b16 %v4679, %v4670
        %v4833 = vpack.c.b16 %v4680, %v4671
        %v4834 = vpack.c.b16 %v4681, %v4672
        %v4835 = vpack.c.b16 %v4682, %v4673
        %v4836 = vpack.c.b16 %v4692, %v4683
        %v4837 = vpack.c.b16 %v4693, %v4684
        %v4838 = vpack.c.b16 %v4694, %v4685
        %v4839 = vpack.c.b16 %v4695, %v4686
        %v4840 = vpack.c.b16 %v4696, %v4687
        %v4841 = vpack.c.b16 %v4697, %v4688
        %v4842 = vpack.c.b16 %v4698, %v4689
        %v4843 = vpack.c.b16 %v4699, %v4690
        %v4844 = vpack.c.b16 %v4700, %v4691
        %v5133 = vunpack.c.l.b16 %v4105
        %v5134 = vunpack.c.l.b16 %v4106
        %v5135 = vunpack.c.l.b16 %v4107
        %v5136 = vunpack.c.l.b16 %v4108
        %v5137 = vunpack.c.l.b16 %v4109
        %v5138 = vunpack.c.l.b16 %v4110
        %v5139 = vunpack.c.l.b16 %v4111
        %v5140 = vunpack.c.l.b16 %v4112
        %v5141 = vunpack.c.l.b16 %v4113
        %v5142 = vunpack.c.l.b16 %v4114
        %v5143 = vunpack.c.l.b16 %v4115
        %v5144 = vunpack.c.l.b16 %v4116
        %v5145 = vunpack.c.l.b16 %v4117
        %v5146 = vunpack.c.l.b16 %v4118
        %v5147 = vunpack.c.l.b16 %v4119
        %v5148 = vunpack.c.l.b16 %v4120
        %v5149 = vunpack.c.l.b16 %v4121
        %v5150 = vunpack.c.l.b16 %v4122
        %v5151 = vunpack.c.l.b16 %v4123
        %v5152 = vunpack.c.l.b16 %v4124
        %v5153 = vunpack.c.l.b16 %v4125
        %v5154 = vunpack.c.l.b16 %v4126
        %v5155 = vunpack.c.l.b16 %v4127
        %v5156 = vunpack.c.l.b16 %v4128
        %v5157 = vunpack.c.l.b16 %v4129
        %v5158 = vunpack.c.l.b16 %v4130
        %v5159 = vunpack.c.l.b16 %v4131
        %v5160 = vunpack.c.l.b16 %v4132
        %v5161 = vunpack.c.l.b16 %v4133
        %v5162 = vunpack.c.l.b16 %v4134
        %v5163 = vunpack.c.l.b16 %v4135
        %v5164 = vunpack.c.l.b16 %v4136
        %v5165 = vunpack.c.l.b16 %v4137
        %v5166 = vunpack.c.l.b16 %v4138
        %v5167 = vunpack.c.l.b16 %v4139
        %v5168 = vunpack.c.l.b16 %v4140
        %v5169 = vunpack.c.l.b16 %v4141
        %v5170 = vunpack.c.l.b16 %v4142
        %v5171 = vunpack.c.l.b16 %v4143
        %v5172 = vunpack.c.l.b16 %v4144
        %v5173 = vunpack.c.l.b16 %v4145
        %v5174 = vunpack.c.l.b16 %v4146
        %v5175 = vunpack.c.l.b16 %v4147
        %v5176 = vunpack.c.l.b16 %v4148
        %v5177 = vunpack.c.l.b16 %v4149
        %v5178 = vunpack.c.l.b16 %v4150
        %v5179 = vunpack.c.l.b16 %v4151
        %v5180 = vunpack.c.l.b16 %v4152
        %v5181 = vunpack.c.l.b16 %v4153
        %v5182 = vunpack.c.l.b16 %v4154
        %v5183 = vunpack.c.l.b16 %v4155
        %v5184 = vunpack.c.l.b16 %v4156
        %v5185 = vunpack.c.l.b16 %v4157
        %v5186 = vunpack.c.l.b16 %v4158
        %v5187 = vunpack.c.l.b16 %v4159
        %v5188 = vunpack.c.l.b16 %v4160
        %v5189 = vunpack.c.l.b16 %v4161
        %v5190 = vunpack.c.l.b16 %v4162
        %v5191 = vunpack.c.l.b16 %v4163
        %v5192 = vunpack.c.l.b16 %v4164
        %v5193 = vunpack.c.l.b16 %v4165
        %v5194 = vunpack.c.l.b16 %v4166
        %v5195 = vunpack.c.l.b16 %v4167
        %v5196 = vunpack.c.l.b16 %v4168
        %v5197 = vunpack.c.l.b16 %v4169
        %v5198 = vunpack.c.l.b16 %v4170
        %v5199 = vunpack.c.l.b16 %v4171
        %v5200 = vunpack.c.l.b16 %v4172
        %v5201 = vunpack.c.l.b16 %v4173
        %v5202 = vunpack.c.l.b16 %v4174
        %v5203 = vunpack.c.l.b16 %v4175
        %v5204 = vunpack.c.l.b16 %v4176
        %v5205 = vunpack.c.l.b16 %v4177
        %v5206 = vunpack.c.l.b16 %v4178
        %v5207 = vunpack.c.l.b16 %v4179
        %v5208 = vunpack.c.l.b16 %v4180
        %v5209 = vunpack.c.l.b16 %v4181
        %v5210 = vunpack.c.l.b16 %v4182
        %v5211 = vunpack.c.l.b16 %v4183
        %v5212 = vunpack.c.l.b16 %v4184
        %v5213 = vunpack.c.l.b16 %v4185
        %v5214 = vunpack.c.l.b16 %v4186
        %v5215 = vunpack.c.l.b16 %v4187
        %v5216 = vunpack.c.l.b16 %v4188
        %v5217 = vunpack.c.l.b16 %v4189
        %v5218 = vunpack.c.l.b16 %v4190
        %v5219 = vunpack.c.l.b16 %v4191
        %v5220 = vunpack.c.l.b16 %v4192
        %v5221 = vunpack.c.l.b16 %v4193
        %v5222 = vunpack.c.l.b16 %v4194
        %v5223 = vunpack.c.l.b16 %v4195
        %v5224 = vunpack.c.l.b16 %v4196
        %v5225 = vunpack.c.l.b16 %v4197
        %v5226 = vunpack.c.l.b16 %v4198
        %v5227 = vunpack.c.l.b16 %v4199
        %v5228 = vunpack.c.l.b16 %v4200
        %v5229 = vunpack.c.l.b16 %v4201
        %v5230 = vunpack.c.l.b16 %v4202
        %v5231 = vunpack.c.l.b16 %v4203
        %v5232 = vunpack.c.l.b16 %v4204
        %v5233 = vunpack.c.l.b16 %v4205
        %v5234 = vunpack.c.l.b16 %v4206
        %v5235 = vunpack.c.l.b16 %v4207
        %v5236 = vunpack.c.l.b16 %v4208
        %v5237 = vunpack.c.l.b16 %v4209
        %v5238 = vunpack.c.l.b16 %v4210
        %v5239 = vunpack.c.l.b16 %v4211
        %v5240 = vunpack.c.l.b16 %v4212
        %v5241 = vunpack.c.l.b16 %v4213
        %v5242 = vunpack.c.l.b16 %v4214
        %v5243 = vunpack.c.l.b16 %v4215
        %v5244 = vunpack.c.l.b16 %v4216
        %v5245 = vunpack.c.l.b16 %v4217
        %v5246 = vunpack.c.l.b16 %v4218
        %v5247 = vunpack.c.l.b16 %v4219
        %v5248 = vunpack.c.l.b16 %v4220
        %v5249 = vunpack.c.l.b16 %v4221
        %v5250 = vunpack.c.l.b16 %v4222
        %v5251 = vunpack.c.l.b16 %v4223
        %v5252 = vunpack.c.l.b16 %v4224
        %v5253 = vunpack.c.l.b16 %v4225
        %v5254 = vunpack.c.l.b16 %v4226
        %v5255 = vunpack.c.l.b16 %v4227
        %v5256 = vunpack.c.l.b16 %v4228
        %v5257 = vunpack.c.l.b16 %v4229
        %v5258 = vunpack.c.l.b16 %v4230
        %v5259 = vunpack.c.l.b16 %v4231
        %v5260 = vunpack.c.l.b16 %v4232
        %v5261 = vunpack.c.l.b16 %v4233
        %v5262 = vunpack.c.l.b16 %v4234
        %v5263 = vunpack.c.l.b16 %v4235
        %v5264 = vunpack.c.l.b16 %v4236
        %v5265 = vunpack.c.l.b16 %v4237
        %v5266 = vunpack.c.l.b16 %v4238
        %v5267 = vunpack.c.l.b16 %v4239
        %v5268 = vunpack.c.l.b16 %v4240
        %v5269 = vunpack.c.l.b16 %v4241
        %v5270 = vunpack.c.l.b16 %v4242
        %v5271 = vunpack.c.l.b16 %v4243
        %v5272 = vunpack.c.l.b16 %v4244
        %v5273 = vunpack.c.l.b16 %v4245
        %v5274 = vunpack.c.l.b16 %v4246
        %v5275 = vunpack.c.l.b16 %v4247
        %v5276 = vunpack.c.l.b16 %v4248
        %v5277 = vpack.c.b16 %v5134, %v5133
        %v5278 = vpack.c.b16 %v5136, %v5135
        %v5279 = vpack.c.b16 %v5138, %v5137
        %v5280 = vpack.c.b16 %v5140, %v5139
        %v5281 = vpack.c.b16 %v5142, %v5141
        %v5282 = vpack.c.b16 %v5144, %v5143
        %v5283 = vpack.c.b16 %v5146, %v5145
        %v5284 = vpack.c.b16 %v5148, %v5147
        %v5285 = vpack.c.b16 %v5150, %v5149
        %v5286 = vpack.c.b16 %v5152, %v5151
        %v5287 = vpack.c.b16 %v5154, %v5153
        %v5288 = vpack.c.b16 %v5156, %v5155
        %v5289 = vpack.c.b16 %v5158, %v5157
        %v5290 = vpack.c.b16 %v5160, %v5159
        %v5291 = vpack.c.b16 %v5162, %v5161
        %v5292 = vpack.c.b16 %v5164, %v5163
        %v5293 = vpack.c.b16 %v5166, %v5165
        %v5294 = vpack.c.b16 %v5168, %v5167
        %v5295 = vpack.c.b16 %v5170, %v5169
        %v5296 = vpack.c.b16 %v5172, %v5171
        %v5297 = vpack.c.b16 %v5174, %v5173
        %v5298 = vpack.c.b16 %v5176, %v5175
        %v5299 = vpack.c.b16 %v5178, %v5177
        %v5300 = vpack.c.b16 %v5180, %v5179
        %v5301 = vpack.c.b16 %v5182, %v5181
        %v5302 = vpack.c.b16 %v5184, %v5183
        %v5303 = vpack.c.b16 %v5186, %v5185
        %v5304 = vpack.c.b16 %v5188, %v5187
        %v5305 = vpack.c.b16 %v5190, %v5189
        %v5306 = vpack.c.b16 %v5192, %v5191
        %v5307 = vpack.c.b16 %v5194, %v5193
        %v5308 = vpack.c.b16 %v5196, %v5195
        %v5309 = vpack.c.b16 %v5198, %v5197
        %v5310 = vpack.c.b16 %v5200, %v5199
        %v5311 = vpack.c.b16 %v5202, %v5201
        %v5312 = vpack.c.b16 %v5204, %v5203
        %v5313 = vpack.c.b16 %v5206, %v5205
        %v5314 = vpack.c.b16 %v5208, %v5207
        %v5315 = vpack.c.b16 %v5210, %v5209
        %v5316 = vpack.c.b16 %v5212, %v5211
        %v5317 = vpack.c.b16 %v5214, %v5213
        %v5318 = vpack.c.b16 %v5216, %v5215
        %v5319 = vpack.c.b16 %v5218, %v5217
        %v5320 = vpack.c.b16 %v5220, %v5219
        %v5321 = vpack.c.b16 %v5222, %v5221
        %v5322 = vpack.c.b16 %v5224, %v5223
        %v5323 = vpack.c.b16 %v5226, %v5225
        %v5324 = vpack.c.b16 %v5228, %v5227
        %v5325 = vpack.c.b16 %v5230, %v5229
        %v5326 = vpack.c.b16 %v5232, %v5231
        %v5327 = vpack.c.b16 %v5234, %v5233
        %v5328 = vpack.c.b16 %v5236, %v5235
        %v5329 = vpack.c.b16 %v5238, %v5237
        %v5330 = vpack.c.b16 %v5240, %v5239
        %v5331 = vpack.c.b16 %v5242, %v5241
        %v5332 = vpack.c.b16 %v5244, %v5243
        %v5333 = vpack.c.b16 %v5246, %v5245
        %v5334 = vpack.c.b16 %v5248, %v5247
        %v5335 = vpack.c.b16 %v5250, %v5249
        %v5336 = vpack.c.b16 %v5252, %v5251
        %v5337 = vpack.c.b16 %v5254, %v5253
        %v5338 = vpack.c.b16 %v5256, %v5255
        %v5339 = vpack.c.b16 %v5258, %v5257
        %v5340 = vpack.c.b16 %v5260, %v5259
        %v5341 = vpack.c.b16 %v5262, %v5261
        %v5342 = vpack.c.b16 %v5264, %v5263
        %v5343 = vpack.c.b16 %v5266, %v5265
        %v5344 = vpack.c.b16 %v5268, %v5267
        %v5345 = vpack.c.b16 %v5270, %v5269
        %v5346 = vpack.c.b16 %v5272, %v5271
        %v5347 = vpack.c.b16 %v5274, %v5273
        %v5348 = vpack.c.b16 %v5276, %v5275
        %5421 = vmatpush.bf16.msra.mxu0 %v5284
        %5422 = vmatpush.bf16.msra.mxu0 %v5283
        %5423 = vmatpush.bf16.msra.mxu0 %v5282
        %5424 = vmatpush.bf16.msra.mxu0 %v5281
        %5425 = vmatpush.bf16.msra.mxu0 %v5280
        %5426 = vmatpush.bf16.msra.mxu0 %v5279
        %5427 = vmatpush.bf16.msra.mxu0 %v5278
        %5428 = vmatpush.bf16.msra.mxu0 %v5277
        %5429 = vmatmul.bf16.gmra.mxu0 %v4701
        %v5430 = vpop.f32.mrf.mxu0
        %v5431 = vadd.f32 %v4251, %v5430
        %v5432 = vpop.f32.mrf.mxu0
        %v5433 = vadd.f32 %v4251, %v5432
        %5434 = vmatmul.bf16.gmra.mxu0 %v4710
        %v5435 = vpop.f32.mrf.mxu0
        %v5436 = vadd.f32 %v4251, %v5435
        %v5437 = vpop.f32.mrf.mxu0
        %v5438 = vadd.f32 %v4251, %v5437
        %5439 = vmatmul.bf16.gmra.mxu0 %v4719
        %v5440 = vpop.f32.mrf.mxu0
        %v5441 = vadd.f32 %v4251, %v5440
        %v5442 = vpop.f32.mrf.mxu0
        %v5443 = vadd.f32 %v4251, %v5442
        %5444 = vmatmul.bf16.gmra.mxu0 %v4728
        %v5445 = vpop.f32.mrf.mxu0
        %v5446 = vadd.f32 %v4251, %v5445
        %v5447 = vpop.f32.mrf.mxu0
        %v5448 = vadd.f32 %v4251, %v5447
        %5449 = vmatmul.bf16.gmra.mxu0 %v4737
        %v5450 = vpop.f32.mrf.mxu0
        %v5451 = vadd.f32 %v4251, %v5450
        %v5452 = vpop.f32.mrf.mxu0
        %v5453 = vadd.f32 %v4251, %v5452
        %5454 = vmatmul.bf16.gmra.mxu0 %v4746
        %v5455 = vpop.f32.mrf.mxu0
        %v5456 = vadd.f32 %v4251, %v5455
        %v5457 = vpop.f32.mrf.mxu0
        %v5458 = vadd.f32 %v4251, %v5457
        %5459 = vmatmul.bf16.gmra.mxu0 %v4755
        %v5460 = vpop.f32.mrf.mxu0
        %v5461 = vadd.f32 %v4251, %v5460
        %v5462 = vpop.f32.mrf.mxu0
        %v5463 = vadd.f32 %v4251, %v5462
        %5464 = vmatmul.bf16.gmra.mxu0 %v4764
        %v5465 = vpop.f32.mrf.mxu0
        %v5466 = vadd.f32 %v4251, %v5465
        %v5467 = vpop.f32.mrf.mxu0
        %v5468 = vadd.f32 %v4251, %v5467
        %5469 = vmatmul.bf16.gmra.mxu0 %v4773
        %v5470 = vpop.f32.mrf.mxu0
        %v5471 = vadd.f32 %v4251, %v5470
        %v5472 = vpop.f32.mrf.mxu0
        %v5473 = vadd.f32 %v4251, %v5472
        %5474 = vmatmul.bf16.gmra.mxu0 %v4782
        %v5475 = vpop.f32.mrf.mxu0
        %v5476 = vadd.f32 %v4251, %v5475
        %v5477 = vpop.f32.mrf.mxu0
        %v5478 = vadd.f32 %v4251, %v5477
        %5479 = vmatmul.bf16.gmra.mxu0 %v4791
        %v5480 = vpop.f32.mrf.mxu0
        %v5481 = vadd.f32 %v4251, %v5480
        %v5482 = vpop.f32.mrf.mxu0
        %v5483 = vadd.f32 %v4251, %v5482
        %5484 = vmatmul.bf16.gmra.mxu0 %v4800
        %v5485 = vpop.f32.mrf.mxu0
        %v5486 = vadd.f32 %v4251, %v5485
        %v5487 = vpop.f32.mrf.mxu0
        %v5488 = vadd.f32 %v4251, %v5487
        %5489 = vmatmul.bf16.gmra.mxu0 %v4809
        %v5490 = vpop.f32.mrf.mxu0
        %v5491 = vadd.f32 %v4251, %v5490
        %v5492 = vpop.f32.mrf.mxu0
        %v5493 = vadd.f32 %v4251, %v5492
        %5494 = vmatmul.bf16.gmra.mxu0 %v4818
        %v5495 = vpop.f32.mrf.mxu0
        %v5496 = vadd.f32 %v4251, %v5495
        %v5497 = vpop.f32.mrf.mxu0
        %v5498 = vadd.f32 %v4251, %v5497
        %5499 = vmatmul.bf16.gmra.mxu0 %v4827
        %v5500 = vpop.f32.mrf.mxu0
        %v5501 = vadd.f32 %v4251, %v5500
        %v5502 = vpop.f32.mrf.mxu0
        %v5503 = vadd.f32 %v4251, %v5502
        %5504 = vmatmul.bf16.gmra.mxu0 %v4836
        %v5505 = vpop.f32.mrf.mxu0
        %v5506 = vadd.f32 %v4251, %v5505
        %v5507 = vpop.f32.mrf.mxu0
        %v5508 = vadd.f32 %v4251, %v5507
        %5509 = vdwg.mxu0
        %5510 = vmatpush.bf16.msra.mxu0 %v5292
        %5511 = vmatpush.bf16.msra.mxu0 %v5291
        %5512 = vmatpush.bf16.msra.mxu0 %v5290
        %5513 = vmatpush.bf16.msra.mxu0 %v5289
        %5514 = vmatpush.bf16.msra.mxu0 %v5288
        %5515 = vmatpush.bf16.msra.mxu0 %v5287
        %5516 = vmatpush.bf16.msra.mxu0 %v5286
        %5517 = vmatpush.bf16.msra.mxu0 %v5285
        %5518 = vmatmul.bf16.gmra.mxu0 %v4702
        %v5519 = vpop.f32.mrf.mxu0
        %v5520 = vadd.f32 %v5431, %v5519
        %v5521 = vpop.f32.mrf.mxu0
        %v5522 = vadd.f32 %v5433, %v5521
        %5523 = vmatmul.bf16.gmra.mxu0 %v4711
        %v5524 = vpop.f32.mrf.mxu0
        %v5525 = vadd.f32 %v5436, %v5524
        %v5526 = vpop.f32.mrf.mxu0
        %v5527 = vadd.f32 %v5438, %v5526
        %5528 = vmatmul.bf16.gmra.mxu0 %v4720
        %v5529 = vpop.f32.mrf.mxu0
        %v5530 = vadd.f32 %v5441, %v5529
        %v5531 = vpop.f32.mrf.mxu0
        %v5532 = vadd.f32 %v5443, %v5531
        %5533 = vmatmul.bf16.gmra.mxu0 %v4729
        %v5534 = vpop.f32.mrf.mxu0
        %v5535 = vadd.f32 %v5446, %v5534
        %v5536 = vpop.f32.mrf.mxu0
        %v5537 = vadd.f32 %v5448, %v5536
        %5538 = vmatmul.bf16.gmra.mxu0 %v4738
        %v5539 = vpop.f32.mrf.mxu0
        %v5540 = vadd.f32 %v5451, %v5539
        %v5541 = vpop.f32.mrf.mxu0
        %v5542 = vadd.f32 %v5453, %v5541
        %5543 = vmatmul.bf16.gmra.mxu0 %v4747
        %v5544 = vpop.f32.mrf.mxu0
        %v5545 = vadd.f32 %v5456, %v5544
        %v5546 = vpop.f32.mrf.mxu0
        %v5547 = vadd.f32 %v5458, %v5546
        %5548 = vmatmul.bf16.gmra.mxu0 %v4756
        %v5549 = vpop.f32.mrf.mxu0
        %v5550 = vadd.f32 %v5461, %v5549
        %v5551 = vpop.f32.mrf.mxu0
        %v5552 = vadd.f32 %v5463, %v5551
        %5553 = vmatmul.bf16.gmra.mxu0 %v4765
        %v5554 = vpop.f32.mrf.mxu0
        %v5555 = vadd.f32 %v5466, %v5554
        %v5556 = vpop.f32.mrf.mxu0
        %v5557 = vadd.f32 %v5468, %v5556
        %5558 = vmatmul.bf16.gmra.mxu0 %v4774
        %v5559 = vpop.f32.mrf.mxu0
        %v5560 = vadd.f32 %v5471, %v5559
        %v5561 = vpop.f32.mrf.mxu0
        %v5562 = vadd.f32 %v5473, %v5561
        %5563 = vmatmul.bf16.gmra.mxu0 %v4783
        %v5564 = vpop.f32.mrf.mxu0
        %v5565 = vadd.f32 %v5476, %v5564
        %v5566 = vpop.f32.mrf.mxu0
        %v5567 = vadd.f32 %v5478, %v5566
        %5568 = vmatmul.bf16.gmra.mxu0 %v4792
        %v5569 = vpop.f32.mrf.mxu0
        %v5570 = vadd.f32 %v5481, %v5569
        %v5571 = vpop.f32.mrf.mxu0
        %v5572 = vadd.f32 %v5483, %v5571
        %5573 = vmatmul.bf16.gmra.mxu0 %v4801
        %v5574 = vpop.f32.mrf.mxu0
        %v5575 = vadd.f32 %v5486, %v5574
        %v5576 = vpop.f32.mrf.mxu0
        %v5577 = vadd.f32 %v5488, %v5576
        %5578 = vmatmul.bf16.gmra.mxu0 %v4810
        %v5579 = vpop.f32.mrf.mxu0
        %v5580 = vadd.f32 %v5491, %v5579
        %v5581 = vpop.f32.mrf.mxu0
        %v5582 = vadd.f32 %v5493, %v5581
        %5583 = vmatmul.bf16.gmra.mxu0 %v4819
        %v5584 = vpop.f32.mrf.mxu0
        %v5585 = vadd.f32 %v5496, %v5584
        %v5586 = vpop.f32.mrf.mxu0
        %v5587 = vadd.f32 %v5498, %v5586
        %5588 = vmatmul.bf16.gmra.mxu0 %v4828
        %v5589 = vpop.f32.mrf.mxu0
        %v5590 = vadd.f32 %v5501, %v5589
        %v5591 = vpop.f32.mrf.mxu0
        %v5592 = vadd.f32 %v5503, %v5591
        %5593 = vmatmul.bf16.gmra.mxu0 %v4837
        %v5594 = vpop.f32.mrf.mxu0
        %v5595 = vadd.f32 %v5506, %v5594
        %v5596 = vpop.f32.mrf.mxu0
        %v5597 = vadd.f32 %v5508, %v5596
        %5598 = vdwg.mxu0
        %5599 = vmatpush.bf16.msra.mxu0 %v5300
        %5600 = vmatpush.bf16.msra.mxu0 %v5299
        %5601 = vmatpush.bf16.msra.mxu0 %v5298
        %5602 = vmatpush.bf16.msra.mxu0 %v5297
        %5603 = vmatpush.bf16.msra.mxu0 %v5296
        %5604 = vmatpush.bf16.msra.mxu0 %v5295
        %5605 = vmatpush.bf16.msra.mxu0 %v5294
        %5606 = vmatpush.bf16.msra.mxu0 %v5293
        %5607 = vmatmul.bf16.gmra.mxu0 %v4703
        %v5608 = vpop.f32.mrf.mxu0
        %v5609 = vadd.f32 %v5520, %v5608
        %v5610 = vpop.f32.mrf.mxu0
        %v5611 = vadd.f32 %v5522, %v5610
        %5612 = vmatmul.bf16.gmra.mxu0 %v4712
        %v5613 = vpop.f32.mrf.mxu0
        %v5614 = vadd.f32 %v5525, %v5613
        %v5615 = vpop.f32.mrf.mxu0
        %v5616 = vadd.f32 %v5527, %v5615
        %5617 = vmatmul.bf16.gmra.mxu0 %v4721
        %v5618 = vpop.f32.mrf.mxu0
        %v5619 = vadd.f32 %v5530, %v5618
        %v5620 = vpop.f32.mrf.mxu0
        %v5621 = vadd.f32 %v5532, %v5620
        %5622 = vmatmul.bf16.gmra.mxu0 %v4730
        %v5623 = vpop.f32.mrf.mxu0
        %v5624 = vadd.f32 %v5535, %v5623
        %v5625 = vpop.f32.mrf.mxu0
        %v5626 = vadd.f32 %v5537, %v5625
        %5627 = vmatmul.bf16.gmra.mxu0 %v4739
        %v5628 = vpop.f32.mrf.mxu0
        %v5629 = vadd.f32 %v5540, %v5628
        %v5630 = vpop.f32.mrf.mxu0
        %v5631 = vadd.f32 %v5542, %v5630
        %5632 = vmatmul.bf16.gmra.mxu0 %v4748
        %v5633 = vpop.f32.mrf.mxu0
        %v5634 = vadd.f32 %v5545, %v5633
        %v5635 = vpop.f32.mrf.mxu0
        %v5636 = vadd.f32 %v5547, %v5635
        %5637 = vmatmul.bf16.gmra.mxu0 %v4757
        %v5638 = vpop.f32.mrf.mxu0
        %v5639 = vadd.f32 %v5550, %v5638
        %v5640 = vpop.f32.mrf.mxu0
        %v5641 = vadd.f32 %v5552, %v5640
        %5642 = vmatmul.bf16.gmra.mxu0 %v4766
        %v5643 = vpop.f32.mrf.mxu0
        %v5644 = vadd.f32 %v5555, %v5643
        %v5645 = vpop.f32.mrf.mxu0
        %v5646 = vadd.f32 %v5557, %v5645
        %5647 = vmatmul.bf16.gmra.mxu0 %v4775
        %v5648 = vpop.f32.mrf.mxu0
        %v5649 = vadd.f32 %v5560, %v5648
        %v5650 = vpop.f32.mrf.mxu0
        %v5651 = vadd.f32 %v5562, %v5650
        %5652 = vmatmul.bf16.gmra.mxu0 %v4784
        %v5653 = vpop.f32.mrf.mxu0
        %v5654 = vadd.f32 %v5565, %v5653
        %v5655 = vpop.f32.mrf.mxu0
        %v5656 = vadd.f32 %v5567, %v5655
        %5657 = vmatmul.bf16.gmra.mxu0 %v4793
        %v5658 = vpop.f32.mrf.mxu0
        %v5659 = vadd.f32 %v5570, %v5658
        %v5660 = vpop.f32.mrf.mxu0
        %v5661 = vadd.f32 %v5572, %v5660
        %5662 = vmatmul.bf16.gmra.mxu0 %v4802
        %v5663 = vpop.f32.mrf.mxu0
        %v5664 = vadd.f32 %v5575, %v5663
        %v5665 = vpop.f32.mrf.mxu0
        %v5666 = vadd.f32 %v5577, %v5665
        %5667 = vmatmul.bf16.gmra.mxu0 %v4811
        %v5668 = vpop.f32.mrf.mxu0
        %v5669 = vadd.f32 %v5580, %v5668
        %v5670 = vpop.f32.mrf.mxu0
        %v5671 = vadd.f32 %v5582, %v5670
        %5672 = vmatmul.bf16.gmra.mxu0 %v4820
        %v5673 = vpop.f32.mrf.mxu0
        %v5674 = vadd.f32 %v5585, %v5673
        %v5675 = vpop.f32.mrf.mxu0
        %v5676 = vadd.f32 %v5587, %v5675
        %5677 = vmatmul.bf16.gmra.mxu0 %v4829
        %v5678 = vpop.f32.mrf.mxu0
        %v5679 = vadd.f32 %v5590, %v5678
        %v5680 = vpop.f32.mrf.mxu0
        %v5681 = vadd.f32 %v5592, %v5680
        %5682 = vmatmul.bf16.gmra.mxu0 %v4838
        %v5683 = vpop.f32.mrf.mxu0
        %v5684 = vadd.f32 %v5595, %v5683
        %v5685 = vpop.f32.mrf.mxu0
        %v5686 = vadd.f32 %v5597, %v5685
        %5687 = vdwg.mxu0
        %5688 = vmatpush.bf16.msra.mxu0 %v5308
        %5689 = vmatpush.bf16.msra.mxu0 %v5307
        %5690 = vmatpush.bf16.msra.mxu0 %v5306
        %5691 = vmatpush.bf16.msra.mxu0 %v5305
        %5692 = vmatpush.bf16.msra.mxu0 %v5304
        %5693 = vmatpush.bf16.msra.mxu0 %v5303
        %5694 = vmatpush.bf16.msra.mxu0 %v5302
        %5695 = vmatpush.bf16.msra.mxu0 %v5301
        %5696 = vmatmul.bf16.gmra.mxu0 %v4704
        %v5697 = vpop.f32.mrf.mxu0
        %v5698 = vadd.f32 %v5609, %v5697
        %v5699 = vpop.f32.mrf.mxu0
        %v5700 = vadd.f32 %v5611, %v5699
        %5701 = vmatmul.bf16.gmra.mxu0 %v4713
        %v5702 = vpop.f32.mrf.mxu0
        %v5703 = vadd.f32 %v5614, %v5702
        %v5704 = vpop.f32.mrf.mxu0
        %v5705 = vadd.f32 %v5616, %v5704
        %5706 = vmatmul.bf16.gmra.mxu0 %v4722
        %v5707 = vpop.f32.mrf.mxu0
        %v5708 = vadd.f32 %v5619, %v5707
        %v5709 = vpop.f32.mrf.mxu0
        %v5710 = vadd.f32 %v5621, %v5709
        %5711 = vmatmul.bf16.gmra.mxu0 %v4731
        %v5712 = vpop.f32.mrf.mxu0
        %v5713 = vadd.f32 %v5624, %v5712
        %v5714 = vpop.f32.mrf.mxu0
        %v5715 = vadd.f32 %v5626, %v5714
        %5716 = vmatmul.bf16.gmra.mxu0 %v4740
        %v5717 = vpop.f32.mrf.mxu0
        %v5718 = vadd.f32 %v5629, %v5717
        %v5719 = vpop.f32.mrf.mxu0
        %v5720 = vadd.f32 %v5631, %v5719
        %5721 = vmatmul.bf16.gmra.mxu0 %v4749
        %v5722 = vpop.f32.mrf.mxu0
        %v5723 = vadd.f32 %v5634, %v5722
        %v5724 = vpop.f32.mrf.mxu0
        %v5725 = vadd.f32 %v5636, %v5724
        %5726 = vmatmul.bf16.gmra.mxu0 %v4758
        %v5727 = vpop.f32.mrf.mxu0
        %v5728 = vadd.f32 %v5639, %v5727
        %v5729 = vpop.f32.mrf.mxu0
        %v5730 = vadd.f32 %v5641, %v5729
        %5731 = vmatmul.bf16.gmra.mxu0 %v4767
        %v5732 = vpop.f32.mrf.mxu0
        %v5733 = vadd.f32 %v5644, %v5732
        %v5734 = vpop.f32.mrf.mxu0
        %v5735 = vadd.f32 %v5646, %v5734
        %5736 = vmatmul.bf16.gmra.mxu0 %v4776
        %v5737 = vpop.f32.mrf.mxu0
        %v5738 = vadd.f32 %v5649, %v5737
        %v5739 = vpop.f32.mrf.mxu0
        %v5740 = vadd.f32 %v5651, %v5739
        %5741 = vmatmul.bf16.gmra.mxu0 %v4785
        %v5742 = vpop.f32.mrf.mxu0
        %v5743 = vadd.f32 %v5654, %v5742
        %v5744 = vpop.f32.mrf.mxu0
        %v5745 = vadd.f32 %v5656, %v5744
        %5746 = vmatmul.bf16.gmra.mxu0 %v4794
        %v5747 = vpop.f32.mrf.mxu0
        %v5748 = vadd.f32 %v5659, %v5747
        %v5749 = vpop.f32.mrf.mxu0
        %v5750 = vadd.f32 %v5661, %v5749
        %5751 = vmatmul.bf16.gmra.mxu0 %v4803
        %v5752 = vpop.f32.mrf.mxu0
        %v5753 = vadd.f32 %v5664, %v5752
        %v5754 = vpop.f32.mrf.mxu0
        %v5755 = vadd.f32 %v5666, %v5754
        %5756 = vmatmul.bf16.gmra.mxu0 %v4812
        %v5757 = vpop.f32.mrf.mxu0
        %v5758 = vadd.f32 %v5669, %v5757
        %v5759 = vpop.f32.mrf.mxu0
        %v5760 = vadd.f32 %v5671, %v5759
        %5761 = vmatmul.bf16.gmra.mxu0 %v4821
        %v5762 = vpop.f32.mrf.mxu0
        %v5763 = vadd.f32 %v5674, %v5762
        %v5764 = vpop.f32.mrf.mxu0
        %v5765 = vadd.f32 %v5676, %v5764
        %5766 = vmatmul.bf16.gmra.mxu0 %v4830
        %v5767 = vpop.f32.mrf.mxu0
        %v5768 = vadd.f32 %v5679, %v5767
        %v5769 = vpop.f32.mrf.mxu0
        %v5770 = vadd.f32 %v5681, %v5769
        %5771 = vmatmul.bf16.gmra.mxu0 %v4839
        %v5772 = vpop.f32.mrf.mxu0
        %v5773 = vadd.f32 %v5684, %v5772
        %v5774 = vpop.f32.mrf.mxu0
        %v5775 = vadd.f32 %v5686, %v5774
        %5776 = vdwg.mxu0
        %5777 = vmatpush.bf16.msra.mxu0 %v5316
        %5778 = vmatpush.bf16.msra.mxu0 %v5315
        %5779 = vmatpush.bf16.msra.mxu0 %v5314
        %5780 = vmatpush.bf16.msra.mxu0 %v5313
        %5781 = vmatpush.bf16.msra.mxu0 %v5312
        %5782 = vmatpush.bf16.msra.mxu0 %v5311
        %5783 = vmatpush.bf16.msra.mxu0 %v5310
        %5784 = vmatpush.bf16.msra.mxu0 %v5309
        %5785 = vmatmul.bf16.gmra.mxu0 %v4705
        %v5786 = vpop.f32.mrf.mxu0
        %v5787 = vadd.f32 %v5698, %v5786
        %v5788 = vpop.f32.mrf.mxu0
        %v5789 = vadd.f32 %v5700, %v5788
        %5790 = vmatmul.bf16.gmra.mxu0 %v4714
        %v5791 = vpop.f32.mrf.mxu0
        %v5792 = vadd.f32 %v5703, %v5791
        %v5793 = vpop.f32.mrf.mxu0
        %v5794 = vadd.f32 %v5705, %v5793
        %5795 = vmatmul.bf16.gmra.mxu0 %v4723
        %v5796 = vpop.f32.mrf.mxu0
        %v5797 = vadd.f32 %v5708, %v5796
        %v5798 = vpop.f32.mrf.mxu0
        %v5799 = vadd.f32 %v5710, %v5798
        %5800 = vmatmul.bf16.gmra.mxu0 %v4732
        %v5801 = vpop.f32.mrf.mxu0
        %v5802 = vadd.f32 %v5713, %v5801
        %v5803 = vpop.f32.mrf.mxu0
        %v5804 = vadd.f32 %v5715, %v5803
        %5805 = vmatmul.bf16.gmra.mxu0 %v4741
        %v5806 = vpop.f32.mrf.mxu0
        %v5807 = vadd.f32 %v5718, %v5806
        %v5808 = vpop.f32.mrf.mxu0
        %v5809 = vadd.f32 %v5720, %v5808
        %5810 = vmatmul.bf16.gmra.mxu0 %v4750
        %v5811 = vpop.f32.mrf.mxu0
        %v5812 = vadd.f32 %v5723, %v5811
        %v5813 = vpop.f32.mrf.mxu0
        %v5814 = vadd.f32 %v5725, %v5813
        %5815 = vmatmul.bf16.gmra.mxu0 %v4759
        %v5816 = vpop.f32.mrf.mxu0
        %v5817 = vadd.f32 %v5728, %v5816
        %v5818 = vpop.f32.mrf.mxu0
        %v5819 = vadd.f32 %v5730, %v5818
        %5820 = vmatmul.bf16.gmra.mxu0 %v4768
        %v5821 = vpop.f32.mrf.mxu0
        %v5822 = vadd.f32 %v5733, %v5821
        %v5823 = vpop.f32.mrf.mxu0
        %v5824 = vadd.f32 %v5735, %v5823
        %5825 = vmatmul.bf16.gmra.mxu0 %v4777
        %v5826 = vpop.f32.mrf.mxu0
        %v5827 = vadd.f32 %v5738, %v5826
        %v5828 = vpop.f32.mrf.mxu0
        %v5829 = vadd.f32 %v5740, %v5828
        %5830 = vmatmul.bf16.gmra.mxu0 %v4786
        %v5831 = vpop.f32.mrf.mxu0
        %v5832 = vadd.f32 %v5743, %v5831
        %v5833 = vpop.f32.mrf.mxu0
        %v5834 = vadd.f32 %v5745, %v5833
        %5835 = vmatmul.bf16.gmra.mxu0 %v4795
        %v5836 = vpop.f32.mrf.mxu0
        %v5837 = vadd.f32 %v5748, %v5836
        %v5838 = vpop.f32.mrf.mxu0
        %v5839 = vadd.f32 %v5750, %v5838
        %5840 = vmatmul.bf16.gmra.mxu0 %v4804
        %v5841 = vpop.f32.mrf.mxu0
        %v5842 = vadd.f32 %v5753, %v5841
        %v5843 = vpop.f32.mrf.mxu0
        %v5844 = vadd.f32 %v5755, %v5843
        %5845 = vmatmul.bf16.gmra.mxu0 %v4813
        %v5846 = vpop.f32.mrf.mxu0
        %v5847 = vadd.f32 %v5758, %v5846
        %v5848 = vpop.f32.mrf.mxu0
        %v5849 = vadd.f32 %v5760, %v5848
        %5850 = vmatmul.bf16.gmra.mxu0 %v4822
        %v5851 = vpop.f32.mrf.mxu0
        %v5852 = vadd.f32 %v5763, %v5851
        %v5853 = vpop.f32.mrf.mxu0
        %v5854 = vadd.f32 %v5765, %v5853
        %5855 = vmatmul.bf16.gmra.mxu0 %v4831
        %v5856 = vpop.f32.mrf.mxu0
        %v5857 = vadd.f32 %v5768, %v5856
        %v5858 = vpop.f32.mrf.mxu0
        %v5859 = vadd.f32 %v5770, %v5858
        %5860 = vmatmul.bf16.gmra.mxu0 %v4840
        %v5861 = vpop.f32.mrf.mxu0
        %v5862 = vadd.f32 %v5773, %v5861
        %v5863 = vpop.f32.mrf.mxu0
        %v5864 = vadd.f32 %v5775, %v5863
        %5865 = vdwg.mxu0
        %5866 = vmatpush.bf16.msra.mxu0 %v5324
        %5867 = vmatpush.bf16.msra.mxu0 %v5323
        %5868 = vmatpush.bf16.msra.mxu0 %v5322
        %5869 = vmatpush.bf16.msra.mxu0 %v5321
        %5870 = vmatpush.bf16.msra.mxu0 %v5320
        %5871 = vmatpush.bf16.msra.mxu0 %v5319
        %5872 = vmatpush.bf16.msra.mxu0 %v5318
        %5873 = vmatpush.bf16.msra.mxu0 %v5317
        %5874 = vmatmul.bf16.gmra.mxu0 %v4706
        %v5875 = vpop.f32.mrf.mxu0
        %v5876 = vadd.f32 %v5787, %v5875
        %v5877 = vpop.f32.mrf.mxu0
        %v5878 = vadd.f32 %v5789, %v5877
        %5879 = vmatmul.bf16.gmra.mxu0 %v4715
        %v5880 = vpop.f32.mrf.mxu0
        %v5881 = vadd.f32 %v5792, %v5880
        %v5882 = vpop.f32.mrf.mxu0
        %v5883 = vadd.f32 %v5794, %v5882
        %5884 = vmatmul.bf16.gmra.mxu0 %v4724
        %v5885 = vpop.f32.mrf.mxu0
        %v5886 = vadd.f32 %v5797, %v5885
        %v5887 = vpop.f32.mrf.mxu0
        %v5888 = vadd.f32 %v5799, %v5887
        %5889 = vmatmul.bf16.gmra.mxu0 %v4733
        %v5890 = vpop.f32.mrf.mxu0
        %v5891 = vadd.f32 %v5802, %v5890
        %v5892 = vpop.f32.mrf.mxu0
        %v5893 = vadd.f32 %v5804, %v5892
        %5894 = vmatmul.bf16.gmra.mxu0 %v4742
        %v5895 = vpop.f32.mrf.mxu0
        %v5896 = vadd.f32 %v5807, %v5895
        %v5897 = vpop.f32.mrf.mxu0
        %v5898 = vadd.f32 %v5809, %v5897
        %5899 = vmatmul.bf16.gmra.mxu0 %v4751
        %v5900 = vpop.f32.mrf.mxu0
        %v5901 = vadd.f32 %v5812, %v5900
        %v5902 = vpop.f32.mrf.mxu0
        %v5903 = vadd.f32 %v5814, %v5902
        %5904 = vmatmul.bf16.gmra.mxu0 %v4760
        %v5905 = vpop.f32.mrf.mxu0
        %v5906 = vadd.f32 %v5817, %v5905
        %v5907 = vpop.f32.mrf.mxu0
        %v5908 = vadd.f32 %v5819, %v5907
        %5909 = vmatmul.bf16.gmra.mxu0 %v4769
        %v5910 = vpop.f32.mrf.mxu0
        %v5911 = vadd.f32 %v5822, %v5910
        %v5912 = vpop.f32.mrf.mxu0
        %v5913 = vadd.f32 %v5824, %v5912
        %5914 = vmatmul.bf16.gmra.mxu0 %v4778
        %v5915 = vpop.f32.mrf.mxu0
        %v5916 = vadd.f32 %v5827, %v5915
        %v5917 = vpop.f32.mrf.mxu0
        %v5918 = vadd.f32 %v5829, %v5917
        %5919 = vmatmul.bf16.gmra.mxu0 %v4787
        %v5920 = vpop.f32.mrf.mxu0
        %v5921 = vadd.f32 %v5832, %v5920
        %v5922 = vpop.f32.mrf.mxu0
        %v5923 = vadd.f32 %v5834, %v5922
        %5924 = vmatmul.bf16.gmra.mxu0 %v4796
        %v5925 = vpop.f32.mrf.mxu0
        %v5926 = vadd.f32 %v5837, %v5925
        %v5927 = vpop.f32.mrf.mxu0
        %v5928 = vadd.f32 %v5839, %v5927
        %5929 = vmatmul.bf16.gmra.mxu0 %v4805
        %v5930 = vpop.f32.mrf.mxu0
        %v5931 = vadd.f32 %v5842, %v5930
        %v5932 = vpop.f32.mrf.mxu0
        %v5933 = vadd.f32 %v5844, %v5932
        %5934 = vmatmul.bf16.gmra.mxu0 %v4814
        %v5935 = vpop.f32.mrf.mxu0
        %v5936 = vadd.f32 %v5847, %v5935
        %v5937 = vpop.f32.mrf.mxu0
        %v5938 = vadd.f32 %v5849, %v5937
        %5939 = vmatmul.bf16.gmra.mxu0 %v4823
        %v5940 = vpop.f32.mrf.mxu0
        %v5941 = vadd.f32 %v5852, %v5940
        %v5942 = vpop.f32.mrf.mxu0
        %v5943 = vadd.f32 %v5854, %v5942
        %5944 = vmatmul.bf16.gmra.mxu0 %v4832
        %v5945 = vpop.f32.mrf.mxu0
        %v5946 = vadd.f32 %v5857, %v5945
        %v5947 = vpop.f32.mrf.mxu0
        %v5948 = vadd.f32 %v5859, %v5947
        %5949 = vmatmul.bf16.gmra.mxu0 %v4841
        %v5950 = vpop.f32.mrf.mxu0
        %v5951 = vadd.f32 %v5862, %v5950
        %v5952 = vpop.f32.mrf.mxu0
        %v5953 = vadd.f32 %v5864, %v5952
        %5954 = vdwg.mxu0
        %5955 = vmatpush.bf16.msra.mxu0 %v5332
        %5956 = vmatpush.bf16.msra.mxu0 %v5331
        %5957 = vmatpush.bf16.msra.mxu0 %v5330
        %5958 = vmatpush.bf16.msra.mxu0 %v5329
        %5959 = vmatpush.bf16.msra.mxu0 %v5328
        %5960 = vmatpush.bf16.msra.mxu0 %v5327
        %5961 = vmatpush.bf16.msra.mxu0 %v5326
        %5962 = vmatpush.bf16.msra.mxu0 %v5325
        %5963 = vmatmul.bf16.gmra.mxu0 %v4707
        %v5964 = vpop.f32.mrf.mxu0
        %v5965 = vadd.f32 %v5876, %v5964
        %v5966 = vpop.f32.mrf.mxu0
        %v5967 = vadd.f32 %v5878, %v5966
        %5968 = vmatmul.bf16.gmra.mxu0 %v4716
        %v5969 = vpop.f32.mrf.mxu0
        %v5970 = vadd.f32 %v5881, %v5969
        %v5971 = vpop.f32.mrf.mxu0
        %v5972 = vadd.f32 %v5883, %v5971
        %5973 = vmatmul.bf16.gmra.mxu0 %v4725
        %v5974 = vpop.f32.mrf.mxu0
        %v5975 = vadd.f32 %v5886, %v5974
        %v5976 = vpop.f32.mrf.mxu0
        %v5977 = vadd.f32 %v5888, %v5976
        %5978 = vmatmul.bf16.gmra.mxu0 %v4734
        %v5979 = vpop.f32.mrf.mxu0
        %v5980 = vadd.f32 %v5891, %v5979
        %v5981 = vpop.f32.mrf.mxu0
        %v5982 = vadd.f32 %v5893, %v5981
        %5983 = vmatmul.bf16.gmra.mxu0 %v4743
        %v5984 = vpop.f32.mrf.mxu0
        %v5985 = vadd.f32 %v5896, %v5984
        %v5986 = vpop.f32.mrf.mxu0
        %v5987 = vadd.f32 %v5898, %v5986
        %5988 = vmatmul.bf16.gmra.mxu0 %v4752
        %v5989 = vpop.f32.mrf.mxu0
        %v5990 = vadd.f32 %v5901, %v5989
        %v5991 = vpop.f32.mrf.mxu0
        %v5992 = vadd.f32 %v5903, %v5991
        %5993 = vmatmul.bf16.gmra.mxu0 %v4761
        %v5994 = vpop.f32.mrf.mxu0
        %v5995 = vadd.f32 %v5906, %v5994
        %v5996 = vpop.f32.mrf.mxu0
        %v5997 = vadd.f32 %v5908, %v5996
        %5998 = vmatmul.bf16.gmra.mxu0 %v4770
        %v5999 = vpop.f32.mrf.mxu0
        %v6000 = vadd.f32 %v5911, %v5999
        %v6001 = vpop.f32.mrf.mxu0
        %v6002 = vadd.f32 %v5913, %v6001
        %6003 = vmatmul.bf16.gmra.mxu0 %v4779
        %v6004 = vpop.f32.mrf.mxu0
        %v6005 = vadd.f32 %v5916, %v6004
        %v6006 = vpop.f32.mrf.mxu0
        %v6007 = vadd.f32 %v5918, %v6006
        %6008 = vmatmul.bf16.gmra.mxu0 %v4788
        %v6009 = vpop.f32.mrf.mxu0
        %v6010 = vadd.f32 %v5921, %v6009
        %v6011 = vpop.f32.mrf.mxu0
        %v6012 = vadd.f32 %v5923, %v6011
        %6013 = vmatmul.bf16.gmra.mxu0 %v4797
        %v6014 = vpop.f32.mrf.mxu0
        %v6015 = vadd.f32 %v5926, %v6014
        %v6016 = vpop.f32.mrf.mxu0
        %v6017 = vadd.f32 %v5928, %v6016
        %6018 = vmatmul.bf16.gmra.mxu0 %v4806
        %v6019 = vpop.f32.mrf.mxu0
        %v6020 = vadd.f32 %v5931, %v6019
        %v6021 = vpop.f32.mrf.mxu0
        %v6022 = vadd.f32 %v5933, %v6021
        %6023 = vmatmul.bf16.gmra.mxu0 %v4815
        %v6024 = vpop.f32.mrf.mxu0
        %v6025 = vadd.f32 %v5936, %v6024
        %v6026 = vpop.f32.mrf.mxu0
        %v6027 = vadd.f32 %v5938, %v6026
        %6028 = vmatmul.bf16.gmra.mxu0 %v4824
        %v6029 = vpop.f32.mrf.mxu0
        %v6030 = vadd.f32 %v5941, %v6029
        %v6031 = vpop.f32.mrf.mxu0
        %v6032 = vadd.f32 %v5943, %v6031
        %6033 = vmatmul.bf16.gmra.mxu0 %v4833
        %v6034 = vpop.f32.mrf.mxu0
        %v6035 = vadd.f32 %v5946, %v6034
        %v6036 = vpop.f32.mrf.mxu0
        %v6037 = vadd.f32 %v5948, %v6036
        %6038 = vmatmul.bf16.gmra.mxu0 %v4842
        %v6039 = vpop.f32.mrf.mxu0
        %v6040 = vadd.f32 %v5951, %v6039
        %v6041 = vpop.f32.mrf.mxu0
        %v6042 = vadd.f32 %v5953, %v6041
        %6043 = vdwg.mxu0
        %6044 = vmatpush.bf16.msra.mxu0 %v5340
        %6045 = vmatpush.bf16.msra.mxu0 %v5339
        %6046 = vmatpush.bf16.msra.mxu0 %v5338
        %6047 = vmatpush.bf16.msra.mxu0 %v5337
        %6048 = vmatpush.bf16.msra.mxu0 %v5336
        %6049 = vmatpush.bf16.msra.mxu0 %v5335
        %6050 = vmatpush.bf16.msra.mxu0 %v5334
        %6051 = vmatpush.bf16.msra.mxu0 %v5333
        %6052 = vmatmul.bf16.gmra.mxu0 %v4708
        %v6053 = vpop.f32.mrf.mxu0
        %v6054 = vadd.f32 %v5965, %v6053
        %v6055 = vpop.f32.mrf.mxu0
        %v6056 = vadd.f32 %v5967, %v6055
        %6057 = vmatmul.bf16.gmra.mxu0 %v4717
        %v6058 = vpop.f32.mrf.mxu0
        %v6059 = vadd.f32 %v5970, %v6058
        %v6060 = vpop.f32.mrf.mxu0
        %v6061 = vadd.f32 %v5972, %v6060
        %6062 = vmatmul.bf16.gmra.mxu0 %v4726
        %v6063 = vpop.f32.mrf.mxu0
        %v6064 = vadd.f32 %v5975, %v6063
        %v6065 = vpop.f32.mrf.mxu0
        %v6066 = vadd.f32 %v5977, %v6065
        %6067 = vmatmul.bf16.gmra.mxu0 %v4735
        %v6068 = vpop.f32.mrf.mxu0
        %v6069 = vadd.f32 %v5980, %v6068
        %v6070 = vpop.f32.mrf.mxu0
        %v6071 = vadd.f32 %v5982, %v6070
        %6072 = vmatmul.bf16.gmra.mxu0 %v4744
        %v6073 = vpop.f32.mrf.mxu0
        %v6074 = vadd.f32 %v5985, %v6073
        %v6075 = vpop.f32.mrf.mxu0
        %v6076 = vadd.f32 %v5987, %v6075
        %6077 = vmatmul.bf16.gmra.mxu0 %v4753
        %v6078 = vpop.f32.mrf.mxu0
        %v6079 = vadd.f32 %v5990, %v6078
        %v6080 = vpop.f32.mrf.mxu0
        %v6081 = vadd.f32 %v5992, %v6080
        %6082 = vmatmul.bf16.gmra.mxu0 %v4762
        %v6083 = vpop.f32.mrf.mxu0
        %v6084 = vadd.f32 %v5995, %v6083
        %v6085 = vpop.f32.mrf.mxu0
        %v6086 = vadd.f32 %v5997, %v6085
        %6087 = vmatmul.bf16.gmra.mxu0 %v4771
        %v6088 = vpop.f32.mrf.mxu0
        %v6089 = vadd.f32 %v6000, %v6088
        %v6090 = vpop.f32.mrf.mxu0
        %v6091 = vadd.f32 %v6002, %v6090
        %6092 = vmatmul.bf16.gmra.mxu0 %v4780
        %v6093 = vpop.f32.mrf.mxu0
        %v6094 = vadd.f32 %v6005, %v6093
        %v6095 = vpop.f32.mrf.mxu0
        %v6096 = vadd.f32 %v6007, %v6095
        %6097 = vmatmul.bf16.gmra.mxu0 %v4789
        %v6098 = vpop.f32.mrf.mxu0
        %v6099 = vadd.f32 %v6010, %v6098
        %v6100 = vpop.f32.mrf.mxu0
        %v6101 = vadd.f32 %v6012, %v6100
        %6102 = vmatmul.bf16.gmra.mxu0 %v4798
        %v6103 = vpop.f32.mrf.mxu0
        %v6104 = vadd.f32 %v6015, %v6103
        %v6105 = vpop.f32.mrf.mxu0
        %v6106 = vadd.f32 %v6017, %v6105
        %6107 = vmatmul.bf16.gmra.mxu0 %v4807
        %v6108 = vpop.f32.mrf.mxu0
        %v6109 = vadd.f32 %v6020, %v6108
        %v6110 = vpop.f32.mrf.mxu0
        %v6111 = vadd.f32 %v6022, %v6110
        %6112 = vmatmul.bf16.gmra.mxu0 %v4816
        %v6113 = vpop.f32.mrf.mxu0
        %v6114 = vadd.f32 %v6025, %v6113
        %v6115 = vpop.f32.mrf.mxu0
        %v6116 = vadd.f32 %v6027, %v6115
        %6117 = vmatmul.bf16.gmra.mxu0 %v4825
        %v6118 = vpop.f32.mrf.mxu0
        %v6119 = vadd.f32 %v6030, %v6118
        %v6120 = vpop.f32.mrf.mxu0
        %v6121 = vadd.f32 %v6032, %v6120
        %6122 = vmatmul.bf16.gmra.mxu0 %v4834
        %v6123 = vpop.f32.mrf.mxu0
        %v6124 = vadd.f32 %v6035, %v6123
        %v6125 = vpop.f32.mrf.mxu0
        %v6126 = vadd.f32 %v6037, %v6125
        %6127 = vmatmul.bf16.gmra.mxu0 %v4843
        %v6128 = vpop.f32.mrf.mxu0
        %v6129 = vadd.f32 %v6040, %v6128
        %v6130 = vpop.f32.mrf.mxu0
        %v6131 = vadd.f32 %v6042, %v6130
        %6132 = vdwg.mxu0
        %6133 = vmatpush.bf16.msra.mxu0 %v5348
        %6134 = vmatpush.bf16.msra.mxu0 %v5347
        %6135 = vmatpush.bf16.msra.mxu0 %v5346
        %6136 = vmatpush.bf16.msra.mxu0 %v5345
        %6137 = vmatpush.bf16.msra.mxu0 %v5344
        %6138 = vmatpush.bf16.msra.mxu0 %v5343
        %6139 = vmatpush.bf16.msra.mxu0 %v5342
        %6140 = vmatpush.bf16.msra.mxu0 %v5341
        %6141 = vmatmul.bf16.gmra.mxu0 %v4709
        %v6142 = vpop.f32.mrf.mxu0
        %v6143 = vadd.f32 %v6054, %v6142
        %v6144 = vpop.f32.mrf.mxu0
        %v6145 = vadd.f32 %v6056, %v6144
        %6146 = vmatmul.bf16.gmra.mxu0 %v4718
        %v6147 = vpop.f32.mrf.mxu0
        %v6148 = vadd.f32 %v6059, %v6147
        %v6149 = vpop.f32.mrf.mxu0
        %v6150 = vadd.f32 %v6061, %v6149
        %6151 = vmatmul.bf16.gmra.mxu0 %v4727
        %v6152 = vpop.f32.mrf.mxu0
        %v6153 = vadd.f32 %v6064, %v6152
        %v6154 = vpop.f32.mrf.mxu0
        %v6155 = vadd.f32 %v6066, %v6154
        %6156 = vmatmul.bf16.gmra.mxu0 %v4736
        %v6157 = vpop.f32.mrf.mxu0
        %v6158 = vadd.f32 %v6069, %v6157
        %v6159 = vpop.f32.mrf.mxu0
        %v6160 = vadd.f32 %v6071, %v6159
        %6161 = vmatmul.bf16.gmra.mxu0 %v4745
        %v6162 = vpop.f32.mrf.mxu0
        %v6163 = vadd.f32 %v6074, %v6162
        %v6164 = vpop.f32.mrf.mxu0
        %v6165 = vadd.f32 %v6076, %v6164
        %6166 = vmatmul.bf16.gmra.mxu0 %v4754
        %v6167 = vpop.f32.mrf.mxu0
        %v6168 = vadd.f32 %v6079, %v6167
        %v6169 = vpop.f32.mrf.mxu0
        %v6170 = vadd.f32 %v6081, %v6169
        %6171 = vmatmul.bf16.gmra.mxu0 %v4763
        %v6172 = vpop.f32.mrf.mxu0
        %v6173 = vadd.f32 %v6084, %v6172
        %v6174 = vpop.f32.mrf.mxu0
        %v6175 = vadd.f32 %v6086, %v6174
        %6176 = vmatmul.bf16.gmra.mxu0 %v4772
        %v6177 = vpop.f32.mrf.mxu0
        %v6178 = vadd.f32 %v6089, %v6177
        %v6179 = vpop.f32.mrf.mxu0
        %v6180 = vadd.f32 %v6091, %v6179
        %6181 = vmatmul.bf16.gmra.mxu0 %v4781
        %v6182 = vpop.f32.mrf.mxu0
        %v6183 = vadd.f32 %v6094, %v6182
        %v6184 = vpop.f32.mrf.mxu0
        %v6185 = vadd.f32 %v6096, %v6184
        %6186 = vmatmul.bf16.gmra.mxu0 %v4790
        %v6187 = vpop.f32.mrf.mxu0
        %v6188 = vadd.f32 %v6099, %v6187
        %v6189 = vpop.f32.mrf.mxu0
        %v6190 = vadd.f32 %v6101, %v6189
        %6191 = vmatmul.bf16.gmra.mxu0 %v4799
        %v6192 = vpop.f32.mrf.mxu0
        %v6193 = vadd.f32 %v6104, %v6192
        %v6194 = vpop.f32.mrf.mxu0
        %v6195 = vadd.f32 %v6106, %v6194
        %6196 = vmatmul.bf16.gmra.mxu0 %v4808
        %v6197 = vpop.f32.mrf.mxu0
        %v6198 = vadd.f32 %v6109, %v6197
        %v6199 = vpop.f32.mrf.mxu0
        %v6200 = vadd.f32 %v6111, %v6199
        %6201 = vmatmul.bf16.gmra.mxu0 %v4817
        %v6202 = vpop.f32.mrf.mxu0
        %v6203 = vadd.f32 %v6114, %v6202
        %v6204 = vpop.f32.mrf.mxu0
        %v6205 = vadd.f32 %v6116, %v6204
        %6206 = vmatmul.bf16.gmra.mxu0 %v4826
        %v6207 = vpop.f32.mrf.mxu0
        %v6208 = vadd.f32 %v6119, %v6207
        %v6209 = vpop.f32.mrf.mxu0
        %v6210 = vadd.f32 %v6121, %v6209
        %6211 = vmatmul.bf16.gmra.mxu0 %v4835
        %v6212 = vpop.f32.mrf.mxu0
        %v6213 = vadd.f32 %v6124, %v6212
        %v6214 = vpop.f32.mrf.mxu0
        %v6215 = vadd.f32 %v6126, %v6214
        %6216 = vmatmul.bf16.gmra.mxu0 %v4844
        %v6217 = vpop.f32.mrf.mxu0
        %v6218 = vadd.f32 %v6129, %v6217
        %v6219 = vpop.f32.mrf.mxu0
        %v6220 = vadd.f32 %v6131, %v6219
        %6221 = vdwg.mxu0
        %v6222 = vmax.f32 %v6143, 0.0
        %v6223 = vmax.f32 %v6145, 0.0
        %v6224 = vmax.f32 %v6148, 0.0
        %v6225 = vmax.f32 %v6150, 0.0
        %v6226 = vmax.f32 %v6153, 0.0
        %v6227 = vmax.f32 %v6155, 0.0
        %v6228 = vmax.f32 %v6158, 0.0
        %v6229 = vmax.f32 %v6160, 0.0
        %v6230 = vmax.f32 %v6163, 0.0
        %v6231 = vmax.f32 %v6165, 0.0
        %v6232 = vmax.f32 %v6168, 0.0
        %v6233 = vmax.f32 %v6170, 0.0
        %v6234 = vmax.f32 %v6173, 0.0
        %v6235 = vmax.f32 %v6175, 0.0
        %v6236 = vmax.f32 %v6178, 0.0
        %v6237 = vmax.f32 %v6180, 0.0
        %v6238 = vmax.f32 %v6183, 0.0
        %v6239 = vmax.f32 %v6185, 0.0
        %v6240 = vmax.f32 %v6188, 0.0
        %v6241 = vmax.f32 %v6190, 0.0
        %v6242 = vmax.f32 %v6193, 0.0
        %v6243 = vmax.f32 %v6195, 0.0
        %v6244 = vmax.f32 %v6198, 0.0
        %v6245 = vmax.f32 %v6200, 0.0
        %v6246 = vmax.f32 %v6203, 0.0
        %v6247 = vmax.f32 %v6205, 0.0
        %v6248 = vmax.f32 %v6208, 0.0
        %v6249 = vmax.f32 %v6210, 0.0
        %v6250 = vmax.f32 %v6213, 0.0
        %v6251 = vmax.f32 %v6215, 0.0
        %v6252 = vmax.f32 %v6218, 0.0
        %v6253 = vmax.f32 %v6220, 0.0
        %v6254 = vpack.c.bf16 %v6222, %v6222
        %v6255 = vpack.c.bf16 %v6223, %v6223
        %v6256 = vpack.c.bf16 %v6224, %v6224
        %v6257 = vpack.c.bf16 %v6225, %v6225
        %v6258 = vpack.c.bf16 %v6226, %v6226
        %v6259 = vpack.c.bf16 %v6227, %v6227
        %v6260 = vpack.c.bf16 %v6228, %v6228
        %v6261 = vpack.c.bf16 %v6229, %v6229
        %v6262 = vpack.c.bf16 %v6230, %v6230
        %v6263 = vpack.c.bf16 %v6231, %v6231
        %v6264 = vpack.c.bf16 %v6232, %v6232
        %v6265 = vpack.c.bf16 %v6233, %v6233
        %v6266 = vpack.c.bf16 %v6234, %v6234
        %v6267 = vpack.c.bf16 %v6235, %v6235
        %v6268 = vpack.c.bf16 %v6236, %v6236
        %v6269 = vpack.c.bf16 %v6237, %v6237
        %v6270 = vpack.c.bf16 %v6238, %v6238
        %v6271 = vpack.c.bf16 %v6239, %v6239
        %v6272 = vpack.c.bf16 %v6240, %v6240
        %v6273 = vpack.c.bf16 %v6241, %v6241
        %v6274 = vpack.c.bf16 %v6242, %v6242
        %v6275 = vpack.c.bf16 %v6243, %v6243
        %v6276 = vpack.c.bf16 %v6244, %v6244
        %v6277 = vpack.c.bf16 %v6245, %v6245
        %v6278 = vpack.c.bf16 %v6246, %v6246
        %v6279 = vpack.c.bf16 %v6247, %v6247
        %v6280 = vpack.c.bf16 %v6248, %v6248
        %v6281 = vpack.c.bf16 %v6249, %v6249
        %v6282 = vpack.c.bf16 %v6250, %v6250
        %v6283 = vpack.c.bf16 %v6251, %v6251
        %v6284 = vpack.c.bf16 %v6252, %v6252
        %v6285 = vpack.c.bf16 %v6253, %v6253
        %6286 = vst [vmem:[%s832 + $0x8] sm:$0xf] %v6254
        %6287 = vst [vmem:[%s832 + $0xc] sm:$0xf] %v6255
        %6288 = vst [vmem:[%s832 + $0x20] sm:$0xf] %v6256
        %6289 = vst [vmem:[%s832 + $0x24] sm:$0xf] %v6257
        %6290 = vst [vmem:[%s832 + $0x38] sm:$0xf] %v6258
        %6291 = vst [vmem:[%s832 + $0x3c] sm:$0xf] %v6259
        %6292 = vst [vmem:[%s832 + $0x50] sm:$0xf] %v6260
        %6293 = vst [vmem:[%s832 + $0x54] sm:$0xf] %v6261
        %6294 = vst [vmem:[%s832 + $0x68] sm:$0xf] %v6262
        %6295 = vst [vmem:[%s832 + $0x6c] sm:$0xf] %v6263
        %6296 = vst [vmem:[%s832 + $0x80] sm:$0xf] %v6264
        %6297 = vst [vmem:[%s832 + $0x84] sm:$0xf] %v6265
        %6298 = vst [vmem:[%s832 + $0x98] sm:$0xf] %v6266
        %6299 = vst [vmem:[%s832 + $0x9c] sm:$0xf] %v6267
        %6300 = vst [vmem:[%s832 + $0xb0] sm:$0xf] %v6268
        %6301 = vst [vmem:[%s832 + $0xb4] sm:$0xf] %v6269
        %6302 = vst [vmem:[%s832 + $0xc8] sm:$0xf] %v6270
        %6303 = vst [vmem:[%s832 + $0xcc] sm:$0xf] %v6271
        %6304 = vst [vmem:[%s832 + $0xe0] sm:$0xf] %v6272
        %6305 = vst [vmem:[%s832 + $0xe4] sm:$0xf] %v6273
        %6306 = vst [vmem:[%s832 + $0xf8] sm:$0xf] %v6274
        %6307 = vst [vmem:[%s832 + $0xfc] sm:$0xf] %v6275
        %6308 = vst [vmem:[%s832 + $0x110] sm:$0xf] %v6276
        %6309 = vst [vmem:[%s832 + $0x114] sm:$0xf] %v6277
        %6310 = vst [vmem:[%s832 + $0x128] sm:$0xf] %v6278
        %6311 = vst [vmem:[%s832 + $0x12c] sm:$0xf] %v6279
        %6312 = vst [vmem:[%s832 + $0x140] sm:$0xf] %v6280
        %6313 = vst [vmem:[%s832 + $0x144] sm:$0xf] %v6281
        %6314 = vst [vmem:[%s832 + $0x158] sm:$0xf] %v6282
        %6315 = vst [vmem:[%s832 + $0x15c] sm:$0xf] %v6283
        %6316 = vst [vmem:[%s832 + $0x170] sm:$0xf] %v6284
        %6317 = vst [vmem:[%s832 + $0x174] sm:$0xf] %v6285
        %v6318 = vld [vmem:[#allocation2 + $0x4] sm:$0x8]
        %v6319 = vld [vmem:[#allocation2 + $0x8] sm:$0xf]
        %v6320 = vld [vmem:[#allocation2 + $0xc] sm:$0x7]
        %v6321 = vld [vmem:[#allocation2 + $0x1c] sm:$0x8]
        %v6322 = vld [vmem:[#allocation2 + $0x20] sm:$0xf]
        %v6323 = vld [vmem:[#allocation2 + $0x24] sm:$0x7]
        %v6324 = vld [vmem:[#allocation2 + $0x34] sm:$0x8]
        %v6325 = vld [vmem:[#allocation2 + $0x38] sm:$0xf]
        %v6326 = vld [vmem:[#allocation2 + $0x3c] sm:$0x7]
        %v6327 = vld [vmem:[#allocation2 + $0x4c] sm:$0x8]
        %v6328 = vld [vmem:[#allocation2 + $0x50] sm:$0xf]
        %v6329 = vld [vmem:[#allocation2 + $0x54] sm:$0x7]
        %v6330 = vld [vmem:[#allocation2 + $0x64] sm:$0x8]
        %v6331 = vld [vmem:[#allocation2 + $0x68] sm:$0xf]
        %v6332 = vld [vmem:[#allocation2 + $0x6c] sm:$0x7]
        %v6333 = vld [vmem:[#allocation2 + $0x7c] sm:$0x8]
        %v6334 = vld [vmem:[#allocation2 + $0x80] sm:$0xf]
        %v6335 = vld [vmem:[#allocation2 + $0x84] sm:$0x7]
        %v6336 = vld [vmem:[#allocation2 + $0x94] sm:$0x8]
        %v6337 = vld [vmem:[#allocation2 + $0x98] sm:$0xf]
        %v6338 = vld [vmem:[#allocation2 + $0x9c] sm:$0x7]
        %v6339 = vld [vmem:[#allocation2 + $0xac] sm:$0x8]
        %v6340 = vld [vmem:[#allocation2 + $0xb0] sm:$0xf]
        %v6341 = vld [vmem:[#allocation2 + $0xb4] sm:$0x7]
        %v6342 = vld [vmem:[#allocation2 + $0xc4] sm:$0x8]
        %v6343 = vld [vmem:[#allocation2 + $0xc8] sm:$0xf]
        %v6344 = vld [vmem:[#allocation2 + $0xcc] sm:$0x7]
        %v6345 = vld [vmem:[#allocation2 + $0xdc] sm:$0x8]
        %v6346 = vld [vmem:[#allocation2 + $0xe0] sm:$0xf]
        %v6347 = vld [vmem:[#allocation2 + $0xe4] sm:$0x7]
        %v6348 = vld [vmem:[#allocation2 + $0xf4] sm:$0x8]
        %v6349 = vld [vmem:[#allocation2 + $0xf8] sm:$0xf]
        %v6350 = vld [vmem:[#allocation2 + $0xfc] sm:$0x7]
        %v6351 = vld [vmem:[#allocation2 + $0x10c] sm:$0x8]
        %v6352 = vld [vmem:[#allocation2 + $0x110] sm:$0xf]
        %v6353 = vld [vmem:[#allocation2 + $0x114] sm:$0x7]
        %v6354 = vld [vmem:[#allocation2 + $0x124] sm:$0x8]
        %v6355 = vld [vmem:[#allocation2 + $0x128] sm:$0xf]
        %v6356 = vld [vmem:[#allocation2 + $0x12c] sm:$0x7]
        %v6357 = vld [vmem:[#allocation2 + $0x13c] sm:$0x8]
        %v6358 = vld [vmem:[#allocation2 + $0x140] sm:$0xf]
        %v6359 = vld [vmem:[#allocation2 + $0x144] sm:$0x7]
        %v6360 = vld [vmem:[#allocation2 + $0x154] sm:$0x8]
        %v6361 = vld [vmem:[#allocation2 + $0x158] sm:$0xf]
        %v6362 = vld [vmem:[#allocation2 + $0x15c] sm:$0x7]
        %v6363 = vld [vmem:[#allocation2 + $0x16c] sm:$0x8]
        %v6364 = vld [vmem:[#allocation2 + $0x170] sm:$0xf]
        %v6365 = vld [vmem:[#allocation2 + $0x174] sm:$0x7]
        %vm6414 = vcmask 1040384
        %vm6415 = vcmask 1044484
        %vm6416 = vmor %vm6414, %vm6415
        %v6417 = vrot.slane %v6318, 7
        %v6418 = vrot.slane %v6417, 4
        %v6419 = vrot.slane %v6319, 7
        %v6420 = vsel %vm6416, %v6418, %v6419
        %v6421 = vrot.slane %v6419, 4
        %v6422 = vrot.slane %v6320, 7
        %v6423 = vsel %vm6416, %v6421, %v6422
        %v6424 = vrot.slane %v6321, 7
        %v6425 = vrot.slane %v6424, 4
        %v6426 = vrot.slane %v6322, 7
        %v6427 = vsel %vm6416, %v6425, %v6426
        %v6428 = vrot.slane %v6426, 4
        %v6429 = vrot.slane %v6323, 7
        %v6430 = vsel %vm6416, %v6428, %v6429
        %v6431 = vrot.slane %v6324, 7
        %v6432 = vrot.slane %v6431, 4
        %v6433 = vrot.slane %v6325, 7
        %v6434 = vsel %vm6416, %v6432, %v6433
        %v6435 = vrot.slane %v6433, 4
        %v6436 = vrot.slane %v6326, 7
        %v6437 = vsel %vm6416, %v6435, %v6436
        %v6438 = vrot.slane %v6327, 7
        %v6439 = vrot.slane %v6438, 4
        %v6440 = vrot.slane %v6328, 7
        %v6441 = vsel %vm6416, %v6439, %v6440
        %v6442 = vrot.slane %v6440, 4
        %v6443 = vrot.slane %v6329, 7
        %v6444 = vsel %vm6416, %v6442, %v6443
        %v6445 = vrot.slane %v6330, 7
        %v6446 = vrot.slane %v6445, 4
        %v6447 = vrot.slane %v6331, 7
        %v6448 = vsel %vm6416, %v6446, %v6447
        %v6449 = vrot.slane %v6447, 4
        %v6450 = vrot.slane %v6332, 7
        %v6451 = vsel %vm6416, %v6449, %v6450
        %v6452 = vrot.slane %v6333, 7
        %v6453 = vrot.slane %v6452, 4
        %v6454 = vrot.slane %v6334, 7
        %v6455 = vsel %vm6416, %v6453, %v6454
        %v6456 = vrot.slane %v6454, 4
        %v6457 = vrot.slane %v6335, 7
        %v6458 = vsel %vm6416, %v6456, %v6457
        %v6459 = vrot.slane %v6336, 7
        %v6460 = vrot.slane %v6459, 4
        %v6461 = vrot.slane %v6337, 7
        %v6462 = vsel %vm6416, %v6460, %v6461
        %v6463 = vrot.slane %v6461, 4
        %v6464 = vrot.slane %v6338, 7
        %v6465 = vsel %vm6416, %v6463, %v6464
        %v6466 = vrot.slane %v6339, 7
        %v6467 = vrot.slane %v6466, 4
        %v6468 = vrot.slane %v6340, 7
        %v6469 = vsel %vm6416, %v6467, %v6468
        %v6470 = vrot.slane %v6468, 4
        %v6471 = vrot.slane %v6341, 7
        %v6472 = vsel %vm6416, %v6470, %v6471
        %v6473 = vrot.slane %v6342, 7
        %v6474 = vrot.slane %v6473, 4
        %v6475 = vrot.slane %v6343, 7
        %v6476 = vsel %vm6416, %v6474, %v6475
        %v6477 = vrot.slane %v6475, 4
        %v6478 = vrot.slane %v6344, 7
        %v6479 = vsel %vm6416, %v6477, %v6478
        %v6480 = vrot.slane %v6345, 7
        %v6481 = vrot.slane %v6480, 4
        %v6482 = vrot.slane %v6346, 7
        %v6483 = vsel %vm6416, %v6481, %v6482
        %v6484 = vrot.slane %v6482, 4
        %v6485 = vrot.slane %v6347, 7
        %v6486 = vsel %vm6416, %v6484, %v6485
        %v6487 = vrot.slane %v6348, 7
        %v6488 = vrot.slane %v6487, 4
        %v6489 = vrot.slane %v6349, 7
        %v6490 = vsel %vm6416, %v6488, %v6489
        %v6491 = vrot.slane %v6489, 4
        %v6492 = vrot.slane %v6350, 7
        %v6493 = vsel %vm6416, %v6491, %v6492
        %v6494 = vrot.slane %v6351, 7
        %v6495 = vrot.slane %v6494, 4
        %v6496 = vrot.slane %v6352, 7
        %v6497 = vsel %vm6416, %v6495, %v6496
        %v6498 = vrot.slane %v6496, 4
        %v6499 = vrot.slane %v6353, 7
        %v6500 = vsel %vm6416, %v6498, %v6499
        %v6501 = vrot.slane %v6354, 7
        %v6502 = vrot.slane %v6501, 4
        %v6503 = vrot.slane %v6355, 7
        %v6504 = vsel %vm6416, %v6502, %v6503
        %v6505 = vrot.slane %v6503, 4
        %v6506 = vrot.slane %v6356, 7
        %v6507 = vsel %vm6416, %v6505, %v6506
        %v6508 = vrot.slane %v6357, 7
        %v6509 = vrot.slane %v6508, 4
        %v6510 = vrot.slane %v6358, 7
        %v6511 = vsel %vm6416, %v6509, %v6510
        %v6512 = vrot.slane %v6510, 4
        %v6513 = vrot.slane %v6359, 7
        %v6514 = vsel %vm6416, %v6512, %v6513
        %v6515 = vrot.slane %v6360, 7
        %v6516 = vrot.slane %v6515, 4
        %v6517 = vrot.slane %v6361, 7
        %v6518 = vsel %vm6416, %v6516, %v6517
        %v6519 = vrot.slane %v6517, 4
        %v6520 = vrot.slane %v6362, 7
        %v6521 = vsel %vm6416, %v6519, %v6520
        %v6522 = vrot.slane %v6363, 7
        %v6523 = vrot.slane %v6522, 4
        %v6524 = vrot.slane %v6364, 7
        %v6525 = vsel %vm6416, %v6523, %v6524
        %v6526 = vrot.slane %v6524, 4
        %v6527 = vrot.slane %v6365, 7
        %v6528 = vsel %vm6416, %v6526, %v6527
        %6561 = vst [vmem:[#allocation3] sm:$0xf] %v6420
        %6562 = vst [vmem:[#allocation3 + $0x24] sm:$0xf] %v6423
        %6563 = vst [vmem:[#allocation3 + $0x48] sm:$0xf] %v6427
        %6564 = vst [vmem:[#allocation3 + $0x6c] sm:$0xf] %v6430
        %6565 = vst [vmem:[#allocation3 + $0x90] sm:$0xf] %v6434
        %6566 = vst [vmem:[#allocation3 + $0xb4] sm:$0xf] %v6437
        %6567 = vst [vmem:[#allocation3 + $0xd8] sm:$0xf] %v6441
        %6568 = vst [vmem:[#allocation3 + $0xfc] sm:$0xf] %v6444
        %6569 = vst [vmem:[#allocation3 + $0x120] sm:$0xf] %v6448
        %6570 = vst [vmem:[#allocation3 + $0x144] sm:$0xf] %v6451
        %6571 = vst [vmem:[#allocation3 + $0x168] sm:$0xf] %v6455
        %6572 = vst [vmem:[#allocation3 + $0x18c] sm:$0xf] %v6458
        %6573 = vst [vmem:[#allocation3 + $0x1b0] sm:$0xf] %v6462
        %6574 = vst [vmem:[#allocation3 + $0x1d4] sm:$0xf] %v6465
        %6575 = vst [vmem:[#allocation3 + $0x1f8] sm:$0xf] %v6469
        %6576 = vst [vmem:[#allocation3 + $0x21c] sm:$0xf] %v6472
        %6577 = vst [vmem:[#allocation3 + $0x240] sm:$0xf] %v6476
        %6578 = vst [vmem:[#allocation3 + $0x264] sm:$0xf] %v6479
        %6579 = vst [vmem:[#allocation3 + $0x288] sm:$0xf] %v6483
        %6580 = vst [vmem:[#allocation3 + $0x2ac] sm:$0xf] %v6486
        %6581 = vst [vmem:[#allocation3 + $0x2d0] sm:$0xf] %v6490
        %6582 = vst [vmem:[#allocation3 + $0x2f4] sm:$0xf] %v6493
        %6583 = vst [vmem:[#allocation3 + $0x318] sm:$0xf] %v6497
        %6584 = vst [vmem:[#allocation3 + $0x33c] sm:$0xf] %v6500
        %6585 = vst [vmem:[#allocation3 + $0x360] sm:$0xf] %v6504
        %6586 = vst [vmem:[#allocation3 + $0x384] sm:$0xf] %v6507
        %6587 = vst [vmem:[#allocation3 + $0x3a8] sm:$0xf] %v6511
        %6588 = vst [vmem:[#allocation3 + $0x3cc] sm:$0xf] %v6514
        %6589 = vst [vmem:[#allocation3 + $0x3f0] sm:$0xf] %v6518
        %6590 = vst [vmem:[#allocation3 + $0x414] sm:$0xf] %v6521
        %6591 = vst [vmem:[#allocation3 + $0x438] sm:$0xf] %v6525
        %6592 = vst [vmem:[#allocation3 + $0x45c] sm:$0xf] %v6528
        %v6593 = vld [vmem:[#allocation2 + $0x8] sm:$0xf]
        %v6594 = vld [vmem:[#allocation2 + $0xc] sm:$0xf]
        %v6595 = vld [vmem:[#allocation2 + $0x20] sm:$0xf]
        %v6596 = vld [vmem:[#allocation2 + $0x24] sm:$0xf]
        %v6597 = vld [vmem:[#allocation2 + $0x38] sm:$0xf]
        %v6598 = vld [vmem:[#allocation2 + $0x3c] sm:$0xf]
        %v6599 = vld [vmem:[#allocation2 + $0x50] sm:$0xf]
        %v6600 = vld [vmem:[#allocation2 + $0x54] sm:$0xf]
        %v6601 = vld [vmem:[#allocation2 + $0x68] sm:$0xf]
        %v6602 = vld [vmem:[#allocation2 + $0x6c] sm:$0xf]
        %v6603 = vld [vmem:[#allocation2 + $0x80] sm:$0xf]
        %v6604 = vld [vmem:[#allocation2 + $0x84] sm:$0xf]
        %v6605 = vld [vmem:[#allocation2 + $0x98] sm:$0xf]
        %v6606 = vld [vmem:[#allocation2 + $0x9c] sm:$0xf]
        %v6607 = vld [vmem:[#allocation2 + $0xb0] sm:$0xf]
        %v6608 = vld [vmem:[#allocation2 + $0xb4] sm:$0xf]
        %v6609 = vld [vmem:[#allocation2 + $0xc8] sm:$0xf]
        %v6610 = vld [vmem:[#allocation2 + $0xcc] sm:$0xf]
        %v6611 = vld [vmem:[#allocation2 + $0xe0] sm:$0xf]
        %v6612 = vld [vmem:[#allocation2 + $0xe4] sm:$0xf]
        %v6613 = vld [vmem:[#allocation2 + $0xf8] sm:$0xf]
        %v6614 = vld [vmem:[#allocation2 + $0xfc] sm:$0xf]
        %v6615 = vld [vmem:[#allocation2 + $0x110] sm:$0xf]
        %v6616 = vld [vmem:[#allocation2 + $0x114] sm:$0xf]
        %v6617 = vld [vmem:[#allocation2 + $0x128] sm:$0xf]
        %v6618 = vld [vmem:[#allocation2 + $0x12c] sm:$0xf]
        %v6619 = vld [vmem:[#allocation2 + $0x140] sm:$0xf]
        %v6620 = vld [vmem:[#allocation2 + $0x144] sm:$0xf]
        %v6621 = vld [vmem:[#allocation2 + $0x158] sm:$0xf]
        %v6622 = vld [vmem:[#allocation2 + $0x15c] sm:$0xf]
        %v6623 = vld [vmem:[#allocation2 + $0x170] sm:$0xf]
        %v6624 = vld [vmem:[#allocation2 + $0x174] sm:$0xf]
        %6625 = vst [vmem:[#allocation3 + $0x4] sm:$0xf] %v6593
        %6626 = vst [vmem:[#allocation3 + $0x28] sm:$0xf] %v6594
        %6627 = vst [vmem:[#allocation3 + $0x4c] sm:$0xf] %v6595
        %6628 = vst [vmem:[#allocation3 + $0x70] sm:$0xf] %v6596
        %6629 = vst [vmem:[#allocation3 + $0x94] sm:$0xf] %v6597
        %6630 = vst [vmem:[#allocation3 + $0xb8] sm:$0xf] %v6598
        %6631 = vst [vmem:[#allocation3 + $0xdc] sm:$0xf] %v6599
        %6632 = vst [vmem:[#allocation3 + $0x100] sm:$0xf] %v6600
        %6633 = vst [vmem:[#allocation3 + $0x124] sm:$0xf] %v6601
        %6634 = vst [vmem:[#allocation3 + $0x148] sm:$0xf] %v6602
        %6635 = vst [vmem:[#allocation3 + $0x16c] sm:$0xf] %v6603
        %6636 = vst [vmem:[#allocation3 + $0x190] sm:$0xf] %v6604
        %6637 = vst [vmem:[#allocation3 + $0x1b4] sm:$0xf] %v6605
        %6638 = vst [vmem:[#allocation3 + $0x1d8] sm:$0xf] %v6606
        %6639 = vst [vmem:[#allocation3 + $0x1fc] sm:$0xf] %v6607
        %6640 = vst [vmem:[#allocation3 + $0x220] sm:$0xf] %v6608
        %6641 = vst [vmem:[#allocation3 + $0x244] sm:$0xf] %v6609
        %6642 = vst [vmem:[#allocation3 + $0x268] sm:$0xf] %v6610
        %6643 = vst [vmem:[#allocation3 + $0x28c] sm:$0xf] %v6611
        %6644 = vst [vmem:[#allocation3 + $0x2b0] sm:$0xf] %v6612
        %6645 = vst [vmem:[#allocation3 + $0x2d4] sm:$0xf] %v6613
        %6646 = vst [vmem:[#allocation3 + $0x2f8] sm:$0xf] %v6614
        %6647 = vst [vmem:[#allocation3 + $0x31c] sm:$0xf] %v6615
        %6648 = vst [vmem:[#allocation3 + $0x340] sm:$0xf] %v6616
        %6649 = vst [vmem:[#allocation3 + $0x364] sm:$0xf] %v6617
        %6650 = vst [vmem:[#allocation3 + $0x388] sm:$0xf] %v6618
        %6651 = vst [vmem:[#allocation3 + $0x3ac] sm:$0xf] %v6619
        %6652 = vst [vmem:[#allocation3 + $0x3d0] sm:$0xf] %v6620
        %6653 = vst [vmem:[#allocation3 + $0x3f4] sm:$0xf] %v6621
        %6654 = vst [vmem:[#allocation3 + $0x418] sm:$0xf] %v6622
        %6655 = vst [vmem:[#allocation3 + $0x43c] sm:$0xf] %v6623
        %6656 = vst [vmem:[#allocation3 + $0x460] sm:$0xf] %v6624
        %v6657 = vld [vmem:[#allocation2 + $0x8] sm:$0xe]
        %v6658 = vld [vmem:[#allocation2 + $0xc] sm:$0xf]
        %v6659 = vld [vmem:[#allocation2 + $0x10] sm:$0x1]
        %v6660 = vld [vmem:[#allocation2 + $0x20] sm:$0xe]
        %v6661 = vld [vmem:[#allocation2 + $0x24] sm:$0xf]
        %v6662 = vld [vmem:[#allocation2 + $0x28] sm:$0x1]
        %v6663 = vld [vmem:[#allocation2 + $0x38] sm:$0xe]
        %v6664 = vld [vmem:[#allocation2 + $0x3c] sm:$0xf]
        %v6665 = vld [vmem:[#allocation2 + $0x40] sm:$0x1]
        %v6666 = vld [vmem:[#allocation2 + $0x50] sm:$0xe]
        %v6667 = vld [vmem:[#allocation2 + $0x54] sm:$0xf]
        %v6668 = vld [vmem:[#allocation2 + $0x58] sm:$0x1]
        %v6669 = vld [vmem:[#allocation2 + $0x68] sm:$0xe]
        %v6670 = vld [vmem:[#allocation2 + $0x6c] sm:$0xf]
        %v6671 = vld [vmem:[#allocation2 + $0x70] sm:$0x1]
        %v6672 = vld [vmem:[#allocation2 + $0x80] sm:$0xe]
        %v6673 = vld [vmem:[#allocation2 + $0x84] sm:$0xf]
        %v6674 = vld [vmem:[#allocation2 + $0x88] sm:$0x1]
        %v6675 = vld [vmem:[#allocation2 + $0x98] sm:$0xe]
        %v6676 = vld [vmem:[#allocation2 + $0x9c] sm:$0xf]
        %v6677 = vld [vmem:[#allocation2 + $0xa0] sm:$0x1]
        %v6678 = vld [vmem:[#allocation2 + $0xb0] sm:$0xe]
        %v6679 = vld [vmem:[#allocation2 + $0xb4] sm:$0xf]
        %v6680 = vld [vmem:[#allocation2 + $0xb8] sm:$0x1]
        %v6681 = vld [vmem:[#allocation2 + $0xc8] sm:$0xe]
        %v6682 = vld [vmem:[#allocation2 + $0xcc] sm:$0xf]
        %v6683 = vld [vmem:[#allocation2 + $0xd0] sm:$0x1]
        %v6684 = vld [vmem:[#allocation2 + $0xe0] sm:$0xe]
        %v6685 = vld [vmem:[#allocation2 + $0xe4] sm:$0xf]
        %v6686 = vld [vmem:[#allocation2 + $0xe8] sm:$0x1]
        %v6687 = vld [vmem:[#allocation2 + $0xf8] sm:$0xe]
        %v6688 = vld [vmem:[#allocation2 + $0xfc] sm:$0xf]
        %v6689 = vld [vmem:[#allocation2 + $0x100] sm:$0x1]
        %v6690 = vld [vmem:[#allocation2 + $0x110] sm:$0xe]
        %v6691 = vld [vmem:[#allocation2 + $0x114] sm:$0xf]
        %v6692 = vld [vmem:[#allocation2 + $0x118] sm:$0x1]
        %v6693 = vld [vmem:[#allocation2 + $0x128] sm:$0xe]
        %v6694 = vld [vmem:[#allocation2 + $0x12c] sm:$0xf]
        %v6695 = vld [vmem:[#allocation2 + $0x130] sm:$0x1]
        %v6696 = vld [vmem:[#allocation2 + $0x140] sm:$0xe]
        %v6697 = vld [vmem:[#allocation2 + $0x144] sm:$0xf]
        %v6698 = vld [vmem:[#allocation2 + $0x148] sm:$0x1]
        %v6699 = vld [vmem:[#allocation2 + $0x158] sm:$0xe]
        %v6700 = vld [vmem:[#allocation2 + $0x15c] sm:$0xf]
        %v6701 = vld [vmem:[#allocation2 + $0x160] sm:$0x1]
        %v6702 = vld [vmem:[#allocation2 + $0x170] sm:$0xe]
        %v6703 = vld [vmem:[#allocation2 + $0x174] sm:$0xf]
        %v6704 = vld [vmem:[#allocation2 + $0x178] sm:$0x1]
        %vm6753 = vcmask 1042432
        %vm6754 = vcmask 1046532
        %vm6755 = vmor %vm6753, %vm6754
        %v6756 = vrot.slane %v6657, 5
        %v6757 = vrot.slane %v6756, 4
        %v6758 = vrot.slane %v6658, 5
        %v6759 = vsel %vm6755, %v6757, %v6758
        %v6760 = vrot.slane %v6758, 4
        %v6761 = vrot.slane %v6659, 5
        %v6762 = vsel %vm6755, %v6760, %v6761
        %v6763 = vrot.slane %v6660, 5
        %v6764 = vrot.slane %v6763, 4
        %v6765 = vrot.slane %v6661, 5
        %v6766 = vsel %vm6755, %v6764, %v6765
        %v6767 = vrot.slane %v6765, 4
        %v6768 = vrot.slane %v6662, 5
        %v6769 = vsel %vm6755, %v6767, %v6768
        %v6770 = vrot.slane %v6663, 5
        %v6771 = vrot.slane %v6770, 4
        %v6772 = vrot.slane %v6664, 5
        %v6773 = vsel %vm6755, %v6771, %v6772
        %v6774 = vrot.slane %v6772, 4
        %v6775 = vrot.slane %v6665, 5
        %v6776 = vsel %vm6755, %v6774, %v6775
        %v6777 = vrot.slane %v6666, 5
        %v6778 = vrot.slane %v6777, 4
        %v6779 = vrot.slane %v6667, 5
        %v6780 = vsel %vm6755, %v6778, %v6779
        %v6781 = vrot.slane %v6779, 4
        %v6782 = vrot.slane %v6668, 5
        %v6783 = vsel %vm6755, %v6781, %v6782
        %v6784 = vrot.slane %v6669, 5
        %v6785 = vrot.slane %v6784, 4
        %v6786 = vrot.slane %v6670, 5
        %v6787 = vsel %vm6755, %v6785, %v6786
        %v6788 = vrot.slane %v6786, 4
        %v6789 = vrot.slane %v6671, 5
        %v6790 = vsel %vm6755, %v6788, %v6789
        %v6791 = vrot.slane %v6672, 5
        %v6792 = vrot.slane %v6791, 4
        %v6793 = vrot.slane %v6673, 5
        %v6794 = vsel %vm6755, %v6792, %v6793
        %v6795 = vrot.slane %v6793, 4
        %v6796 = vrot.slane %v6674, 5
        %v6797 = vsel %vm6755, %v6795, %v6796
        %v6798 = vrot.slane %v6675, 5
        %v6799 = vrot.slane %v6798, 4
        %v6800 = vrot.slane %v6676, 5
        %v6801 = vsel %vm6755, %v6799, %v6800
        %v6802 = vrot.slane %v6800, 4
        %v6803 = vrot.slane %v6677, 5
        %v6804 = vsel %vm6755, %v6802, %v6803
        %v6805 = vrot.slane %v6678, 5
        %v6806 = vrot.slane %v6805, 4
        %v6807 = vrot.slane %v6679, 5
        %v6808 = vsel %vm6755, %v6806, %v6807
        %v6809 = vrot.slane %v6807, 4
        %v6810 = vrot.slane %v6680, 5
        %v6811 = vsel %vm6755, %v6809, %v6810
        %v6812 = vrot.slane %v6681, 5
        %v6813 = vrot.slane %v6812, 4
        %v6814 = vrot.slane %v6682, 5
        %v6815 = vsel %vm6755, %v6813, %v6814
        %v6816 = vrot.slane %v6814, 4
        %v6817 = vrot.slane %v6683, 5
        %v6818 = vsel %vm6755, %v6816, %v6817
        %v6819 = vrot.slane %v6684, 5
        %v6820 = vrot.slane %v6819, 4
        %v6821 = vrot.slane %v6685, 5
        %v6822 = vsel %vm6755, %v6820, %v6821
        %v6823 = vrot.slane %v6821, 4
        %v6824 = vrot.slane %v6686, 5
        %v6825 = vsel %vm6755, %v6823, %v6824
        %v6826 = vrot.slane %v6687, 5
        %v6827 = vrot.slane %v6826, 4
        %v6828 = vrot.slane %v6688, 5
        %v6829 = vsel %vm6755, %v6827, %v6828
        %v6830 = vrot.slane %v6828, 4
        %v6831 = vrot.slane %v6689, 5
        %v6832 = vsel %vm6755, %v6830, %v6831
        %v6833 = vrot.slane %v6690, 5
        %v6834 = vrot.slane %v6833, 4
        %v6835 = vrot.slane %v6691, 5
        %v6836 = vsel %vm6755, %v6834, %v6835
        %v6837 = vrot.slane %v6835, 4
        %v6838 = vrot.slane %v6692, 5
        %v6839 = vsel %vm6755, %v6837, %v6838
        %v6840 = vrot.slane %v6693, 5
        %v6841 = vrot.slane %v6840, 4
        %v6842 = vrot.slane %v6694, 5
        %v6843 = vsel %vm6755, %v6841, %v6842
        %v6844 = vrot.slane %v6842, 4
        %v6845 = vrot.slane %v6695, 5
        %v6846 = vsel %vm6755, %v6844, %v6845
        %v6847 = vrot.slane %v6696, 5
        %v6848 = vrot.slane %v6847, 4
        %v6849 = vrot.slane %v6697, 5
        %v6850 = vsel %vm6755, %v6848, %v6849
        %v6851 = vrot.slane %v6849, 4
        %v6852 = vrot.slane %v6698, 5
        %v6853 = vsel %vm6755, %v6851, %v6852
        %v6854 = vrot.slane %v6699, 5
        %v6855 = vrot.slane %v6854, 4
        %v6856 = vrot.slane %v6700, 5
        %v6857 = vsel %vm6755, %v6855, %v6856
        %v6858 = vrot.slane %v6856, 4
        %v6859 = vrot.slane %v6701, 5
        %v6860 = vsel %vm6755, %v6858, %v6859
        %v6861 = vrot.slane %v6702, 5
        %v6862 = vrot.slane %v6861, 4
        %v6863 = vrot.slane %v6703, 5
        %v6864 = vsel %vm6755, %v6862, %v6863
        %v6865 = vrot.slane %v6863, 4
        %v6866 = vrot.slane %v6704, 5
        %v6867 = vsel %vm6755, %v6865, %v6866
        %6900 = vst [vmem:[#allocation3 + $0x8] sm:$0xf] %v6759
        %6901 = vst [vmem:[#allocation3 + $0x2c] sm:$0xf] %v6762
        %6902 = vst [vmem:[#allocation3 + $0x50] sm:$0xf] %v6766
        %6903 = vst [vmem:[#allocation3 + $0x74] sm:$0xf] %v6769
        %6904 = vst [vmem:[#allocation3 + $0x98] sm:$0xf] %v6773
        %6905 = vst [vmem:[#allocation3 + $0xbc] sm:$0xf] %v6776
        %6906 = vst [vmem:[#allocation3 + $0xe0] sm:$0xf] %v6780
        %6907 = vst [vmem:[#allocation3 + $0x104] sm:$0xf] %v6783
        %6908 = vst [vmem:[#allocation3 + $0x128] sm:$0xf] %v6787
        %6909 = vst [vmem:[#allocation3 + $0x14c] sm:$0xf] %v6790
        %6910 = vst [vmem:[#allocation3 + $0x170] sm:$0xf] %v6794
        %6911 = vst [vmem:[#allocation3 + $0x194] sm:$0xf] %v6797
        %6912 = vst [vmem:[#allocation3 + $0x1b8] sm:$0xf] %v6801
        %6913 = vst [vmem:[#allocation3 + $0x1dc] sm:$0xf] %v6804
        %6914 = vst [vmem:[#allocation3 + $0x200] sm:$0xf] %v6808
        %6915 = vst [vmem:[#allocation3 + $0x224] sm:$0xf] %v6811
        %6916 = vst [vmem:[#allocation3 + $0x248] sm:$0xf] %v6815
        %6917 = vst [vmem:[#allocation3 + $0x26c] sm:$0xf] %v6818
        %6918 = vst [vmem:[#allocation3 + $0x290] sm:$0xf] %v6822
        %6919 = vst [vmem:[#allocation3 + $0x2b4] sm:$0xf] %v6825
        %6920 = vst [vmem:[#allocation3 + $0x2d8] sm:$0xf] %v6829
        %6921 = vst [vmem:[#allocation3 + $0x2fc] sm:$0xf] %v6832
        %6922 = vst [vmem:[#allocation3 + $0x320] sm:$0xf] %v6836
        %6923 = vst [vmem:[#allocation3 + $0x344] sm:$0xf] %v6839
        %6924 = vst [vmem:[#allocation3 + $0x368] sm:$0xf] %v6843
        %6925 = vst [vmem:[#allocation3 + $0x38c] sm:$0xf] %v6846
        %6926 = vst [vmem:[#allocation3 + $0x3b0] sm:$0xf] %v6850
        %6927 = vst [vmem:[#allocation3 + $0x3d4] sm:$0xf] %v6853
        %6928 = vst [vmem:[#allocation3 + $0x3f8] sm:$0xf] %v6857
        %6929 = vst [vmem:[#allocation3 + $0x41c] sm:$0xf] %v6860
        %6930 = vst [vmem:[#allocation3 + $0x440] sm:$0xf] %v6864
        %6931 = vst [vmem:[#allocation3 + $0x464] sm:$0xf] %v6867
        %v6932 = vld [vmem:[%s832 + $0x4] sm:$0x8]
        %v6933 = vld [vmem:[%s832 + $0x8] sm:$0xf]
        %v6934 = vld [vmem:[%s832 + $0xc] sm:$0x7]
        %v6935 = vld [vmem:[%s832 + $0x1c] sm:$0x8]
        %v6936 = vld [vmem:[%s832 + $0x20] sm:$0xf]
        %v6937 = vld [vmem:[%s832 + $0x24] sm:$0x7]
        %v6938 = vld [vmem:[%s832 + $0x34] sm:$0x8]
        %v6939 = vld [vmem:[%s832 + $0x38] sm:$0xf]
        %v6940 = vld [vmem:[%s832 + $0x3c] sm:$0x7]
        %v6941 = vld [vmem:[%s832 + $0x4c] sm:$0x8]
        %v6942 = vld [vmem:[%s832 + $0x50] sm:$0xf]
        %v6943 = vld [vmem:[%s832 + $0x54] sm:$0x7]
        %v6944 = vld [vmem:[%s832 + $0x64] sm:$0x8]
        %v6945 = vld [vmem:[%s832 + $0x68] sm:$0xf]
        %v6946 = vld [vmem:[%s832 + $0x6c] sm:$0x7]
        %v6947 = vld [vmem:[%s832 + $0x7c] sm:$0x8]
        %v6948 = vld [vmem:[%s832 + $0x80] sm:$0xf]
        %v6949 = vld [vmem:[%s832 + $0x84] sm:$0x7]
        %v6950 = vld [vmem:[%s832 + $0x94] sm:$0x8]
        %v6951 = vld [vmem:[%s832 + $0x98] sm:$0xf]
        %v6952 = vld [vmem:[%s832 + $0x9c] sm:$0x7]
        %v6953 = vld [vmem:[%s832 + $0xac] sm:$0x8]
        %v6954 = vld [vmem:[%s832 + $0xb0] sm:$0xf]
        %v6955 = vld [vmem:[%s832 + $0xb4] sm:$0x7]
        %v6956 = vld [vmem:[%s832 + $0xc4] sm:$0x8]
        %v6957 = vld [vmem:[%s832 + $0xc8] sm:$0xf]
        %v6958 = vld [vmem:[%s832 + $0xcc] sm:$0x7]
        %v6959 = vld [vmem:[%s832 + $0xdc] sm:$0x8]
        %v6960 = vld [vmem:[%s832 + $0xe0] sm:$0xf]
        %v6961 = vld [vmem:[%s832 + $0xe4] sm:$0x7]
        %v6962 = vld [vmem:[%s832 + $0xf4] sm:$0x8]
        %v6963 = vld [vmem:[%s832 + $0xf8] sm:$0xf]
        %v6964 = vld [vmem:[%s832 + $0xfc] sm:$0x7]
        %v6965 = vld [vmem:[%s832 + $0x10c] sm:$0x8]
        %v6966 = vld [vmem:[%s832 + $0x110] sm:$0xf]
        %v6967 = vld [vmem:[%s832 + $0x114] sm:$0x7]
        %v6968 = vld [vmem:[%s832 + $0x124] sm:$0x8]
        %v6969 = vld [vmem:[%s832 + $0x128] sm:$0xf]
        %v6970 = vld [vmem:[%s832 + $0x12c] sm:$0x7]
        %v6971 = vld [vmem:[%s832 + $0x13c] sm:$0x8]
        %v6972 = vld [vmem:[%s832 + $0x140] sm:$0xf]
        %v6973 = vld [vmem:[%s832 + $0x144] sm:$0x7]
        %v6974 = vld [vmem:[%s832 + $0x154] sm:$0x8]
        %v6975 = vld [vmem:[%s832 + $0x158] sm:$0xf]
        %v6976 = vld [vmem:[%s832 + $0x15c] sm:$0x7]
        %v6977 = vld [vmem:[%s832 + $0x16c] sm:$0x8]
        %v6978 = vld [vmem:[%s832 + $0x170] sm:$0xf]
        %v6979 = vld [vmem:[%s832 + $0x174] sm:$0x7]
        %v7028 = vrot.slane %v6932, 7
        %v7029 = vrot.slane %v7028, 4
        %v7030 = vrot.slane %v6933, 7
        %v7031 = vsel %vm6416, %v7029, %v7030
        %v7032 = vrot.slane %v7030, 4
        %v7033 = vrot.slane %v6934, 7
        %v7034 = vsel %vm6416, %v7032, %v7033
        %v7035 = vrot.slane %v6935, 7
        %v7036 = vrot.slane %v7035, 4
        %v7037 = vrot.slane %v6936, 7
        %v7038 = vsel %vm6416, %v7036, %v7037
        %v7039 = vrot.slane %v7037, 4
        %v7040 = vrot.slane %v6937, 7
        %v7041 = vsel %vm6416, %v7039, %v7040
        %v7042 = vrot.slane %v6938, 7
        %v7043 = vrot.slane %v7042, 4
        %v7044 = vrot.slane %v6939, 7
        %v7045 = vsel %vm6416, %v7043, %v7044
        %v7046 = vrot.slane %v7044, 4
        %v7047 = vrot.slane %v6940, 7
        %v7048 = vsel %vm6416, %v7046, %v7047
        %v7049 = vrot.slane %v6941, 7
        %v7050 = vrot.slane %v7049, 4
        %v7051 = vrot.slane %v6942, 7
        %v7052 = vsel %vm6416, %v7050, %v7051
        %v7053 = vrot.slane %v7051, 4
        %v7054 = vrot.slane %v6943, 7
        %v7055 = vsel %vm6416, %v7053, %v7054
        %v7056 = vrot.slane %v6944, 7
        %v7057 = vrot.slane %v7056, 4
        %v7058 = vrot.slane %v6945, 7
        %v7059 = vsel %vm6416, %v7057, %v7058
        %v7060 = vrot.slane %v7058, 4
        %v7061 = vrot.slane %v6946, 7
        %v7062 = vsel %vm6416, %v7060, %v7061
        %v7063 = vrot.slane %v6947, 7
        %v7064 = vrot.slane %v7063, 4
        %v7065 = vrot.slane %v6948, 7
        %v7066 = vsel %vm6416, %v7064, %v7065
        %v7067 = vrot.slane %v7065, 4
        %v7068 = vrot.slane %v6949, 7
        %v7069 = vsel %vm6416, %v7067, %v7068
        %v7070 = vrot.slane %v6950, 7
        %v7071 = vrot.slane %v7070, 4
        %v7072 = vrot.slane %v6951, 7
        %v7073 = vsel %vm6416, %v7071, %v7072
        %v7074 = vrot.slane %v7072, 4
        %v7075 = vrot.slane %v6952, 7
        %v7076 = vsel %vm6416, %v7074, %v7075
        %v7077 = vrot.slane %v6953, 7
        %v7078 = vrot.slane %v7077, 4
        %v7079 = vrot.slane %v6954, 7
        %v7080 = vsel %vm6416, %v7078, %v7079
        %v7081 = vrot.slane %v7079, 4
        %v7082 = vrot.slane %v6955, 7
        %v7083 = vsel %vm6416, %v7081, %v7082
        %v7084 = vrot.slane %v6956, 7
        %v7085 = vrot.slane %v7084, 4
        %v7086 = vrot.slane %v6957, 7
        %v7087 = vsel %vm6416, %v7085, %v7086
        %v7088 = vrot.slane %v7086, 4
        %v7089 = vrot.slane %v6958, 7
        %v7090 = vsel %vm6416, %v7088, %v7089
        %v7091 = vrot.slane %v6959, 7
        %v7092 = vrot.slane %v7091, 4
        %v7093 = vrot.slane %v6960, 7
        %v7094 = vsel %vm6416, %v7092, %v7093
        %v7095 = vrot.slane %v7093, 4
        %v7096 = vrot.slane %v6961, 7
        %v7097 = vsel %vm6416, %v7095, %v7096
        %v7098 = vrot.slane %v6962, 7
        %v7099 = vrot.slane %v7098, 4
        %v7100 = vrot.slane %v6963, 7
        %v7101 = vsel %vm6416, %v7099, %v7100
        %v7102 = vrot.slane %v7100, 4
        %v7103 = vrot.slane %v6964, 7
        %v7104 = vsel %vm6416, %v7102, %v7103
        %v7105 = vrot.slane %v6965, 7
        %v7106 = vrot.slane %v7105, 4
        %v7107 = vrot.slane %v6966, 7
        %v7108 = vsel %vm6416, %v7106, %v7107
        %v7109 = vrot.slane %v7107, 4
        %v7110 = vrot.slane %v6967, 7
        %v7111 = vsel %vm6416, %v7109, %v7110
        %v7112 = vrot.slane %v6968, 7
        %v7113 = vrot.slane %v7112, 4
        %v7114 = vrot.slane %v6969, 7
        %v7115 = vsel %vm6416, %v7113, %v7114
        %v7116 = vrot.slane %v7114, 4
        %v7117 = vrot.slane %v6970, 7
        %v7118 = vsel %vm6416, %v7116, %v7117
        %v7119 = vrot.slane %v6971, 7
        %v7120 = vrot.slane %v7119, 4
        %v7121 = vrot.slane %v6972, 7
        %v7122 = vsel %vm6416, %v7120, %v7121
        %v7123 = vrot.slane %v7121, 4
        %v7124 = vrot.slane %v6973, 7
        %v7125 = vsel %vm6416, %v7123, %v7124
        %v7126 = vrot.slane %v6974, 7
        %v7127 = vrot.slane %v7126, 4
        %v7128 = vrot.slane %v6975, 7
        %v7129 = vsel %vm6416, %v7127, %v7128
        %v7130 = vrot.slane %v7128, 4
        %v7131 = vrot.slane %v6976, 7
        %v7132 = vsel %vm6416, %v7130, %v7131
        %v7133 = vrot.slane %v6977, 7
        %v7134 = vrot.slane %v7133, 4
        %v7135 = vrot.slane %v6978, 7
        %v7136 = vsel %vm6416, %v7134, %v7135
        %v7137 = vrot.slane %v7135, 4
        %v7138 = vrot.slane %v6979, 7
        %v7139 = vsel %vm6416, %v7137, %v7138
        %7172 = vst [vmem:[#allocation3 + $0xc] sm:$0xf] %v7031
        %7173 = vst [vmem:[#allocation3 + $0x30] sm:$0xf] %v7034
        %7174 = vst [vmem:[#allocation3 + $0x54] sm:$0xf] %v7038
        %7175 = vst [vmem:[#allocation3 + $0x78] sm:$0xf] %v7041
        %7176 = vst [vmem:[#allocation3 + $0x9c] sm:$0xf] %v7045
        %7177 = vst [vmem:[#allocation3 + $0xc0] sm:$0xf] %v7048
        %7178 = vst [vmem:[#allocation3 + $0xe4] sm:$0xf] %v7052
        %7179 = vst [vmem:[#allocation3 + $0x108] sm:$0xf] %v7055
        %7180 = vst [vmem:[#allocation3 + $0x12c] sm:$0xf] %v7059
        %7181 = vst [vmem:[#allocation3 + $0x150] sm:$0xf] %v7062
        %7182 = vst [vmem:[#allocation3 + $0x174] sm:$0xf] %v7066
        %7183 = vst [vmem:[#allocation3 + $0x198] sm:$0xf] %v7069
        %7184 = vst [vmem:[#allocation3 + $0x1bc] sm:$0xf] %v7073
        %7185 = vst [vmem:[#allocation3 + $0x1e0] sm:$0xf] %v7076
        %7186 = vst [vmem:[#allocation3 + $0x204] sm:$0xf] %v7080
        %7187 = vst [vmem:[#allocation3 + $0x228] sm:$0xf] %v7083
        %7188 = vst [vmem:[#allocation3 + $0x24c] sm:$0xf] %v7087
        %7189 = vst [vmem:[#allocation3 + $0x270] sm:$0xf] %v7090
        %7190 = vst [vmem:[#allocation3 + $0x294] sm:$0xf] %v7094
        %7191 = vst [vmem:[#allocation3 + $0x2b8] sm:$0xf] %v7097
        %7192 = vst [vmem:[#allocation3 + $0x2dc] sm:$0xf] %v7101
        %7193 = vst [vmem:[#allocation3 + $0x300] sm:$0xf] %v7104
        %7194 = vst [vmem:[#allocation3 + $0x324] sm:$0xf] %v7108
        %7195 = vst [vmem:[#allocation3 + $0x348] sm:$0xf] %v7111
        %7196 = vst [vmem:[#allocation3 + $0x36c] sm:$0xf] %v7115
        %7197 = vst [vmem:[#allocation3 + $0x390] sm:$0xf] %v7118
        %7198 = vst [vmem:[#allocation3 + $0x3b4] sm:$0xf] %v7122
        %7199 = vst [vmem:[#allocation3 + $0x3d8] sm:$0xf] %v7125
        %7200 = vst [vmem:[#allocation3 + $0x3fc] sm:$0xf] %v7129
        %7201 = vst [vmem:[#allocation3 + $0x420] sm:$0xf] %v7132
        %7202 = vst [vmem:[#allocation3 + $0x444] sm:$0xf] %v7136
        %7203 = vst [vmem:[#allocation3 + $0x468] sm:$0xf] %v7139
        %v7204 = vld [vmem:[%s832 + $0x8] sm:$0xf]
        %v7205 = vld [vmem:[%s832 + $0xc] sm:$0xf]
        %v7206 = vld [vmem:[%s832 + $0x20] sm:$0xf]
        %v7207 = vld [vmem:[%s832 + $0x24] sm:$0xf]
        %v7208 = vld [vmem:[%s832 + $0x38] sm:$0xf]
        %v7209 = vld [vmem:[%s832 + $0x3c] sm:$0xf]
        %v7210 = vld [vmem:[%s832 + $0x50] sm:$0xf]
        %v7211 = vld [vmem:[%s832 + $0x54] sm:$0xf]
        %v7212 = vld [vmem:[%s832 + $0x68] sm:$0xf]
        %v7213 = vld [vmem:[%s832 + $0x6c] sm:$0xf]
        %v7214 = vld [vmem:[%s832 + $0x80] sm:$0xf]
        %v7215 = vld [vmem:[%s832 + $0x84] sm:$0xf]
        %v7216 = vld [vmem:[%s832 + $0x98] sm:$0xf]
        %v7217 = vld [vmem:[%s832 + $0x9c] sm:$0xf]
        %v7218 = vld [vmem:[%s832 + $0xb0] sm:$0xf]
        %v7219 = vld [vmem:[%s832 + $0xb4] sm:$0xf]
        %v7220 = vld [vmem:[%s832 + $0xc8] sm:$0xf]
        %v7221 = vld [vmem:[%s832 + $0xcc] sm:$0xf]
        %v7222 = vld [vmem:[%s832 + $0xe0] sm:$0xf]
        %v7223 = vld [vmem:[%s832 + $0xe4] sm:$0xf]
        %v7224 = vld [vmem:[%s832 + $0xf8] sm:$0xf]
        %v7225 = vld [vmem:[%s832 + $0xfc] sm:$0xf]
        %v7226 = vld [vmem:[%s832 + $0x110] sm:$0xf]
        %v7227 = vld [vmem:[%s832 + $0x114] sm:$0xf]
        %v7228 = vld [vmem:[%s832 + $0x128] sm:$0xf]
        %v7229 = vld [vmem:[%s832 + $0x12c] sm:$0xf]
        %v7230 = vld [vmem:[%s832 + $0x140] sm:$0xf]
        %v7231 = vld [vmem:[%s832 + $0x144] sm:$0xf]
        %v7232 = vld [vmem:[%s832 + $0x158] sm:$0xf]
        %v7233 = vld [vmem:[%s832 + $0x15c] sm:$0xf]
        %v7234 = vld [vmem:[%s832 + $0x170] sm:$0xf]
        %v7235 = vld [vmem:[%s832 + $0x174] sm:$0xf]
        %7236 = vst [vmem:[#allocation3 + $0x10] sm:$0xf] %v7204
        %7237 = vst [vmem:[#allocation3 + $0x34] sm:$0xf] %v7205
        %7238 = vst [vmem:[#allocation3 + $0x58] sm:$0xf] %v7206
        %7239 = vst [vmem:[#allocation3 + $0x7c] sm:$0xf] %v7207
        %7240 = vst [vmem:[#allocation3 + $0xa0] sm:$0xf] %v7208
        %7241 = vst [vmem:[#allocation3 + $0xc4] sm:$0xf] %v7209
        %7242 = vst [vmem:[#allocation3 + $0xe8] sm:$0xf] %v7210
        %7243 = vst [vmem:[#allocation3 + $0x10c] sm:$0xf] %v7211
        %7244 = vst [vmem:[#allocation3 + $0x130] sm:$0xf] %v7212
        %7245 = vst [vmem:[#allocation3 + $0x154] sm:$0xf] %v7213
        %7246 = vst [vmem:[#allocation3 + $0x178] sm:$0xf] %v7214
        %7247 = vst [vmem:[#allocation3 + $0x19c] sm:$0xf] %v7215
        %7248 = vst [vmem:[#allocation3 + $0x1c0] sm:$0xf] %v7216
        %7249 = vst [vmem:[#allocation3 + $0x1e4] sm:$0xf] %v7217
        %7250 = vst [vmem:[#allocation3 + $0x208] sm:$0xf] %v7218
        %7251 = vst [vmem:[#allocation3 + $0x22c] sm:$0xf] %v7219
        %7252 = vst [vmem:[#allocation3 + $0x250] sm:$0xf] %v7220
        %7253 = vst [vmem:[#allocation3 + $0x274] sm:$0xf] %v7221
        %7254 = vst [vmem:[#allocation3 + $0x298] sm:$0xf] %v7222
        %7255 = vst [vmem:[#allocation3 + $0x2bc] sm:$0xf] %v7223
        %7256 = vst [vmem:[#allocation3 + $0x2e0] sm:$0xf] %v7224
        %7257 = vst [vmem:[#allocation3 + $0x304] sm:$0xf] %v7225
        %7258 = vst [vmem:[#allocation3 + $0x328] sm:$0xf] %v7226
        %7259 = vst [vmem:[#allocation3 + $0x34c] sm:$0xf] %v7227
        %7260 = vst [vmem:[#allocation3 + $0x370] sm:$0xf] %v7228
        %7261 = vst [vmem:[#allocation3 + $0x394] sm:$0xf] %v7229
        %7262 = vst [vmem:[#allocation3 + $0x3b8] sm:$0xf] %v7230
        %7263 = vst [vmem:[#allocation3 + $0x3dc] sm:$0xf] %v7231
        %7264 = vst [vmem:[#allocation3 + $0x400] sm:$0xf] %v7232
        %7265 = vst [vmem:[#allocation3 + $0x424] sm:$0xf] %v7233
        %7266 = vst [vmem:[#allocation3 + $0x448] sm:$0xf] %v7234
        %7267 = vst [vmem:[#allocation3 + $0x46c] sm:$0xf] %v7235
        %v7268 = vld [vmem:[%s832 + $0x8] sm:$0xe]
        %v7269 = vld [vmem:[%s832 + $0xc] sm:$0xf]
        %v7270 = vld [vmem:[%s832 + $0x10] sm:$0x1]
        %v7271 = vld [vmem:[%s832 + $0x20] sm:$0xe]
        %v7272 = vld [vmem:[%s832 + $0x24] sm:$0xf]
        %v7273 = vld [vmem:[%s832 + $0x28] sm:$0x1]
        %v7274 = vld [vmem:[%s832 + $0x38] sm:$0xe]
        %v7275 = vld [vmem:[%s832 + $0x3c] sm:$0xf]
        %v7276 = vld [vmem:[%s832 + $0x40] sm:$0x1]
        %v7277 = vld [vmem:[%s832 + $0x50] sm:$0xe]
        %v7278 = vld [vmem:[%s832 + $0x54] sm:$0xf]
        %v7279 = vld [vmem:[%s832 + $0x58] sm:$0x1]
        %v7280 = vld [vmem:[%s832 + $0x68] sm:$0xe]
        %v7281 = vld [vmem:[%s832 + $0x6c] sm:$0xf]
        %v7282 = vld [vmem:[%s832 + $0x70] sm:$0x1]
        %v7283 = vld [vmem:[%s832 + $0x80] sm:$0xe]
        %v7284 = vld [vmem:[%s832 + $0x84] sm:$0xf]
        %v7285 = vld [vmem:[%s832 + $0x88] sm:$0x1]
        %v7286 = vld [vmem:[%s832 + $0x98] sm:$0xe]
        %v7287 = vld [vmem:[%s832 + $0x9c] sm:$0xf]
        %v7288 = vld [vmem:[%s832 + $0xa0] sm:$0x1]
        %v7289 = vld [vmem:[%s832 + $0xb0] sm:$0xe]
        %v7290 = vld [vmem:[%s832 + $0xb4] sm:$0xf]
        %v7291 = vld [vmem:[%s832 + $0xb8] sm:$0x1]
        %v7292 = vld [vmem:[%s832 + $0xc8] sm:$0xe]
        %v7293 = vld [vmem:[%s832 + $0xcc] sm:$0xf]
        %v7294 = vld [vmem:[%s832 + $0xd0] sm:$0x1]
        %v7295 = vld [vmem:[%s832 + $0xe0] sm:$0xe]
        %v7296 = vld [vmem:[%s832 + $0xe4] sm:$0xf]
        %v7297 = vld [vmem:[%s832 + $0xe8] sm:$0x1]
        %v7298 = vld [vmem:[%s832 + $0xf8] sm:$0xe]
        %v7299 = vld [vmem:[%s832 + $0xfc] sm:$0xf]
        %v7300 = vld [vmem:[%s832 + $0x100] sm:$0x1]
        %v7301 = vld [vmem:[%s832 + $0x110] sm:$0xe]
        %v7302 = vld [vmem:[%s832 + $0x114] sm:$0xf]
        %v7303 = vld [vmem:[%s832 + $0x118] sm:$0x1]
        %v7304 = vld [vmem:[%s832 + $0x128] sm:$0xe]
        %v7305 = vld [vmem:[%s832 + $0x12c] sm:$0xf]
        %v7306 = vld [vmem:[%s832 + $0x130] sm:$0x1]
        %v7307 = vld [vmem:[%s832 + $0x140] sm:$0xe]
        %v7308 = vld [vmem:[%s832 + $0x144] sm:$0xf]
        %v7309 = vld [vmem:[%s832 + $0x148] sm:$0x1]
        %v7310 = vld [vmem:[%s832 + $0x158] sm:$0xe]
        %v7311 = vld [vmem:[%s832 + $0x15c] sm:$0xf]
        %v7312 = vld [vmem:[%s832 + $0x160] sm:$0x1]
        %v7313 = vld [vmem:[%s832 + $0x170] sm:$0xe]
        %v7314 = vld [vmem:[%s832 + $0x174] sm:$0xf]
        %v7315 = vld [vmem:[%s832 + $0x178] sm:$0x1]
        %v7364 = vrot.slane %v7268, 5
        %v7365 = vrot.slane %v7364, 4
        %v7366 = vrot.slane %v7269, 5
        %v7367 = vsel %vm6755, %v7365, %v7366
        %v7368 = vrot.slane %v7366, 4
        %v7369 = vrot.slane %v7270, 5
        %v7370 = vsel %vm6755, %v7368, %v7369
        %v7371 = vrot.slane %v7271, 5
        %v7372 = vrot.slane %v7371, 4
        %v7373 = vrot.slane %v7272, 5
        %v7374 = vsel %vm6755, %v7372, %v7373
        %v7375 = vrot.slane %v7373, 4
        %v7376 = vrot.slane %v7273, 5
        %v7377 = vsel %vm6755, %v7375, %v7376
        %v7378 = vrot.slane %v7274, 5
        %v7379 = vrot.slane %v7378, 4
        %v7380 = vrot.slane %v7275, 5
        %v7381 = vsel %vm6755, %v7379, %v7380
        %v7382 = vrot.slane %v7380, 4
        %v7383 = vrot.slane %v7276, 5
        %v7384 = vsel %vm6755, %v7382, %v7383
        %v7385 = vrot.slane %v7277, 5
        %v7386 = vrot.slane %v7385, 4
        %v7387 = vrot.slane %v7278, 5
        %v7388 = vsel %vm6755, %v7386, %v7387
        %v7389 = vrot.slane %v7387, 4
        %v7390 = vrot.slane %v7279, 5
        %v7391 = vsel %vm6755, %v7389, %v7390
        %v7392 = vrot.slane %v7280, 5
        %v7393 = vrot.slane %v7392, 4
        %v7394 = vrot.slane %v7281, 5
        %v7395 = vsel %vm6755, %v7393, %v7394
        %v7396 = vrot.slane %v7394, 4
        %v7397 = vrot.slane %v7282, 5
        %v7398 = vsel %vm6755, %v7396, %v7397
        %v7399 = vrot.slane %v7283, 5
        %v7400 = vrot.slane %v7399, 4
        %v7401 = vrot.slane %v7284, 5
        %v7402 = vsel %vm6755, %v7400, %v7401
        %v7403 = vrot.slane %v7401, 4
        %v7404 = vrot.slane %v7285, 5
        %v7405 = vsel %vm6755, %v7403, %v7404
        %v7406 = vrot.slane %v7286, 5
        %v7407 = vrot.slane %v7406, 4
        %v7408 = vrot.slane %v7287, 5
        %v7409 = vsel %vm6755, %v7407, %v7408
        %v7410 = vrot.slane %v7408, 4
        %v7411 = vrot.slane %v7288, 5
        %v7412 = vsel %vm6755, %v7410, %v7411
        %v7413 = vrot.slane %v7289, 5
        %v7414 = vrot.slane %v7413, 4
        %v7415 = vrot.slane %v7290, 5
        %v7416 = vsel %vm6755, %v7414, %v7415
        %v7417 = vrot.slane %v7415, 4
        %v7418 = vrot.slane %v7291, 5
        %v7419 = vsel %vm6755, %v7417, %v7418
        %v7420 = vrot.slane %v7292, 5
        %v7421 = vrot.slane %v7420, 4
        %v7422 = vrot.slane %v7293, 5
        %v7423 = vsel %vm6755, %v7421, %v7422
        %v7424 = vrot.slane %v7422, 4
        %v7425 = vrot.slane %v7294, 5
        %v7426 = vsel %vm6755, %v7424, %v7425
        %v7427 = vrot.slane %v7295, 5
        %v7428 = vrot.slane %v7427, 4
        %v7429 = vrot.slane %v7296, 5
        %v7430 = vsel %vm6755, %v7428, %v7429
        %v7431 = vrot.slane %v7429, 4
        %v7432 = vrot.slane %v7297, 5
        %v7433 = vsel %vm6755, %v7431, %v7432
        %v7434 = vrot.slane %v7298, 5
        %v7435 = vrot.slane %v7434, 4
        %v7436 = vrot.slane %v7299, 5
        %v7437 = vsel %vm6755, %v7435, %v7436
        %v7438 = vrot.slane %v7436, 4
        %v7439 = vrot.slane %v7300, 5
        %v7440 = vsel %vm6755, %v7438, %v7439
        %v7441 = vrot.slane %v7301, 5
        %v7442 = vrot.slane %v7441, 4
        %v7443 = vrot.slane %v7302, 5
        %v7444 = vsel %vm6755, %v7442, %v7443
        %v7445 = vrot.slane %v7443, 4
        %v7446 = vrot.slane %v7303, 5
        %v7447 = vsel %vm6755, %v7445, %v7446
        %v7448 = vrot.slane %v7304, 5
        %v7449 = vrot.slane %v7448, 4
        %v7450 = vrot.slane %v7305, 5
        %v7451 = vsel %vm6755, %v7449, %v7450
        %v7452 = vrot.slane %v7450, 4
        %v7453 = vrot.slane %v7306, 5
        %v7454 = vsel %vm6755, %v7452, %v7453
        %v7455 = vrot.slane %v7307, 5
        %v7456 = vrot.slane %v7455, 4
        %v7457 = vrot.slane %v7308, 5
        %v7458 = vsel %vm6755, %v7456, %v7457
        %v7459 = vrot.slane %v7457, 4
        %v7460 = vrot.slane %v7309, 5
        %v7461 = vsel %vm6755, %v7459, %v7460
        %v7462 = vrot.slane %v7310, 5
        %v7463 = vrot.slane %v7462, 4
        %v7464 = vrot.slane %v7311, 5
        %v7465 = vsel %vm6755, %v7463, %v7464
        %v7466 = vrot.slane %v7464, 4
        %v7467 = vrot.slane %v7312, 5
        %v7468 = vsel %vm6755, %v7466, %v7467
        %v7469 = vrot.slane %v7313, 5
        %v7470 = vrot.slane %v7469, 4
        %v7471 = vrot.slane %v7314, 5
        %v7472 = vsel %vm6755, %v7470, %v7471
        %v7473 = vrot.slane %v7471, 4
        %v7474 = vrot.slane %v7315, 5
        %v7475 = vsel %vm6755, %v7473, %v7474
        %7508 = vst [vmem:[#allocation3 + $0x14] sm:$0xf] %v7367
        %7509 = vst [vmem:[#allocation3 + $0x38] sm:$0xf] %v7370
        %7510 = vst [vmem:[#allocation3 + $0x5c] sm:$0xf] %v7374
        %7511 = vst [vmem:[#allocation3 + $0x80] sm:$0xf] %v7377
        %7512 = vst [vmem:[#allocation3 + $0xa4] sm:$0xf] %v7381
        %7513 = vst [vmem:[#allocation3 + $0xc8] sm:$0xf] %v7384
        %7514 = vst [vmem:[#allocation3 + $0xec] sm:$0xf] %v7388
        %7515 = vst [vmem:[#allocation3 + $0x110] sm:$0xf] %v7391
        %7516 = vst [vmem:[#allocation3 + $0x134] sm:$0xf] %v7395
        %7517 = vst [vmem:[#allocation3 + $0x158] sm:$0xf] %v7398
        %7518 = vst [vmem:[#allocation3 + $0x17c] sm:$0xf] %v7402
        %7519 = vst [vmem:[#allocation3 + $0x1a0] sm:$0xf] %v7405
        %7520 = vst [vmem:[#allocation3 + $0x1c4] sm:$0xf] %v7409
        %7521 = vst [vmem:[#allocation3 + $0x1e8] sm:$0xf] %v7412
        %7522 = vst [vmem:[#allocation3 + $0x20c] sm:$0xf] %v7416
        %7523 = vst [vmem:[#allocation3 + $0x230] sm:$0xf] %v7419
        %7524 = vst [vmem:[#allocation3 + $0x254] sm:$0xf] %v7423
        %7525 = vst [vmem:[#allocation3 + $0x278] sm:$0xf] %v7426
        %7526 = vst [vmem:[#allocation3 + $0x29c] sm:$0xf] %v7430
        %7527 = vst [vmem:[#allocation3 + $0x2c0] sm:$0xf] %v7433
        %7528 = vst [vmem:[#allocation3 + $0x2e4] sm:$0xf] %v7437
        %7529 = vst [vmem:[#allocation3 + $0x308] sm:$0xf] %v7440
        %7530 = vst [vmem:[#allocation3 + $0x32c] sm:$0xf] %v7444
        %7531 = vst [vmem:[#allocation3 + $0x350] sm:$0xf] %v7447
        %7532 = vst [vmem:[#allocation3 + $0x374] sm:$0xf] %v7451
        %7533 = vst [vmem:[#allocation3 + $0x398] sm:$0xf] %v7454
        %7534 = vst [vmem:[#allocation3 + $0x3bc] sm:$0xf] %v7458
        %7535 = vst [vmem:[#allocation3 + $0x3e0] sm:$0xf] %v7461
        %7536 = vst [vmem:[#allocation3 + $0x404] sm:$0xf] %v7465
        %7537 = vst [vmem:[#allocation3 + $0x428] sm:$0xf] %v7468
        %7538 = vst [vmem:[#allocation3 + $0x44c] sm:$0xf] %v7472
        %7539 = vst [vmem:[#allocation3 + $0x470] sm:$0xf] %v7475
        %s7540 = scalar_lea.vmem [#allocation2], 96
        %v7541 = vld [vmem:[%s7540 + $0x4] sm:$0x8]
        %v7542 = vld [vmem:[%s7540 + $0x8] sm:$0xf]
        %v7543 = vld [vmem:[%s7540 + $0xc] sm:$0x7]
        %v7544 = vld [vmem:[%s7540 + $0x1c] sm:$0x8]
        %v7545 = vld [vmem:[%s7540 + $0x20] sm:$0xf]
        %v7546 = vld [vmem:[%s7540 + $0x24] sm:$0x7]
        %v7547 = vld [vmem:[%s7540 + $0x34] sm:$0x8]
        %v7548 = vld [vmem:[%s7540 + $0x38] sm:$0xf]
        %v7549 = vld [vmem:[%s7540 + $0x3c] sm:$0x7]
        %v7550 = vld [vmem:[%s7540 + $0x4c] sm:$0x8]
        %v7551 = vld [vmem:[%s7540 + $0x50] sm:$0xf]
        %v7552 = vld [vmem:[%s7540 + $0x54] sm:$0x7]
        %v7553 = vld [vmem:[%s7540 + $0x64] sm:$0x8]
        %v7554 = vld [vmem:[%s7540 + $0x68] sm:$0xf]
        %v7555 = vld [vmem:[%s7540 + $0x6c] sm:$0x7]
        %v7556 = vld [vmem:[%s7540 + $0x7c] sm:$0x8]
        %v7557 = vld [vmem:[%s7540 + $0x80] sm:$0xf]
        %v7558 = vld [vmem:[%s7540 + $0x84] sm:$0x7]
        %v7559 = vld [vmem:[%s7540 + $0x94] sm:$0x8]
        %v7560 = vld [vmem:[%s7540 + $0x98] sm:$0xf]
        %v7561 = vld [vmem:[%s7540 + $0x9c] sm:$0x7]
        %v7562 = vld [vmem:[%s7540 + $0xac] sm:$0x8]
        %v7563 = vld [vmem:[%s7540 + $0xb0] sm:$0xf]
        %v7564 = vld [vmem:[%s7540 + $0xb4] sm:$0x7]
        %v7565 = vld [vmem:[%s7540 + $0xc4] sm:$0x8]
        %v7566 = vld [vmem:[%s7540 + $0xc8] sm:$0xf]
        %v7567 = vld [vmem:[%s7540 + $0xcc] sm:$0x7]
        %v7568 = vld [vmem:[%s7540 + $0xdc] sm:$0x8]
        %v7569 = vld [vmem:[%s7540 + $0xe0] sm:$0xf]
        %v7570 = vld [vmem:[%s7540 + $0xe4] sm:$0x7]
        %v7571 = vld [vmem:[%s7540 + $0xf4] sm:$0x8]
        %v7572 = vld [vmem:[%s7540 + $0xf8] sm:$0xf]
        %v7573 = vld [vmem:[%s7540 + $0xfc] sm:$0x7]
        %v7574 = vld [vmem:[%s7540 + $0x10c] sm:$0x8]
        %v7575 = vld [vmem:[%s7540 + $0x110] sm:$0xf]
        %v7576 = vld [vmem:[%s7540 + $0x114] sm:$0x7]
        %v7577 = vld [vmem:[%s7540 + $0x124] sm:$0x8]
        %v7578 = vld [vmem:[%s7540 + $0x128] sm:$0xf]
        %v7579 = vld [vmem:[%s7540 + $0x12c] sm:$0x7]
        %v7580 = vld [vmem:[%s7540 + $0x13c] sm:$0x8]
        %v7581 = vld [vmem:[%s7540 + $0x140] sm:$0xf]
        %v7582 = vld [vmem:[%s7540 + $0x144] sm:$0x7]
        %v7583 = vld [vmem:[%s7540 + $0x154] sm:$0x8]
        %v7584 = vld [vmem:[%s7540 + $0x158] sm:$0xf]
        %v7585 = vld [vmem:[%s7540 + $0x15c] sm:$0x7]
        %v7586 = vld [vmem:[%s7540 + $0x16c] sm:$0x8]
        %v7587 = vld [vmem:[%s7540 + $0x170] sm:$0xf]
        %v7588 = vld [vmem:[%s7540 + $0x174] sm:$0x7]
        %v7637 = vrot.slane %v7541, 7
        %v7638 = vrot.slane %v7637, 4
        %v7639 = vrot.slane %v7542, 7
        %v7640 = vsel %vm6416, %v7638, %v7639
        %v7641 = vrot.slane %v7639, 4
        %v7642 = vrot.slane %v7543, 7
        %v7643 = vsel %vm6416, %v7641, %v7642
        %v7644 = vrot.slane %v7544, 7
        %v7645 = vrot.slane %v7644, 4
        %v7646 = vrot.slane %v7545, 7
        %v7647 = vsel %vm6416, %v7645, %v7646
        %v7648 = vrot.slane %v7646, 4
        %v7649 = vrot.slane %v7546, 7
        %v7650 = vsel %vm6416, %v7648, %v7649
        %v7651 = vrot.slane %v7547, 7
        %v7652 = vrot.slane %v7651, 4
        %v7653 = vrot.slane %v7548, 7
        %v7654 = vsel %vm6416, %v7652, %v7653
        %v7655 = vrot.slane %v7653, 4
        %v7656 = vrot.slane %v7549, 7
        %v7657 = vsel %vm6416, %v7655, %v7656
        %v7658 = vrot.slane %v7550, 7
        %v7659 = vrot.slane %v7658, 4
        %v7660 = vrot.slane %v7551, 7
        %v7661 = vsel %vm6416, %v7659, %v7660
        %v7662 = vrot.slane %v7660, 4
        %v7663 = vrot.slane %v7552, 7
        %v7664 = vsel %vm6416, %v7662, %v7663
        %v7665 = vrot.slane %v7553, 7
        %v7666 = vrot.slane %v7665, 4
        %v7667 = vrot.slane %v7554, 7
        %v7668 = vsel %vm6416, %v7666, %v7667
        %v7669 = vrot.slane %v7667, 4
        %v7670 = vrot.slane %v7555, 7
        %v7671 = vsel %vm6416, %v7669, %v7670
        %v7672 = vrot.slane %v7556, 7
        %v7673 = vrot.slane %v7672, 4
        %v7674 = vrot.slane %v7557, 7
        %v7675 = vsel %vm6416, %v7673, %v7674
        %v7676 = vrot.slane %v7674, 4
        %v7677 = vrot.slane %v7558, 7
        %v7678 = vsel %vm6416, %v7676, %v7677
        %v7679 = vrot.slane %v7559, 7
        %v7680 = vrot.slane %v7679, 4
        %v7681 = vrot.slane %v7560, 7
        %v7682 = vsel %vm6416, %v7680, %v7681
        %v7683 = vrot.slane %v7681, 4
        %v7684 = vrot.slane %v7561, 7
        %v7685 = vsel %vm6416, %v7683, %v7684
        %v7686 = vrot.slane %v7562, 7
        %v7687 = vrot.slane %v7686, 4
        %v7688 = vrot.slane %v7563, 7
        %v7689 = vsel %vm6416, %v7687, %v7688
        %v7690 = vrot.slane %v7688, 4
        %v7691 = vrot.slane %v7564, 7
        %v7692 = vsel %vm6416, %v7690, %v7691
        %v7693 = vrot.slane %v7565, 7
        %v7694 = vrot.slane %v7693, 4
        %v7695 = vrot.slane %v7566, 7
        %v7696 = vsel %vm6416, %v7694, %v7695
        %v7697 = vrot.slane %v7695, 4
        %v7698 = vrot.slane %v7567, 7
        %v7699 = vsel %vm6416, %v7697, %v7698
        %v7700 = vrot.slane %v7568, 7
        %v7701 = vrot.slane %v7700, 4
        %v7702 = vrot.slane %v7569, 7
        %v7703 = vsel %vm6416, %v7701, %v7702
        %v7704 = vrot.slane %v7702, 4
        %v7705 = vrot.slane %v7570, 7
        %v7706 = vsel %vm6416, %v7704, %v7705
        %v7707 = vrot.slane %v7571, 7
        %v7708 = vrot.slane %v7707, 4
        %v7709 = vrot.slane %v7572, 7
        %v7710 = vsel %vm6416, %v7708, %v7709
        %v7711 = vrot.slane %v7709, 4
        %v7712 = vrot.slane %v7573, 7
        %v7713 = vsel %vm6416, %v7711, %v7712
        %v7714 = vrot.slane %v7574, 7
        %v7715 = vrot.slane %v7714, 4
        %v7716 = vrot.slane %v7575, 7
        %v7717 = vsel %vm6416, %v7715, %v7716
        %v7718 = vrot.slane %v7716, 4
        %v7719 = vrot.slane %v7576, 7
        %v7720 = vsel %vm6416, %v7718, %v7719
        %v7721 = vrot.slane %v7577, 7
        %v7722 = vrot.slane %v7721, 4
        %v7723 = vrot.slane %v7578, 7
        %v7724 = vsel %vm6416, %v7722, %v7723
        %v7725 = vrot.slane %v7723, 4
        %v7726 = vrot.slane %v7579, 7
        %v7727 = vsel %vm6416, %v7725, %v7726
        %v7728 = vrot.slane %v7580, 7
        %v7729 = vrot.slane %v7728, 4
        %v7730 = vrot.slane %v7581, 7
        %v7731 = vsel %vm6416, %v7729, %v7730
        %v7732 = vrot.slane %v7730, 4
        %v7733 = vrot.slane %v7582, 7
        %v7734 = vsel %vm6416, %v7732, %v7733
        %v7735 = vrot.slane %v7583, 7
        %v7736 = vrot.slane %v7735, 4
        %v7737 = vrot.slane %v7584, 7
        %v7738 = vsel %vm6416, %v7736, %v7737
        %v7739 = vrot.slane %v7737, 4
        %v7740 = vrot.slane %v7585, 7
        %v7741 = vsel %vm6416, %v7739, %v7740
        %v7742 = vrot.slane %v7586, 7
        %v7743 = vrot.slane %v7742, 4
        %v7744 = vrot.slane %v7587, 7
        %v7745 = vsel %vm6416, %v7743, %v7744
        %v7746 = vrot.slane %v7744, 4
        %v7747 = vrot.slane %v7588, 7
        %v7748 = vsel %vm6416, %v7746, %v7747
        %7781 = vst [vmem:[#allocation3 + $0x18] sm:$0xf] %v7640
        %7782 = vst [vmem:[#allocation3 + $0x3c] sm:$0xf] %v7643
        %7783 = vst [vmem:[#allocation3 + $0x60] sm:$0xf] %v7647
        %7784 = vst [vmem:[#allocation3 + $0x84] sm:$0xf] %v7650
        %7785 = vst [vmem:[#allocation3 + $0xa8] sm:$0xf] %v7654
        %7786 = vst [vmem:[#allocation3 + $0xcc] sm:$0xf] %v7657
        %7787 = vst [vmem:[#allocation3 + $0xf0] sm:$0xf] %v7661
        %7788 = vst [vmem:[#allocation3 + $0x114] sm:$0xf] %v7664
        %7789 = vst [vmem:[#allocation3 + $0x138] sm:$0xf] %v7668
        %7790 = vst [vmem:[#allocation3 + $0x15c] sm:$0xf] %v7671
        %7791 = vst [vmem:[#allocation3 + $0x180] sm:$0xf] %v7675
        %7792 = vst [vmem:[#allocation3 + $0x1a4] sm:$0xf] %v7678
        %7793 = vst [vmem:[#allocation3 + $0x1c8] sm:$0xf] %v7682
        %7794 = vst [vmem:[#allocation3 + $0x1ec] sm:$0xf] %v7685
        %7795 = vst [vmem:[#allocation3 + $0x210] sm:$0xf] %v7689
        %7796 = vst [vmem:[#allocation3 + $0x234] sm:$0xf] %v7692
        %7797 = vst [vmem:[#allocation3 + $0x258] sm:$0xf] %v7696
        %7798 = vst [vmem:[#allocation3 + $0x27c] sm:$0xf] %v7699
        %7799 = vst [vmem:[#allocation3 + $0x2a0] sm:$0xf] %v7703
        %7800 = vst [vmem:[#allocation3 + $0x2c4] sm:$0xf] %v7706
        %7801 = vst [vmem:[#allocation3 + $0x2e8] sm:$0xf] %v7710
        %7802 = vst [vmem:[#allocation3 + $0x30c] sm:$0xf] %v7713
        %7803 = vst [vmem:[#allocation3 + $0x330] sm:$0xf] %v7717
        %7804 = vst [vmem:[#allocation3 + $0x354] sm:$0xf] %v7720
        %7805 = vst [vmem:[#allocation3 + $0x378] sm:$0xf] %v7724
        %7806 = vst [vmem:[#allocation3 + $0x39c] sm:$0xf] %v7727
        %7807 = vst [vmem:[#allocation3 + $0x3c0] sm:$0xf] %v7731
        %7808 = vst [vmem:[#allocation3 + $0x3e4] sm:$0xf] %v7734
        %7809 = vst [vmem:[#allocation3 + $0x408] sm:$0xf] %v7738
        %7810 = vst [vmem:[#allocation3 + $0x42c] sm:$0xf] %v7741
        %7811 = vst [vmem:[#allocation3 + $0x450] sm:$0xf] %v7745
        %7812 = vst [vmem:[#allocation3 + $0x474] sm:$0xf] %v7748
        %v7813 = vld [vmem:[%s7540 + $0x8] sm:$0xf]
        %v7814 = vld [vmem:[%s7540 + $0xc] sm:$0xf]
        %v7815 = vld [vmem:[%s7540 + $0x20] sm:$0xf]
        %v7816 = vld [vmem:[%s7540 + $0x24] sm:$0xf]
        %v7817 = vld [vmem:[%s7540 + $0x38] sm:$0xf]
        %v7818 = vld [vmem:[%s7540 + $0x3c] sm:$0xf]
        %v7819 = vld [vmem:[%s7540 + $0x50] sm:$0xf]
        %v7820 = vld [vmem:[%s7540 + $0x54] sm:$0xf]
        %v7821 = vld [vmem:[%s7540 + $0x68] sm:$0xf]
        %v7822 = vld [vmem:[%s7540 + $0x6c] sm:$0xf]
        %v7823 = vld [vmem:[%s7540 + $0x80] sm:$0xf]
        %v7824 = vld [vmem:[%s7540 + $0x84] sm:$0xf]
        %v7825 = vld [vmem:[%s7540 + $0x98] sm:$0xf]
        %v7826 = vld [vmem:[%s7540 + $0x9c] sm:$0xf]
        %v7827 = vld [vmem:[%s7540 + $0xb0] sm:$0xf]
        %v7828 = vld [vmem:[%s7540 + $0xb4] sm:$0xf]
        %v7829 = vld [vmem:[%s7540 + $0xc8] sm:$0xf]
        %v7830 = vld [vmem:[%s7540 + $0xcc] sm:$0xf]
        %v7831 = vld [vmem:[%s7540 + $0xe0] sm:$0xf]
        %v7832 = vld [vmem:[%s7540 + $0xe4] sm:$0xf]
        %v7833 = vld [vmem:[%s7540 + $0xf8] sm:$0xf]
        %v7834 = vld [vmem:[%s7540 + $0xfc] sm:$0xf]
        %v7835 = vld [vmem:[%s7540 + $0x110] sm:$0xf]
        %v7836 = vld [vmem:[%s7540 + $0x114] sm:$0xf]
        %v7837 = vld [vmem:[%s7540 + $0x128] sm:$0xf]
        %v7838 = vld [vmem:[%s7540 + $0x12c] sm:$0xf]
        %v7839 = vld [vmem:[%s7540 + $0x140] sm:$0xf]
        %v7840 = vld [vmem:[%s7540 + $0x144] sm:$0xf]
        %v7841 = vld [vmem:[%s7540 + $0x158] sm:$0xf]
        %v7842 = vld [vmem:[%s7540 + $0x15c] sm:$0xf]
        %v7843 = vld [vmem:[%s7540 + $0x170] sm:$0xf]
        %v7844 = vld [vmem:[%s7540 + $0x174] sm:$0xf]
        %7845 = vst [vmem:[#allocation3 + $0x1c] sm:$0xf] %v7813
        %7846 = vst [vmem:[#allocation3 + $0x40] sm:$0xf] %v7814
        %7847 = vst [vmem:[#allocation3 + $0x64] sm:$0xf] %v7815
        %7848 = vst [vmem:[#allocation3 + $0x88] sm:$0xf] %v7816
        %7849 = vst [vmem:[#allocation3 + $0xac] sm:$0xf] %v7817
        %7850 = vst [vmem:[#allocation3 + $0xd0] sm:$0xf] %v7818
        %7851 = vst [vmem:[#allocation3 + $0xf4] sm:$0xf] %v7819
        %7852 = vst [vmem:[#allocation3 + $0x118] sm:$0xf] %v7820
        %7853 = vst [vmem:[#allocation3 + $0x13c] sm:$0xf] %v7821
        %7854 = vst [vmem:[#allocation3 + $0x160] sm:$0xf] %v7822
        %7855 = vst [vmem:[#allocation3 + $0x184] sm:$0xf] %v7823
        %7856 = vst [vmem:[#allocation3 + $0x1a8] sm:$0xf] %v7824
        %7857 = vst [vmem:[#allocation3 + $0x1cc] sm:$0xf] %v7825
        %7858 = vst [vmem:[#allocation3 + $0x1f0] sm:$0xf] %v7826
        %7859 = vst [vmem:[#allocation3 + $0x214] sm:$0xf] %v7827
        %7860 = vst [vmem:[#allocation3 + $0x238] sm:$0xf] %v7828
        %7861 = vst [vmem:[#allocation3 + $0x25c] sm:$0xf] %v7829
        %7862 = vst [vmem:[#allocation3 + $0x280] sm:$0xf] %v7830
        %7863 = vst [vmem:[#allocation3 + $0x2a4] sm:$0xf] %v7831
        %7864 = vst [vmem:[#allocation3 + $0x2c8] sm:$0xf] %v7832
        %7865 = vst [vmem:[#allocation3 + $0x2ec] sm:$0xf] %v7833
        %7866 = vst [vmem:[#allocation3 + $0x310] sm:$0xf] %v7834
        %7867 = vst [vmem:[#allocation3 + $0x334] sm:$0xf] %v7835
        %7868 = vst [vmem:[#allocation3 + $0x358] sm:$0xf] %v7836
        %7869 = vst [vmem:[#allocation3 + $0x37c] sm:$0xf] %v7837
        %7870 = vst [vmem:[#allocation3 + $0x3a0] sm:$0xf] %v7838
        %7871 = vst [vmem:[#allocation3 + $0x3c4] sm:$0xf] %v7839
        %7872 = vst [vmem:[#allocation3 + $0x3e8] sm:$0xf] %v7840
        %7873 = vst [vmem:[#allocation3 + $0x40c] sm:$0xf] %v7841
        %7874 = vst [vmem:[#allocation3 + $0x430] sm:$0xf] %v7842
        %7875 = vst [vmem:[#allocation3 + $0x454] sm:$0xf] %v7843
        %7876 = vst [vmem:[#allocation3 + $0x478] sm:$0xf] %v7844
        %v7877 = vld [vmem:[%s7540 + $0x8] sm:$0xe]
        %v7878 = vld [vmem:[%s7540 + $0xc] sm:$0xf]
        %v7879 = vld [vmem:[%s7540 + $0x10] sm:$0x1]
        %v7880 = vld [vmem:[%s7540 + $0x20] sm:$0xe]
        %v7881 = vld [vmem:[%s7540 + $0x24] sm:$0xf]
        %v7882 = vld [vmem:[%s7540 + $0x28] sm:$0x1]
        %v7883 = vld [vmem:[%s7540 + $0x38] sm:$0xe]
        %v7884 = vld [vmem:[%s7540 + $0x3c] sm:$0xf]
        %v7885 = vld [vmem:[%s7540 + $0x40] sm:$0x1]
        %v7886 = vld [vmem:[%s7540 + $0x50] sm:$0xe]
        %v7887 = vld [vmem:[%s7540 + $0x54] sm:$0xf]
        %v7888 = vld [vmem:[%s7540 + $0x58] sm:$0x1]
        %v7889 = vld [vmem:[%s7540 + $0x68] sm:$0xe]
        %v7890 = vld [vmem:[%s7540 + $0x6c] sm:$0xf]
        %v7891 = vld [vmem:[%s7540 + $0x70] sm:$0x1]
        %v7892 = vld [vmem:[%s7540 + $0x80] sm:$0xe]
        %v7893 = vld [vmem:[%s7540 + $0x84] sm:$0xf]
        %v7894 = vld [vmem:[%s7540 + $0x88] sm:$0x1]
        %v7895 = vld [vmem:[%s7540 + $0x98] sm:$0xe]
        %v7896 = vld [vmem:[%s7540 + $0x9c] sm:$0xf]
        %v7897 = vld [vmem:[%s7540 + $0xa0] sm:$0x1]
        %v7898 = vld [vmem:[%s7540 + $0xb0] sm:$0xe]
        %v7899 = vld [vmem:[%s7540 + $0xb4] sm:$0xf]
        %v7900 = vld [vmem:[%s7540 + $0xb8] sm:$0x1]
        %v7901 = vld [vmem:[%s7540 + $0xc8] sm:$0xe]
        %v7902 = vld [vmem:[%s7540 + $0xcc] sm:$0xf]
        %v7903 = vld [vmem:[%s7540 + $0xd0] sm:$0x1]
        %v7904 = vld [vmem:[%s7540 + $0xe0] sm:$0xe]
        %v7905 = vld [vmem:[%s7540 + $0xe4] sm:$0xf]
        %v7906 = vld [vmem:[%s7540 + $0xe8] sm:$0x1]
        %v7907 = vld [vmem:[%s7540 + $0xf8] sm:$0xe]
        %v7908 = vld [vmem:[%s7540 + $0xfc] sm:$0xf]
        %v7909 = vld [vmem:[%s7540 + $0x100] sm:$0x1]
        %v7910 = vld [vmem:[%s7540 + $0x110] sm:$0xe]
        %v7911 = vld [vmem:[%s7540 + $0x114] sm:$0xf]
        %v7912 = vld [vmem:[%s7540 + $0x118] sm:$0x1]
        %v7913 = vld [vmem:[%s7540 + $0x128] sm:$0xe]
        %v7914 = vld [vmem:[%s7540 + $0x12c] sm:$0xf]
        %v7915 = vld [vmem:[%s7540 + $0x130] sm:$0x1]
        %v7916 = vld [vmem:[%s7540 + $0x140] sm:$0xe]
        %v7917 = vld [vmem:[%s7540 + $0x144] sm:$0xf]
        %v7918 = vld [vmem:[%s7540 + $0x148] sm:$0x1]
        %v7919 = vld [vmem:[%s7540 + $0x158] sm:$0xe]
        %v7920 = vld [vmem:[%s7540 + $0x15c] sm:$0xf]
        %v7921 = vld [vmem:[%s7540 + $0x160] sm:$0x1]
        %v7922 = vld [vmem:[%s7540 + $0x170] sm:$0xe]
        %v7923 = vld [vmem:[%s7540 + $0x174] sm:$0xf]
        %v7924 = vld [vmem:[%s7540 + $0x178] sm:$0x1]
        %v7973 = vrot.slane %v7877, 5
        %v7974 = vrot.slane %v7973, 4
        %v7975 = vrot.slane %v7878, 5
        %v7976 = vsel %vm6755, %v7974, %v7975
        %v7977 = vrot.slane %v7975, 4
        %v7978 = vrot.slane %v7879, 5
        %v7979 = vsel %vm6755, %v7977, %v7978
        %v7980 = vrot.slane %v7880, 5
        %v7981 = vrot.slane %v7980, 4
        %v7982 = vrot.slane %v7881, 5
        %v7983 = vsel %vm6755, %v7981, %v7982
        %v7984 = vrot.slane %v7982, 4
        %v7985 = vrot.slane %v7882, 5
        %v7986 = vsel %vm6755, %v7984, %v7985
        %v7987 = vrot.slane %v7883, 5
        %v7988 = vrot.slane %v7987, 4
        %v7989 = vrot.slane %v7884, 5
        %v7990 = vsel %vm6755, %v7988, %v7989
        %v7991 = vrot.slane %v7989, 4
        %v7992 = vrot.slane %v7885, 5
        %v7993 = vsel %vm6755, %v7991, %v7992
        %v7994 = vrot.slane %v7886, 5
        %v7995 = vrot.slane %v7994, 4
        %v7996 = vrot.slane %v7887, 5
        %v7997 = vsel %vm6755, %v7995, %v7996
        %v7998 = vrot.slane %v7996, 4
        %v7999 = vrot.slane %v7888, 5
        %v8000 = vsel %vm6755, %v7998, %v7999
        %v8001 = vrot.slane %v7889, 5
        %v8002 = vrot.slane %v8001, 4
        %v8003 = vrot.slane %v7890, 5
        %v8004 = vsel %vm6755, %v8002, %v8003
        %v8005 = vrot.slane %v8003, 4
        %v8006 = vrot.slane %v7891, 5
        %v8007 = vsel %vm6755, %v8005, %v8006
        %v8008 = vrot.slane %v7892, 5
        %v8009 = vrot.slane %v8008, 4
        %v8010 = vrot.slane %v7893, 5
        %v8011 = vsel %vm6755, %v8009, %v8010
        %v8012 = vrot.slane %v8010, 4
        %v8013 = vrot.slane %v7894, 5
        %v8014 = vsel %vm6755, %v8012, %v8013
        %v8015 = vrot.slane %v7895, 5
        %v8016 = vrot.slane %v8015, 4
        %v8017 = vrot.slane %v7896, 5
        %v8018 = vsel %vm6755, %v8016, %v8017
        %v8019 = vrot.slane %v8017, 4
        %v8020 = vrot.slane %v7897, 5
        %v8021 = vsel %vm6755, %v8019, %v8020
        %v8022 = vrot.slane %v7898, 5
        %v8023 = vrot.slane %v8022, 4
        %v8024 = vrot.slane %v7899, 5
        %v8025 = vsel %vm6755, %v8023, %v8024
        %v8026 = vrot.slane %v8024, 4
        %v8027 = vrot.slane %v7900, 5
        %v8028 = vsel %vm6755, %v8026, %v8027
        %v8029 = vrot.slane %v7901, 5
        %v8030 = vrot.slane %v8029, 4
        %v8031 = vrot.slane %v7902, 5
        %v8032 = vsel %vm6755, %v8030, %v8031
        %v8033 = vrot.slane %v8031, 4
        %v8034 = vrot.slane %v7903, 5
        %v8035 = vsel %vm6755, %v8033, %v8034
        %v8036 = vrot.slane %v7904, 5
        %v8037 = vrot.slane %v8036, 4
        %v8038 = vrot.slane %v7905, 5
        %v8039 = vsel %vm6755, %v8037, %v8038
        %v8040 = vrot.slane %v8038, 4
        %v8041 = vrot.slane %v7906, 5
        %v8042 = vsel %vm6755, %v8040, %v8041
        %v8043 = vrot.slane %v7907, 5
        %v8044 = vrot.slane %v8043, 4
        %v8045 = vrot.slane %v7908, 5
        %v8046 = vsel %vm6755, %v8044, %v8045
        %v8047 = vrot.slane %v8045, 4
        %v8048 = vrot.slane %v7909, 5
        %v8049 = vsel %vm6755, %v8047, %v8048
        %v8050 = vrot.slane %v7910, 5
        %v8051 = vrot.slane %v8050, 4
        %v8052 = vrot.slane %v7911, 5
        %v8053 = vsel %vm6755, %v8051, %v8052
        %v8054 = vrot.slane %v8052, 4
        %v8055 = vrot.slane %v7912, 5
        %v8056 = vsel %vm6755, %v8054, %v8055
        %v8057 = vrot.slane %v7913, 5
        %v8058 = vrot.slane %v8057, 4
        %v8059 = vrot.slane %v7914, 5
        %v8060 = vsel %vm6755, %v8058, %v8059
        %v8061 = vrot.slane %v8059, 4
        %v8062 = vrot.slane %v7915, 5
        %v8063 = vsel %vm6755, %v8061, %v8062
        %v8064 = vrot.slane %v7916, 5
        %v8065 = vrot.slane %v8064, 4
        %v8066 = vrot.slane %v7917, 5
        %v8067 = vsel %vm6755, %v8065, %v8066
        %v8068 = vrot.slane %v8066, 4
        %v8069 = vrot.slane %v7918, 5
        %v8070 = vsel %vm6755, %v8068, %v8069
        %v8071 = vrot.slane %v7919, 5
        %v8072 = vrot.slane %v8071, 4
        %v8073 = vrot.slane %v7920, 5
        %v8074 = vsel %vm6755, %v8072, %v8073
        %v8075 = vrot.slane %v8073, 4
        %v8076 = vrot.slane %v7921, 5
        %v8077 = vsel %vm6755, %v8075, %v8076
        %v8078 = vrot.slane %v7922, 5
        %v8079 = vrot.slane %v8078, 4
        %v8080 = vrot.slane %v7923, 5
        %v8081 = vsel %vm6755, %v8079, %v8080
        %v8082 = vrot.slane %v8080, 4
        %v8083 = vrot.slane %v7924, 5
        %v8084 = vsel %vm6755, %v8082, %v8083
        %8117 = vst [vmem:[#allocation3 + $0x20] sm:$0xf] %v7976
        %8118 = vst [vmem:[#allocation3 + $0x44] sm:$0xf] %v7979
        %8119 = vst [vmem:[#allocation3 + $0x68] sm:$0xf] %v7983
        %8120 = vst [vmem:[#allocation3 + $0x8c] sm:$0xf] %v7986
        %8121 = vst [vmem:[#allocation3 + $0xb0] sm:$0xf] %v7990
        %8122 = vst [vmem:[#allocation3 + $0xd4] sm:$0xf] %v7993
        %8123 = vst [vmem:[#allocation3 + $0xf8] sm:$0xf] %v7997
        %8124 = vst [vmem:[#allocation3 + $0x11c] sm:$0xf] %v8000
        %8125 = vst [vmem:[#allocation3 + $0x140] sm:$0xf] %v8004
        %8126 = vst [vmem:[#allocation3 + $0x164] sm:$0xf] %v8007
        %8127 = vst [vmem:[#allocation3 + $0x188] sm:$0xf] %v8011
        %8128 = vst [vmem:[#allocation3 + $0x1ac] sm:$0xf] %v8014
        %8129 = vst [vmem:[#allocation3 + $0x1d0] sm:$0xf] %v8018
        %8130 = vst [vmem:[#allocation3 + $0x1f4] sm:$0xf] %v8021
        %8131 = vst [vmem:[#allocation3 + $0x218] sm:$0xf] %v8025
        %8132 = vst [vmem:[#allocation3 + $0x23c] sm:$0xf] %v8028
        %8133 = vst [vmem:[#allocation3 + $0x260] sm:$0xf] %v8032
        %8134 = vst [vmem:[#allocation3 + $0x284] sm:$0xf] %v8035
        %8135 = vst [vmem:[#allocation3 + $0x2a8] sm:$0xf] %v8039
        %8136 = vst [vmem:[#allocation3 + $0x2cc] sm:$0xf] %v8042
        %8137 = vst [vmem:[#allocation3 + $0x2f0] sm:$0xf] %v8046
        %8138 = vst [vmem:[#allocation3 + $0x314] sm:$0xf] %v8049
        %8139 = vst [vmem:[#allocation3 + $0x338] sm:$0xf] %v8053
        %8140 = vst [vmem:[#allocation3 + $0x35c] sm:$0xf] %v8056
        %8141 = vst [vmem:[#allocation3 + $0x380] sm:$0xf] %v8060
        %8142 = vst [vmem:[#allocation3 + $0x3a4] sm:$0xf] %v8063
        %8143 = vst [vmem:[#allocation3 + $0x3c8] sm:$0xf] %v8067
        %8144 = vst [vmem:[#allocation3 + $0x3ec] sm:$0xf] %v8070
        %8145 = vst [vmem:[#allocation3 + $0x410] sm:$0xf] %v8074
        %8146 = vst [vmem:[#allocation3 + $0x434] sm:$0xf] %v8077
        %8147 = vst [vmem:[#allocation3 + $0x458] sm:$0xf] %v8081
        %8148 = vst [vmem:[#allocation3 + $0x47c] sm:$0xf] %v8084
        %v8149 = vld [vmem:[#allocation3] sm:$0xff]
        %v8150 = vld [vmem:[#allocation3 + $0x8] sm:$0xff]
        %v8151 = vld [vmem:[#allocation3 + $0x10] sm:$0xff]
        %v8152 = vld [vmem:[#allocation3 + $0x18] sm:$0xff]
        %v8153 = vld [vmem:[#allocation3 + $0x20] sm:$0xf]
        %v8154 = vld [vmem:[#allocation3 + $0x24] sm:$0xff]
        %v8155 = vld [vmem:[#allocation3 + $0x2c] sm:$0xff]
        %v8156 = vld [vmem:[#allocation3 + $0x34] sm:$0xff]
        %v8157 = vld [vmem:[#allocation3 + $0x3c] sm:$0xff]
        %v8158 = vld [vmem:[#allocation3 + $0x44] sm:$0xf]
        %v8159 = vld [vmem:[#allocation3 + $0x48] sm:$0xff]
        %v8160 = vld [vmem:[#allocation3 + $0x50] sm:$0xff]
        %v8161 = vld [vmem:[#allocation3 + $0x58] sm:$0xff]
        %v8162 = vld [vmem:[#allocation3 + $0x60] sm:$0xff]
        %v8163 = vld [vmem:[#allocation3 + $0x68] sm:$0xf]
        %v8164 = vld [vmem:[#allocation3 + $0x6c] sm:$0xff]
        %v8165 = vld [vmem:[#allocation3 + $0x74] sm:$0xff]
        %v8166 = vld [vmem:[#allocation3 + $0x7c] sm:$0xff]
        %v8167 = vld [vmem:[#allocation3 + $0x84] sm:$0xff]
        %v8168 = vld [vmem:[#allocation3 + $0x8c] sm:$0xf]
        %v8169 = vld [vmem:[#allocation3 + $0x90] sm:$0xff]
        %v8170 = vld [vmem:[#allocation3 + $0x98] sm:$0xff]
        %v8171 = vld [vmem:[#allocation3 + $0xa0] sm:$0xff]
        %v8172 = vld [vmem:[#allocation3 + $0xa8] sm:$0xff]
        %v8173 = vld [vmem:[#allocation3 + $0xb0] sm:$0xf]
        %v8174 = vld [vmem:[#allocation3 + $0xb4] sm:$0xff]
        %v8175 = vld [vmem:[#allocation3 + $0xbc] sm:$0xff]
        %v8176 = vld [vmem:[#allocation3 + $0xc4] sm:$0xff]
        %v8177 = vld [vmem:[#allocation3 + $0xcc] sm:$0xff]
        %v8178 = vld [vmem:[#allocation3 + $0xd4] sm:$0xf]
        %v8179 = vld [vmem:[#allocation3 + $0xd8] sm:$0xff]
        %v8180 = vld [vmem:[#allocation3 + $0xe0] sm:$0xff]
        %v8181 = vld [vmem:[#allocation3 + $0xe8] sm:$0xff]
        %v8182 = vld [vmem:[#allocation3 + $0xf0] sm:$0xff]
        %v8183 = vld [vmem:[#allocation3 + $0xf8] sm:$0xf]
        %v8184 = vld [vmem:[#allocation3 + $0xfc] sm:$0xff]
        %v8185 = vld [vmem:[#allocation3 + $0x104] sm:$0xff]
        %v8186 = vld [vmem:[#allocation3 + $0x10c] sm:$0xff]
        %v8187 = vld [vmem:[#allocation3 + $0x114] sm:$0xff]
        %v8188 = vld [vmem:[#allocation3 + $0x11c] sm:$0xf]
        %v8189 = vld [vmem:[#allocation3 + $0x120] sm:$0xff]
        %v8190 = vld [vmem:[#allocation3 + $0x128] sm:$0xff]
        %v8191 = vld [vmem:[#allocation3 + $0x130] sm:$0xff]
        %v8192 = vld [vmem:[#allocation3 + $0x138] sm:$0xff]
        %v8193 = vld [vmem:[#allocation3 + $0x140] sm:$0xf]
        %v8194 = vld [vmem:[#allocation3 + $0x144] sm:$0xff]
        %v8195 = vld [vmem:[#allocation3 + $0x14c] sm:$0xff]
        %v8196 = vld [vmem:[#allocation3 + $0x154] sm:$0xff]
        %v8197 = vld [vmem:[#allocation3 + $0x15c] sm:$0xff]
        %v8198 = vld [vmem:[#allocation3 + $0x164] sm:$0xf]
        %v8199 = vld [vmem:[#allocation3 + $0x168] sm:$0xff]
        %v8200 = vld [vmem:[#allocation3 + $0x170] sm:$0xff]
        %v8201 = vld [vmem:[#allocation3 + $0x178] sm:$0xff]
        %v8202 = vld [vmem:[#allocation3 + $0x180] sm:$0xff]
        %v8203 = vld [vmem:[#allocation3 + $0x188] sm:$0xf]
        %v8204 = vld [vmem:[#allocation3 + $0x18c] sm:$0xff]
        %v8205 = vld [vmem:[#allocation3 + $0x194] sm:$0xff]
        %v8206 = vld [vmem:[#allocation3 + $0x19c] sm:$0xff]
        %v8207 = vld [vmem:[#allocation3 + $0x1a4] sm:$0xff]
        %v8208 = vld [vmem:[#allocation3 + $0x1ac] sm:$0xf]
        %v8209 = vld [vmem:[#allocation3 + $0x1b0] sm:$0xff]
        %v8210 = vld [vmem:[#allocation3 + $0x1b8] sm:$0xff]
        %v8211 = vld [vmem:[#allocation3 + $0x1c0] sm:$0xff]
        %v8212 = vld [vmem:[#allocation3 + $0x1c8] sm:$0xff]
        %v8213 = vld [vmem:[#allocation3 + $0x1d0] sm:$0xf]
        %v8214 = vld [vmem:[#allocation3 + $0x1d4] sm:$0xff]
        %v8215 = vld [vmem:[#allocation3 + $0x1dc] sm:$0xff]
        %v8216 = vld [vmem:[#allocation3 + $0x1e4] sm:$0xff]
        %v8217 = vld [vmem:[#allocation3 + $0x1ec] sm:$0xff]
        %v8218 = vld [vmem:[#allocation3 + $0x1f4] sm:$0xf]
        %v8219 = vld [vmem:[#allocation3 + $0x1f8] sm:$0xff]
        %v8220 = vld [vmem:[#allocation3 + $0x200] sm:$0xff]
        %v8221 = vld [vmem:[#allocation3 + $0x208] sm:$0xff]
        %v8222 = vld [vmem:[#allocation3 + $0x210] sm:$0xff]
        %v8223 = vld [vmem:[#allocation3 + $0x218] sm:$0xf]
        %v8224 = vld [vmem:[#allocation3 + $0x21c] sm:$0xff]
        %v8225 = vld [vmem:[#allocation3 + $0x224] sm:$0xff]
        %v8226 = vld [vmem:[#allocation3 + $0x22c] sm:$0xff]
        %v8227 = vld [vmem:[#allocation3 + $0x234] sm:$0xff]
        %v8228 = vld [vmem:[#allocation3 + $0x23c] sm:$0xf]
        %v8229 = vld [vmem:[#allocation3 + $0x240] sm:$0xff]
        %v8230 = vld [vmem:[#allocation3 + $0x248] sm:$0xff]
        %v8231 = vld [vmem:[#allocation3 + $0x250] sm:$0xff]
        %v8232 = vld [vmem:[#allocation3 + $0x258] sm:$0xff]
        %v8233 = vld [vmem:[#allocation3 + $0x260] sm:$0xf]
        %v8234 = vld [vmem:[#allocation3 + $0x264] sm:$0xff]
        %v8235 = vld [vmem:[#allocation3 + $0x26c] sm:$0xff]
        %v8236 = vld [vmem:[#allocation3 + $0x274] sm:$0xff]
        %v8237 = vld [vmem:[#allocation3 + $0x27c] sm:$0xff]
        %v8238 = vld [vmem:[#allocation3 + $0x284] sm:$0xf]
        %v8239 = vld [vmem:[#allocation3 + $0x288] sm:$0xff]
        %v8240 = vld [vmem:[#allocation3 + $0x290] sm:$0xff]
        %v8241 = vld [vmem:[#allocation3 + $0x298] sm:$0xff]
        %v8242 = vld [vmem:[#allocation3 + $0x2a0] sm:$0xff]
        %v8243 = vld [vmem:[#allocation3 + $0x2a8] sm:$0xf]
        %v8244 = vld [vmem:[#allocation3 + $0x2ac] sm:$0xff]
        %v8245 = vld [vmem:[#allocation3 + $0x2b4] sm:$0xff]
        %v8246 = vld [vmem:[#allocation3 + $0x2bc] sm:$0xff]
        %v8247 = vld [vmem:[#allocation3 + $0x2c4] sm:$0xff]
        %v8248 = vld [vmem:[#allocation3 + $0x2cc] sm:$0xf]
        %v8249 = vld [vmem:[#allocation3 + $0x2d0] sm:$0xff]
        %v8250 = vld [vmem:[#allocation3 + $0x2d8] sm:$0xff]
        %v8251 = vld [vmem:[#allocation3 + $0x2e0] sm:$0xff]
        %v8252 = vld [vmem:[#allocation3 + $0x2e8] sm:$0xff]
        %v8253 = vld [vmem:[#allocation3 + $0x2f0] sm:$0xf]
        %v8254 = vld [vmem:[#allocation3 + $0x2f4] sm:$0xff]
        %v8255 = vld [vmem:[#allocation3 + $0x2fc] sm:$0xff]
        %v8256 = vld [vmem:[#allocation3 + $0x304] sm:$0xff]
        %v8257 = vld [vmem:[#allocation3 + $0x30c] sm:$0xff]
        %v8258 = vld [vmem:[#allocation3 + $0x314] sm:$0xf]
        %v8259 = vld [vmem:[#allocation3 + $0x318] sm:$0xff]
        %v8260 = vld [vmem:[#allocation3 + $0x320] sm:$0xff]
        %v8261 = vld [vmem:[#allocation3 + $0x328] sm:$0xff]
        %v8262 = vld [vmem:[#allocation3 + $0x330] sm:$0xff]
        %v8263 = vld [vmem:[#allocation3 + $0x338] sm:$0xf]
        %v8264 = vld [vmem:[#allocation3 + $0x33c] sm:$0xff]
        %v8265 = vld [vmem:[#allocation3 + $0x344] sm:$0xff]
        %v8266 = vld [vmem:[#allocation3 + $0x34c] sm:$0xff]
        %v8267 = vld [vmem:[#allocation3 + $0x354] sm:$0xff]
        %v8268 = vld [vmem:[#allocation3 + $0x35c] sm:$0xf]
        %v8269 = vld [vmem:[#allocation3 + $0x360] sm:$0xff]
        %v8270 = vld [vmem:[#allocation3 + $0x368] sm:$0xff]
        %v8271 = vld [vmem:[#allocation3 + $0x370] sm:$0xff]
        %v8272 = vld [vmem:[#allocation3 + $0x378] sm:$0xff]
        %v8273 = vld [vmem:[#allocation3 + $0x380] sm:$0xf]
        %v8274 = vld [vmem:[#allocation3 + $0x384] sm:$0xff]
        %v8275 = vld [vmem:[#allocation3 + $0x38c] sm:$0xff]
        %v8276 = vld [vmem:[#allocation3 + $0x394] sm:$0xff]
        %v8277 = vld [vmem:[#allocation3 + $0x39c] sm:$0xff]
        %v8278 = vld [vmem:[#allocation3 + $0x3a4] sm:$0xf]
        %v8279 = vld [vmem:[#allocation3 + $0x3a8] sm:$0xff]
        %v8280 = vld [vmem:[#allocation3 + $0x3b0] sm:$0xff]
        %v8281 = vld [vmem:[#allocation3 + $0x3b8] sm:$0xff]
        %v8282 = vld [vmem:[#allocation3 + $0x3c0] sm:$0xff]
        %v8283 = vld [vmem:[#allocation3 + $0x3c8] sm:$0xf]
        %v8284 = vld [vmem:[#allocation3 + $0x3cc] sm:$0xff]
        %v8285 = vld [vmem:[#allocation3 + $0x3d4] sm:$0xff]
        %v8286 = vld [vmem:[#allocation3 + $0x3dc] sm:$0xff]
        %v8287 = vld [vmem:[#allocation3 + $0x3e4] sm:$0xff]
        %v8288 = vld [vmem:[#allocation3 + $0x3ec] sm:$0xf]
        %v8289 = vld [vmem:[#allocation3 + $0x3f0] sm:$0xff]
        %v8290 = vld [vmem:[#allocation3 + $0x3f8] sm:$0xff]
        %v8291 = vld [vmem:[#allocation3 + $0x400] sm:$0xff]
        %v8292 = vld [vmem:[#allocation3 + $0x408] sm:$0xff]
        %v8293 = vld [vmem:[#allocation3 + $0x410] sm:$0xf]
        %v8294 = vld [vmem:[#allocation3 + $0x414] sm:$0xff]
        %v8295 = vld [vmem:[#allocation3 + $0x41c] sm:$0xff]
        %v8296 = vld [vmem:[#allocation3 + $0x424] sm:$0xff]
        %v8297 = vld [vmem:[#allocation3 + $0x42c] sm:$0xff]
        %v8298 = vld [vmem:[#allocation3 + $0x434] sm:$0xf]
        %v8299 = vld [vmem:[#allocation3 + $0x438] sm:$0xff]
        %v8300 = vld [vmem:[#allocation3 + $0x440] sm:$0xff]
        %v8301 = vld [vmem:[#allocation3 + $0x448] sm:$0xff]
        %v8302 = vld [vmem:[#allocation3 + $0x450] sm:$0xff]
        %v8303 = vld [vmem:[#allocation3 + $0x458] sm:$0xf]
        %v8304 = vld [vmem:[#allocation3 + $0x45c] sm:$0xff]
        %v8305 = vld [vmem:[#allocation3 + $0x464] sm:$0xff]
        %v8306 = vld [vmem:[#allocation3 + $0x46c] sm:$0xff]
        %v8307 = vld [vmem:[#allocation3 + $0x474] sm:$0xff]
        %v8308 = vld [vmem:[#allocation3 + $0x47c] sm:$0xf]
        %v8309 = vld [vmem:[#allocation7] sm:$0xf]
        %v8310 = vld [vmem:[#allocation7 + $0x4] sm:$0xf]
        %v8311 = vld [vmem:[#allocation7 + $0x8] sm:$0xf]
        %v8312 = vld [vmem:[#allocation7 + $0xc] sm:$0xf]
        %v8313 = vld [vmem:[#allocation7 + $0x10] sm:$0xf]
        %v8314 = vld [vmem:[#allocation7 + $0x14] sm:$0xf]
        %v8315 = vld [vmem:[#allocation7 + $0x18] sm:$0xf]
        %v8316 = vld [vmem:[#allocation7 + $0x1c] sm:$0xf]
        %v8317 = vld [vmem:[#allocation7 + $0x20] sm:$0xf]
        %v8318 = vld [vmem:[#allocation7 + $0x24] sm:$0xf]
        %v8319 = vld [vmem:[#allocation7 + $0x28] sm:$0xf]
        %v8320 = vld [vmem:[#allocation7 + $0x2c] sm:$0xf]
        %v8321 = vld [vmem:[#allocation7 + $0x30] sm:$0xf]
        %v8322 = vld [vmem:[#allocation7 + $0x34] sm:$0xf]
        %v8323 = vld [vmem:[#allocation7 + $0x38] sm:$0xf]
        %v8324 = vld [vmem:[#allocation7 + $0x3c] sm:$0xf]
        %v8325 = vld [vmem:[#allocation7 + $0x40] sm:$0xf]
        %v8326 = vld [vmem:[#allocation7 + $0x44] sm:$0xf]
        %v8327 = vld [vmem:[#allocation7 + $0x48] sm:$0xf]
        %v8328 = vld [vmem:[#allocation7 + $0x4c] sm:$0xf]
        %v8329 = vld [vmem:[#allocation7 + $0x50] sm:$0xf]
        %v8330 = vld [vmem:[#allocation7 + $0x54] sm:$0xf]
        %v8331 = vld [vmem:[#allocation7 + $0x58] sm:$0xf]
        %v8332 = vld [vmem:[#allocation7 + $0x5c] sm:$0xf]
        %v8333 = vld [vmem:[#allocation7 + $0x60] sm:$0xf]
        %v8334 = vld [vmem:[#allocation7 + $0x64] sm:$0xf]
        %v8335 = vld [vmem:[#allocation7 + $0x68] sm:$0xf]
        %v8336 = vld [vmem:[#allocation7 + $0x6c] sm:$0xf]
        %v8337 = vld [vmem:[#allocation7 + $0x70] sm:$0xf]
        %v8338 = vld [vmem:[#allocation7 + $0x74] sm:$0xf]
        %v8339 = vld [vmem:[#allocation7 + $0x78] sm:$0xf]
        %v8340 = vld [vmem:[#allocation7 + $0x7c] sm:$0xf]
        %v8341 = vld [vmem:[#allocation7 + $0x80] sm:$0xf]
        %v8342 = vld [vmem:[#allocation7 + $0x84] sm:$0xf]
        %v8343 = vld [vmem:[#allocation7 + $0x88] sm:$0xf]
        %v8344 = vld [vmem:[#allocation7 + $0x8c] sm:$0xf]
        %v8345 = vld [vmem:[#allocation7 + $0x90] sm:$0xf]
        %v8346 = vld [vmem:[#allocation7 + $0x94] sm:$0xf]
        %v8347 = vld [vmem:[#allocation7 + $0x98] sm:$0xf]
        %v8348 = vld [vmem:[#allocation7 + $0x9c] sm:$0xf]
        %v8349 = vld [vmem:[#allocation7 + $0xa0] sm:$0xf]
        %v8350 = vld [vmem:[#allocation7 + $0xa4] sm:$0xf]
        %v8351 = vld [vmem:[#allocation7 + $0xa8] sm:$0xf]
        %v8352 = vld [vmem:[#allocation7 + $0xac] sm:$0xf]
        %v8353 = vld [vmem:[#allocation7 + $0xb0] sm:$0xf]
        %v8354 = vld [vmem:[#allocation7 + $0xb4] sm:$0xf]
        %v8355 = vld [vmem:[#allocation7 + $0xb8] sm:$0xf]
        %v8356 = vld [vmem:[#allocation7 + $0xbc] sm:$0xf]
        %v8357 = vld [vmem:[#allocation7 + $0xc0] sm:$0xf]
        %v8358 = vld [vmem:[#allocation7 + $0xc4] sm:$0xf]
        %v8359 = vld [vmem:[#allocation7 + $0xc8] sm:$0xf]
        %v8360 = vld [vmem:[#allocation7 + $0xcc] sm:$0xf]
        %v8361 = vld [vmem:[#allocation7 + $0xd0] sm:$0xf]
        %v8362 = vld [vmem:[#allocation7 + $0xd4] sm:$0xf]
        %v8363 = vld [vmem:[#allocation7 + $0xd8] sm:$0xf]
        %v8364 = vld [vmem:[#allocation7 + $0xdc] sm:$0xf]
        %v8365 = vld [vmem:[#allocation7 + $0xe0] sm:$0xf]
        %v8366 = vld [vmem:[#allocation7 + $0xe4] sm:$0xf]
        %v8367 = vld [vmem:[#allocation7 + $0xe8] sm:$0xf]
        %v8368 = vld [vmem:[#allocation7 + $0xec] sm:$0xf]
        %v8369 = vld [vmem:[#allocation7 + $0xf0] sm:$0xf]
        %v8370 = vld [vmem:[#allocation7 + $0xf4] sm:$0xf]
        %v8371 = vld [vmem:[#allocation7 + $0xf8] sm:$0xf]
        %v8372 = vld [vmem:[#allocation7 + $0xfc] sm:$0xf]
        %v8373 = vld [vmem:[#allocation7 + $0x100] sm:$0xf]
        %v8374 = vld [vmem:[#allocation7 + $0x104] sm:$0xf]
        %v8375 = vld [vmem:[#allocation7 + $0x108] sm:$0xf]
        %v8376 = vld [vmem:[#allocation7 + $0x10c] sm:$0xf]
        %v8377 = vld [vmem:[#allocation7 + $0x110] sm:$0xf]
        %v8378 = vld [vmem:[#allocation7 + $0x114] sm:$0xf]
        %v8379 = vld [vmem:[#allocation7 + $0x118] sm:$0xf]
        %v8380 = vld [vmem:[#allocation7 + $0x11c] sm:$0xf]
        %v8381 = vld [vmem:[#allocation7 + $0x120] sm:$0xf]
        %v8382 = vld [vmem:[#allocation7 + $0x124] sm:$0xf]
        %v8383 = vld [vmem:[#allocation7 + $0x128] sm:$0xf]
        %v8384 = vld [vmem:[#allocation7 + $0x12c] sm:$0xf]
        %v8385 = vld [vmem:[#allocation7 + $0x130] sm:$0xf]
        %v8386 = vld [vmem:[#allocation7 + $0x134] sm:$0xf]
        %v8387 = vld [vmem:[#allocation7 + $0x138] sm:$0xf]
        %v8388 = vld [vmem:[#allocation7 + $0x13c] sm:$0xf]
        %v8389 = vld [vmem:[#allocation7 + $0x140] sm:$0xf]
        %v8390 = vld [vmem:[#allocation7 + $0x144] sm:$0xf]
        %v8391 = vld [vmem:[#allocation7 + $0x148] sm:$0xf]
        %v8392 = vld [vmem:[#allocation7 + $0x14c] sm:$0xf]
        %v8393 = vld [vmem:[#allocation7 + $0x150] sm:$0xf]
        %v8394 = vld [vmem:[#allocation7 + $0x154] sm:$0xf]
        %v8395 = vld [vmem:[#allocation7 + $0x158] sm:$0xf]
        %v8396 = vld [vmem:[#allocation7 + $0x15c] sm:$0xf]
        %v8397 = vld [vmem:[#allocation7 + $0x160] sm:$0xf]
        %v8398 = vld [vmem:[#allocation7 + $0x164] sm:$0xf]
        %v8399 = vld [vmem:[#allocation7 + $0x168] sm:$0xf]
        %v8400 = vld [vmem:[#allocation7 + $0x16c] sm:$0xf]
        %v8401 = vld [vmem:[#allocation7 + $0x170] sm:$0xf]
        %v8402 = vld [vmem:[#allocation7 + $0x174] sm:$0xf]
        %v8403 = vld [vmem:[#allocation7 + $0x178] sm:$0xf]
        %v8404 = vld [vmem:[#allocation7 + $0x17c] sm:$0xf]
        %v8405 = vld [vmem:[#allocation7 + $0x180] sm:$0xf]
        %v8406 = vld [vmem:[#allocation7 + $0x184] sm:$0xf]
        %v8407 = vld [vmem:[#allocation7 + $0x188] sm:$0xf]
        %v8408 = vld [vmem:[#allocation7 + $0x18c] sm:$0xf]
        %v8409 = vld [vmem:[#allocation7 + $0x190] sm:$0xf]
        %v8410 = vld [vmem:[#allocation7 + $0x194] sm:$0xf]
        %v8411 = vld [vmem:[#allocation7 + $0x198] sm:$0xf]
        %v8412 = vld [vmem:[#allocation7 + $0x19c] sm:$0xf]
        %v8413 = vld [vmem:[#allocation7 + $0x1a0] sm:$0xf]
        %v8414 = vld [vmem:[#allocation7 + $0x1a4] sm:$0xf]
        %v8415 = vld [vmem:[#allocation7 + $0x1a8] sm:$0xf]
        %v8416 = vld [vmem:[#allocation7 + $0x1ac] sm:$0xf]
        %v8417 = vld [vmem:[#allocation7 + $0x1b0] sm:$0xf]
        %v8418 = vld [vmem:[#allocation7 + $0x1b4] sm:$0xf]
        %v8419 = vld [vmem:[#allocation7 + $0x1b8] sm:$0xf]
        %v8420 = vld [vmem:[#allocation7 + $0x1bc] sm:$0xf]
        %v8421 = vld [vmem:[#allocation7 + $0x1c0] sm:$0xf]
        %v8422 = vld [vmem:[#allocation7 + $0x1c4] sm:$0xf]
        %v8423 = vld [vmem:[#allocation7 + $0x1c8] sm:$0xf]
        %v8424 = vld [vmem:[#allocation7 + $0x1cc] sm:$0xf]
        %v8425 = vld [vmem:[#allocation7 + $0x1d0] sm:$0xf]
        %v8426 = vld [vmem:[#allocation7 + $0x1d4] sm:$0xf]
        %v8427 = vld [vmem:[#allocation7 + $0x1d8] sm:$0xf]
        %v8428 = vld [vmem:[#allocation7 + $0x1dc] sm:$0xf]
        %v8429 = vld [vmem:[#allocation7 + $0x1e0] sm:$0xf]
        %v8430 = vld [vmem:[#allocation7 + $0x1e4] sm:$0xf]
        %v8431 = vld [vmem:[#allocation7 + $0x1e8] sm:$0xf]
        %v8432 = vld [vmem:[#allocation7 + $0x1ec] sm:$0xf]
        %v8433 = vld [vmem:[#allocation7 + $0x1f0] sm:$0xf]
        %v8434 = vld [vmem:[#allocation7 + $0x1f4] sm:$0xf]
        %v8435 = vld [vmem:[#allocation7 + $0x1f8] sm:$0xf]
        %v8436 = vld [vmem:[#allocation7 + $0x1fc] sm:$0xf]
        %v8437 = vld [vmem:[#allocation7 + $0x200] sm:$0xf]
        %v8438 = vld [vmem:[#allocation7 + $0x204] sm:$0xf]
        %v8439 = vld [vmem:[#allocation7 + $0x208] sm:$0xf]
        %v8440 = vld [vmem:[#allocation7 + $0x20c] sm:$0xf]
        %v8441 = vld [vmem:[#allocation7 + $0x210] sm:$0xf]
        %v8442 = vld [vmem:[#allocation7 + $0x214] sm:$0xf]
        %v8443 = vld [vmem:[#allocation7 + $0x218] sm:$0xf]
        %v8444 = vld [vmem:[#allocation7 + $0x21c] sm:$0xf]
        %v8445 = vld [vmem:[#allocation7 + $0x220] sm:$0xf]
        %v8446 = vld [vmem:[#allocation7 + $0x224] sm:$0xf]
        %v8447 = vld [vmem:[#allocation7 + $0x228] sm:$0xf]
        %v8448 = vld [vmem:[#allocation7 + $0x22c] sm:$0xf]
        %v8449 = vld [vmem:[#allocation7 + $0x230] sm:$0xf]
        %v8450 = vld [vmem:[#allocation7 + $0x234] sm:$0xf]
        %v8451 = vld [vmem:[#allocation7 + $0x238] sm:$0xf]
        %v8452 = vld [vmem:[#allocation7 + $0x23c] sm:$0xf]
        %v8453 = vld [vmem:[%s6] sm:$0x1]
        %v8455 = vperm.slane %v8453, 0
        %v8617 = vunpack.c.l.b16 %v8149
        %v8618 = vunpack.c.h.b16 %v8149
        %v8619 = vunpack.c.l.b16 %v8150
        %v8620 = vunpack.c.h.b16 %v8150
        %v8621 = vunpack.c.l.b16 %v8151
        %v8622 = vunpack.c.h.b16 %v8151
        %v8623 = vunpack.c.l.b16 %v8152
        %v8624 = vunpack.c.h.b16 %v8152
        %v8625 = vunpack.c.l.b16 %v8153
        %v8626 = vunpack.c.l.b16 %v8154
        %v8627 = vunpack.c.h.b16 %v8154
        %v8628 = vunpack.c.l.b16 %v8155
        %v8629 = vunpack.c.h.b16 %v8155
        %v8630 = vunpack.c.l.b16 %v8156
        %v8631 = vunpack.c.h.b16 %v8156
        %v8632 = vunpack.c.l.b16 %v8157
        %v8633 = vunpack.c.h.b16 %v8157
        %v8634 = vunpack.c.l.b16 %v8158
        %v8635 = vunpack.c.l.b16 %v8159
        %v8636 = vunpack.c.h.b16 %v8159
        %v8637 = vunpack.c.l.b16 %v8160
        %v8638 = vunpack.c.h.b16 %v8160
        %v8639 = vunpack.c.l.b16 %v8161
        %v8640 = vunpack.c.h.b16 %v8161
        %v8641 = vunpack.c.l.b16 %v8162
        %v8642 = vunpack.c.h.b16 %v8162
        %v8643 = vunpack.c.l.b16 %v8163
        %v8644 = vunpack.c.l.b16 %v8164
        %v8645 = vunpack.c.h.b16 %v8164
        %v8646 = vunpack.c.l.b16 %v8165
        %v8647 = vunpack.c.h.b16 %v8165
        %v8648 = vunpack.c.l.b16 %v8166
        %v8649 = vunpack.c.h.b16 %v8166
        %v8650 = vunpack.c.l.b16 %v8167
        %v8651 = vunpack.c.h.b16 %v8167
        %v8652 = vunpack.c.l.b16 %v8168
        %v8653 = vunpack.c.l.b16 %v8169
        %v8654 = vunpack.c.h.b16 %v8169
        %v8655 = vunpack.c.l.b16 %v8170
        %v8656 = vunpack.c.h.b16 %v8170
        %v8657 = vunpack.c.l.b16 %v8171
        %v8658 = vunpack.c.h.b16 %v8171
        %v8659 = vunpack.c.l.b16 %v8172
        %v8660 = vunpack.c.h.b16 %v8172
        %v8661 = vunpack.c.l.b16 %v8173
        %v8662 = vunpack.c.l.b16 %v8174
        %v8663 = vunpack.c.h.b16 %v8174
        %v8664 = vunpack.c.l.b16 %v8175
        %v8665 = vunpack.c.h.b16 %v8175
        %v8666 = vunpack.c.l.b16 %v8176
        %v8667 = vunpack.c.h.b16 %v8176
        %v8668 = vunpack.c.l.b16 %v8177
        %v8669 = vunpack.c.h.b16 %v8177
        %v8670 = vunpack.c.l.b16 %v8178
        %v8671 = vunpack.c.l.b16 %v8179
        %v8672 = vunpack.c.h.b16 %v8179
        %v8673 = vunpack.c.l.b16 %v8180
        %v8674 = vunpack.c.h.b16 %v8180
        %v8675 = vunpack.c.l.b16 %v8181
        %v8676 = vunpack.c.h.b16 %v8181
        %v8677 = vunpack.c.l.b16 %v8182
        %v8678 = vunpack.c.h.b16 %v8182
        %v8679 = vunpack.c.l.b16 %v8183
        %v8680 = vunpack.c.l.b16 %v8184
        %v8681 = vunpack.c.h.b16 %v8184
        %v8682 = vunpack.c.l.b16 %v8185
        %v8683 = vunpack.c.h.b16 %v8185
        %v8684 = vunpack.c.l.b16 %v8186
        %v8685 = vunpack.c.h.b16 %v8186
        %v8686 = vunpack.c.l.b16 %v8187
        %v8687 = vunpack.c.h.b16 %v8187
        %v8688 = vunpack.c.l.b16 %v8188
        %v8689 = vunpack.c.l.b16 %v8189
        %v8690 = vunpack.c.h.b16 %v8189
        %v8691 = vunpack.c.l.b16 %v8190
        %v8692 = vunpack.c.h.b16 %v8190
        %v8693 = vunpack.c.l.b16 %v8191
        %v8694 = vunpack.c.h.b16 %v8191
        %v8695 = vunpack.c.l.b16 %v8192
        %v8696 = vunpack.c.h.b16 %v8192
        %v8697 = vunpack.c.l.b16 %v8193
        %v8698 = vunpack.c.l.b16 %v8194
        %v8699 = vunpack.c.h.b16 %v8194
        %v8700 = vunpack.c.l.b16 %v8195
        %v8701 = vunpack.c.h.b16 %v8195
        %v8702 = vunpack.c.l.b16 %v8196
        %v8703 = vunpack.c.h.b16 %v8196
        %v8704 = vunpack.c.l.b16 %v8197
        %v8705 = vunpack.c.h.b16 %v8197
        %v8706 = vunpack.c.l.b16 %v8198
        %v8707 = vunpack.c.l.b16 %v8199
        %v8708 = vunpack.c.h.b16 %v8199
        %v8709 = vunpack.c.l.b16 %v8200
        %v8710 = vunpack.c.h.b16 %v8200
        %v8711 = vunpack.c.l.b16 %v8201
        %v8712 = vunpack.c.h.b16 %v8201
        %v8713 = vunpack.c.l.b16 %v8202
        %v8714 = vunpack.c.h.b16 %v8202
        %v8715 = vunpack.c.l.b16 %v8203
        %v8716 = vunpack.c.l.b16 %v8204
        %v8717 = vunpack.c.h.b16 %v8204
        %v8718 = vunpack.c.l.b16 %v8205
        %v8719 = vunpack.c.h.b16 %v8205
        %v8720 = vunpack.c.l.b16 %v8206
        %v8721 = vunpack.c.h.b16 %v8206
        %v8722 = vunpack.c.l.b16 %v8207
        %v8723 = vunpack.c.h.b16 %v8207
        %v8724 = vunpack.c.l.b16 %v8208
        %v8725 = vunpack.c.l.b16 %v8209
        %v8726 = vunpack.c.h.b16 %v8209
        %v8727 = vunpack.c.l.b16 %v8210
        %v8728 = vunpack.c.h.b16 %v8210
        %v8729 = vunpack.c.l.b16 %v8211
        %v8730 = vunpack.c.h.b16 %v8211
        %v8731 = vunpack.c.l.b16 %v8212
        %v8732 = vunpack.c.h.b16 %v8212
        %v8733 = vunpack.c.l.b16 %v8213
        %v8734 = vunpack.c.l.b16 %v8214
        %v8735 = vunpack.c.h.b16 %v8214
        %v8736 = vunpack.c.l.b16 %v8215
        %v8737 = vunpack.c.h.b16 %v8215
        %v8738 = vunpack.c.l.b16 %v8216
        %v8739 = vunpack.c.h.b16 %v8216
        %v8740 = vunpack.c.l.b16 %v8217
        %v8741 = vunpack.c.h.b16 %v8217
        %v8742 = vunpack.c.l.b16 %v8218
        %v8743 = vunpack.c.l.b16 %v8219
        %v8744 = vunpack.c.h.b16 %v8219
        %v8745 = vunpack.c.l.b16 %v8220
        %v8746 = vunpack.c.h.b16 %v8220
        %v8747 = vunpack.c.l.b16 %v8221
        %v8748 = vunpack.c.h.b16 %v8221
        %v8749 = vunpack.c.l.b16 %v8222
        %v8750 = vunpack.c.h.b16 %v8222
        %v8751 = vunpack.c.l.b16 %v8223
        %v8752 = vunpack.c.l.b16 %v8224
        %v8753 = vunpack.c.h.b16 %v8224
        %v8754 = vunpack.c.l.b16 %v8225
        %v8755 = vunpack.c.h.b16 %v8225
        %v8756 = vunpack.c.l.b16 %v8226
        %v8757 = vunpack.c.h.b16 %v8226
        %v8758 = vunpack.c.l.b16 %v8227
        %v8759 = vunpack.c.h.b16 %v8227
        %v8760 = vunpack.c.l.b16 %v8228
        %v8761 = vunpack.c.l.b16 %v8229
        %v8762 = vunpack.c.h.b16 %v8229
        %v8763 = vunpack.c.l.b16 %v8230
        %v8764 = vunpack.c.h.b16 %v8230
        %v8765 = vunpack.c.l.b16 %v8231
        %v8766 = vunpack.c.h.b16 %v8231
        %v8767 = vunpack.c.l.b16 %v8232
        %v8768 = vunpack.c.h.b16 %v8232
        %v8769 = vunpack.c.l.b16 %v8233
        %v8770 = vunpack.c.l.b16 %v8234
        %v8771 = vunpack.c.h.b16 %v8234
        %v8772 = vunpack.c.l.b16 %v8235
        %v8773 = vunpack.c.h.b16 %v8235
        %v8774 = vunpack.c.l.b16 %v8236
        %v8775 = vunpack.c.h.b16 %v8236
        %v8776 = vunpack.c.l.b16 %v8237
        %v8777 = vunpack.c.h.b16 %v8237
        %v8778 = vunpack.c.l.b16 %v8238
        %v8779 = vunpack.c.l.b16 %v8239
        %v8780 = vunpack.c.h.b16 %v8239
        %v8781 = vunpack.c.l.b16 %v8240
        %v8782 = vunpack.c.h.b16 %v8240
        %v8783 = vunpack.c.l.b16 %v8241
        %v8784 = vunpack.c.h.b16 %v8241
        %v8785 = vunpack.c.l.b16 %v8242
        %v8786 = vunpack.c.h.b16 %v8242
        %v8787 = vunpack.c.l.b16 %v8243
        %v8788 = vunpack.c.l.b16 %v8244
        %v8789 = vunpack.c.h.b16 %v8244
        %v8790 = vunpack.c.l.b16 %v8245
        %v8791 = vunpack.c.h.b16 %v8245
        %v8792 = vunpack.c.l.b16 %v8246
        %v8793 = vunpack.c.h.b16 %v8246
        %v8794 = vunpack.c.l.b16 %v8247
        %v8795 = vunpack.c.h.b16 %v8247
        %v8796 = vunpack.c.l.b16 %v8248
        %v8797 = vunpack.c.l.b16 %v8249
        %v8798 = vunpack.c.h.b16 %v8249
        %v8799 = vunpack.c.l.b16 %v8250
        %v8800 = vunpack.c.h.b16 %v8250
        %v8801 = vunpack.c.l.b16 %v8251
        %v8802 = vunpack.c.h.b16 %v8251
        %v8803 = vunpack.c.l.b16 %v8252
        %v8804 = vunpack.c.h.b16 %v8252
        %v8805 = vunpack.c.l.b16 %v8253
        %v8806 = vunpack.c.l.b16 %v8254
        %v8807 = vunpack.c.h.b16 %v8254
        %v8808 = vunpack.c.l.b16 %v8255
        %v8809 = vunpack.c.h.b16 %v8255
        %v8810 = vunpack.c.l.b16 %v8256
        %v8811 = vunpack.c.h.b16 %v8256
        %v8812 = vunpack.c.l.b16 %v8257
        %v8813 = vunpack.c.h.b16 %v8257
        %v8814 = vunpack.c.l.b16 %v8258
        %v8815 = vunpack.c.l.b16 %v8259
        %v8816 = vunpack.c.h.b16 %v8259
        %v8817 = vunpack.c.l.b16 %v8260
        %v8818 = vunpack.c.h.b16 %v8260
        %v8819 = vunpack.c.l.b16 %v8261
        %v8820 = vunpack.c.h.b16 %v8261
        %v8821 = vunpack.c.l.b16 %v8262
        %v8822 = vunpack.c.h.b16 %v8262
        %v8823 = vunpack.c.l.b16 %v8263
        %v8824 = vunpack.c.l.b16 %v8264
        %v8825 = vunpack.c.h.b16 %v8264
        %v8826 = vunpack.c.l.b16 %v8265
        %v8827 = vunpack.c.h.b16 %v8265
        %v8828 = vunpack.c.l.b16 %v8266
        %v8829 = vunpack.c.h.b16 %v8266
        %v8830 = vunpack.c.l.b16 %v8267
        %v8831 = vunpack.c.h.b16 %v8267
        %v8832 = vunpack.c.l.b16 %v8268
        %v8833 = vunpack.c.l.b16 %v8269
        %v8834 = vunpack.c.h.b16 %v8269
        %v8835 = vunpack.c.l.b16 %v8270
        %v8836 = vunpack.c.h.b16 %v8270
        %v8837 = vunpack.c.l.b16 %v8271
        %v8838 = vunpack.c.h.b16 %v8271
        %v8839 = vunpack.c.l.b16 %v8272
        %v8840 = vunpack.c.h.b16 %v8272
        %v8841 = vunpack.c.l.b16 %v8273
        %v8842 = vunpack.c.l.b16 %v8274
        %v8843 = vunpack.c.h.b16 %v8274
        %v8844 = vunpack.c.l.b16 %v8275
        %v8845 = vunpack.c.h.b16 %v8275
        %v8846 = vunpack.c.l.b16 %v8276
        %v8847 = vunpack.c.h.b16 %v8276
        %v8848 = vunpack.c.l.b16 %v8277
        %v8849 = vunpack.c.h.b16 %v8277
        %v8850 = vunpack.c.l.b16 %v8278
        %v8851 = vunpack.c.l.b16 %v8279
        %v8852 = vunpack.c.h.b16 %v8279
        %v8853 = vunpack.c.l.b16 %v8280
        %v8854 = vunpack.c.h.b16 %v8280
        %v8855 = vunpack.c.l.b16 %v8281
        %v8856 = vunpack.c.h.b16 %v8281
        %v8857 = vunpack.c.l.b16 %v8282
        %v8858 = vunpack.c.h.b16 %v8282
        %v8859 = vunpack.c.l.b16 %v8283
        %v8860 = vunpack.c.l.b16 %v8284
        %v8861 = vunpack.c.h.b16 %v8284
        %v8862 = vunpack.c.l.b16 %v8285
        %v8863 = vunpack.c.h.b16 %v8285
        %v8864 = vunpack.c.l.b16 %v8286
        %v8865 = vunpack.c.h.b16 %v8286
        %v8866 = vunpack.c.l.b16 %v8287
        %v8867 = vunpack.c.h.b16 %v8287
        %v8868 = vunpack.c.l.b16 %v8288
        %v8869 = vunpack.c.l.b16 %v8289
        %v8870 = vunpack.c.h.b16 %v8289
        %v8871 = vunpack.c.l.b16 %v8290
        %v8872 = vunpack.c.h.b16 %v8290
        %v8873 = vunpack.c.l.b16 %v8291
        %v8874 = vunpack.c.h.b16 %v8291
        %v8875 = vunpack.c.l.b16 %v8292
        %v8876 = vunpack.c.h.b16 %v8292
        %v8877 = vunpack.c.l.b16 %v8293
        %v8878 = vunpack.c.l.b16 %v8294
        %v8879 = vunpack.c.h.b16 %v8294
        %v8880 = vunpack.c.l.b16 %v8295
        %v8881 = vunpack.c.h.b16 %v8295
        %v8882 = vunpack.c.l.b16 %v8296
        %v8883 = vunpack.c.h.b16 %v8296
        %v8884 = vunpack.c.l.b16 %v8297
        %v8885 = vunpack.c.h.b16 %v8297
        %v8886 = vunpack.c.l.b16 %v8298
        %v8887 = vunpack.c.l.b16 %v8299
        %v8888 = vunpack.c.h.b16 %v8299
        %v8889 = vunpack.c.l.b16 %v8300
        %v8890 = vunpack.c.h.b16 %v8300
        %v8891 = vunpack.c.l.b16 %v8301
        %v8892 = vunpack.c.h.b16 %v8301
        %v8893 = vunpack.c.l.b16 %v8302
        %v8894 = vunpack.c.h.b16 %v8302
        %v8895 = vunpack.c.l.b16 %v8303
        %v8896 = vunpack.c.l.b16 %v8304
        %v8897 = vunpack.c.h.b16 %v8304
        %v8898 = vunpack.c.l.b16 %v8305
        %v8899 = vunpack.c.h.b16 %v8305
        %v8900 = vunpack.c.l.b16 %v8306
        %v8901 = vunpack.c.h.b16 %v8306
        %v8902 = vunpack.c.l.b16 %v8307
        %v8903 = vunpack.c.h.b16 %v8307
        %v8904 = vunpack.c.l.b16 %v8308
        %v8905 = vpack.c.b16 %v8626, %v8617
        %v8906 = vpack.c.b16 %v8627, %v8618
        %v8907 = vpack.c.b16 %v8628, %v8619
        %v8908 = vpack.c.b16 %v8629, %v8620
        %v8909 = vpack.c.b16 %v8630, %v8621
        %v8910 = vpack.c.b16 %v8631, %v8622
        %v8911 = vpack.c.b16 %v8632, %v8623
        %v8912 = vpack.c.b16 %v8633, %v8624
        %v8913 = vpack.c.b16 %v8634, %v8625
        %v8914 = vpack.c.b16 %v8644, %v8635
        %v8915 = vpack.c.b16 %v8645, %v8636
        %v8916 = vpack.c.b16 %v8646, %v8637
        %v8917 = vpack.c.b16 %v8647, %v8638
        %v8918 = vpack.c.b16 %v8648, %v8639
        %v8919 = vpack.c.b16 %v8649, %v8640
        %v8920 = vpack.c.b16 %v8650, %v8641
        %v8921 = vpack.c.b16 %v8651, %v8642
        %v8922 = vpack.c.b16 %v8652, %v8643
        %v8923 = vpack.c.b16 %v8662, %v8653
        %v8924 = vpack.c.b16 %v8663, %v8654
        %v8925 = vpack.c.b16 %v8664, %v8655
        %v8926 = vpack.c.b16 %v8665, %v8656
        %v8927 = vpack.c.b16 %v8666, %v8657
        %v8928 = vpack.c.b16 %v8667, %v8658
        %v8929 = vpack.c.b16 %v8668, %v8659
        %v8930 = vpack.c.b16 %v8669, %v8660
        %v8931 = vpack.c.b16 %v8670, %v8661
        %v8932 = vpack.c.b16 %v8680, %v8671
        %v8933 = vpack.c.b16 %v8681, %v8672
        %v8934 = vpack.c.b16 %v8682, %v8673
        %v8935 = vpack.c.b16 %v8683, %v8674
        %v8936 = vpack.c.b16 %v8684, %v8675
        %v8937 = vpack.c.b16 %v8685, %v8676
        %v8938 = vpack.c.b16 %v8686, %v8677
        %v8939 = vpack.c.b16 %v8687, %v8678
        %v8940 = vpack.c.b16 %v8688, %v8679
        %v8941 = vpack.c.b16 %v8698, %v8689
        %v8942 = vpack.c.b16 %v8699, %v8690
        %v8943 = vpack.c.b16 %v8700, %v8691
        %v8944 = vpack.c.b16 %v8701, %v8692
        %v8945 = vpack.c.b16 %v8702, %v8693
        %v8946 = vpack.c.b16 %v8703, %v8694
        %v8947 = vpack.c.b16 %v8704, %v8695
        %v8948 = vpack.c.b16 %v8705, %v8696
        %v8949 = vpack.c.b16 %v8706, %v8697
        %v8950 = vpack.c.b16 %v8716, %v8707
        %v8951 = vpack.c.b16 %v8717, %v8708
        %v8952 = vpack.c.b16 %v8718, %v8709
        %v8953 = vpack.c.b16 %v8719, %v8710
        %v8954 = vpack.c.b16 %v8720, %v8711
        %v8955 = vpack.c.b16 %v8721, %v8712
        %v8956 = vpack.c.b16 %v8722, %v8713
        %v8957 = vpack.c.b16 %v8723, %v8714
        %v8958 = vpack.c.b16 %v8724, %v8715
        %v8959 = vpack.c.b16 %v8734, %v8725
        %v8960 = vpack.c.b16 %v8735, %v8726
        %v8961 = vpack.c.b16 %v8736, %v8727
        %v8962 = vpack.c.b16 %v8737, %v8728
        %v8963 = vpack.c.b16 %v8738, %v8729
        %v8964 = vpack.c.b16 %v8739, %v8730
        %v8965 = vpack.c.b16 %v8740, %v8731
        %v8966 = vpack.c.b16 %v8741, %v8732
        %v8967 = vpack.c.b16 %v8742, %v8733
        %v8968 = vpack.c.b16 %v8752, %v8743
        %v8969 = vpack.c.b16 %v8753, %v8744
        %v8970 = vpack.c.b16 %v8754, %v8745
        %v8971 = vpack.c.b16 %v8755, %v8746
        %v8972 = vpack.c.b16 %v8756, %v8747
        %v8973 = vpack.c.b16 %v8757, %v8748
        %v8974 = vpack.c.b16 %v8758, %v8749
        %v8975 = vpack.c.b16 %v8759, %v8750
        %v8976 = vpack.c.b16 %v8760, %v8751
        %v8977 = vpack.c.b16 %v8770, %v8761
        %v8978 = vpack.c.b16 %v8771, %v8762
        %v8979 = vpack.c.b16 %v8772, %v8763
        %v8980 = vpack.c.b16 %v8773, %v8764
        %v8981 = vpack.c.b16 %v8774, %v8765
        %v8982 = vpack.c.b16 %v8775, %v8766
        %v8983 = vpack.c.b16 %v8776, %v8767
        %v8984 = vpack.c.b16 %v8777, %v8768
        %v8985 = vpack.c.b16 %v8778, %v8769
        %v8986 = vpack.c.b16 %v8788, %v8779
        %v8987 = vpack.c.b16 %v8789, %v8780
        %v8988 = vpack.c.b16 %v8790, %v8781
        %v8989 = vpack.c.b16 %v8791, %v8782
        %v8990 = vpack.c.b16 %v8792, %v8783
        %v8991 = vpack.c.b16 %v8793, %v8784
        %v8992 = vpack.c.b16 %v8794, %v8785
        %v8993 = vpack.c.b16 %v8795, %v8786
        %v8994 = vpack.c.b16 %v8796, %v8787
        %v8995 = vpack.c.b16 %v8806, %v8797
        %v8996 = vpack.c.b16 %v8807, %v8798
        %v8997 = vpack.c.b16 %v8808, %v8799
        %v8998 = vpack.c.b16 %v8809, %v8800
        %v8999 = vpack.c.b16 %v8810, %v8801
        %v9000 = vpack.c.b16 %v8811, %v8802
        %v9001 = vpack.c.b16 %v8812, %v8803
        %v9002 = vpack.c.b16 %v8813, %v8804
        %v9003 = vpack.c.b16 %v8814, %v8805
        %v9004 = vpack.c.b16 %v8824, %v8815
        %v9005 = vpack.c.b16 %v8825, %v8816
        %v9006 = vpack.c.b16 %v8826, %v8817
        %v9007 = vpack.c.b16 %v8827, %v8818
        %v9008 = vpack.c.b16 %v8828, %v8819
        %v9009 = vpack.c.b16 %v8829, %v8820
        %v9010 = vpack.c.b16 %v8830, %v8821
        %v9011 = vpack.c.b16 %v8831, %v8822
        %v9012 = vpack.c.b16 %v8832, %v8823
        %v9013 = vpack.c.b16 %v8842, %v8833
        %v9014 = vpack.c.b16 %v8843, %v8834
        %v9015 = vpack.c.b16 %v8844, %v8835
        %v9016 = vpack.c.b16 %v8845, %v8836
        %v9017 = vpack.c.b16 %v8846, %v8837
        %v9018 = vpack.c.b16 %v8847, %v8838
        %v9019 = vpack.c.b16 %v8848, %v8839
        %v9020 = vpack.c.b16 %v8849, %v8840
        %v9021 = vpack.c.b16 %v8850, %v8841
        %v9022 = vpack.c.b16 %v8860, %v8851
        %v9023 = vpack.c.b16 %v8861, %v8852
        %v9024 = vpack.c.b16 %v8862, %v8853
        %v9025 = vpack.c.b16 %v8863, %v8854
        %v9026 = vpack.c.b16 %v8864, %v8855
        %v9027 = vpack.c.b16 %v8865, %v8856
        %v9028 = vpack.c.b16 %v8866, %v8857
        %v9029 = vpack.c.b16 %v8867, %v8858
        %v9030 = vpack.c.b16 %v8868, %v8859
        %v9031 = vpack.c.b16 %v8878, %v8869
        %v9032 = vpack.c.b16 %v8879, %v8870
        %v9033 = vpack.c.b16 %v8880, %v8871
        %v9034 = vpack.c.b16 %v8881, %v8872
        %v9035 = vpack.c.b16 %v8882, %v8873
        %v9036 = vpack.c.b16 %v8883, %v8874
        %v9037 = vpack.c.b16 %v8884, %v8875
        %v9038 = vpack.c.b16 %v8885, %v8876
        %v9039 = vpack.c.b16 %v8886, %v8877
        %v9040 = vpack.c.b16 %v8896, %v8887
        %v9041 = vpack.c.b16 %v8897, %v8888
        %v9042 = vpack.c.b16 %v8898, %v8889
        %v9043 = vpack.c.b16 %v8899, %v8890
        %v9044 = vpack.c.b16 %v8900, %v8891
        %v9045 = vpack.c.b16 %v8901, %v8892
        %v9046 = vpack.c.b16 %v8902, %v8893
        %v9047 = vpack.c.b16 %v8903, %v8894
        %v9048 = vpack.c.b16 %v8904, %v8895
        %v9337 = vunpack.c.l.b16 %v8309
        %v9338 = vunpack.c.l.b16 %v8310
        %v9339 = vunpack.c.l.b16 %v8311
        %v9340 = vunpack.c.l.b16 %v8312
        %v9341 = vunpack.c.l.b16 %v8313
        %v9342 = vunpack.c.l.b16 %v8314
        %v9343 = vunpack.c.l.b16 %v8315
        %v9344 = vunpack.c.l.b16 %v8316
        %v9345 = vunpack.c.l.b16 %v8317
        %v9346 = vunpack.c.l.b16 %v8318
        %v9347 = vunpack.c.l.b16 %v8319
        %v9348 = vunpack.c.l.b16 %v8320
        %v9349 = vunpack.c.l.b16 %v8321
        %v9350 = vunpack.c.l.b16 %v8322
        %v9351 = vunpack.c.l.b16 %v8323
        %v9352 = vunpack.c.l.b16 %v8324
        %v9353 = vunpack.c.l.b16 %v8325
        %v9354 = vunpack.c.l.b16 %v8326
        %v9355 = vunpack.c.l.b16 %v8327
        %v9356 = vunpack.c.l.b16 %v8328
        %v9357 = vunpack.c.l.b16 %v8329
        %v9358 = vunpack.c.l.b16 %v8330
        %v9359 = vunpack.c.l.b16 %v8331
        %v9360 = vunpack.c.l.b16 %v8332
        %v9361 = vunpack.c.l.b16 %v8333
        %v9362 = vunpack.c.l.b16 %v8334
        %v9363 = vunpack.c.l.b16 %v8335
        %v9364 = vunpack.c.l.b16 %v8336
        %v9365 = vunpack.c.l.b16 %v8337
        %v9366 = vunpack.c.l.b16 %v8338
        %v9367 = vunpack.c.l.b16 %v8339
        %v9368 = vunpack.c.l.b16 %v8340
        %v9369 = vunpack.c.l.b16 %v8341
        %v9370 = vunpack.c.l.b16 %v8342
        %v9371 = vunpack.c.l.b16 %v8343
        %v9372 = vunpack.c.l.b16 %v8344
        %v9373 = vunpack.c.l.b16 %v8345
        %v9374 = vunpack.c.l.b16 %v8346
        %v9375 = vunpack.c.l.b16 %v8347
        %v9376 = vunpack.c.l.b16 %v8348
        %v9377 = vunpack.c.l.b16 %v8349
        %v9378 = vunpack.c.l.b16 %v8350
        %v9379 = vunpack.c.l.b16 %v8351
        %v9380 = vunpack.c.l.b16 %v8352
        %v9381 = vunpack.c.l.b16 %v8353
        %v9382 = vunpack.c.l.b16 %v8354
        %v9383 = vunpack.c.l.b16 %v8355
        %v9384 = vunpack.c.l.b16 %v8356
        %v9385 = vunpack.c.l.b16 %v8357
        %v9386 = vunpack.c.l.b16 %v8358
        %v9387 = vunpack.c.l.b16 %v8359
        %v9388 = vunpack.c.l.b16 %v8360
        %v9389 = vunpack.c.l.b16 %v8361
        %v9390 = vunpack.c.l.b16 %v8362
        %v9391 = vunpack.c.l.b16 %v8363
        %v9392 = vunpack.c.l.b16 %v8364
        %v9393 = vunpack.c.l.b16 %v8365
        %v9394 = vunpack.c.l.b16 %v8366
        %v9395 = vunpack.c.l.b16 %v8367
        %v9396 = vunpack.c.l.b16 %v8368
        %v9397 = vunpack.c.l.b16 %v8369
        %v9398 = vunpack.c.l.b16 %v8370
        %v9399 = vunpack.c.l.b16 %v8371
        %v9400 = vunpack.c.l.b16 %v8372
        %v9401 = vunpack.c.l.b16 %v8373
        %v9402 = vunpack.c.l.b16 %v8374
        %v9403 = vunpack.c.l.b16 %v8375
        %v9404 = vunpack.c.l.b16 %v8376
        %v9405 = vunpack.c.l.b16 %v8377
        %v9406 = vunpack.c.l.b16 %v8378
        %v9407 = vunpack.c.l.b16 %v8379
        %v9408 = vunpack.c.l.b16 %v8380
        %v9409 = vunpack.c.l.b16 %v8381
        %v9410 = vunpack.c.l.b16 %v8382
        %v9411 = vunpack.c.l.b16 %v8383
        %v9412 = vunpack.c.l.b16 %v8384
        %v9413 = vunpack.c.l.b16 %v8385
        %v9414 = vunpack.c.l.b16 %v8386
        %v9415 = vunpack.c.l.b16 %v8387
        %v9416 = vunpack.c.l.b16 %v8388
        %v9417 = vunpack.c.l.b16 %v8389
        %v9418 = vunpack.c.l.b16 %v8390
        %v9419 = vunpack.c.l.b16 %v8391
        %v9420 = vunpack.c.l.b16 %v8392
        %v9421 = vunpack.c.l.b16 %v8393
        %v9422 = vunpack.c.l.b16 %v8394
        %v9423 = vunpack.c.l.b16 %v8395
        %v9424 = vunpack.c.l.b16 %v8396
        %v9425 = vunpack.c.l.b16 %v8397
        %v9426 = vunpack.c.l.b16 %v8398
        %v9427 = vunpack.c.l.b16 %v8399
        %v9428 = vunpack.c.l.b16 %v8400
        %v9429 = vunpack.c.l.b16 %v8401
        %v9430 = vunpack.c.l.b16 %v8402
        %v9431 = vunpack.c.l.b16 %v8403
        %v9432 = vunpack.c.l.b16 %v8404
        %v9433 = vunpack.c.l.b16 %v8405
        %v9434 = vunpack.c.l.b16 %v8406
        %v9435 = vunpack.c.l.b16 %v8407
        %v9436 = vunpack.c.l.b16 %v8408
        %v9437 = vunpack.c.l.b16 %v8409
        %v9438 = vunpack.c.l.b16 %v8410
        %v9439 = vunpack.c.l.b16 %v8411
        %v9440 = vunpack.c.l.b16 %v8412
        %v9441 = vunpack.c.l.b16 %v8413
        %v9442 = vunpack.c.l.b16 %v8414
        %v9443 = vunpack.c.l.b16 %v8415
        %v9444 = vunpack.c.l.b16 %v8416
        %v9445 = vunpack.c.l.b16 %v8417
        %v9446 = vunpack.c.l.b16 %v8418
        %v9447 = vunpack.c.l.b16 %v8419
        %v9448 = vunpack.c.l.b16 %v8420
        %v9449 = vunpack.c.l.b16 %v8421
        %v9450 = vunpack.c.l.b16 %v8422
        %v9451 = vunpack.c.l.b16 %v8423
        %v9452 = vunpack.c.l.b16 %v8424
        %v9453 = vunpack.c.l.b16 %v8425
        %v9454 = vunpack.c.l.b16 %v8426
        %v9455 = vunpack.c.l.b16 %v8427
        %v9456 = vunpack.c.l.b16 %v8428
        %v9457 = vunpack.c.l.b16 %v8429
        %v9458 = vunpack.c.l.b16 %v8430
        %v9459 = vunpack.c.l.b16 %v8431
        %v9460 = vunpack.c.l.b16 %v8432
        %v9461 = vunpack.c.l.b16 %v8433
        %v9462 = vunpack.c.l.b16 %v8434
        %v9463 = vunpack.c.l.b16 %v8435
        %v9464 = vunpack.c.l.b16 %v8436
        %v9465 = vunpack.c.l.b16 %v8437
        %v9466 = vunpack.c.l.b16 %v8438
        %v9467 = vunpack.c.l.b16 %v8439
        %v9468 = vunpack.c.l.b16 %v8440
        %v9469 = vunpack.c.l.b16 %v8441
        %v9470 = vunpack.c.l.b16 %v8442
        %v9471 = vunpack.c.l.b16 %v8443
        %v9472 = vunpack.c.l.b16 %v8444
        %v9473 = vunpack.c.l.b16 %v8445
        %v9474 = vunpack.c.l.b16 %v8446
        %v9475 = vunpack.c.l.b16 %v8447
        %v9476 = vunpack.c.l.b16 %v8448
        %v9477 = vunpack.c.l.b16 %v8449
        %v9478 = vunpack.c.l.b16 %v8450
        %v9479 = vunpack.c.l.b16 %v8451
        %v9480 = vunpack.c.l.b16 %v8452
        %v9481 = vpack.c.b16 %v9338, %v9337
        %v9482 = vpack.c.b16 %v9340, %v9339
        %v9483 = vpack.c.b16 %v9342, %v9341
        %v9484 = vpack.c.b16 %v9344, %v9343
        %v9485 = vpack.c.b16 %v9346, %v9345
        %v9486 = vpack.c.b16 %v9348, %v9347
        %v9487 = vpack.c.b16 %v9350, %v9349
        %v9488 = vpack.c.b16 %v9352, %v9351
        %v9489 = vpack.c.b16 %v9354, %v9353
        %v9490 = vpack.c.b16 %v9356, %v9355
        %v9491 = vpack.c.b16 %v9358, %v9357
        %v9492 = vpack.c.b16 %v9360, %v9359
        %v9493 = vpack.c.b16 %v9362, %v9361
        %v9494 = vpack.c.b16 %v9364, %v9363
        %v9495 = vpack.c.b16 %v9366, %v9365
        %v9496 = vpack.c.b16 %v9368, %v9367
        %v9497 = vpack.c.b16 %v9370, %v9369
        %v9498 = vpack.c.b16 %v9372, %v9371
        %v9499 = vpack.c.b16 %v9374, %v9373
        %v9500 = vpack.c.b16 %v9376, %v9375
        %v9501 = vpack.c.b16 %v9378, %v9377
        %v9502 = vpack.c.b16 %v9380, %v9379
        %v9503 = vpack.c.b16 %v9382, %v9381
        %v9504 = vpack.c.b16 %v9384, %v9383
        %v9505 = vpack.c.b16 %v9386, %v9385
        %v9506 = vpack.c.b16 %v9388, %v9387
        %v9507 = vpack.c.b16 %v9390, %v9389
        %v9508 = vpack.c.b16 %v9392, %v9391
        %v9509 = vpack.c.b16 %v9394, %v9393
        %v9510 = vpack.c.b16 %v9396, %v9395
        %v9511 = vpack.c.b16 %v9398, %v9397
        %v9512 = vpack.c.b16 %v9400, %v9399
        %v9513 = vpack.c.b16 %v9402, %v9401
        %v9514 = vpack.c.b16 %v9404, %v9403
        %v9515 = vpack.c.b16 %v9406, %v9405
        %v9516 = vpack.c.b16 %v9408, %v9407
        %v9517 = vpack.c.b16 %v9410, %v9409
        %v9518 = vpack.c.b16 %v9412, %v9411
        %v9519 = vpack.c.b16 %v9414, %v9413
        %v9520 = vpack.c.b16 %v9416, %v9415
        %v9521 = vpack.c.b16 %v9418, %v9417
        %v9522 = vpack.c.b16 %v9420, %v9419
        %v9523 = vpack.c.b16 %v9422, %v9421
        %v9524 = vpack.c.b16 %v9424, %v9423
        %v9525 = vpack.c.b16 %v9426, %v9425
        %v9526 = vpack.c.b16 %v9428, %v9427
        %v9527 = vpack.c.b16 %v9430, %v9429
        %v9528 = vpack.c.b16 %v9432, %v9431
        %v9529 = vpack.c.b16 %v9434, %v9433
        %v9530 = vpack.c.b16 %v9436, %v9435
        %v9531 = vpack.c.b16 %v9438, %v9437
        %v9532 = vpack.c.b16 %v9440, %v9439
        %v9533 = vpack.c.b16 %v9442, %v9441
        %v9534 = vpack.c.b16 %v9444, %v9443
        %v9535 = vpack.c.b16 %v9446, %v9445
        %v9536 = vpack.c.b16 %v9448, %v9447
        %v9537 = vpack.c.b16 %v9450, %v9449
        %v9538 = vpack.c.b16 %v9452, %v9451
        %v9539 = vpack.c.b16 %v9454, %v9453
        %v9540 = vpack.c.b16 %v9456, %v9455
        %v9541 = vpack.c.b16 %v9458, %v9457
        %v9542 = vpack.c.b16 %v9460, %v9459
        %v9543 = vpack.c.b16 %v9462, %v9461
        %v9544 = vpack.c.b16 %v9464, %v9463
        %v9545 = vpack.c.b16 %v9466, %v9465
        %v9546 = vpack.c.b16 %v9468, %v9467
        %v9547 = vpack.c.b16 %v9470, %v9469
        %v9548 = vpack.c.b16 %v9472, %v9471
        %v9549 = vpack.c.b16 %v9474, %v9473
        %v9550 = vpack.c.b16 %v9476, %v9475
        %v9551 = vpack.c.b16 %v9478, %v9477
        %v9552 = vpack.c.b16 %v9480, %v9479
        %9625 = vmatpush.bf16.msra.mxu0 %v9488
        %9626 = vmatpush.bf16.msra.mxu0 %v9487
        %9627 = vmatpush.bf16.msra.mxu0 %v9486
        %9628 = vmatpush.bf16.msra.mxu0 %v9485
        %9629 = vmatpush.bf16.msra.mxu0 %v9484
        %9630 = vmatpush.bf16.msra.mxu0 %v9483
        %9631 = vmatpush.bf16.msra.mxu0 %v9482
        %9632 = vmatpush.bf16.msra.mxu0 %v9481
        %9633 = vmatmul.bf16.gmra.mxu0 %v8905
        %v9634 = vpop.f32.mrf.mxu0
        %v9635 = vadd.f32 %v8455, %v9634
        %v9636 = vpop.f32.mrf.mxu0
        %v9637 = vadd.f32 %v8455, %v9636
        %9638 = vmatmul.bf16.gmra.mxu0 %v8914
        %v9639 = vpop.f32.mrf.mxu0
        %v9640 = vadd.f32 %v8455, %v9639
        %v9641 = vpop.f32.mrf.mxu0
        %v9642 = vadd.f32 %v8455, %v9641
        %9643 = vmatmul.bf16.gmra.mxu0 %v8923
        %v9644 = vpop.f32.mrf.mxu0
        %v9645 = vadd.f32 %v8455, %v9644
        %v9646 = vpop.f32.mrf.mxu0
        %v9647 = vadd.f32 %v8455, %v9646
        %9648 = vmatmul.bf16.gmra.mxu0 %v8932
        %v9649 = vpop.f32.mrf.mxu0
        %v9650 = vadd.f32 %v8455, %v9649
        %v9651 = vpop.f32.mrf.mxu0
        %v9652 = vadd.f32 %v8455, %v9651
        %9653 = vmatmul.bf16.gmra.mxu0 %v8941
        %v9654 = vpop.f32.mrf.mxu0
        %v9655 = vadd.f32 %v8455, %v9654
        %v9656 = vpop.f32.mrf.mxu0
        %v9657 = vadd.f32 %v8455, %v9656
        %9658 = vmatmul.bf16.gmra.mxu0 %v8950
        %v9659 = vpop.f32.mrf.mxu0
        %v9660 = vadd.f32 %v8455, %v9659
        %v9661 = vpop.f32.mrf.mxu0
        %v9662 = vadd.f32 %v8455, %v9661
        %9663 = vmatmul.bf16.gmra.mxu0 %v8959
        %v9664 = vpop.f32.mrf.mxu0
        %v9665 = vadd.f32 %v8455, %v9664
        %v9666 = vpop.f32.mrf.mxu0
        %v9667 = vadd.f32 %v8455, %v9666
        %9668 = vmatmul.bf16.gmra.mxu0 %v8968
        %v9669 = vpop.f32.mrf.mxu0
        %v9670 = vadd.f32 %v8455, %v9669
        %v9671 = vpop.f32.mrf.mxu0
        %v9672 = vadd.f32 %v8455, %v9671
        %9673 = vmatmul.bf16.gmra.mxu0 %v8977
        %v9674 = vpop.f32.mrf.mxu0
        %v9675 = vadd.f32 %v8455, %v9674
        %v9676 = vpop.f32.mrf.mxu0
        %v9677 = vadd.f32 %v8455, %v9676
        %9678 = vmatmul.bf16.gmra.mxu0 %v8986
        %v9679 = vpop.f32.mrf.mxu0
        %v9680 = vadd.f32 %v8455, %v9679
        %v9681 = vpop.f32.mrf.mxu0
        %v9682 = vadd.f32 %v8455, %v9681
        %9683 = vmatmul.bf16.gmra.mxu0 %v8995
        %v9684 = vpop.f32.mrf.mxu0
        %v9685 = vadd.f32 %v8455, %v9684
        %v9686 = vpop.f32.mrf.mxu0
        %v9687 = vadd.f32 %v8455, %v9686
        %9688 = vmatmul.bf16.gmra.mxu0 %v9004
        %v9689 = vpop.f32.mrf.mxu0
        %v9690 = vadd.f32 %v8455, %v9689
        %v9691 = vpop.f32.mrf.mxu0
        %v9692 = vadd.f32 %v8455, %v9691
        %9693 = vmatmul.bf16.gmra.mxu0 %v9013
        %v9694 = vpop.f32.mrf.mxu0
        %v9695 = vadd.f32 %v8455, %v9694
        %v9696 = vpop.f32.mrf.mxu0
        %v9697 = vadd.f32 %v8455, %v9696
        %9698 = vmatmul.bf16.gmra.mxu0 %v9022
        %v9699 = vpop.f32.mrf.mxu0
        %v9700 = vadd.f32 %v8455, %v9699
        %v9701 = vpop.f32.mrf.mxu0
        %v9702 = vadd.f32 %v8455, %v9701
        %9703 = vmatmul.bf16.gmra.mxu0 %v9031
        %v9704 = vpop.f32.mrf.mxu0
        %v9705 = vadd.f32 %v8455, %v9704
        %v9706 = vpop.f32.mrf.mxu0
        %v9707 = vadd.f32 %v8455, %v9706
        %9708 = vmatmul.bf16.gmra.mxu0 %v9040
        %v9709 = vpop.f32.mrf.mxu0
        %v9710 = vadd.f32 %v8455, %v9709
        %v9711 = vpop.f32.mrf.mxu0
        %v9712 = vadd.f32 %v8455, %v9711
        %9713 = vdwg.mxu0
        %9714 = vmatpush.bf16.msra.mxu0 %v9496
        %9715 = vmatpush.bf16.msra.mxu0 %v9495
        %9716 = vmatpush.bf16.msra.mxu0 %v9494
        %9717 = vmatpush.bf16.msra.mxu0 %v9493
        %9718 = vmatpush.bf16.msra.mxu0 %v9492
        %9719 = vmatpush.bf16.msra.mxu0 %v9491
        %9720 = vmatpush.bf16.msra.mxu0 %v9490
        %9721 = vmatpush.bf16.msra.mxu0 %v9489
        %9722 = vmatmul.bf16.gmra.mxu0 %v8906
        %v9723 = vpop.f32.mrf.mxu0
        %v9724 = vadd.f32 %v9635, %v9723
        %v9725 = vpop.f32.mrf.mxu0
        %v9726 = vadd.f32 %v9637, %v9725
        %9727 = vmatmul.bf16.gmra.mxu0 %v8915
        %v9728 = vpop.f32.mrf.mxu0
        %v9729 = vadd.f32 %v9640, %v9728
        %v9730 = vpop.f32.mrf.mxu0
        %v9731 = vadd.f32 %v9642, %v9730
        %9732 = vmatmul.bf16.gmra.mxu0 %v8924
        %v9733 = vpop.f32.mrf.mxu0
        %v9734 = vadd.f32 %v9645, %v9733
        %v9735 = vpop.f32.mrf.mxu0
        %v9736 = vadd.f32 %v9647, %v9735
        %9737 = vmatmul.bf16.gmra.mxu0 %v8933
        %v9738 = vpop.f32.mrf.mxu0
        %v9739 = vadd.f32 %v9650, %v9738
        %v9740 = vpop.f32.mrf.mxu0
        %v9741 = vadd.f32 %v9652, %v9740
        %9742 = vmatmul.bf16.gmra.mxu0 %v8942
        %v9743 = vpop.f32.mrf.mxu0
        %v9744 = vadd.f32 %v9655, %v9743
        %v9745 = vpop.f32.mrf.mxu0
        %v9746 = vadd.f32 %v9657, %v9745
        %9747 = vmatmul.bf16.gmra.mxu0 %v8951
        %v9748 = vpop.f32.mrf.mxu0
        %v9749 = vadd.f32 %v9660, %v9748
        %v9750 = vpop.f32.mrf.mxu0
        %v9751 = vadd.f32 %v9662, %v9750
        %9752 = vmatmul.bf16.gmra.mxu0 %v8960
        %v9753 = vpop.f32.mrf.mxu0
        %v9754 = vadd.f32 %v9665, %v9753
        %v9755 = vpop.f32.mrf.mxu0
        %v9756 = vadd.f32 %v9667, %v9755
        %9757 = vmatmul.bf16.gmra.mxu0 %v8969
        %v9758 = vpop.f32.mrf.mxu0
        %v9759 = vadd.f32 %v9670, %v9758
        %v9760 = vpop.f32.mrf.mxu0
        %v9761 = vadd.f32 %v9672, %v9760
        %9762 = vmatmul.bf16.gmra.mxu0 %v8978
        %v9763 = vpop.f32.mrf.mxu0
        %v9764 = vadd.f32 %v9675, %v9763
        %v9765 = vpop.f32.mrf.mxu0
        %v9766 = vadd.f32 %v9677, %v9765
        %9767 = vmatmul.bf16.gmra.mxu0 %v8987
        %v9768 = vpop.f32.mrf.mxu0
        %v9769 = vadd.f32 %v9680, %v9768
        %v9770 = vpop.f32.mrf.mxu0
        %v9771 = vadd.f32 %v9682, %v9770
        %9772 = vmatmul.bf16.gmra.mxu0 %v8996
        %v9773 = vpop.f32.mrf.mxu0
        %v9774 = vadd.f32 %v9685, %v9773
        %v9775 = vpop.f32.mrf.mxu0
        %v9776 = vadd.f32 %v9687, %v9775
        %9777 = vmatmul.bf16.gmra.mxu0 %v9005
        %v9778 = vpop.f32.mrf.mxu0
        %v9779 = vadd.f32 %v9690, %v9778
        %v9780 = vpop.f32.mrf.mxu0
        %v9781 = vadd.f32 %v9692, %v9780
        %9782 = vmatmul.bf16.gmra.mxu0 %v9014
        %v9783 = vpop.f32.mrf.mxu0
        %v9784 = vadd.f32 %v9695, %v9783
        %v9785 = vpop.f32.mrf.mxu0
        %v9786 = vadd.f32 %v9697, %v9785
        %9787 = vmatmul.bf16.gmra.mxu0 %v9023
        %v9788 = vpop.f32.mrf.mxu0
        %v9789 = vadd.f32 %v9700, %v9788
        %v9790 = vpop.f32.mrf.mxu0
        %v9791 = vadd.f32 %v9702, %v9790
        %9792 = vmatmul.bf16.gmra.mxu0 %v9032
        %v9793 = vpop.f32.mrf.mxu0
        %v9794 = vadd.f32 %v9705, %v9793
        %v9795 = vpop.f32.mrf.mxu0
        %v9796 = vadd.f32 %v9707, %v9795
        %9797 = vmatmul.bf16.gmra.mxu0 %v9041
        %v9798 = vpop.f32.mrf.mxu0
        %v9799 = vadd.f32 %v9710, %v9798
        %v9800 = vpop.f32.mrf.mxu0
        %v9801 = vadd.f32 %v9712, %v9800
        %9802 = vdwg.mxu0
        %9803 = vmatpush.bf16.msra.mxu0 %v9504
        %9804 = vmatpush.bf16.msra.mxu0 %v9503
        %9805 = vmatpush.bf16.msra.mxu0 %v9502
        %9806 = vmatpush.bf16.msra.mxu0 %v9501
        %9807 = vmatpush.bf16.msra.mxu0 %v9500
        %9808 = vmatpush.bf16.msra.mxu0 %v9499
        %9809 = vmatpush.bf16.msra.mxu0 %v9498
        %9810 = vmatpush.bf16.msra.mxu0 %v9497
        %9811 = vmatmul.bf16.gmra.mxu0 %v8907
        %v9812 = vpop.f32.mrf.mxu0
        %v9813 = vadd.f32 %v9724, %v9812
        %v9814 = vpop.f32.mrf.mxu0
        %v9815 = vadd.f32 %v9726, %v9814
        %9816 = vmatmul.bf16.gmra.mxu0 %v8916
        %v9817 = vpop.f32.mrf.mxu0
        %v9818 = vadd.f32 %v9729, %v9817
        %v9819 = vpop.f32.mrf.mxu0
        %v9820 = vadd.f32 %v9731, %v9819
        %9821 = vmatmul.bf16.gmra.mxu0 %v8925
        %v9822 = vpop.f32.mrf.mxu0
        %v9823 = vadd.f32 %v9734, %v9822
        %v9824 = vpop.f32.mrf.mxu0
        %v9825 = vadd.f32 %v9736, %v9824
        %9826 = vmatmul.bf16.gmra.mxu0 %v8934
        %v9827 = vpop.f32.mrf.mxu0
        %v9828 = vadd.f32 %v9739, %v9827
        %v9829 = vpop.f32.mrf.mxu0
        %v9830 = vadd.f32 %v9741, %v9829
        %9831 = vmatmul.bf16.gmra.mxu0 %v8943
        %v9832 = vpop.f32.mrf.mxu0
        %v9833 = vadd.f32 %v9744, %v9832
        %v9834 = vpop.f32.mrf.mxu0
        %v9835 = vadd.f32 %v9746, %v9834
        %9836 = vmatmul.bf16.gmra.mxu0 %v8952
        %v9837 = vpop.f32.mrf.mxu0
        %v9838 = vadd.f32 %v9749, %v9837
        %v9839 = vpop.f32.mrf.mxu0
        %v9840 = vadd.f32 %v9751, %v9839
        %9841 = vmatmul.bf16.gmra.mxu0 %v8961
        %v9842 = vpop.f32.mrf.mxu0
        %v9843 = vadd.f32 %v9754, %v9842
        %v9844 = vpop.f32.mrf.mxu0
        %v9845 = vadd.f32 %v9756, %v9844
        %9846 = vmatmul.bf16.gmra.mxu0 %v8970
        %v9847 = vpop.f32.mrf.mxu0
        %v9848 = vadd.f32 %v9759, %v9847
        %v9849 = vpop.f32.mrf.mxu0
        %v9850 = vadd.f32 %v9761, %v9849
        %9851 = vmatmul.bf16.gmra.mxu0 %v8979
        %v9852 = vpop.f32.mrf.mxu0
        %v9853 = vadd.f32 %v9764, %v9852
        %v9854 = vpop.f32.mrf.mxu0
        %v9855 = vadd.f32 %v9766, %v9854
        %9856 = vmatmul.bf16.gmra.mxu0 %v8988
        %v9857 = vpop.f32.mrf.mxu0
        %v9858 = vadd.f32 %v9769, %v9857
        %v9859 = vpop.f32.mrf.mxu0
        %v9860 = vadd.f32 %v9771, %v9859
        %9861 = vmatmul.bf16.gmra.mxu0 %v8997
        %v9862 = vpop.f32.mrf.mxu0
        %v9863 = vadd.f32 %v9774, %v9862
        %v9864 = vpop.f32.mrf.mxu0
        %v9865 = vadd.f32 %v9776, %v9864
        %9866 = vmatmul.bf16.gmra.mxu0 %v9006
        %v9867 = vpop.f32.mrf.mxu0
        %v9868 = vadd.f32 %v9779, %v9867
        %v9869 = vpop.f32.mrf.mxu0
        %v9870 = vadd.f32 %v9781, %v9869
        %9871 = vmatmul.bf16.gmra.mxu0 %v9015
        %v9872 = vpop.f32.mrf.mxu0
        %v9873 = vadd.f32 %v9784, %v9872
        %v9874 = vpop.f32.mrf.mxu0
        %v9875 = vadd.f32 %v9786, %v9874
        %9876 = vmatmul.bf16.gmra.mxu0 %v9024
        %v9877 = vpop.f32.mrf.mxu0
        %v9878 = vadd.f32 %v9789, %v9877
        %v9879 = vpop.f32.mrf.mxu0
        %v9880 = vadd.f32 %v9791, %v9879
        %9881 = vmatmul.bf16.gmra.mxu0 %v9033
        %v9882 = vpop.f32.mrf.mxu0
        %v9883 = vadd.f32 %v9794, %v9882
        %v9884 = vpop.f32.mrf.mxu0
        %v9885 = vadd.f32 %v9796, %v9884
        %9886 = vmatmul.bf16.gmra.mxu0 %v9042
        %v9887 = vpop.f32.mrf.mxu0
        %v9888 = vadd.f32 %v9799, %v9887
        %v9889 = vpop.f32.mrf.mxu0
        %v9890 = vadd.f32 %v9801, %v9889
        %9891 = vdwg.mxu0
        %9892 = vmatpush.bf16.msra.mxu0 %v9512
        %9893 = vmatpush.bf16.msra.mxu0 %v9511
        %9894 = vmatpush.bf16.msra.mxu0 %v9510
        %9895 = vmatpush.bf16.msra.mxu0 %v9509
        %9896 = vmatpush.bf16.msra.mxu0 %v9508
        %9897 = vmatpush.bf16.msra.mxu0 %v9507
        %9898 = vmatpush.bf16.msra.mxu0 %v9506
        %9899 = vmatpush.bf16.msra.mxu0 %v9505
        %9900 = vmatmul.bf16.gmra.mxu0 %v8908
        %v9901 = vpop.f32.mrf.mxu0
        %v9902 = vadd.f32 %v9813, %v9901
        %v9903 = vpop.f32.mrf.mxu0
        %v9904 = vadd.f32 %v9815, %v9903
        %9905 = vmatmul.bf16.gmra.mxu0 %v8917
        %v9906 = vpop.f32.mrf.mxu0
        %v9907 = vadd.f32 %v9818, %v9906
        %v9908 = vpop.f32.mrf.mxu0
        %v9909 = vadd.f32 %v9820, %v9908
        %9910 = vmatmul.bf16.gmra.mxu0 %v8926
        %v9911 = vpop.f32.mrf.mxu0
        %v9912 = vadd.f32 %v9823, %v9911
        %v9913 = vpop.f32.mrf.mxu0
        %v9914 = vadd.f32 %v9825, %v9913
        %9915 = vmatmul.bf16.gmra.mxu0 %v8935
        %v9916 = vpop.f32.mrf.mxu0
        %v9917 = vadd.f32 %v9828, %v9916
        %v9918 = vpop.f32.mrf.mxu0
        %v9919 = vadd.f32 %v9830, %v9918
        %9920 = vmatmul.bf16.gmra.mxu0 %v8944
        %v9921 = vpop.f32.mrf.mxu0
        %v9922 = vadd.f32 %v9833, %v9921
        %v9923 = vpop.f32.mrf.mxu0
        %v9924 = vadd.f32 %v9835, %v9923
        %9925 = vmatmul.bf16.gmra.mxu0 %v8953
        %v9926 = vpop.f32.mrf.mxu0
        %v9927 = vadd.f32 %v9838, %v9926
        %v9928 = vpop.f32.mrf.mxu0
        %v9929 = vadd.f32 %v9840, %v9928
        %9930 = vmatmul.bf16.gmra.mxu0 %v8962
        %v9931 = vpop.f32.mrf.mxu0
        %v9932 = vadd.f32 %v9843, %v9931
        %v9933 = vpop.f32.mrf.mxu0
        %v9934 = vadd.f32 %v9845, %v9933
        %9935 = vmatmul.bf16.gmra.mxu0 %v8971
        %v9936 = vpop.f32.mrf.mxu0
        %v9937 = vadd.f32 %v9848, %v9936
        %v9938 = vpop.f32.mrf.mxu0
        %v9939 = vadd.f32 %v9850, %v9938
        %9940 = vmatmul.bf16.gmra.mxu0 %v8980
        %v9941 = vpop.f32.mrf.mxu0
        %v9942 = vadd.f32 %v9853, %v9941
        %v9943 = vpop.f32.mrf.mxu0
        %v9944 = vadd.f32 %v9855, %v9943
        %9945 = vmatmul.bf16.gmra.mxu0 %v8989
        %v9946 = vpop.f32.mrf.mxu0
        %v9947 = vadd.f32 %v9858, %v9946
        %v9948 = vpop.f32.mrf.mxu0
        %v9949 = vadd.f32 %v9860, %v9948
        %9950 = vmatmul.bf16.gmra.mxu0 %v8998
        %v9951 = vpop.f32.mrf.mxu0
        %v9952 = vadd.f32 %v9863, %v9951
        %v9953 = vpop.f32.mrf.mxu0
        %v9954 = vadd.f32 %v9865, %v9953
        %9955 = vmatmul.bf16.gmra.mxu0 %v9007
        %v9956 = vpop.f32.mrf.mxu0
        %v9957 = vadd.f32 %v9868, %v9956
        %v9958 = vpop.f32.mrf.mxu0
        %v9959 = vadd.f32 %v9870, %v9958
        %9960 = vmatmul.bf16.gmra.mxu0 %v9016
        %v9961 = vpop.f32.mrf.mxu0
        %v9962 = vadd.f32 %v9873, %v9961
        %v9963 = vpop.f32.mrf.mxu0
        %v9964 = vadd.f32 %v9875, %v9963
        %9965 = vmatmul.bf16.gmra.mxu0 %v9025
        %v9966 = vpop.f32.mrf.mxu0
        %v9967 = vadd.f32 %v9878, %v9966
        %v9968 = vpop.f32.mrf.mxu0
        %v9969 = vadd.f32 %v9880, %v9968
        %9970 = vmatmul.bf16.gmra.mxu0 %v9034
        %v9971 = vpop.f32.mrf.mxu0
        %v9972 = vadd.f32 %v9883, %v9971
        %v9973 = vpop.f32.mrf.mxu0
        %v9974 = vadd.f32 %v9885, %v9973
        %9975 = vmatmul.bf16.gmra.mxu0 %v9043
        %v9976 = vpop.f32.mrf.mxu0
        %v9977 = vadd.f32 %v9888, %v9976
        %v9978 = vpop.f32.mrf.mxu0
        %v9979 = vadd.f32 %v9890, %v9978
        %9980 = vdwg.mxu0
        %9981 = vmatpush.bf16.msra.mxu0 %v9520
        %9982 = vmatpush.bf16.msra.mxu0 %v9519
        %9983 = vmatpush.bf16.msra.mxu0 %v9518
        %9984 = vmatpush.bf16.msra.mxu0 %v9517
        %9985 = vmatpush.bf16.msra.mxu0 %v9516
        %9986 = vmatpush.bf16.msra.mxu0 %v9515
        %9987 = vmatpush.bf16.msra.mxu0 %v9514
        %9988 = vmatpush.bf16.msra.mxu0 %v9513
        %9989 = vmatmul.bf16.gmra.mxu0 %v8909
        %v9990 = vpop.f32.mrf.mxu0
        %v9991 = vadd.f32 %v9902, %v9990
        %v9992 = vpop.f32.mrf.mxu0
        %v9993 = vadd.f32 %v9904, %v9992
        %9994 = vmatmul.bf16.gmra.mxu0 %v8918
        %v9995 = vpop.f32.mrf.mxu0
        %v9996 = vadd.f32 %v9907, %v9995
        %v9997 = vpop.f32.mrf.mxu0
        %v9998 = vadd.f32 %v9909, %v9997
        %9999 = vmatmul.bf16.gmra.mxu0 %v8927
        %v10000 = vpop.f32.mrf.mxu0
        %v10001 = vadd.f32 %v9912, %v10000
        %v10002 = vpop.f32.mrf.mxu0
        %v10003 = vadd.f32 %v9914, %v10002
        %10004 = vmatmul.bf16.gmra.mxu0 %v8936
        %v10005 = vpop.f32.mrf.mxu0
        %v10006 = vadd.f32 %v9917, %v10005
        %v10007 = vpop.f32.mrf.mxu0
        %v10008 = vadd.f32 %v9919, %v10007
        %10009 = vmatmul.bf16.gmra.mxu0 %v8945
        %v10010 = vpop.f32.mrf.mxu0
        %v10011 = vadd.f32 %v9922, %v10010
        %v10012 = vpop.f32.mrf.mxu0
        %v10013 = vadd.f32 %v9924, %v10012
        %10014 = vmatmul.bf16.gmra.mxu0 %v8954
        %v10015 = vpop.f32.mrf.mxu0
        %v10016 = vadd.f32 %v9927, %v10015
        %v10017 = vpop.f32.mrf.mxu0
        %v10018 = vadd.f32 %v9929, %v10017
        %10019 = vmatmul.bf16.gmra.mxu0 %v8963
        %v10020 = vpop.f32.mrf.mxu0
        %v10021 = vadd.f32 %v9932, %v10020
        %v10022 = vpop.f32.mrf.mxu0
        %v10023 = vadd.f32 %v9934, %v10022
        %10024 = vmatmul.bf16.gmra.mxu0 %v8972
        %v10025 = vpop.f32.mrf.mxu0
        %v10026 = vadd.f32 %v9937, %v10025
        %v10027 = vpop.f32.mrf.mxu0
        %v10028 = vadd.f32 %v9939, %v10027
        %10029 = vmatmul.bf16.gmra.mxu0 %v8981
        %v10030 = vpop.f32.mrf.mxu0
        %v10031 = vadd.f32 %v9942, %v10030
        %v10032 = vpop.f32.mrf.mxu0
        %v10033 = vadd.f32 %v9944, %v10032
        %10034 = vmatmul.bf16.gmra.mxu0 %v8990
        %v10035 = vpop.f32.mrf.mxu0
        %v10036 = vadd.f32 %v9947, %v10035
        %v10037 = vpop.f32.mrf.mxu0
        %v10038 = vadd.f32 %v9949, %v10037
        %10039 = vmatmul.bf16.gmra.mxu0 %v8999
        %v10040 = vpop.f32.mrf.mxu0
        %v10041 = vadd.f32 %v9952, %v10040
        %v10042 = vpop.f32.mrf.mxu0
        %v10043 = vadd.f32 %v9954, %v10042
        %10044 = vmatmul.bf16.gmra.mxu0 %v9008
        %v10045 = vpop.f32.mrf.mxu0
        %v10046 = vadd.f32 %v9957, %v10045
        %v10047 = vpop.f32.mrf.mxu0
        %v10048 = vadd.f32 %v9959, %v10047
        %10049 = vmatmul.bf16.gmra.mxu0 %v9017
        %v10050 = vpop.f32.mrf.mxu0
        %v10051 = vadd.f32 %v9962, %v10050
        %v10052 = vpop.f32.mrf.mxu0
        %v10053 = vadd.f32 %v9964, %v10052
        %10054 = vmatmul.bf16.gmra.mxu0 %v9026
        %v10055 = vpop.f32.mrf.mxu0
        %v10056 = vadd.f32 %v9967, %v10055
        %v10057 = vpop.f32.mrf.mxu0
        %v10058 = vadd.f32 %v9969, %v10057
        %10059 = vmatmul.bf16.gmra.mxu0 %v9035
        %v10060 = vpop.f32.mrf.mxu0
        %v10061 = vadd.f32 %v9972, %v10060
        %v10062 = vpop.f32.mrf.mxu0
        %v10063 = vadd.f32 %v9974, %v10062
        %10064 = vmatmul.bf16.gmra.mxu0 %v9044
        %v10065 = vpop.f32.mrf.mxu0
        %v10066 = vadd.f32 %v9977, %v10065
        %v10067 = vpop.f32.mrf.mxu0
        %v10068 = vadd.f32 %v9979, %v10067
        %10069 = vdwg.mxu0
        %10070 = vmatpush.bf16.msra.mxu0 %v9528
        %10071 = vmatpush.bf16.msra.mxu0 %v9527
        %10072 = vmatpush.bf16.msra.mxu0 %v9526
        %10073 = vmatpush.bf16.msra.mxu0 %v9525
        %10074 = vmatpush.bf16.msra.mxu0 %v9524
        %10075 = vmatpush.bf16.msra.mxu0 %v9523
        %10076 = vmatpush.bf16.msra.mxu0 %v9522
        %10077 = vmatpush.bf16.msra.mxu0 %v9521
        %10078 = vmatmul.bf16.gmra.mxu0 %v8910
        %v10079 = vpop.f32.mrf.mxu0
        %v10080 = vadd.f32 %v9991, %v10079
        %v10081 = vpop.f32.mrf.mxu0
        %v10082 = vadd.f32 %v9993, %v10081
        %10083 = vmatmul.bf16.gmra.mxu0 %v8919
        %v10084 = vpop.f32.mrf.mxu0
        %v10085 = vadd.f32 %v9996, %v10084
        %v10086 = vpop.f32.mrf.mxu0
        %v10087 = vadd.f32 %v9998, %v10086
        %10088 = vmatmul.bf16.gmra.mxu0 %v8928
        %v10089 = vpop.f32.mrf.mxu0
        %v10090 = vadd.f32 %v10001, %v10089
        %v10091 = vpop.f32.mrf.mxu0
        %v10092 = vadd.f32 %v10003, %v10091
        %10093 = vmatmul.bf16.gmra.mxu0 %v8937
        %v10094 = vpop.f32.mrf.mxu0
        %v10095 = vadd.f32 %v10006, %v10094
        %v10096 = vpop.f32.mrf.mxu0
        %v10097 = vadd.f32 %v10008, %v10096
        %10098 = vmatmul.bf16.gmra.mxu0 %v8946
        %v10099 = vpop.f32.mrf.mxu0
        %v10100 = vadd.f32 %v10011, %v10099
        %v10101 = vpop.f32.mrf.mxu0
        %v10102 = vadd.f32 %v10013, %v10101
        %10103 = vmatmul.bf16.gmra.mxu0 %v8955
        %v10104 = vpop.f32.mrf.mxu0
        %v10105 = vadd.f32 %v10016, %v10104
        %v10106 = vpop.f32.mrf.mxu0
        %v10107 = vadd.f32 %v10018, %v10106
        %10108 = vmatmul.bf16.gmra.mxu0 %v8964
        %v10109 = vpop.f32.mrf.mxu0
        %v10110 = vadd.f32 %v10021, %v10109
        %v10111 = vpop.f32.mrf.mxu0
        %v10112 = vadd.f32 %v10023, %v10111
        %10113 = vmatmul.bf16.gmra.mxu0 %v8973
        %v10114 = vpop.f32.mrf.mxu0
        %v10115 = vadd.f32 %v10026, %v10114
        %v10116 = vpop.f32.mrf.mxu0
        %v10117 = vadd.f32 %v10028, %v10116
        %10118 = vmatmul.bf16.gmra.mxu0 %v8982
        %v10119 = vpop.f32.mrf.mxu0
        %v10120 = vadd.f32 %v10031, %v10119
        %v10121 = vpop.f32.mrf.mxu0
        %v10122 = vadd.f32 %v10033, %v10121
        %10123 = vmatmul.bf16.gmra.mxu0 %v8991
        %v10124 = vpop.f32.mrf.mxu0
        %v10125 = vadd.f32 %v10036, %v10124
        %v10126 = vpop.f32.mrf.mxu0
        %v10127 = vadd.f32 %v10038, %v10126
        %10128 = vmatmul.bf16.gmra.mxu0 %v9000
        %v10129 = vpop.f32.mrf.mxu0
        %v10130 = vadd.f32 %v10041, %v10129
        %v10131 = vpop.f32.mrf.mxu0
        %v10132 = vadd.f32 %v10043, %v10131
        %10133 = vmatmul.bf16.gmra.mxu0 %v9009
        %v10134 = vpop.f32.mrf.mxu0
        %v10135 = vadd.f32 %v10046, %v10134
        %v10136 = vpop.f32.mrf.mxu0
        %v10137 = vadd.f32 %v10048, %v10136
        %10138 = vmatmul.bf16.gmra.mxu0 %v9018
        %v10139 = vpop.f32.mrf.mxu0
        %v10140 = vadd.f32 %v10051, %v10139
        %v10141 = vpop.f32.mrf.mxu0
        %v10142 = vadd.f32 %v10053, %v10141
        %10143 = vmatmul.bf16.gmra.mxu0 %v9027
        %v10144 = vpop.f32.mrf.mxu0
        %v10145 = vadd.f32 %v10056, %v10144
        %v10146 = vpop.f32.mrf.mxu0
        %v10147 = vadd.f32 %v10058, %v10146
        %10148 = vmatmul.bf16.gmra.mxu0 %v9036
        %v10149 = vpop.f32.mrf.mxu0
        %v10150 = vadd.f32 %v10061, %v10149
        %v10151 = vpop.f32.mrf.mxu0
        %v10152 = vadd.f32 %v10063, %v10151
        %10153 = vmatmul.bf16.gmra.mxu0 %v9045
        %v10154 = vpop.f32.mrf.mxu0
        %v10155 = vadd.f32 %v10066, %v10154
        %v10156 = vpop.f32.mrf.mxu0
        %v10157 = vadd.f32 %v10068, %v10156
        %10158 = vdwg.mxu0
        %10159 = vmatpush.bf16.msra.mxu0 %v9536
        %10160 = vmatpush.bf16.msra.mxu0 %v9535
        %10161 = vmatpush.bf16.msra.mxu0 %v9534
        %10162 = vmatpush.bf16.msra.mxu0 %v9533
        %10163 = vmatpush.bf16.msra.mxu0 %v9532
        %10164 = vmatpush.bf16.msra.mxu0 %v9531
        %10165 = vmatpush.bf16.msra.mxu0 %v9530
        %10166 = vmatpush.bf16.msra.mxu0 %v9529
        %10167 = vmatmul.bf16.gmra.mxu0 %v8911
        %v10168 = vpop.f32.mrf.mxu0
        %v10169 = vadd.f32 %v10080, %v10168
        %v10170 = vpop.f32.mrf.mxu0
        %v10171 = vadd.f32 %v10082, %v10170
        %10172 = vmatmul.bf16.gmra.mxu0 %v8920
        %v10173 = vpop.f32.mrf.mxu0
        %v10174 = vadd.f32 %v10085, %v10173
        %v10175 = vpop.f32.mrf.mxu0
        %v10176 = vadd.f32 %v10087, %v10175
        %10177 = vmatmul.bf16.gmra.mxu0 %v8929
        %v10178 = vpop.f32.mrf.mxu0
        %v10179 = vadd.f32 %v10090, %v10178
        %v10180 = vpop.f32.mrf.mxu0
        %v10181 = vadd.f32 %v10092, %v10180
        %10182 = vmatmul.bf16.gmra.mxu0 %v8938
        %v10183 = vpop.f32.mrf.mxu0
        %v10184 = vadd.f32 %v10095, %v10183
        %v10185 = vpop.f32.mrf.mxu0
        %v10186 = vadd.f32 %v10097, %v10185
        %10187 = vmatmul.bf16.gmra.mxu0 %v8947
        %v10188 = vpop.f32.mrf.mxu0
        %v10189 = vadd.f32 %v10100, %v10188
        %v10190 = vpop.f32.mrf.mxu0
        %v10191 = vadd.f32 %v10102, %v10190
        %10192 = vmatmul.bf16.gmra.mxu0 %v8956
        %v10193 = vpop.f32.mrf.mxu0
        %v10194 = vadd.f32 %v10105, %v10193
        %v10195 = vpop.f32.mrf.mxu0
        %v10196 = vadd.f32 %v10107, %v10195
        %10197 = vmatmul.bf16.gmra.mxu0 %v8965
        %v10198 = vpop.f32.mrf.mxu0
        %v10199 = vadd.f32 %v10110, %v10198
        %v10200 = vpop.f32.mrf.mxu0
        %v10201 = vadd.f32 %v10112, %v10200
        %10202 = vmatmul.bf16.gmra.mxu0 %v8974
        %v10203 = vpop.f32.mrf.mxu0
        %v10204 = vadd.f32 %v10115, %v10203
        %v10205 = vpop.f32.mrf.mxu0
        %v10206 = vadd.f32 %v10117, %v10205
        %10207 = vmatmul.bf16.gmra.mxu0 %v8983
        %v10208 = vpop.f32.mrf.mxu0
        %v10209 = vadd.f32 %v10120, %v10208
        %v10210 = vpop.f32.mrf.mxu0
        %v10211 = vadd.f32 %v10122, %v10210
        %10212 = vmatmul.bf16.gmra.mxu0 %v8992
        %v10213 = vpop.f32.mrf.mxu0
        %v10214 = vadd.f32 %v10125, %v10213
        %v10215 = vpop.f32.mrf.mxu0
        %v10216 = vadd.f32 %v10127, %v10215
        %10217 = vmatmul.bf16.gmra.mxu0 %v9001
        %v10218 = vpop.f32.mrf.mxu0
        %v10219 = vadd.f32 %v10130, %v10218
        %v10220 = vpop.f32.mrf.mxu0
        %v10221 = vadd.f32 %v10132, %v10220
        %10222 = vmatmul.bf16.gmra.mxu0 %v9010
        %v10223 = vpop.f32.mrf.mxu0
        %v10224 = vadd.f32 %v10135, %v10223
        %v10225 = vpop.f32.mrf.mxu0
        %v10226 = vadd.f32 %v10137, %v10225
        %10227 = vmatmul.bf16.gmra.mxu0 %v9019
        %v10228 = vpop.f32.mrf.mxu0
        %v10229 = vadd.f32 %v10140, %v10228
        %v10230 = vpop.f32.mrf.mxu0
        %v10231 = vadd.f32 %v10142, %v10230
        %10232 = vmatmul.bf16.gmra.mxu0 %v9028
        %v10233 = vpop.f32.mrf.mxu0
        %v10234 = vadd.f32 %v10145, %v10233
        %v10235 = vpop.f32.mrf.mxu0
        %v10236 = vadd.f32 %v10147, %v10235
        %10237 = vmatmul.bf16.gmra.mxu0 %v9037
        %v10238 = vpop.f32.mrf.mxu0
        %v10239 = vadd.f32 %v10150, %v10238
        %v10240 = vpop.f32.mrf.mxu0
        %v10241 = vadd.f32 %v10152, %v10240
        %10242 = vmatmul.bf16.gmra.mxu0 %v9046
        %v10243 = vpop.f32.mrf.mxu0
        %v10244 = vadd.f32 %v10155, %v10243
        %v10245 = vpop.f32.mrf.mxu0
        %v10246 = vadd.f32 %v10157, %v10245
        %10247 = vdwg.mxu0
        %10248 = vmatpush.bf16.msra.mxu0 %v9544
        %10249 = vmatpush.bf16.msra.mxu0 %v9543
        %10250 = vmatpush.bf16.msra.mxu0 %v9542
        %10251 = vmatpush.bf16.msra.mxu0 %v9541
        %10252 = vmatpush.bf16.msra.mxu0 %v9540
        %10253 = vmatpush.bf16.msra.mxu0 %v9539
        %10254 = vmatpush.bf16.msra.mxu0 %v9538
        %10255 = vmatpush.bf16.msra.mxu0 %v9537
        %10256 = vmatmul.bf16.gmra.mxu0 %v8912
        %v10257 = vpop.f32.mrf.mxu0
        %v10258 = vadd.f32 %v10169, %v10257
        %v10259 = vpop.f32.mrf.mxu0
        %v10260 = vadd.f32 %v10171, %v10259
        %10261 = vmatmul.bf16.gmra.mxu0 %v8921
        %v10262 = vpop.f32.mrf.mxu0
        %v10263 = vadd.f32 %v10174, %v10262
        %v10264 = vpop.f32.mrf.mxu0
        %v10265 = vadd.f32 %v10176, %v10264
        %10266 = vmatmul.bf16.gmra.mxu0 %v8930
        %v10267 = vpop.f32.mrf.mxu0
        %v10268 = vadd.f32 %v10179, %v10267
        %v10269 = vpop.f32.mrf.mxu0
        %v10270 = vadd.f32 %v10181, %v10269
        %10271 = vmatmul.bf16.gmra.mxu0 %v8939
        %v10272 = vpop.f32.mrf.mxu0
        %v10273 = vadd.f32 %v10184, %v10272
        %v10274 = vpop.f32.mrf.mxu0
        %v10275 = vadd.f32 %v10186, %v10274
        %10276 = vmatmul.bf16.gmra.mxu0 %v8948
        %v10277 = vpop.f32.mrf.mxu0
        %v10278 = vadd.f32 %v10189, %v10277
        %v10279 = vpop.f32.mrf.mxu0
        %v10280 = vadd.f32 %v10191, %v10279
        %10281 = vmatmul.bf16.gmra.mxu0 %v8957
        %v10282 = vpop.f32.mrf.mxu0
        %v10283 = vadd.f32 %v10194, %v10282
        %v10284 = vpop.f32.mrf.mxu0
        %v10285 = vadd.f32 %v10196, %v10284
        %10286 = vmatmul.bf16.gmra.mxu0 %v8966
        %v10287 = vpop.f32.mrf.mxu0
        %v10288 = vadd.f32 %v10199, %v10287
        %v10289 = vpop.f32.mrf.mxu0
        %v10290 = vadd.f32 %v10201, %v10289
        %10291 = vmatmul.bf16.gmra.mxu0 %v8975
        %v10292 = vpop.f32.mrf.mxu0
        %v10293 = vadd.f32 %v10204, %v10292
        %v10294 = vpop.f32.mrf.mxu0
        %v10295 = vadd.f32 %v10206, %v10294
        %10296 = vmatmul.bf16.gmra.mxu0 %v8984
        %v10297 = vpop.f32.mrf.mxu0
        %v10298 = vadd.f32 %v10209, %v10297
        %v10299 = vpop.f32.mrf.mxu0
        %v10300 = vadd.f32 %v10211, %v10299
        %10301 = vmatmul.bf16.gmra.mxu0 %v8993
        %v10302 = vpop.f32.mrf.mxu0
        %v10303 = vadd.f32 %v10214, %v10302
        %v10304 = vpop.f32.mrf.mxu0
        %v10305 = vadd.f32 %v10216, %v10304
        %10306 = vmatmul.bf16.gmra.mxu0 %v9002
        %v10307 = vpop.f32.mrf.mxu0
        %v10308 = vadd.f32 %v10219, %v10307
        %v10309 = vpop.f32.mrf.mxu0
        %v10310 = vadd.f32 %v10221, %v10309
        %10311 = vmatmul.bf16.gmra.mxu0 %v9011
        %v10312 = vpop.f32.mrf.mxu0
        %v10313 = vadd.f32 %v10224, %v10312
        %v10314 = vpop.f32.mrf.mxu0
        %v10315 = vadd.f32 %v10226, %v10314
        %10316 = vmatmul.bf16.gmra.mxu0 %v9020
        %v10317 = vpop.f32.mrf.mxu0
        %v10318 = vadd.f32 %v10229, %v10317
        %v10319 = vpop.f32.mrf.mxu0
        %v10320 = vadd.f32 %v10231, %v10319
        %10321 = vmatmul.bf16.gmra.mxu0 %v9029
        %v10322 = vpop.f32.mrf.mxu0
        %v10323 = vadd.f32 %v10234, %v10322
        %v10324 = vpop.f32.mrf.mxu0
        %v10325 = vadd.f32 %v10236, %v10324
        %10326 = vmatmul.bf16.gmra.mxu0 %v9038
        %v10327 = vpop.f32.mrf.mxu0
        %v10328 = vadd.f32 %v10239, %v10327
        %v10329 = vpop.f32.mrf.mxu0
        %v10330 = vadd.f32 %v10241, %v10329
        %10331 = vmatmul.bf16.gmra.mxu0 %v9047
        %v10332 = vpop.f32.mrf.mxu0
        %v10333 = vadd.f32 %v10244, %v10332
        %v10334 = vpop.f32.mrf.mxu0
        %v10335 = vadd.f32 %v10246, %v10334
        %10336 = vdwg.mxu0
        %10337 = vmatpush.bf16.msra.mxu0 %v9552
        %10338 = vmatpush.bf16.msra.mxu0 %v9551
        %10339 = vmatpush.bf16.msra.mxu0 %v9550
        %10340 = vmatpush.bf16.msra.mxu0 %v9549
        %10341 = vmatpush.bf16.msra.mxu0 %v9548
        %10342 = vmatpush.bf16.msra.mxu0 %v9547
        %10343 = vmatpush.bf16.msra.mxu0 %v9546
        %10344 = vmatpush.bf16.msra.mxu0 %v9545
        %10345 = vmatmul.bf16.gmra.mxu0 %v8913
        %v10346 = vpop.f32.mrf.mxu0
        %v10347 = vadd.f32 %v10258, %v10346
        %v10348 = vpop.f32.mrf.mxu0
        %v10349 = vadd.f32 %v10260, %v10348
        %10350 = vmatmul.bf16.gmra.mxu0 %v8922
        %v10351 = vpop.f32.mrf.mxu0
        %v10352 = vadd.f32 %v10263, %v10351
        %v10353 = vpop.f32.mrf.mxu0
        %v10354 = vadd.f32 %v10265, %v10353
        %10355 = vmatmul.bf16.gmra.mxu0 %v8931
        %v10356 = vpop.f32.mrf.mxu0
        %v10357 = vadd.f32 %v10268, %v10356
        %v10358 = vpop.f32.mrf.mxu0
        %v10359 = vadd.f32 %v10270, %v10358
        %10360 = vmatmul.bf16.gmra.mxu0 %v8940
        %v10361 = vpop.f32.mrf.mxu0
        %v10362 = vadd.f32 %v10273, %v10361
        %v10363 = vpop.f32.mrf.mxu0
        %v10364 = vadd.f32 %v10275, %v10363
        %10365 = vmatmul.bf16.gmra.mxu0 %v8949
        %v10366 = vpop.f32.mrf.mxu0
        %v10367 = vadd.f32 %v10278, %v10366
        %v10368 = vpop.f32.mrf.mxu0
        %v10369 = vadd.f32 %v10280, %v10368
        %10370 = vmatmul.bf16.gmra.mxu0 %v8958
        %v10371 = vpop.f32.mrf.mxu0
        %v10372 = vadd.f32 %v10283, %v10371
        %v10373 = vpop.f32.mrf.mxu0
        %v10374 = vadd.f32 %v10285, %v10373
        %10375 = vmatmul.bf16.gmra.mxu0 %v8967
        %v10376 = vpop.f32.mrf.mxu0
        %v10377 = vadd.f32 %v10288, %v10376
        %v10378 = vpop.f32.mrf.mxu0
        %v10379 = vadd.f32 %v10290, %v10378
        %10380 = vmatmul.bf16.gmra.mxu0 %v8976
        %v10381 = vpop.f32.mrf.mxu0
        %v10382 = vadd.f32 %v10293, %v10381
        %v10383 = vpop.f32.mrf.mxu0
        %v10384 = vadd.f32 %v10295, %v10383
        %10385 = vmatmul.bf16.gmra.mxu0 %v8985
        %v10386 = vpop.f32.mrf.mxu0
        %v10387 = vadd.f32 %v10298, %v10386
        %v10388 = vpop.f32.mrf.mxu0
        %v10389 = vadd.f32 %v10300, %v10388
        %10390 = vmatmul.bf16.gmra.mxu0 %v8994
        %v10391 = vpop.f32.mrf.mxu0
        %v10392 = vadd.f32 %v10303, %v10391
        %v10393 = vpop.f32.mrf.mxu0
        %v10394 = vadd.f32 %v10305, %v10393
        %10395 = vmatmul.bf16.gmra.mxu0 %v9003
        %v10396 = vpop.f32.mrf.mxu0
        %v10397 = vadd.f32 %v10308, %v10396
        %v10398 = vpop.f32.mrf.mxu0
        %v10399 = vadd.f32 %v10310, %v10398
        %10400 = vmatmul.bf16.gmra.mxu0 %v9012
        %v10401 = vpop.f32.mrf.mxu0
        %v10402 = vadd.f32 %v10313, %v10401
        %v10403 = vpop.f32.mrf.mxu0
        %v10404 = vadd.f32 %v10315, %v10403
        %10405 = vmatmul.bf16.gmra.mxu0 %v9021
        %v10406 = vpop.f32.mrf.mxu0
        %v10407 = vadd.f32 %v10318, %v10406
        %v10408 = vpop.f32.mrf.mxu0
        %v10409 = vadd.f32 %v10320, %v10408
        %10410 = vmatmul.bf16.gmra.mxu0 %v9030
        %v10411 = vpop.f32.mrf.mxu0
        %v10412 = vadd.f32 %v10323, %v10411
        %v10413 = vpop.f32.mrf.mxu0
        %v10414 = vadd.f32 %v10325, %v10413
        %10415 = vmatmul.bf16.gmra.mxu0 %v9039
        %v10416 = vpop.f32.mrf.mxu0
        %v10417 = vadd.f32 %v10328, %v10416
        %v10418 = vpop.f32.mrf.mxu0
        %v10419 = vadd.f32 %v10330, %v10418
        %10420 = vmatmul.bf16.gmra.mxu0 %v9048
        %v10421 = vpop.f32.mrf.mxu0
        %v10422 = vadd.f32 %v10333, %v10421
        %v10423 = vpop.f32.mrf.mxu0
        %v10424 = vadd.f32 %v10335, %v10423
        %10425 = vdwg.mxu0
        %v10426 = vmax.f32 %v10347, 0.0
        %v10427 = vmax.f32 %v10349, 0.0
        %v10428 = vmax.f32 %v10352, 0.0
        %v10429 = vmax.f32 %v10354, 0.0
        %v10430 = vmax.f32 %v10357, 0.0
        %v10431 = vmax.f32 %v10359, 0.0
        %v10432 = vmax.f32 %v10362, 0.0
        %v10433 = vmax.f32 %v10364, 0.0
        %v10434 = vmax.f32 %v10367, 0.0
        %v10435 = vmax.f32 %v10369, 0.0
        %v10436 = vmax.f32 %v10372, 0.0
        %v10437 = vmax.f32 %v10374, 0.0
        %v10438 = vmax.f32 %v10377, 0.0
        %v10439 = vmax.f32 %v10379, 0.0
        %v10440 = vmax.f32 %v10382, 0.0
        %v10441 = vmax.f32 %v10384, 0.0
        %v10442 = vmax.f32 %v10387, 0.0
        %v10443 = vmax.f32 %v10389, 0.0
        %v10444 = vmax.f32 %v10392, 0.0
        %v10445 = vmax.f32 %v10394, 0.0
        %v10446 = vmax.f32 %v10397, 0.0
        %v10447 = vmax.f32 %v10399, 0.0
        %v10448 = vmax.f32 %v10402, 0.0
        %v10449 = vmax.f32 %v10404, 0.0
        %v10450 = vmax.f32 %v10407, 0.0
        %v10451 = vmax.f32 %v10409, 0.0
        %v10452 = vmax.f32 %v10412, 0.0
        %v10453 = vmax.f32 %v10414, 0.0
        %v10454 = vmax.f32 %v10417, 0.0
        %v10455 = vmax.f32 %v10419, 0.0
        %v10456 = vmax.f32 %v10422, 0.0
        %v10457 = vmax.f32 %v10424, 0.0
        %v10458 = vld [vmem:[%s305] sm:$0xff]
        %v10459 = vld [vmem:[%s305 + $0x8] sm:$0xff]
        %v10460 = vld [vmem:[%s305 + $0x10] sm:$0xff]
        %v10461 = vld [vmem:[%s305 + $0x18] sm:$0xff]
        %v10462 = vld [vmem:[%s305 + $0x20] sm:$0xff]
        %v10463 = vld [vmem:[%s305 + $0x28] sm:$0xff]
        %v10464 = vld [vmem:[%s305 + $0x30] sm:$0xff]
        %v10465 = vld [vmem:[%s305 + $0x38] sm:$0xff]
        %v10466 = vld [vmem:[%s305 + $0x40] sm:$0xff]
        %v10467 = vld [vmem:[%s305 + $0x48] sm:$0xff]
        %v10468 = vld [vmem:[%s305 + $0x50] sm:$0xff]
        %v10469 = vld [vmem:[%s305 + $0x58] sm:$0xff]
        %v10470 = vld [vmem:[%s305 + $0x60] sm:$0xff]
        %v10471 = vld [vmem:[%s305 + $0x68] sm:$0xff]
        %v10472 = vld [vmem:[%s305 + $0x70] sm:$0xff]
        %v10473 = vld [vmem:[%s305 + $0x78] sm:$0xff]
        %v10474 = vld [vmem:[%s305 + $0x80] sm:$0xff]
        %v10475 = vld [vmem:[%s305 + $0x88] sm:$0xff]
        %v10476 = vld [vmem:[%s305 + $0x90] sm:$0xff]
        %v10477 = vld [vmem:[%s305 + $0x98] sm:$0xff]
        %v10478 = vld [vmem:[%s305 + $0xa0] sm:$0xff]
        %v10479 = vld [vmem:[%s305 + $0xa8] sm:$0xff]
        %v10480 = vld [vmem:[%s305 + $0xb0] sm:$0xff]
        %v10481 = vld [vmem:[%s305 + $0xb8] sm:$0xff]
        %v10482 = vld [vmem:[%s305 + $0xc0] sm:$0xff]
        %v10483 = vld [vmem:[%s305 + $0xc8] sm:$0xff]
        %v10484 = vld [vmem:[%s305 + $0xd0] sm:$0xff]
        %v10485 = vld [vmem:[%s305 + $0xd8] sm:$0xff]
        %v10486 = vld [vmem:[%s305 + $0xe0] sm:$0xff]
        %v10487 = vld [vmem:[%s305 + $0xe8] sm:$0xff]
        %v10488 = vld [vmem:[%s305 + $0xf0] sm:$0xff]
        %v10489 = vld [vmem:[%s305 + $0xf8] sm:$0xff]
        %v10490 = vadd.f32 %v10458, %v10426
        %v10491 = vadd.f32 %v10459, %v10427
        %v10492 = vadd.f32 %v10460, %v10428
        %v10493 = vadd.f32 %v10461, %v10429
        %v10494 = vadd.f32 %v10462, %v10430
        %v10495 = vadd.f32 %v10463, %v10431
        %v10496 = vadd.f32 %v10464, %v10432
        %v10497 = vadd.f32 %v10465, %v10433
        %v10498 = vadd.f32 %v10466, %v10434
        %v10499 = vadd.f32 %v10467, %v10435
        %v10500 = vadd.f32 %v10468, %v10436
        %v10501 = vadd.f32 %v10469, %v10437
        %v10502 = vadd.f32 %v10470, %v10438
        %v10503 = vadd.f32 %v10471, %v10439
        %v10504 = vadd.f32 %v10472, %v10440
        %v10505 = vadd.f32 %v10473, %v10441
        %v10506 = vadd.f32 %v10474, %v10442
        %v10507 = vadd.f32 %v10475, %v10443
        %v10508 = vadd.f32 %v10476, %v10444
        %v10509 = vadd.f32 %v10477, %v10445
        %v10510 = vadd.f32 %v10478, %v10446
        %v10511 = vadd.f32 %v10479, %v10447
        %v10512 = vadd.f32 %v10480, %v10448
        %v10513 = vadd.f32 %v10481, %v10449
        %v10514 = vadd.f32 %v10482, %v10450
        %v10515 = vadd.f32 %v10483, %v10451
        %v10516 = vadd.f32 %v10484, %v10452
        %v10517 = vadd.f32 %v10485, %v10453
        %v10518 = vadd.f32 %v10486, %v10454
        %v10519 = vadd.f32 %v10487, %v10455
        %v10520 = vadd.f32 %v10488, %v10456
        %v10521 = vadd.f32 %v10489, %v10457
        %10522 = vst [vmem:[%s305] sm:$0xff] %v10490
        %10523 = vst [vmem:[%s305 + $0x8] sm:$0xff] %v10491
        %10524 = vst [vmem:[%s305 + $0x10] sm:$0xff] %v10492
        %10525 = vst [vmem:[%s305 + $0x18] sm:$0xff] %v10493
        %10526 = vst [vmem:[%s305 + $0x20] sm:$0xff] %v10494
        %10527 = vst [vmem:[%s305 + $0x28] sm:$0xff] %v10495
        %10528 = vst [vmem:[%s305 + $0x30] sm:$0xff] %v10496
        %10529 = vst [vmem:[%s305 + $0x38] sm:$0xff] %v10497
        %10530 = vst [vmem:[%s305 + $0x40] sm:$0xff] %v10498
        %10531 = vst [vmem:[%s305 + $0x48] sm:$0xff] %v10499
        %10532 = vst [vmem:[%s305 + $0x50] sm:$0xff] %v10500
        %10533 = vst [vmem:[%s305 + $0x58] sm:$0xff] %v10501
        %10534 = vst [vmem:[%s305 + $0x60] sm:$0xff] %v10502
        %10535 = vst [vmem:[%s305 + $0x68] sm:$0xff] %v10503
        %10536 = vst [vmem:[%s305 + $0x70] sm:$0xff] %v10504
        %10537 = vst [vmem:[%s305 + $0x78] sm:$0xff] %v10505
        %10538 = vst [vmem:[%s305 + $0x80] sm:$0xff] %v10506
        %10539 = vst [vmem:[%s305 + $0x88] sm:$0xff] %v10507
        %10540 = vst [vmem:[%s305 + $0x90] sm:$0xff] %v10508
        %10541 = vst [vmem:[%s305 + $0x98] sm:$0xff] %v10509
        %10542 = vst [vmem:[%s305 + $0xa0] sm:$0xff] %v10510
        %10543 = vst [vmem:[%s305 + $0xa8] sm:$0xff] %v10511
        %10544 = vst [vmem:[%s305 + $0xb0] sm:$0xff] %v10512
        %10545 = vst [vmem:[%s305 + $0xb8] sm:$0xff] %v10513
        %10546 = vst [vmem:[%s305 + $0xc0] sm:$0xff] %v10514
        %10547 = vst [vmem:[%s305 + $0xc8] sm:$0xff] %v10515
        %10548 = vst [vmem:[%s305 + $0xd0] sm:$0xff] %v10516
        %10549 = vst [vmem:[%s305 + $0xd8] sm:$0xff] %v10517
        %10550 = vst [vmem:[%s305 + $0xe0] sm:$0xff] %v10518
        %10551 = vst [vmem:[%s305 + $0xe8] sm:$0xff] %v10519
        %10552 = vst [vmem:[%s305 + $0xf0] sm:$0xff] %v10520
        %10553 = vst [vmem:[%s305 + $0xf8] sm:$0xff] %v10521
        %s10554 = sand.u32 %s183, 1
        %s10555 = scalar_lea.sflag [#allocation6], %s10554
        %s10556 = sand.u32 %s183, 1
        %s10557 = smul.addr %s10556, 256
        %s10558 = scalar_lea.vmem [#allocation9], %s10557
        // Predicated region
        $region57: #{tpu_custom_call.1} parent=47 // pred_check
          %p10559 = pneg %p193
        $region58: #{tpu_custom_call.1} parent=47 // pred_check_branch
          %10561 = sbr.rel (%p10559) target = $region60
        $region59: #{tpu_custom_call.1} parent=47 // pred_region
          %10563 = vsyncadd %s10555, 0
          %s10564 = smul.addr %s23, 32
          %s10565 = smul.addr %s10564, 8
          %s10566 = scalar_lea.hbm %s7, %s10565
          %s10567 = sshll.u32 %s10558, 4
          %s10568 = int_to_ptr.vmem [resolvable:$true] %s10567
          %s10569 = sshll.u32 %s10566, 4
          %s10570 = int_to_ptr.hbm [resolvable:$true] %s10569
          %10575 = dma.vmem_to_hbm [thread:$0]  %s10568, 4096, %s10570, %s10555, 128, 128, 8
        $region60: #{tpu_custom_call.1} parent=47 // pred_fallthru
          _
      $region48: #{tpu_custom_call.1} parent=5 // pred_fallthru
        _
      %p10576 = scmp.le.s32.totalorder 2, %s18
      // Predicated region
      $region61: #{tpu_custom_call.1} parent=5 // pred_check
        %p10577 = pneg %p10576
      $region62: #{tpu_custom_call.1} parent=5 // pred_check_branch
        %10579 = sbr.rel (%p10577) target = $region64
      $region63: #{tpu_custom_call.1} parent=5 // pred_region
        %s10580 = ssub.s32 %s18, 2
        // Predicated region
        $region65: #{tpu_custom_call.1} parent=63 // pred_check
          %p10581 = pneg %p199
        $region66: #{tpu_custom_call.1} parent=63 // pred_check_branch
          %10583 = sbr.rel (%p10581) target = $region68
        $region67: #{tpu_custom_call.1} parent=63 // pred_region
          %s10584 = sand.u32 %s184, 1
          %s10585 = scalar_lea.sflag [#allocation6], %s10584
          %s10586 = sand.u32 %s184, 1
          %s10587 = smul.addr %s10586, 256
          %s10588 = scalar_lea.vmem [#allocation9], %s10587
          %10590 = dma.done %s10585, 4096
        $region68: #{tpu_custom_call.1} parent=63 // pred_fallthru
          _
      $region64: #{tpu_custom_call.1} parent=5 // pred_fallthru
        _
    $region6: #{tpu_custom_call.1} parent=1 // loop_footer
      %s22 = sadd.s32 1, %s18
    $region7: #{tpu_custom_call.1} parent=1 // loop_footer_branch
      %17 = sbr.rel target = $region3
    $region8: #{tpu_custom_call.1} parent=1 // loop_exit
      _
    %10591 = vsyncpa [#allocation5], 1
    %s10592 = scalar_lea.sflag [#allocation5], 1
    %10593 = vsyncpa %s10592, 1
    %10594 = vsyncpa [#allocation8], 1
    %10595 = vsyncpa [#allocation6], 1
    %s10596 = scalar_lea.sflag [#allocation6], 1
    %10597 = vsyncpa %s10596, 1

</llo_original>
